<compile_context>
chip_gen: v7x
topology: tpu7x:2x2x1
jax: 0.10.0
libtpu: 0.0.40
codegen_flags: <defaults>
</compile_context>

<pallas_src>
import math
import numpy as np

import jax
import jax.numpy as jnp
from jax.experimental import pallas as pl
from jax.experimental.pallas import tpu as pltpu

# ---- small, module-consistent hyper-parameters ----
N_BATCH   = 2
IN_CH     = 4
H_IMG     = 16
W_IMG     = 16
D_MODEL   = 32
N_HEAD    = 4
HEAD_DIM  = D_MODEL // N_HEAD
SEQ_LEN   = 8          # <= maxlen (25) of the sinusoidal table
NUM_CHAR  = 40
DIM_FF    = 64
START_TOKEN = NUM_CHAR - 3
PAD_TOKEN   = NUM_CHAR - 2
EPS = 1e-5

C_PAD  = 32                                   # all conv channel dims zero-padded to 32
K_TAPS = 9
KDIM   = K_TAPS * C_PAD                       # 288: merged conv contraction dim
S_MEM  = (H_IMG // 2) * (W_IMG // 2)          # 64 visual tokens per image after the pool
V_PAD  = 128                                  # lane-dense logits width (40 -> 128)
NEG_INF = -1e30


# ----------------------------------------------------------------------------
# In-kernel helpers
# ----------------------------------------------------------------------------
def _layernorm(x, g, b):
    mu = jnp.mean(x, axis=-1, keepdims=True)
    var = jnp.mean((x - mu) ** 2, axis=-1, keepdims=True)
    return (x - mu) * jax.lax.rsqrt(var + EPS) * g + b


def _softmax_rows(s):
    m = jnp.max(s, axis=-1, keepdims=True)
    p = jnp.exp(s - m)
    # divide -> EUP approximate reciprocal (frees the VALU slot)        [review item G]
    return p * pl.reciprocal(jnp.sum(p, axis=-1, keepdims=True), approx=True)


# ----------------------------------------------------------------------------
# Fused forward kernel
# ----------------------------------------------------------------------------
def recognizer_kernel(xc_ref, wcnn_ref, pcnn_ref, m16_ref, m8_ref, psel_ref,
                      emb_ref, smask_ref, cmask_ref, wdec_ref, vdec_ref, out_ref):
    # ------------- CNN encoder (channel-major: (32, N*H*W)) -------------
    def conv_bn_relu(xc, masks, layer, w_img):
        m = xc.shape[1]
        parts = []
        for ky in range(3):
            for kx in range(3):
                tap = ky * 3 + kx
                delta = (ky - 1) * w_img + (kx - 1)      # flat pixel shift of this tap
                if delta == 0:
                    parts.append(xc)                     # centre tap: no shift, no border
                else:
                    # lane roll on the XLU; precomputed border mask zeroes padded taps  [A]
                    shifted = pltpu.roll(xc, (-delta) % m, 1)
                    parts.append(shifted * masks[tap:tap + 1, :])
        win = jnp.concatenate(parts, axis=0)             # (288, m) merged window slab   [B]
        y = jnp.dot(wcnn_ref[layer], win,
                    preferred_element_type=jnp.float32)  # (32, m): one matmul per layer
        pr = pcnn_ref[layer]                             # (32, 8): bias | gamma | beta
        y = y + pr[:, 0:1]

        # train-mode BN statistics on the MXU (two-pass variance)                       [D]
        ones_col = jnp.ones((m, 1), jnp.float32)
        inv_m = 1.0 / m
        mu = jnp.dot(y, ones_col, preferred_element_type=jnp.float32) * inv_m     # (32,1)
        t = y - mu
        var = jnp.dot(t * t, ones_col, preferred_element_type=jnp.float32) * inv_m
        y = t * (jax.lax.rsqrt(var + EPS) * pr[:, 1:2]) + pr[:, 2:3]
        return jnp.maximum(y, 0.0)

    m16 = m16_ref[...]
    m8 = m8_ref[...]

    x = xc_ref[...]                                      # (32, N*H*W) = (32, 512)
    x = conv_bn_relu(x, m16, 0, W_IMG)
    x = conv_bn_relu(x, m16, 1, W_IMG)
    x = conv_bn_relu(x, m16, 2, W_IMG)
    x = conv_bn_relu(x, m16, 3, W_IMG)

    # 2x2/2 max-pool: two lane rolls + max, then ONE precomputed gather matmul.          [C]
    mbig = N_BATCH * H_IMG * W_IMG
    hm = jnp.maximum(x, pltpu.roll(x, mbig - 1, 1))          # max over (x, x+1)
    vm = jnp.maximum(hm, pltpu.roll(hm, mbig - W_IMG, 1))    # max over 2x2 block
    x = jnp.dot(vm, psel_ref[...], preferred_element_type=jnp.float32)   # (32, 128)

    x = conv_bn_relu(x, m8, 4, W_IMG // 2)
    mem_c = conv_bn_relu(x, m8, 5, W_IMG // 2)           # (32, N*S) channel-major memory

    # channel-major -> token-major memory via the MXU (identity @ mem_c^T); keeps the
    # decoder in its natural (tokens, E) layout without an XLU transpose.
    n_mem = N_BATCH * S_MEM
    eye = (jax.lax.broadcasted_iota(jnp.int32, (n_mem, n_mem), 0) ==
           jax.lax.broadcasted_iota(jnp.int32, (n_mem, n_mem), 1)).astype(jnp.float32)
    memory = jax.lax.dot_general(eye, mem_c, (((1,), (1,)), ((), ())),
                                 preferred_element_type=jnp.float32)     # (128, 32)

    # ------------- Transformer decoder layer + output head -------------
    E = D_MODEL
    V = vdec_ref[...]                                    # (16, 128) packed vectors

    def vec(row, width):
        return V[row:row + 1, :width]                    # (1, width)

    ln_emb_g, ln_emb_b = vec(0, E), vec(1, E)
    b_qkv_s = vec(2, 3 * E)                              # q part pre-scaled at pack time  [E]
    b_o_s, b_q_c = vec(3, E), vec(4, E)                  # b_q_c pre-scaled at pack time   [E]
    b_kv_c = vec(5, 2 * E)
    b_o_c = vec(6, E)
    g1, bb1, g2, bb2, g3, bb3 = (vec(7, E), vec(8, E), vec(9, E),
                                 vec(10, E), vec(11, E), vec(12, E))
    b_ff1 = vec(13, DIM_FF)
    b_ff2 = vec(14, E)
    b_out = vec(15, V_PAD)

    def mat(slot, rows, cols):
        return wdec_ref[slot][:rows, :cols]

    w_qkv_s = mat(0, E, 3 * E)                           # q columns pre-scaled            [E]
    w_q_c   = mat(1, E, E)                               # pre-scaled                      [E]
    w_kv_c  = mat(2, E, 2 * E)
    w_o_s   = mat(3, E, E)
    w_o_c   = mat(4, E, E)
    w_ff1   = mat(5, E, DIM_FF)
    w_ff2   = mat(6, DIM_FF, E)
    w_out   = mat(7, E, V_PAD)

    self_mask = smask_ref[...]                           # precomputed additive masks      [F]
    cross_mask = cmask_ref[...]

    def attention(q, k, v, mask):
        # per-head attention; heads are concatenated once and W_o applied with one matmul [E]
        heads = []
        for h in range(N_HEAD):
            sl = slice(h * HEAD_DIM, (h + 1) * HEAD_DIM)
            s = jax.lax.dot_general(q[:, sl], k[:, sl],
                                    (((1,), (1,)), ((), ())),
                                    preferred_element_type=jnp.float32) + mask
            p = _softmax_rows(s)
            heads.append(jnp.dot(p, v[:, sl], preferred_element_type=jnp.float32))
        return jnp.concatenate(heads, axis=1)            # (rows, E)

    # embedding LayerNorm (dropout == identity)
    x = _layernorm(emb_ref[...], ln_emb_g, ln_emb_b)     # (N*T, E)

    # --- self-attention (post-norm residual block) ---
    qkv = jnp.dot(x, w_qkv_s, preferred_element_type=jnp.float32) + b_qkv_s
    a = attention(qkv[:, :E], qkv[:, E:2 * E], qkv[:, 2 * E:], self_mask)
    a = jnp.dot(a, w_o_s, preferred_element_type=jnp.float32) + b_o_s
    x = _layernorm(x + a, g1, bb1)

    # --- cross-attention over the visual memory ---
    q = jnp.dot(x, w_q_c, preferred_element_type=jnp.float32) + b_q_c
    kv = jnp.dot(memory, w_kv_c, preferred_element_type=jnp.float32) + b_kv_c
    a = attention(q, kv[:, :E], kv[:, E:], cross_mask)
    a = jnp.dot(a, w_o_c, preferred_element_type=jnp.float32) + b_o_c
    x = _layernorm(x + a, g2, bb2)

    # --- feed-forward (relu) ---
    f = jnp.maximum(jnp.dot(x, w_ff1, preferred_element_type=jnp.float32) + b_ff1, 0.0)
    f = jnp.dot(f, w_ff2, preferred_element_type=jnp.float32) + b_ff2
    x = _layernorm(x + f, g3, bb3)

    # --- output head (lane-dense: NUM_CHAR padded to 128, padded columns zero) ---
    out_ref[...] = jnp.dot(x, w_out, preferred_element_type=jnp.float32) + b_out


# ----------------------------------------------------------------------------
# Wrapper (thin XLA glue: channel pad/transpose, label shift, embedding gather,
#          self-attention mask build, final slice)
# ----------------------------------------------------------------------------
def transformer_attn_recognizer_forward(packed, roi_features, text_labels, text_masks):
    """Training-mode (teacher forcing) forward. roi_features: (N, C, H, W) as in the reference."""
    nb, cin, hh, ww = roi_features.shape
    t = text_labels.shape[1]
    nt = nb * t

    # channel-major, zero-padded to 32 channels: (32, N*H*W); padded channels are inert.
    x = jnp.pad(roi_features, ((0, 0), (0, C_PAD - cin), (0, 0), (0, 0)))
    xc = jnp.transpose(x, (1, 0, 2, 3)).reshape(C_PAD, nb * hh * ww)

    # teacher-forcing label / mask preparation (faithful to the reference in-place edits:
    # labels shifted right with START at t=0; mask cols 1..T-1 = original last column).
    labels = jnp.concatenate(
        [jnp.full((nb, 1), START_TOKEN, dtype=text_labels.dtype), text_labels[:, :-1]], axis=1)
    masks = jnp.concatenate(
        [text_masks[:, :1], jnp.broadcast_to(text_masks[:, -1:], (nb, t - 1))], axis=1)

    # char + positional embedding (tiny gather kept in XLA glue; LayerNorm runs in-kernel)
    emb = jnp.take(packed['letter_emb'], labels, axis=0) + packed['pos_emb'][:t][None, :, :]
    emb2d = emb.reshape(nt, D_MODEL)

    # additive self-attention mask: block-diagonal over the collapsed batch with the float
    # key-padding mask folded in (PyTorch float-mask semantics: added to the scores).
    # The reference's tgt_mask is all-zero by construction and is dropped.             [F]
    qb = (jnp.arange(nt) // t)[:, None]
    kb = (jnp.arange(nt) // t)[None, :]
    kpm = jnp.broadcast_to(masks.astype(jnp.float32).reshape(1, nt), (nt, nt))
    self_mask = jnp.where(qb == kb, kpm, NEG_INF)

    logits = pl.pallas_call(
        recognizer_kernel,
        out_shape=jax.ShapeDtypeStruct((nt, V_PAD), jnp.float32),
    )(xc, packed['w_cnn'], packed['p_cnn'], packed['mask16'], packed['mask8'],
      packed['pool_sel'], emb2d, self_mask, packed['cross_mask'],
      packed['w_dec'], packed['v_dec'])

    return logits[:, :NUM_CHAR].reshape(nb, t, NUM_CHAR)      # (N, T, num_char)


# ----------------------------------------------------------------------------
# Deterministic parameter initialization + one-time packing into VMEM slabs
# ----------------------------------------------------------------------------
def _w(key, shape, scale=0.1):
    return scale * jax.random.normal(key, shape, dtype=jnp.float32)


def sinusoid_table(maxlen, e):
    pos = np.arange(maxlen)[:, None].astype(np.float64)
    i = np.arange(e)[None, :].astype(np.float64)
    angle = pos / np.power(10000.0, (i - (i % 2)) / e)
    table = angle.copy()
    table[:, 0::2] = np.sin(angle[:, 0::2])
    table[:, 1::2] = np.cos(angle[:, 1::2])
    return jnp.asarray(table, dtype=jnp.float32)


def init_params(key):
    keys = iter(jax.random.split(key, 64))
    nk = lambda: next(keys)
    conv_dims = [(IN_CH, IN_CH), (IN_CH, D_MODEL), (D_MODEL, D_MODEL),
                 (D_MODEL, D_MODEL), (D_MODEL, D_MODEL), (D_MODEL, D_MODEL)]
    convs = []
    for cin, cout in conv_dims:
        convs.append(dict(
            w=_w(nk(), (3, 3, cin, cout), 0.2),               # HWIO
            b=_w(nk(), (cout,), 0.05),
            gamma=1.0 + _w(nk(), (cout,), 0.05),
            beta=_w(nk(), (cout,), 0.05)))
    raw = dict(convs=convs)
    raw['letter_emb'] = _w(nk(), (NUM_CHAR, D_MODEL), 1.0)
    raw['pos_emb'] = sinusoid_table(25, D_MODEL)              # maxlen = 25 as in the module
    raw['ln_emb_g'] = 1.0 + _w(nk(), (D_MODEL,), 0.05)
    raw['ln_emb_b'] = _w(nk(), (D_MODEL,), 0.05)
    raw['w_qkv_s'] = _w(nk(), (D_MODEL, 3 * D_MODEL))
    raw['b_qkv_s'] = _w(nk(), (3 * D_MODEL,), 0.05)
    raw['w_o_s'] = _w(nk(), (D_MODEL, D_MODEL))
    raw['b_o_s'] = _w(nk(), (D_MODEL,), 0.05)
    raw['w_q_c'] = _w(nk(), (D_MODEL, D_MODEL))
    raw['b_q_c'] = _w(nk(), (D_MODEL,), 0.05)
    raw['w_kv_c'] = _w(nk(), (D_MODEL, 2 * D_MODEL))
    raw['b_kv_c'] = _w(nk(), (2 * D_MODEL,), 0.05)
    raw['w_o_c'] = _w(nk(), (D_MODEL, D_MODEL))
    raw['b_o_c'] = _w(nk(), (D_MODEL,), 0.05)
    for i in (1, 2, 3):
        raw[f'ln{i}_g'] = 1.0 + _w(nk(), (D_MODEL,), 0.05)
        raw[f'ln{i}_b'] = _w(nk(), (D_MODEL,), 0.05)
    raw['w_ff1'] = _w(nk(), (D_MODEL, DIM_FF))
    raw['b_ff1'] = _w(nk(), (DIM_FF,), 0.05)
    raw['w_ff2'] = _w(nk(), (DIM_FF, D_MODEL))
    raw['b_ff2'] = _w(nk(), (D_MODEL,), 0.05)
    raw['w_out'] = _w(nk(), (D_MODEL, NUM_CHAR))
    raw['b_out'] = _w(nk(), (NUM_CHAR,), 0.05)
    return raw


def _conv_border_masks(n, h, w):
    """(16, n*h*w) per-tap validity masks (rows 0..8 used) for the 'same'-padded 3x3 conv."""
    m = n * h * w
    idx = np.arange(m)
    y = (idx % (h * w)) // w
    x = idx % w
    msk = np.zeros((16, m), np.float32)
    for ky in range(3):
        for kx in range(3):
            dy, dx = ky - 1, kx - 1
            valid = (y + dy >= 0) & (y + dy < h) & (x + dx >= 0) & (x + dx < w)
            msk[ky * 3 + kx] = valid.astype(np.float32)
    return msk


def _pool_selection(n, h, w):
    """(n*h*w, n*(h/2)*(w/2)) gather matrix selecting the top-left pixel of each 2x2 block."""
    ho, wo = h // 2, w // 2
    sel = np.zeros((n * h * w, n * ho * wo), np.float32)
    for b in range(n):
        for yo in range(ho):
            for xo in range(wo):
                sel[b * h * w + 2 * yo * w + 2 * xo, b * ho * wo + yo * wo + xo] = 1.0
    return sel


def pack_params(raw):
    """One-time packing of the many tiny parameter tensors into a few slabs (few input DMAs)."""
    # CNN weights, merged-tap channel-major layout: w_cnn[l, co, tap*32 + ci] = w[ky, kx, ci, co]
    w_cnn = np.zeros((6, C_PAD, KDIM), np.float32)
    p_cnn = np.zeros((6, C_PAD, 8), np.float32)               # cols: bias | gamma | beta | 0...
    p_cnn[:, :, 1] = 1.0                                      # gamma=1 on padded channels (inert)
    for l, blk in enumerate(raw['convs']):
        w = np.asarray(blk['w'])
        cin, cout = w.shape[2], w.shape[3]
        for ky in range(3):
            for kx in range(3):
                tap = ky * 3 + kx
                w_cnn[l, :cout, tap * C_PAD: tap * C_PAD + cin] = w[ky, kx].T
        p_cnn[l, :cout, 0] = np.asarray(blk['b'])
        p_cnn[l, :cout, 1] = np.asarray(blk['gamma'])
        p_cnn[l, :cout, 2] = np.asarray(blk['beta'])

    mask16 = _conv_border_masks(N_BATCH, H_IMG, W_IMG)        # (16, 512)
    mask8 = _conv_border_masks(N_BATCH, H_IMG // 2, W_IMG // 2)  # (16, 128)
    pool_sel = _pool_selection(N_BATCH, H_IMG, W_IMG)         # (512, 128)

    # Fold the 1/sqrt(head_dim) query scaling into the packed q projections.           [E]
    scale = 1.0 / math.sqrt(HEAD_DIM)
    w_qkv_s = np.asarray(raw['w_qkv_s']).copy()
    w_qkv_s[:, :D_MODEL] *= scale
    b_qkv_s = np.asarray(raw['b_qkv_s']).copy()
    b_qkv_s[:D_MODEL] *= scale
    w_q_c = np.asarray(raw['w_q_c']) * scale
    b_q_c = np.asarray(raw['b_q_c']) * scale

    # Decoder matrices: one (8, 64, 128) slab, all entries 0-aligned and zero-padded.
    w_dec = np.zeros((8, 2 * D_MODEL, V_PAD), np.float32)

    def put_mat(slot, m):
        m = np.asarray(m)
        w_dec[slot, :m.shape[0], :m.shape[1]] = m

    put_mat(0, w_qkv_s); put_mat(1, w_q_c); put_mat(2, raw['w_kv_c'])
    put_mat(3, raw['w_o_s']); put_mat(4, raw['w_o_c']); put_mat(5, raw['w_ff1'])
    put_mat(6, raw['w_ff2']); put_mat(7, raw['w_out'])

    # Decoder vectors (LN scales/offsets + biases): one (16, 128) slab.
    v_dec = np.zeros((16, V_PAD), np.float32)
    vec_vals = [raw['ln_emb_g'], raw['ln_emb_b'], b_qkv_s, raw['b_o_s'], b_q_c,
                raw['b_kv_c'], raw['b_o_c'],
                raw['ln1_g'], raw['ln1_b'], raw['ln2_g'], raw['ln2_b'],
                raw['ln3_g'], raw['ln3_b'], raw['b_ff1'], raw['b_ff2'], raw['b_out']]
    for row, v in enumerate(vec_vals):
        v = np.asarray(v)
        v_dec[row, :v.shape[0]] = v

    # Cross-attention block-diagonal mask (input-independent -> precomputed).          [F]
    nt = N_BATCH * SEQ_LEN
    nmem = N_BATCH * S_MEM
    qb = (np.arange(nt) // SEQ_LEN)[:, None]
    kb = (np.arange(nmem) // S_MEM)[None, :]
    cross_mask = np.where(qb == kb, 0.0, NEG_INF).astype(np.float32)

    return dict(
        w_cnn=jnp.asarray(w_cnn), p_cnn=jnp.asarray(p_cnn),
        mask16=jnp.asarray(mask16), mask8=jnp.asarray(mask8),
        pool_sel=jnp.asarray(pool_sel), cross_mask=jnp.asarray(cross_mask),
        w_dec=jnp.asarray(w_dec), v_dec=jnp.asarray(v_dec),
        letter_emb=raw['letter_emb'], pos_emb=raw['pos_emb'])


# ----------------------------------------------------------------------------
if __name__ == "__main__":
    key = jax.random.PRNGKey(0)
    k_param, k_roi, k_lab = jax.random.split(key, 3)

    packed = pack_params(init_params(k_param))
    roi = jax.random.normal(k_roi, (N_BATCH, IN_CH, H_IMG, W_IMG), dtype=jnp.float32)  # NCHW
    text_labels = jax.random.randint(k_lab, (N_BATCH, SEQ_LEN), 0, NUM_CHAR, dtype=jnp.int32)
    # float additive key-padding mask (0.0 = keep); matches PyTorch float-mask semantics.
    text_masks = jnp.zeros((N_BATCH, SEQ_LEN), dtype=jnp.float32)

    # TODO(synk): eval-mode greedy autoregressive decode loop not implemented; this covers
    #             the training-mode (teacher-forcing) forward pass only.
    fwd = jax.jit(transformer_attn_recognizer_forward)
    logits = jax.block_until_ready(fwd(packed, roi, text_labels, text_masks))

    assert logits.shape == (N_BATCH, SEQ_LEN, NUM_CHAR)
    assert bool(jnp.all(jnp.isfinite(logits)))
    print("KERNEL_OK")
</pallas_src>

<mosaic_0001>
module attributes {stable_mosaic.version = 11 : i64} {
  func.func @recognizer_kernel(%arg0: memref<32x512xf32, #tpu.memory_space<vmem>>, %arg1: memref<6x32x288xf32, #tpu.memory_space<vmem>>, %arg2: memref<6x32x8xf32, #tpu.memory_space<vmem>>, %arg3: memref<16x512xf32, #tpu.memory_space<vmem>>, %arg4: memref<16x128xf32, #tpu.memory_space<vmem>>, %arg5: memref<512x128xf32, #tpu.memory_space<vmem>>, %arg6: memref<16x32xf32, #tpu.memory_space<vmem>>, %arg7: memref<16x16xf32, #tpu.memory_space<vmem>>, %arg8: memref<16x128xf32, #tpu.memory_space<vmem>>, %arg9: memref<8x64x128xf32, #tpu.memory_space<vmem>>, %arg10: memref<16x128xf32, #tpu.memory_space<vmem>>, %arg11: memref<16x128xf32, #tpu.memory_space<vmem>>) attributes {dimension_semantics = [], scalar_prefetch = 0 : i64, scratch_operands = 0 : i64, tpu.core_type = #tpu.core_type<tc>} {
    %c0 = arith.constant 0 : index
    %c0_0 = arith.constant 0 : index
    %0 = vector.load %arg3[%c0, %c0_0] : memref<16x512xf32, #tpu.memory_space<vmem>>, vector<16x512xf32>
    %c0_1 = arith.constant 0 : index
    %c0_2 = arith.constant 0 : index
    %1 = vector.load %arg4[%c0_1, %c0_2] : memref<16x128xf32, #tpu.memory_space<vmem>>, vector<16x128xf32>
    %c0_3 = arith.constant 0 : index
    %c0_4 = arith.constant 0 : index
    %2 = vector.load %arg0[%c0_3, %c0_4] : memref<32x512xf32, #tpu.memory_space<vmem>>, vector<32x512xf32>
    %c17_i32 = arith.constant 17 : i32
    %3 = tpu.dynamic_rotate %2 by %c17_i32 dim 1 : vector<32x512xf32>, i32 -> vector<32x512xf32>
    %4 = vector.extract_strided_slice %0 {offsets = [0, 0], sizes = [1, 512], strides = [1, 1]} : vector<16x512xf32> to vector<1x512xf32>
    %5 = vector.broadcast %4 : vector<1x512xf32> to vector<32x512xf32>
    %6 = arith.mulf %3, %5 : vector<32x512xf32>
    %c16_i32 = arith.constant 16 : i32
    %7 = tpu.dynamic_rotate %2 by %c16_i32 dim 1 : vector<32x512xf32>, i32 -> vector<32x512xf32>
    %8 = vector.extract_strided_slice %0 {offsets = [1, 0], sizes = [1, 512], strides = [1, 1]} : vector<16x512xf32> to vector<1x512xf32>
    %9 = vector.broadcast %8 : vector<1x512xf32> to vector<32x512xf32>
    %10 = arith.mulf %7, %9 : vector<32x512xf32>
    %c15_i32 = arith.constant 15 : i32
    %11 = tpu.dynamic_rotate %2 by %c15_i32 dim 1 : vector<32x512xf32>, i32 -> vector<32x512xf32>
    %12 = vector.extract_strided_slice %0 {offsets = [2, 0], sizes = [1, 512], strides = [1, 1]} : vector<16x512xf32> to vector<1x512xf32>
    %13 = vector.broadcast %12 : vector<1x512xf32> to vector<32x512xf32>
    %14 = arith.mulf %11, %13 : vector<32x512xf32>
    %c1_i32 = arith.constant 1 : i32
    %15 = tpu.dynamic_rotate %2 by %c1_i32 dim 1 : vector<32x512xf32>, i32 -> vector<32x512xf32>
    %16 = vector.extract_strided_slice %0 {offsets = [3, 0], sizes = [1, 512], strides = [1, 1]} : vector<16x512xf32> to vector<1x512xf32>
    %17 = vector.broadcast %16 : vector<1x512xf32> to vector<32x512xf32>
    %18 = arith.mulf %15, %17 : vector<32x512xf32>
    %c511_i32 = arith.constant 511 : i32
    %19 = tpu.dynamic_rotate %2 by %c511_i32 dim 1 : vector<32x512xf32>, i32 -> vector<32x512xf32>
    %20 = vector.extract_strided_slice %0 {offsets = [5, 0], sizes = [1, 512], strides = [1, 1]} : vector<16x512xf32> to vector<1x512xf32>
    %21 = vector.broadcast %20 : vector<1x512xf32> to vector<32x512xf32>
    %22 = arith.mulf %19, %21 : vector<32x512xf32>
    %c497_i32 = arith.constant 497 : i32
    %23 = tpu.dynamic_rotate %2 by %c497_i32 dim 1 : vector<32x512xf32>, i32 -> vector<32x512xf32>
    %24 = vector.extract_strided_slice %0 {offsets = [6, 0], sizes = [1, 512], strides = [1, 1]} : vector<16x512xf32> to vector<1x512xf32>
    %25 = vector.broadcast %24 : vector<1x512xf32> to vector<32x512xf32>
    %26 = arith.mulf %23, %25 : vector<32x512xf32>
    %c496_i32 = arith.constant 496 : i32
    %27 = tpu.dynamic_rotate %2 by %c496_i32 dim 1 : vector<32x512xf32>, i32 -> vector<32x512xf32>
    %28 = vector.extract_strided_slice %0 {offsets = [7, 0], sizes = [1, 512], strides = [1, 1]} : vector<16x512xf32> to vector<1x512xf32>
    %29 = vector.broadcast %28 : vector<1x512xf32> to vector<32x512xf32>
    %30 = arith.mulf %27, %29 : vector<32x512xf32>
    %c495_i32 = arith.constant 495 : i32
    %31 = tpu.dynamic_rotate %2 by %c495_i32 dim 1 : vector<32x512xf32>, i32 -> vector<32x512xf32>
    %32 = vector.extract_strided_slice %0 {offsets = [8, 0], sizes = [1, 512], strides = [1, 1]} : vector<16x512xf32> to vector<1x512xf32>
    %33 = vector.broadcast %32 : vector<1x512xf32> to vector<32x512xf32>
    %34 = arith.mulf %31, %33 : vector<32x512xf32>
    %35 = tpu.concatenate %6, %10, %14, %18, %2, %22, %26, %30, %34 in 0 : vector<32x512xf32>, vector<32x512xf32>, vector<32x512xf32>, vector<32x512xf32>, vector<32x512xf32>, vector<32x512xf32>, vector<32x512xf32>, vector<32x512xf32>, vector<32x512xf32> -> vector<288x512xf32>
    %c0_5 = arith.constant 0 : index
    %c0_6 = arith.constant 0 : index
    %c0_7 = arith.constant 0 : index
    %36 = vector.load %arg1[%c0_5, %c0_6, %c0_7] : memref<6x32x288xf32, #tpu.memory_space<vmem>>, vector<1x32x288xf32>
    %37 = vector.shape_cast %36 : vector<1x32x288xf32> to vector<32x288xf32>
    %cst = arith.constant dense<0.000000e+00> : vector<32x512xf32>
    %38 = tpu.matmul %37, %35, %cst {dimension_numbers = #tpu.dot_dimension_numbers<[1], [0], [0], [1], [0, 0, 1, 1], [], []>} : vector<32x288xf32>, vector<288x512xf32>, vector<32x512xf32> -> vector<32x512xf32>
    %c0_8 = arith.constant 0 : index
    %c0_9 = arith.constant 0 : index
    %c0_10 = arith.constant 0 : index
    %39 = vector.load %arg2[%c0_8, %c0_9, %c0_10] : memref<6x32x8xf32, #tpu.memory_space<vmem>>, vector<1x32x8xf32>
    %40 = vector.shape_cast %39 : vector<1x32x8xf32> to vector<32x8xf32>
    %41 = vector.extract_strided_slice %40 {offsets = [0, 0], sizes = [32, 1], strides = [1, 1]} : vector<32x8xf32> to vector<32x1xf32>
    %42 = vector.broadcast %41 : vector<32x1xf32> to vector<32x512xf32>
    %43 = arith.addf %38, %42 : vector<32x512xf32>
    %cst_11 = arith.constant 1.000000e+00 : f32
    %44 = vector.broadcast %cst_11 : f32 to vector<512x1xf32>
    %cst_12 = arith.constant dense<0.000000e+00> : vector<32x1xf32>
    %45 = tpu.matmul %43, %44, %cst_12 {dimension_numbers = #tpu.dot_dimension_numbers<[1], [0], [0], [1], [0, 0, 1, 1], [], []>} : vector<32x512xf32>, vector<512x1xf32>, vector<32x1xf32> -> vector<32x1xf32>
    %cst_13 = arith.constant 0.001953125 : f32
    %46 = vector.broadcast %cst_13 : f32 to vector<32x1xf32>
    %47 = arith.mulf %45, %46 : vector<32x1xf32>
    %48 = vector.broadcast %47 : vector<32x1xf32> to vector<32x512xf32>
    %49 = arith.subf %43, %48 : vector<32x512xf32>
    %50 = arith.mulf %49, %49 : vector<32x512xf32>
    %cst_14 = arith.constant dense<0.000000e+00> : vector<32x1xf32>
    %51 = tpu.matmul %50, %44, %cst_14 {dimension_numbers = #tpu.dot_dimension_numbers<[1], [0], [0], [1], [0, 0, 1, 1], [], []>} : vector<32x512xf32>, vector<512x1xf32>, vector<32x1xf32> -> vector<32x1xf32>
    %cst_15 = arith.constant 0.001953125 : f32
    %52 = vector.broadcast %cst_15 : f32 to vector<32x1xf32>
    %53 = arith.mulf %51, %52 : vector<32x1xf32>
    %cst_16 = arith.constant 9.99999974E-6 : f32
    %54 = vector.broadcast %cst_16 : f32 to vector<32x1xf32>
    %55 = arith.addf %53, %54 : vector<32x1xf32>
    %56 = math.rsqrt %55 : vector<32x1xf32>
    %57 = vector.extract_strided_slice %40 {offsets = [0, 1], sizes = [32, 1], strides = [1, 1]} : vector<32x8xf32> to vector<32x1xf32>
    %58 = arith.mulf %56, %57 : vector<32x1xf32>
    %59 = vector.broadcast %58 : vector<32x1xf32> to vector<32x512xf32>
    %60 = arith.mulf %49, %59 : vector<32x512xf32>
    %61 = vector.extract_strided_slice %40 {offsets = [0, 2], sizes = [32, 1], strides = [1, 1]} : vector<32x8xf32> to vector<32x1xf32>
    %62 = vector.broadcast %61 : vector<32x1xf32> to vector<32x512xf32>
    %63 = arith.addf %60, %62 : vector<32x512xf32>
    %cst_17 = arith.constant 0.000000e+00 : f32
    %64 = vector.broadcast %cst_17 : f32 to vector<32x512xf32>
    %65 = arith.maximumf %63, %64 : vector<32x512xf32>
    %c17_i32_18 = arith.constant 17 : i32
    %66 = tpu.dynamic_rotate %65 by %c17_i32_18 dim 1 : vector<32x512xf32>, i32 -> vector<32x512xf32>
    %67 = vector.extract_strided_slice %0 {offsets = [0, 0], sizes = [1, 512], strides = [1, 1]} : vector<16x512xf32> to vector<1x512xf32>
    %68 = vector.broadcast %67 : vector<1x512xf32> to vector<32x512xf32>
    %69 = arith.mulf %66, %68 : vector<32x512xf32>
    %c16_i32_19 = arith.constant 16 : i32
    %70 = tpu.dynamic_rotate %65 by %c16_i32_19 dim 1 : vector<32x512xf32>, i32 -> vector<32x512xf32>
    %71 = vector.extract_strided_slice %0 {offsets = [1, 0], sizes = [1, 512], strides = [1, 1]} : vector<16x512xf32> to vector<1x512xf32>
    %72 = vector.broadcast %71 : vector<1x512xf32> to vector<32x512xf32>
    %73 = arith.mulf %70, %72 : vector<32x512xf32>
    %c15_i32_20 = arith.constant 15 : i32
    %74 = tpu.dynamic_rotate %65 by %c15_i32_20 dim 1 : vector<32x512xf32>, i32 -> vector<32x512xf32>
    %75 = vector.extract_strided_slice %0 {offsets = [2, 0], sizes = [1, 512], strides = [1, 1]} : vector<16x512xf32> to vector<1x512xf32>
    %76 = vector.broadcast %75 : vector<1x512xf32> to vector<32x512xf32>
    %77 = arith.mulf %74, %76 : vector<32x512xf32>
    %c1_i32_21 = arith.constant 1 : i32
    %78 = tpu.dynamic_rotate %65 by %c1_i32_21 dim 1 : vector<32x512xf32>, i32 -> vector<32x512xf32>
    %79 = vector.extract_strided_slice %0 {offsets = [3, 0], sizes = [1, 512], strides = [1, 1]} : vector<16x512xf32> to vector<1x512xf32>
    %80 = vector.broadcast %79 : vector<1x512xf32> to vector<32x512xf32>
    %81 = arith.mulf %78, %80 : vector<32x512xf32>
    %c511_i32_22 = arith.constant 511 : i32
    %82 = tpu.dynamic_rotate %65 by %c511_i32_22 dim 1 : vector<32x512xf32>, i32 -> vector<32x512xf32>
    %83 = vector.extract_strided_slice %0 {offsets = [5, 0], sizes = [1, 512], strides = [1, 1]} : vector<16x512xf32> to vector<1x512xf32>
    %84 = vector.broadcast %83 : vector<1x512xf32> to vector<32x512xf32>
    %85 = arith.mulf %82, %84 : vector<32x512xf32>
    %c497_i32_23 = arith.constant 497 : i32
    %86 = tpu.dynamic_rotate %65 by %c497_i32_23 dim 1 : vector<32x512xf32>, i32 -> vector<32x512xf32>
    %87 = vector.extract_strided_slice %0 {offsets = [6, 0], sizes = [1, 512], strides = [1, 1]} : vector<16x512xf32> to vector<1x512xf32>
    %88 = vector.broadcast %87 : vector<1x512xf32> to vector<32x512xf32>
    %89 = arith.mulf %86, %88 : vector<32x512xf32>
    %c496_i32_24 = arith.constant 496 : i32
    %90 = tpu.dynamic_rotate %65 by %c496_i32_24 dim 1 : vector<32x512xf32>, i32 -> vector<32x512xf32>
    %91 = vector.extract_strided_slice %0 {offsets = [7, 0], sizes = [1, 512], strides = [1, 1]} : vector<16x512xf32> to vector<1x512xf32>
    %92 = vector.broadcast %91 : vector<1x512xf32> to vector<32x512xf32>
    %93 = arith.mulf %90, %92 : vector<32x512xf32>
    %c495_i32_25 = arith.constant 495 : i32
    %94 = tpu.dynamic_rotate %65 by %c495_i32_25 dim 1 : vector<32x512xf32>, i32 -> vector<32x512xf32>
    %95 = vector.extract_strided_slice %0 {offsets = [8, 0], sizes = [1, 512], strides = [1, 1]} : vector<16x512xf32> to vector<1x512xf32>
    %96 = vector.broadcast %95 : vector<1x512xf32> to vector<32x512xf32>
    %97 = arith.mulf %94, %96 : vector<32x512xf32>
    %98 = tpu.concatenate %69, %73, %77, %81, %65, %85, %89, %93, %97 in 0 : vector<32x512xf32>, vector<32x512xf32>, vector<32x512xf32>, vector<32x512xf32>, vector<32x512xf32>, vector<32x512xf32>, vector<32x512xf32>, vector<32x512xf32>, vector<32x512xf32> -> vector<288x512xf32>
    %c1 = arith.constant 1 : index
    %c0_26 = arith.constant 0 : index
    %c0_27 = arith.constant 0 : index
    %99 = vector.load %arg1[%c1, %c0_26, %c0_27] : memref<6x32x288xf32, #tpu.memory_space<vmem>>, vector<1x32x288xf32>
    %100 = vector.shape_cast %99 : vector<1x32x288xf32> to vector<32x288xf32>
    %cst_28 = arith.constant dense<0.000000e+00> : vector<32x512xf32>
    %101 = tpu.matmul %100, %98, %cst_28 {dimension_numbers = #tpu.dot_dimension_numbers<[1], [0], [0], [1], [0, 0, 1, 1], [], []>} : vector<32x288xf32>, vector<288x512xf32>, vector<32x512xf32> -> vector<32x512xf32>
    %c1_29 = arith.constant 1 : index
    %c0_30 = arith.constant 0 : index
    %c0_31 = arith.constant 0 : index
    %102 = vector.load %arg2[%c1_29, %c0_30, %c0_31] : memref<6x32x8xf32, #tpu.memory_space<vmem>>, vector<1x32x8xf32>
    %103 = vector.shape_cast %102 : vector<1x32x8xf32> to vector<32x8xf32>
    %104 = vector.extract_strided_slice %103 {offsets = [0, 0], sizes = [32, 1], strides = [1, 1]} : vector<32x8xf32> to vector<32x1xf32>
    %105 = vector.broadcast %104 : vector<32x1xf32> to vector<32x512xf32>
    %106 = arith.addf %101, %105 : vector<32x512xf32>
    %cst_32 = arith.constant 1.000000e+00 : f32
    %107 = vector.broadcast %cst_32 : f32 to vector<512x1xf32>
    %cst_33 = arith.constant dense<0.000000e+00> : vector<32x1xf32>
    %108 = tpu.matmul %106, %107, %cst_33 {dimension_numbers = #tpu.dot_dimension_numbers<[1], [0], [0], [1], [0, 0, 1, 1], [], []>} : vector<32x512xf32>, vector<512x1xf32>, vector<32x1xf32> -> vector<32x1xf32>
    %cst_34 = arith.constant 0.001953125 : f32
    %109 = vector.broadcast %cst_34 : f32 to vector<32x1xf32>
    %110 = arith.mulf %108, %109 : vector<32x1xf32>
    %111 = vector.broadcast %110 : vector<32x1xf32> to vector<32x512xf32>
    %112 = arith.subf %106, %111 : vector<32x512xf32>
    %113 = arith.mulf %112, %112 : vector<32x512xf32>
    %cst_35 = arith.constant dense<0.000000e+00> : vector<32x1xf32>
    %114 = tpu.matmul %113, %107, %cst_35 {dimension_numbers = #tpu.dot_dimension_numbers<[1], [0], [0], [1], [0, 0, 1, 1], [], []>} : vector<32x512xf32>, vector<512x1xf32>, vector<32x1xf32> -> vector<32x1xf32>
    %cst_36 = arith.constant 0.001953125 : f32
    %115 = vector.broadcast %cst_36 : f32 to vector<32x1xf32>
    %116 = arith.mulf %114, %115 : vector<32x1xf32>
    %cst_37 = arith.constant 9.99999974E-6 : f32
    %117 = vector.broadcast %cst_37 : f32 to vector<32x1xf32>
    %118 = arith.addf %116, %117 : vector<32x1xf32>
    %119 = math.rsqrt %118 : vector<32x1xf32>
    %120 = vector.extract_strided_slice %103 {offsets = [0, 1], sizes = [32, 1], strides = [1, 1]} : vector<32x8xf32> to vector<32x1xf32>
    %121 = arith.mulf %119, %120 : vector<32x1xf32>
    %122 = vector.broadcast %121 : vector<32x1xf32> to vector<32x512xf32>
    %123 = arith.mulf %112, %122 : vector<32x512xf32>
    %124 = vector.extract_strided_slice %103 {offsets = [0, 2], sizes = [32, 1], strides = [1, 1]} : vector<32x8xf32> to vector<32x1xf32>
    %125 = vector.broadcast %124 : vector<32x1xf32> to vector<32x512xf32>
    %126 = arith.addf %123, %125 : vector<32x512xf32>
    %cst_38 = arith.constant 0.000000e+00 : f32
    %127 = vector.broadcast %cst_38 : f32 to vector<32x512xf32>
    %128 = arith.maximumf %126, %127 : vector<32x512xf32>
    %c17_i32_39 = arith.constant 17 : i32
    %129 = tpu.dynamic_rotate %128 by %c17_i32_39 dim 1 : vector<32x512xf32>, i32 -> vector<32x512xf32>
    %130 = vector.extract_strided_slice %0 {offsets = [0, 0], sizes = [1, 512], strides = [1, 1]} : vector<16x512xf32> to vector<1x512xf32>
    %131 = vector.broadcast %130 : vector<1x512xf32> to vector<32x512xf32>
    %132 = arith.mulf %129, %131 : vector<32x512xf32>
    %c16_i32_40 = arith.constant 16 : i32
    %133 = tpu.dynamic_rotate %128 by %c16_i32_40 dim 1 : vector<32x512xf32>, i32 -> vector<32x512xf32>
    %134 = vector.extract_strided_slice %0 {offsets = [1, 0], sizes = [1, 512], strides = [1, 1]} : vector<16x512xf32> to vector<1x512xf32>
    %135 = vector.broadcast %134 : vector<1x512xf32> to vector<32x512xf32>
    %136 = arith.mulf %133, %135 : vector<32x512xf32>
    %c15_i32_41 = arith.constant 15 : i32
    %137 = tpu.dynamic_rotate %128 by %c15_i32_41 dim 1 : vector<32x512xf32>, i32 -> vector<32x512xf32>
    %138 = vector.extract_strided_slice %0 {offsets = [2, 0], sizes = [1, 512], strides = [1, 1]} : vector<16x512xf32> to vector<1x512xf32>
    %139 = vector.broadcast %138 : vector<1x512xf32> to vector<32x512xf32>
    %140 = arith.mulf %137, %139 : vector<32x512xf32>
    %c1_i32_42 = arith.constant 1 : i32
    %141 = tpu.dynamic_rotate %128 by %c1_i32_42 dim 1 : vector<32x512xf32>, i32 -> vector<32x512xf32>
    %142 = vector.extract_strided_slice %0 {offsets = [3, 0], sizes = [1, 512], strides = [1, 1]} : vector<16x512xf32> to vector<1x512xf32>
    %143 = vector.broadcast %142 : vector<1x512xf32> to vector<32x512xf32>
    %144 = arith.mulf %141, %143 : vector<32x512xf32>
    %c511_i32_43 = arith.constant 511 : i32
    %145 = tpu.dynamic_rotate %128 by %c511_i32_43 dim 1 : vector<32x512xf32>, i32 -> vector<32x512xf32>
    %146 = vector.extract_strided_slice %0 {offsets = [5, 0], sizes = [1, 512], strides = [1, 1]} : vector<16x512xf32> to vector<1x512xf32>
    %147 = vector.broadcast %146 : vector<1x512xf32> to vector<32x512xf32>
    %148 = arith.mulf %145, %147 : vector<32x512xf32>
    %c497_i32_44 = arith.constant 497 : i32
    %149 = tpu.dynamic_rotate %128 by %c497_i32_44 dim 1 : vector<32x512xf32>, i32 -> vector<32x512xf32>
    %150 = vector.extract_strided_slice %0 {offsets = [6, 0], sizes = [1, 512], strides = [1, 1]} : vector<16x512xf32> to vector<1x512xf32>
    %151 = vector.broadcast %150 : vector<1x512xf32> to vector<32x512xf32>
    %152 = arith.mulf %149, %151 : vector<32x512xf32>
    %c496_i32_45 = arith.constant 496 : i32
    %153 = tpu.dynamic_rotate %128 by %c496_i32_45 dim 1 : vector<32x512xf32>, i32 -> vector<32x512xf32>
    %154 = vector.extract_strided_slice %0 {offsets = [7, 0], sizes = [1, 512], strides = [1, 1]} : vector<16x512xf32> to vector<1x512xf32>
    %155 = vector.broadcast %154 : vector<1x512xf32> to vector<32x512xf32>
    %156 = arith.mulf %153, %155 : vector<32x512xf32>
    %c495_i32_46 = arith.constant 495 : i32
    %157 = tpu.dynamic_rotate %128 by %c495_i32_46 dim 1 : vector<32x512xf32>, i32 -> vector<32x512xf32>
    %158 = vector.extract_strided_slice %0 {offsets = [8, 0], sizes = [1, 512], strides = [1, 1]} : vector<16x512xf32> to vector<1x512xf32>
    %159 = vector.broadcast %158 : vector<1x512xf32> to vector<32x512xf32>
    %160 = arith.mulf %157, %159 : vector<32x512xf32>
    %161 = tpu.concatenate %132, %136, %140, %144, %128, %148, %152, %156, %160 in 0 : vector<32x512xf32>, vector<32x512xf32>, vector<32x512xf32>, vector<32x512xf32>, vector<32x512xf32>, vector<32x512xf32>, vector<32x512xf32>, vector<32x512xf32>, vector<32x512xf32> -> vector<288x512xf32>
    %c2 = arith.constant 2 : index
    %c0_47 = arith.constant 0 : index
    %c0_48 = arith.constant 0 : index
    %162 = vector.load %arg1[%c2, %c0_47, %c0_48] : memref<6x32x288xf32, #tpu.memory_space<vmem>>, vector<1x32x288xf32>
    %163 = vector.shape_cast %162 : vector<1x32x288xf32> to vector<32x288xf32>
    %cst_49 = arith.constant dense<0.000000e+00> : vector<32x512xf32>
    %164 = tpu.matmul %163, %161, %cst_49 {dimension_numbers = #tpu.dot_dimension_numbers<[1], [0], [0], [1], [0, 0, 1, 1], [], []>} : vector<32x288xf32>, vector<288x512xf32>, vector<32x512xf32> -> vector<32x512xf32>
    %c2_50 = arith.constant 2 : index
    %c0_51 = arith.constant 0 : index
    %c0_52 = arith.constant 0 : index
    %165 = vector.load %arg2[%c2_50, %c0_51, %c0_52] : memref<6x32x8xf32, #tpu.memory_space<vmem>>, vector<1x32x8xf32>
    %166 = vector.shape_cast %165 : vector<1x32x8xf32> to vector<32x8xf32>
    %167 = vector.extract_strided_slice %166 {offsets = [0, 0], sizes = [32, 1], strides = [1, 1]} : vector<32x8xf32> to vector<32x1xf32>
    %168 = vector.broadcast %167 : vector<32x1xf32> to vector<32x512xf32>
    %169 = arith.addf %164, %168 : vector<32x512xf32>
    %cst_53 = arith.constant 1.000000e+00 : f32
    %170 = vector.broadcast %cst_53 : f32 to vector<512x1xf32>
    %cst_54 = arith.constant dense<0.000000e+00> : vector<32x1xf32>
    %171 = tpu.matmul %169, %170, %cst_54 {dimension_numbers = #tpu.dot_dimension_numbers<[1], [0], [0], [1], [0, 0, 1, 1], [], []>} : vector<32x512xf32>, vector<512x1xf32>, vector<32x1xf32> -> vector<32x1xf32>
    %cst_55 = arith.constant 0.001953125 : f32
    %172 = vector.broadcast %cst_55 : f32 to vector<32x1xf32>
    %173 = arith.mulf %171, %172 : vector<32x1xf32>
    %174 = vector.broadcast %173 : vector<32x1xf32> to vector<32x512xf32>
    %175 = arith.subf %169, %174 : vector<32x512xf32>
    %176 = arith.mulf %175, %175 : vector<32x512xf32>
    %cst_56 = arith.constant dense<0.000000e+00> : vector<32x1xf32>
    %177 = tpu.matmul %176, %170, %cst_56 {dimension_numbers = #tpu.dot_dimension_numbers<[1], [0], [0], [1], [0, 0, 1, 1], [], []>} : vector<32x512xf32>, vector<512x1xf32>, vector<32x1xf32> -> vector<32x1xf32>
    %cst_57 = arith.constant 0.001953125 : f32
    %178 = vector.broadcast %cst_57 : f32 to vector<32x1xf32>
    %179 = arith.mulf %177, %178 : vector<32x1xf32>
    %cst_58 = arith.constant 9.99999974E-6 : f32
    %180 = vector.broadcast %cst_58 : f32 to vector<32x1xf32>
    %181 = arith.addf %179, %180 : vector<32x1xf32>
    %182 = math.rsqrt %181 : vector<32x1xf32>
    %183 = vector.extract_strided_slice %166 {offsets = [0, 1], sizes = [32, 1], strides = [1, 1]} : vector<32x8xf32> to vector<32x1xf32>
    %184 = arith.mulf %182, %183 : vector<32x1xf32>
    %185 = vector.broadcast %184 : vector<32x1xf32> to vector<32x512xf32>
    %186 = arith.mulf %175, %185 : vector<32x512xf32>
    %187 = vector.extract_strided_slice %166 {offsets = [0, 2], sizes = [32, 1], strides = [1, 1]} : vector<32x8xf32> to vector<32x1xf32>
    %188 = vector.broadcast %187 : vector<32x1xf32> to vector<32x512xf32>
    %189 = arith.addf %186, %188 : vector<32x512xf32>
    %cst_59 = arith.constant 0.000000e+00 : f32
    %190 = vector.broadcast %cst_59 : f32 to vector<32x512xf32>
    %191 = arith.maximumf %189, %190 : vector<32x512xf32>
    %c17_i32_60 = arith.constant 17 : i32
    %192 = tpu.dynamic_rotate %191 by %c17_i32_60 dim 1 : vector<32x512xf32>, i32 -> vector<32x512xf32>
    %193 = vector.extract_strided_slice %0 {offsets = [0, 0], sizes = [1, 512], strides = [1, 1]} : vector<16x512xf32> to vector<1x512xf32>
    %194 = vector.broadcast %193 : vector<1x512xf32> to vector<32x512xf32>
    %195 = arith.mulf %192, %194 : vector<32x512xf32>
    %c16_i32_61 = arith.constant 16 : i32
    %196 = tpu.dynamic_rotate %191 by %c16_i32_61 dim 1 : vector<32x512xf32>, i32 -> vector<32x512xf32>
    %197 = vector.extract_strided_slice %0 {offsets = [1, 0], sizes = [1, 512], strides = [1, 1]} : vector<16x512xf32> to vector<1x512xf32>
    %198 = vector.broadcast %197 : vector<1x512xf32> to vector<32x512xf32>
    %199 = arith.mulf %196, %198 : vector<32x512xf32>
    %c15_i32_62 = arith.constant 15 : i32
    %200 = tpu.dynamic_rotate %191 by %c15_i32_62 dim 1 : vector<32x512xf32>, i32 -> vector<32x512xf32>
    %201 = vector.extract_strided_slice %0 {offsets = [2, 0], sizes = [1, 512], strides = [1, 1]} : vector<16x512xf32> to vector<1x512xf32>
    %202 = vector.broadcast %201 : vector<1x512xf32> to vector<32x512xf32>
    %203 = arith.mulf %200, %202 : vector<32x512xf32>
    %c1_i32_63 = arith.constant 1 : i32
    %204 = tpu.dynamic_rotate %191 by %c1_i32_63 dim 1 : vector<32x512xf32>, i32 -> vector<32x512xf32>
    %205 = vector.extract_strided_slice %0 {offsets = [3, 0], sizes = [1, 512], strides = [1, 1]} : vector<16x512xf32> to vector<1x512xf32>
    %206 = vector.broadcast %205 : vector<1x512xf32> to vector<32x512xf32>
    %207 = arith.mulf %204, %206 : vector<32x512xf32>
    %c511_i32_64 = arith.constant 511 : i32
    %208 = tpu.dynamic_rotate %191 by %c511_i32_64 dim 1 : vector<32x512xf32>, i32 -> vector<32x512xf32>
    %209 = vector.extract_strided_slice %0 {offsets = [5, 0], sizes = [1, 512], strides = [1, 1]} : vector<16x512xf32> to vector<1x512xf32>
    %210 = vector.broadcast %209 : vector<1x512xf32> to vector<32x512xf32>
    %211 = arith.mulf %208, %210 : vector<32x512xf32>
    %c497_i32_65 = arith.constant 497 : i32
    %212 = tpu.dynamic_rotate %191 by %c497_i32_65 dim 1 : vector<32x512xf32>, i32 -> vector<32x512xf32>
    %213 = vector.extract_strided_slice %0 {offsets = [6, 0], sizes = [1, 512], strides = [1, 1]} : vector<16x512xf32> to vector<1x512xf32>
    %214 = vector.broadcast %213 : vector<1x512xf32> to vector<32x512xf32>
    %215 = arith.mulf %212, %214 : vector<32x512xf32>
    %c496_i32_66 = arith.constant 496 : i32
    %216 = tpu.dynamic_rotate %191 by %c496_i32_66 dim 1 : vector<32x512xf32>, i32 -> vector<32x512xf32>
    %217 = vector.extract_strided_slice %0 {offsets = [7, 0], sizes = [1, 512], strides = [1, 1]} : vector<16x512xf32> to vector<1x512xf32>
    %218 = vector.broadcast %217 : vector<1x512xf32> to vector<32x512xf32>
    %219 = arith.mulf %216, %218 : vector<32x512xf32>
    %c495_i32_67 = arith.constant 495 : i32
    %220 = tpu.dynamic_rotate %191 by %c495_i32_67 dim 1 : vector<32x512xf32>, i32 -> vector<32x512xf32>
    %221 = vector.extract_strided_slice %0 {offsets = [8, 0], sizes = [1, 512], strides = [1, 1]} : vector<16x512xf32> to vector<1x512xf32>
    %222 = vector.broadcast %221 : vector<1x512xf32> to vector<32x512xf32>
    %223 = arith.mulf %220, %222 : vector<32x512xf32>
    %224 = tpu.concatenate %195, %199, %203, %207, %191, %211, %215, %219, %223 in 0 : vector<32x512xf32>, vector<32x512xf32>, vector<32x512xf32>, vector<32x512xf32>, vector<32x512xf32>, vector<32x512xf32>, vector<32x512xf32>, vector<32x512xf32>, vector<32x512xf32> -> vector<288x512xf32>
    %c3 = arith.constant 3 : index
    %c0_68 = arith.constant 0 : index
    %c0_69 = arith.constant 0 : index
    %225 = vector.load %arg1[%c3, %c0_68, %c0_69] : memref<6x32x288xf32, #tpu.memory_space<vmem>>, vector<1x32x288xf32>
    %226 = vector.shape_cast %225 : vector<1x32x288xf32> to vector<32x288xf32>
    %cst_70 = arith.constant dense<0.000000e+00> : vector<32x512xf32>
    %227 = tpu.matmul %226, %224, %cst_70 {dimension_numbers = #tpu.dot_dimension_numbers<[1], [0], [0], [1], [0, 0, 1, 1], [], []>} : vector<32x288xf32>, vector<288x512xf32>, vector<32x512xf32> -> vector<32x512xf32>
    %c3_71 = arith.constant 3 : index
    %c0_72 = arith.constant 0 : index
    %c0_73 = arith.constant 0 : index
    %228 = vector.load %arg2[%c3_71, %c0_72, %c0_73] : memref<6x32x8xf32, #tpu.memory_space<vmem>>, vector<1x32x8xf32>
    %229 = vector.shape_cast %228 : vector<1x32x8xf32> to vector<32x8xf32>
    %230 = vector.extract_strided_slice %229 {offsets = [0, 0], sizes = [32, 1], strides = [1, 1]} : vector<32x8xf32> to vector<32x1xf32>
    %231 = vector.broadcast %230 : vector<32x1xf32> to vector<32x512xf32>
    %232 = arith.addf %227, %231 : vector<32x512xf32>
    %cst_74 = arith.constant 1.000000e+00 : f32
    %233 = vector.broadcast %cst_74 : f32 to vector<512x1xf32>
    %cst_75 = arith.constant dense<0.000000e+00> : vector<32x1xf32>
    %234 = tpu.matmul %232, %233, %cst_75 {dimension_numbers = #tpu.dot_dimension_numbers<[1], [0], [0], [1], [0, 0, 1, 1], [], []>} : vector<32x512xf32>, vector<512x1xf32>, vector<32x1xf32> -> vector<32x1xf32>
    %cst_76 = arith.constant 0.001953125 : f32
    %235 = vector.broadcast %cst_76 : f32 to vector<32x1xf32>
    %236 = arith.mulf %234, %235 : vector<32x1xf32>
    %237 = vector.broadcast %236 : vector<32x1xf32> to vector<32x512xf32>
    %238 = arith.subf %232, %237 : vector<32x512xf32>
    %239 = arith.mulf %238, %238 : vector<32x512xf32>
    %cst_77 = arith.constant dense<0.000000e+00> : vector<32x1xf32>
    %240 = tpu.matmul %239, %233, %cst_77 {dimension_numbers = #tpu.dot_dimension_numbers<[1], [0], [0], [1], [0, 0, 1, 1], [], []>} : vector<32x512xf32>, vector<512x1xf32>, vector<32x1xf32> -> vector<32x1xf32>
    %cst_78 = arith.constant 0.001953125 : f32
    %241 = vector.broadcast %cst_78 : f32 to vector<32x1xf32>
    %242 = arith.mulf %240, %241 : vector<32x1xf32>
    %cst_79 = arith.constant 9.99999974E-6 : f32
    %243 = vector.broadcast %cst_79 : f32 to vector<32x1xf32>
    %244 = arith.addf %242, %243 : vector<32x1xf32>
    %245 = math.rsqrt %244 : vector<32x1xf32>
    %246 = vector.extract_strided_slice %229 {offsets = [0, 1], sizes = [32, 1], strides = [1, 1]} : vector<32x8xf32> to vector<32x1xf32>
    %247 = arith.mulf %245, %246 : vector<32x1xf32>
    %248 = vector.broadcast %247 : vector<32x1xf32> to vector<32x512xf32>
    %249 = arith.mulf %238, %248 : vector<32x512xf32>
    %250 = vector.extract_strided_slice %229 {offsets = [0, 2], sizes = [32, 1], strides = [1, 1]} : vector<32x8xf32> to vector<32x1xf32>
    %251 = vector.broadcast %250 : vector<32x1xf32> to vector<32x512xf32>
    %252 = arith.addf %249, %251 : vector<32x512xf32>
    %cst_80 = arith.constant 0.000000e+00 : f32
    %253 = vector.broadcast %cst_80 : f32 to vector<32x512xf32>
    %254 = arith.maximumf %252, %253 : vector<32x512xf32>
    %c511_i32_81 = arith.constant 511 : i32
    %255 = tpu.dynamic_rotate %254 by %c511_i32_81 dim 1 : vector<32x512xf32>, i32 -> vector<32x512xf32>
    %256 = arith.maximumf %254, %255 : vector<32x512xf32>
    %c496_i32_82 = arith.constant 496 : i32
    %257 = tpu.dynamic_rotate %256 by %c496_i32_82 dim 1 : vector<32x512xf32>, i32 -> vector<32x512xf32>
    %258 = arith.maximumf %256, %257 : vector<32x512xf32>
    %c0_83 = arith.constant 0 : index
    %c0_84 = arith.constant 0 : index
    %259 = vector.load %arg5[%c0_83, %c0_84] : memref<512x128xf32, #tpu.memory_space<vmem>>, vector<512x128xf32>
    %cst_85 = arith.constant dense<0.000000e+00> : vector<32x128xf32>
    %260 = tpu.matmul %258, %259, %cst_85 {dimension_numbers = #tpu.dot_dimension_numbers<[1], [0], [0], [1], [0, 0, 1, 1], [], []>} : vector<32x512xf32>, vector<512x128xf32>, vector<32x128xf32> -> vector<32x128xf32>
    %c9_i32 = arith.constant 9 : i32
    %261 = tpu.dynamic_rotate %260 by %c9_i32 dim 1 : vector<32x128xf32>, i32 -> vector<32x128xf32>
    %262 = vector.extract_strided_slice %1 {offsets = [0, 0], sizes = [1, 128], strides = [1, 1]} : vector<16x128xf32> to vector<1x128xf32>
    %263 = vector.broadcast %262 : vector<1x128xf32> to vector<32x128xf32>
    %264 = arith.mulf %261, %263 : vector<32x128xf32>
    %c8_i32 = arith.constant 8 : i32
    %265 = tpu.dynamic_rotate %260 by %c8_i32 dim 1 : vector<32x128xf32>, i32 -> vector<32x128xf32>
    %266 = vector.extract_strided_slice %1 {offsets = [1, 0], sizes = [1, 128], strides = [1, 1]} : vector<16x128xf32> to vector<1x128xf32>
    %267 = vector.broadcast %266 : vector<1x128xf32> to vector<32x128xf32>
    %268 = arith.mulf %265, %267 : vector<32x128xf32>
    %c7_i32 = arith.constant 7 : i32
    %269 = tpu.dynamic_rotate %260 by %c7_i32 dim 1 : vector<32x128xf32>, i32 -> vector<32x128xf32>
    %270 = vector.extract_strided_slice %1 {offsets = [2, 0], sizes = [1, 128], strides = [1, 1]} : vector<16x128xf32> to vector<1x128xf32>
    %271 = vector.broadcast %270 : vector<1x128xf32> to vector<32x128xf32>
    %272 = arith.mulf %269, %271 : vector<32x128xf32>
    %c1_i32_86 = arith.constant 1 : i32
    %273 = tpu.dynamic_rotate %260 by %c1_i32_86 dim 1 : vector<32x128xf32>, i32 -> vector<32x128xf32>
    %274 = vector.extract_strided_slice %1 {offsets = [3, 0], sizes = [1, 128], strides = [1, 1]} : vector<16x128xf32> to vector<1x128xf32>
    %275 = vector.broadcast %274 : vector<1x128xf32> to vector<32x128xf32>
    %276 = arith.mulf %273, %275 : vector<32x128xf32>
    %c127_i32 = arith.constant 127 : i32
    %277 = tpu.dynamic_rotate %260 by %c127_i32 dim 1 : vector<32x128xf32>, i32 -> vector<32x128xf32>
    %278 = vector.extract_strided_slice %1 {offsets = [5, 0], sizes = [1, 128], strides = [1, 1]} : vector<16x128xf32> to vector<1x128xf32>
    %279 = vector.broadcast %278 : vector<1x128xf32> to vector<32x128xf32>
    %280 = arith.mulf %277, %279 : vector<32x128xf32>
    %c121_i32 = arith.constant 121 : i32
    %281 = tpu.dynamic_rotate %260 by %c121_i32 dim 1 : vector<32x128xf32>, i32 -> vector<32x128xf32>
    %282 = vector.extract_strided_slice %1 {offsets = [6, 0], sizes = [1, 128], strides = [1, 1]} : vector<16x128xf32> to vector<1x128xf32>
    %283 = vector.broadcast %282 : vector<1x128xf32> to vector<32x128xf32>
    %284 = arith.mulf %281, %283 : vector<32x128xf32>
    %c120_i32 = arith.constant 120 : i32
    %285 = tpu.dynamic_rotate %260 by %c120_i32 dim 1 : vector<32x128xf32>, i32 -> vector<32x128xf32>
    %286 = vector.extract_strided_slice %1 {offsets = [7, 0], sizes = [1, 128], strides = [1, 1]} : vector<16x128xf32> to vector<1x128xf32>
    %287 = vector.broadcast %286 : vector<1x128xf32> to vector<32x128xf32>
    %288 = arith.mulf %285, %287 : vector<32x128xf32>
    %c119_i32 = arith.constant 119 : i32
    %289 = tpu.dynamic_rotate %260 by %c119_i32 dim 1 : vector<32x128xf32>, i32 -> vector<32x128xf32>
    %290 = vector.extract_strided_slice %1 {offsets = [8, 0], sizes = [1, 128], strides = [1, 1]} : vector<16x128xf32> to vector<1x128xf32>
    %291 = vector.broadcast %290 : vector<1x128xf32> to vector<32x128xf32>
    %292 = arith.mulf %289, %291 : vector<32x128xf32>
    %293 = tpu.concatenate %264, %268, %272, %276, %260, %280, %284, %288, %292 in 0 : vector<32x128xf32>, vector<32x128xf32>, vector<32x128xf32>, vector<32x128xf32>, vector<32x128xf32>, vector<32x128xf32>, vector<32x128xf32>, vector<32x128xf32>, vector<32x128xf32> -> vector<288x128xf32>
    %c4 = arith.constant 4 : index
    %c0_87 = arith.constant 0 : index
    %c0_88 = arith.constant 0 : index
    %294 = vector.load %arg1[%c4, %c0_87, %c0_88] : memref<6x32x288xf32, #tpu.memory_space<vmem>>, vector<1x32x288xf32>
    %295 = vector.shape_cast %294 : vector<1x32x288xf32> to vector<32x288xf32>
    %cst_89 = arith.constant dense<0.000000e+00> : vector<32x128xf32>
    %296 = tpu.matmul %295, %293, %cst_89 {dimension_numbers = #tpu.dot_dimension_numbers<[1], [0], [0], [1], [0, 0, 1, 1], [], []>} : vector<32x288xf32>, vector<288x128xf32>, vector<32x128xf32> -> vector<32x128xf32>
    %c4_90 = arith.constant 4 : index
    %c0_91 = arith.constant 0 : index
    %c0_92 = arith.constant 0 : index
    %297 = vector.load %arg2[%c4_90, %c0_91, %c0_92] : memref<6x32x8xf32, #tpu.memory_space<vmem>>, vector<1x32x8xf32>
    %298 = vector.shape_cast %297 : vector<1x32x8xf32> to vector<32x8xf32>
    %299 = vector.extract_strided_slice %298 {offsets = [0, 0], sizes = [32, 1], strides = [1, 1]} : vector<32x8xf32> to vector<32x1xf32>
    %300 = vector.broadcast %299 : vector<32x1xf32> to vector<32x128xf32>
    %301 = arith.addf %296, %300 : vector<32x128xf32>
    %cst_93 = arith.constant 1.000000e+00 : f32
    %302 = vector.broadcast %cst_93 : f32 to vector<128x1xf32>
    %cst_94 = arith.constant dense<0.000000e+00> : vector<32x1xf32>
    %303 = tpu.matmul %301, %302, %cst_94 {dimension_numbers = #tpu.dot_dimension_numbers<[1], [0], [0], [1], [0, 0, 1, 1], [], []>} : vector<32x128xf32>, vector<128x1xf32>, vector<32x1xf32> -> vector<32x1xf32>
    %cst_95 = arith.constant 7.812500e-03 : f32
    %304 = vector.broadcast %cst_95 : f32 to vector<32x1xf32>
    %305 = arith.mulf %303, %304 : vector<32x1xf32>
    %306 = vector.broadcast %305 : vector<32x1xf32> to vector<32x128xf32>
    %307 = arith.subf %301, %306 : vector<32x128xf32>
    %308 = arith.mulf %307, %307 : vector<32x128xf32>
    %cst_96 = arith.constant dense<0.000000e+00> : vector<32x1xf32>
    %309 = tpu.matmul %308, %302, %cst_96 {dimension_numbers = #tpu.dot_dimension_numbers<[1], [0], [0], [1], [0, 0, 1, 1], [], []>} : vector<32x128xf32>, vector<128x1xf32>, vector<32x1xf32> -> vector<32x1xf32>
    %cst_97 = arith.constant 7.812500e-03 : f32
    %310 = vector.broadcast %cst_97 : f32 to vector<32x1xf32>
    %311 = arith.mulf %309, %310 : vector<32x1xf32>
    %cst_98 = arith.constant 9.99999974E-6 : f32
    %312 = vector.broadcast %cst_98 : f32 to vector<32x1xf32>
    %313 = arith.addf %311, %312 : vector<32x1xf32>
    %314 = math.rsqrt %313 : vector<32x1xf32>
    %315 = vector.extract_strided_slice %298 {offsets = [0, 1], sizes = [32, 1], strides = [1, 1]} : vector<32x8xf32> to vector<32x1xf32>
    %316 = arith.mulf %314, %315 : vector<32x1xf32>
    %317 = vector.broadcast %316 : vector<32x1xf32> to vector<32x128xf32>
    %318 = arith.mulf %307, %317 : vector<32x128xf32>
    %319 = vector.extract_strided_slice %298 {offsets = [0, 2], sizes = [32, 1], strides = [1, 1]} : vector<32x8xf32> to vector<32x1xf32>
    %320 = vector.broadcast %319 : vector<32x1xf32> to vector<32x128xf32>
    %321 = arith.addf %318, %320 : vector<32x128xf32>
    %cst_99 = arith.constant 0.000000e+00 : f32
    %322 = vector.broadcast %cst_99 : f32 to vector<32x128xf32>
    %323 = arith.maximumf %321, %322 : vector<32x128xf32>
    %c9_i32_100 = arith.constant 9 : i32
    %324 = tpu.dynamic_rotate %323 by %c9_i32_100 dim 1 : vector<32x128xf32>, i32 -> vector<32x128xf32>
    %325 = vector.extract_strided_slice %1 {offsets = [0, 0], sizes = [1, 128], strides = [1, 1]} : vector<16x128xf32> to vector<1x128xf32>
    %326 = vector.broadcast %325 : vector<1x128xf32> to vector<32x128xf32>
    %327 = arith.mulf %324, %326 : vector<32x128xf32>
    %c8_i32_101 = arith.constant 8 : i32
    %328 = tpu.dynamic_rotate %323 by %c8_i32_101 dim 1 : vector<32x128xf32>, i32 -> vector<32x128xf32>
    %329 = vector.extract_strided_slice %1 {offsets = [1, 0], sizes = [1, 128], strides = [1, 1]} : vector<16x128xf32> to vector<1x128xf32>
    %330 = vector.broadcast %329 : vector<1x128xf32> to vector<32x128xf32>
    %331 = arith.mulf %328, %330 : vector<32x128xf32>
    %c7_i32_102 = arith.constant 7 : i32
    %332 = tpu.dynamic_rotate %323 by %c7_i32_102 dim 1 : vector<32x128xf32>, i32 -> vector<32x128xf32>
    %333 = vector.extract_strided_slice %1 {offsets = [2, 0], sizes = [1, 128], strides = [1, 1]} : vector<16x128xf32> to vector<1x128xf32>
    %334 = vector.broadcast %333 : vector<1x128xf32> to vector<32x128xf32>
    %335 = arith.mulf %332, %334 : vector<32x128xf32>
    %c1_i32_103 = arith.constant 1 : i32
    %336 = tpu.dynamic_rotate %323 by %c1_i32_103 dim 1 : vector<32x128xf32>, i32 -> vector<32x128xf32>
    %337 = vector.extract_strided_slice %1 {offsets = [3, 0], sizes = [1, 128], strides = [1, 1]} : vector<16x128xf32> to vector<1x128xf32>
    %338 = vector.broadcast %337 : vector<1x128xf32> to vector<32x128xf32>
    %339 = arith.mulf %336, %338 : vector<32x128xf32>
    %c127_i32_104 = arith.constant 127 : i32
    %340 = tpu.dynamic_rotate %323 by %c127_i32_104 dim 1 : vector<32x128xf32>, i32 -> vector<32x128xf32>
    %341 = vector.extract_strided_slice %1 {offsets = [5, 0], sizes = [1, 128], strides = [1, 1]} : vector<16x128xf32> to vector<1x128xf32>
    %342 = vector.broadcast %341 : vector<1x128xf32> to vector<32x128xf32>
    %343 = arith.mulf %340, %342 : vector<32x128xf32>
    %c121_i32_105 = arith.constant 121 : i32
    %344 = tpu.dynamic_rotate %323 by %c121_i32_105 dim 1 : vector<32x128xf32>, i32 -> vector<32x128xf32>
    %345 = vector.extract_strided_slice %1 {offsets = [6, 0], sizes = [1, 128], strides = [1, 1]} : vector<16x128xf32> to vector<1x128xf32>
    %346 = vector.broadcast %345 : vector<1x128xf32> to vector<32x128xf32>
    %347 = arith.mulf %344, %346 : vector<32x128xf32>
    %c120_i32_106 = arith.constant 120 : i32
    %348 = tpu.dynamic_rotate %323 by %c120_i32_106 dim 1 : vector<32x128xf32>, i32 -> vector<32x128xf32>
    %349 = vector.extract_strided_slice %1 {offsets = [7, 0], sizes = [1, 128], strides = [1, 1]} : vector<16x128xf32> to vector<1x128xf32>
    %350 = vector.broadcast %349 : vector<1x128xf32> to vector<32x128xf32>
    %351 = arith.mulf %348, %350 : vector<32x128xf32>
    %c119_i32_107 = arith.constant 119 : i32
    %352 = tpu.dynamic_rotate %323 by %c119_i32_107 dim 1 : vector<32x128xf32>, i32 -> vector<32x128xf32>
    %353 = vector.extract_strided_slice %1 {offsets = [8, 0], sizes = [1, 128], strides = [1, 1]} : vector<16x128xf32> to vector<1x128xf32>
    %354 = vector.broadcast %353 : vector<1x128xf32> to vector<32x128xf32>
    %355 = arith.mulf %352, %354 : vector<32x128xf32>
    %356 = tpu.concatenate %327, %331, %335, %339, %323, %343, %347, %351, %355 in 0 : vector<32x128xf32>, vector<32x128xf32>, vector<32x128xf32>, vector<32x128xf32>, vector<32x128xf32>, vector<32x128xf32>, vector<32x128xf32>, vector<32x128xf32>, vector<32x128xf32> -> vector<288x128xf32>
    %c5 = arith.constant 5 : index
    %c0_108 = arith.constant 0 : index
    %c0_109 = arith.constant 0 : index
    %357 = vector.load %arg1[%c5, %c0_108, %c0_109] : memref<6x32x288xf32, #tpu.memory_space<vmem>>, vector<1x32x288xf32>
    %358 = vector.shape_cast %357 : vector<1x32x288xf32> to vector<32x288xf32>
    %cst_110 = arith.constant dense<0.000000e+00> : vector<32x128xf32>
    %359 = tpu.matmul %358, %356, %cst_110 {dimension_numbers = #tpu.dot_dimension_numbers<[1], [0], [0], [1], [0, 0, 1, 1], [], []>} : vector<32x288xf32>, vector<288x128xf32>, vector<32x128xf32> -> vector<32x128xf32>
    %c5_111 = arith.constant 5 : index
    %c0_112 = arith.constant 0 : index
    %c0_113 = arith.constant 0 : index
    %360 = vector.load %arg2[%c5_111, %c0_112, %c0_113] : memref<6x32x8xf32, #tpu.memory_space<vmem>>, vector<1x32x8xf32>
    %361 = vector.shape_cast %360 : vector<1x32x8xf32> to vector<32x8xf32>
    %362 = vector.extract_strided_slice %361 {offsets = [0, 0], sizes = [32, 1], strides = [1, 1]} : vector<32x8xf32> to vector<32x1xf32>
    %363 = vector.broadcast %362 : vector<32x1xf32> to vector<32x128xf32>
    %364 = arith.addf %359, %363 : vector<32x128xf32>
    %cst_114 = arith.constant 1.000000e+00 : f32
    %365 = vector.broadcast %cst_114 : f32 to vector<128x1xf32>
    %cst_115 = arith.constant dense<0.000000e+00> : vector<32x1xf32>
    %366 = tpu.matmul %364, %365, %cst_115 {dimension_numbers = #tpu.dot_dimension_numbers<[1], [0], [0], [1], [0, 0, 1, 1], [], []>} : vector<32x128xf32>, vector<128x1xf32>, vector<32x1xf32> -> vector<32x1xf32>
    %cst_116 = arith.constant 7.812500e-03 : f32
    %367 = vector.broadcast %cst_116 : f32 to vector<32x1xf32>
    %368 = arith.mulf %366, %367 : vector<32x1xf32>
    %369 = vector.broadcast %368 : vector<32x1xf32> to vector<32x128xf32>
    %370 = arith.subf %364, %369 : vector<32x128xf32>
    %371 = arith.mulf %370, %370 : vector<32x128xf32>
    %cst_117 = arith.constant dense<0.000000e+00> : vector<32x1xf32>
    %372 = tpu.matmul %371, %365, %cst_117 {dimension_numbers = #tpu.dot_dimension_numbers<[1], [0], [0], [1], [0, 0, 1, 1], [], []>} : vector<32x128xf32>, vector<128x1xf32>, vector<32x1xf32> -> vector<32x1xf32>
    %cst_118 = arith.constant 7.812500e-03 : f32
    %373 = vector.broadcast %cst_118 : f32 to vector<32x1xf32>
    %374 = arith.mulf %372, %373 : vector<32x1xf32>
    %cst_119 = arith.constant 9.99999974E-6 : f32
    %375 = vector.broadcast %cst_119 : f32 to vector<32x1xf32>
    %376 = arith.addf %374, %375 : vector<32x1xf32>
    %377 = math.rsqrt %376 : vector<32x1xf32>
    %378 = vector.extract_strided_slice %361 {offsets = [0, 1], sizes = [32, 1], strides = [1, 1]} : vector<32x8xf32> to vector<32x1xf32>
    %379 = arith.mulf %377, %378 : vector<32x1xf32>
    %380 = vector.broadcast %379 : vector<32x1xf32> to vector<32x128xf32>
    %381 = arith.mulf %370, %380 : vector<32x128xf32>
    %382 = vector.extract_strided_slice %361 {offsets = [0, 2], sizes = [32, 1], strides = [1, 1]} : vector<32x8xf32> to vector<32x1xf32>
    %383 = vector.broadcast %382 : vector<32x1xf32> to vector<32x128xf32>
    %384 = arith.addf %381, %383 : vector<32x128xf32>
    %cst_120 = arith.constant 0.000000e+00 : f32
    %385 = vector.broadcast %cst_120 : f32 to vector<32x128xf32>
    %386 = arith.maximumf %384, %385 : vector<32x128xf32>
    %387 = tpu.iota {dimensions = array<i32: 0>} : vector<128x128xi32>
    %388 = tpu.iota {dimensions = array<i32: 1>} : vector<128x128xi32>
    %389 = arith.cmpi eq, %387, %388 : vector<128x128xi32>
    %390 = arith.extui %389 : vector<128x128xi1> to vector<128x128xi32>
    %391 = arith.sitofp %390 : vector<128x128xi32> to vector<128x128xf32>
    %cst_121 = arith.constant dense<0.000000e+00> : vector<128x32xf32>
    %392 = tpu.matmul %391, %386, %cst_121 {dimension_numbers = #tpu.dot_dimension_numbers<[1], [1], [0], [0], [0, 0, 1, 0], [], []>} : vector<128x128xf32>, vector<32x128xf32>, vector<128x32xf32> -> vector<128x32xf32>
    %c0_122 = arith.constant 0 : index
    %c0_123 = arith.constant 0 : index
    %393 = vector.load %arg10[%c0_122, %c0_123] : memref<16x128xf32, #tpu.memory_space<vmem>>, vector<16x128xf32>
    %394 = vector.extract_strided_slice %393 {offsets = [0, 0], sizes = [1, 32], strides = [1, 1]} : vector<16x128xf32> to vector<1x32xf32>
    %395 = vector.extract_strided_slice %393 {offsets = [1, 0], sizes = [1, 32], strides = [1, 1]} : vector<16x128xf32> to vector<1x32xf32>
    %396 = vector.extract_strided_slice %393 {offsets = [2, 0], sizes = [1, 96], strides = [1, 1]} : vector<16x128xf32> to vector<1x96xf32>
    %397 = vector.extract_strided_slice %393 {offsets = [3, 0], sizes = [1, 32], strides = [1, 1]} : vector<16x128xf32> to vector<1x32xf32>
    %398 = vector.extract_strided_slice %393 {offsets = [4, 0], sizes = [1, 32], strides = [1, 1]} : vector<16x128xf32> to vector<1x32xf32>
    %399 = vector.extract_strided_slice %393 {offsets = [5, 0], sizes = [1, 64], strides = [1, 1]} : vector<16x128xf32> to vector<1x64xf32>
    %400 = vector.extract_strided_slice %393 {offsets = [6, 0], sizes = [1, 32], strides = [1, 1]} : vector<16x128xf32> to vector<1x32xf32>
    %401 = vector.extract_strided_slice %393 {offsets = [7, 0], sizes = [1, 32], strides = [1, 1]} : vector<16x128xf32> to vector<1x32xf32>
    %402 = vector.extract_strided_slice %393 {offsets = [8, 0], sizes = [1, 32], strides = [1, 1]} : vector<16x128xf32> to vector<1x32xf32>
    %403 = vector.extract_strided_slice %393 {offsets = [9, 0], sizes = [1, 32], strides = [1, 1]} : vector<16x128xf32> to vector<1x32xf32>
    %404 = vector.extract_strided_slice %393 {offsets = [10, 0], sizes = [1, 32], strides = [1, 1]} : vector<16x128xf32> to vector<1x32xf32>
    %405 = vector.extract_strided_slice %393 {offsets = [11, 0], sizes = [1, 32], strides = [1, 1]} : vector<16x128xf32> to vector<1x32xf32>
    %406 = vector.extract_strided_slice %393 {offsets = [12, 0], sizes = [1, 32], strides = [1, 1]} : vector<16x128xf32> to vector<1x32xf32>
    %407 = vector.extract_strided_slice %393 {offsets = [13, 0], sizes = [1, 64], strides = [1, 1]} : vector<16x128xf32> to vector<1x64xf32>
    %408 = vector.extract_strided_slice %393 {offsets = [14, 0], sizes = [1, 32], strides = [1, 1]} : vector<16x128xf32> to vector<1x32xf32>
    %409 = vector.extract_strided_slice %393 {offsets = [15, 0], sizes = [1, 128], strides = [1, 1]} : vector<16x128xf32> to vector<1x128xf32>
    %c0_124 = arith.constant 0 : index
    %c0_125 = arith.constant 0 : index
    %c0_126 = arith.constant 0 : index
    %410 = vector.load %arg9[%c0_124, %c0_125, %c0_126] : memref<8x64x128xf32, #tpu.memory_space<vmem>>, vector<1x64x128xf32>
    %411 = vector.shape_cast %410 : vector<1x64x128xf32> to vector<64x128xf32>
    %412 = vector.extract_strided_slice %411 {offsets = [0, 0], sizes = [32, 96], strides = [1, 1]} : vector<64x128xf32> to vector<32x96xf32>
    %c1_127 = arith.constant 1 : index
    %c0_128 = arith.constant 0 : index
    %c0_129 = arith.constant 0 : index
    %413 = vector.load %arg9[%c1_127, %c0_128, %c0_129] : memref<8x64x128xf32, #tpu.memory_space<vmem>>, vector<1x64x128xf32>
    %414 = vector.shape_cast %413 : vector<1x64x128xf32> to vector<64x128xf32>
    %415 = vector.extract_strided_slice %414 {offsets = [0, 0], sizes = [32, 32], strides = [1, 1]} : vector<64x128xf32> to vector<32x32xf32>
    %c2_130 = arith.constant 2 : index
    %c0_131 = arith.constant 0 : index
    %c0_132 = arith.constant 0 : index
    %416 = vector.load %arg9[%c2_130, %c0_131, %c0_132] : memref<8x64x128xf32, #tpu.memory_space<vmem>>, vector<1x64x128xf32>
    %417 = vector.shape_cast %416 : vector<1x64x128xf32> to vector<64x128xf32>
    %418 = vector.extract_strided_slice %417 {offsets = [0, 0], sizes = [32, 64], strides = [1, 1]} : vector<64x128xf32> to vector<32x64xf32>
    %c3_133 = arith.constant 3 : index
    %c0_134 = arith.constant 0 : index
    %c0_135 = arith.constant 0 : index
    %419 = vector.load %arg9[%c3_133, %c0_134, %c0_135] : memref<8x64x128xf32, #tpu.memory_space<vmem>>, vector<1x64x128xf32>
    %420 = vector.shape_cast %419 : vector<1x64x128xf32> to vector<64x128xf32>
    %421 = vector.extract_strided_slice %420 {offsets = [0, 0], sizes = [32, 32], strides = [1, 1]} : vector<64x128xf32> to vector<32x32xf32>
    %c4_136 = arith.constant 4 : index
    %c0_137 = arith.constant 0 : index
    %c0_138 = arith.constant 0 : index
    %422 = vector.load %arg9[%c4_136, %c0_137, %c0_138] : memref<8x64x128xf32, #tpu.memory_space<vmem>>, vector<1x64x128xf32>
    %423 = vector.shape_cast %422 : vector<1x64x128xf32> to vector<64x128xf32>
    %424 = vector.extract_strided_slice %423 {offsets = [0, 0], sizes = [32, 32], strides = [1, 1]} : vector<64x128xf32> to vector<32x32xf32>
    %c5_139 = arith.constant 5 : index
    %c0_140 = arith.constant 0 : index
    %c0_141 = arith.constant 0 : index
    %425 = vector.load %arg9[%c5_139, %c0_140, %c0_141] : memref<8x64x128xf32, #tpu.memory_space<vmem>>, vector<1x64x128xf32>
    %426 = vector.shape_cast %425 : vector<1x64x128xf32> to vector<64x128xf32>
    %427 = vector.extract_strided_slice %426 {offsets = [0, 0], sizes = [32, 64], strides = [1, 1]} : vector<64x128xf32> to vector<32x64xf32>
    %c6 = arith.constant 6 : index
    %c0_142 = arith.constant 0 : index
    %c0_143 = arith.constant 0 : index
    %428 = vector.load %arg9[%c6, %c0_142, %c0_143] : memref<8x64x128xf32, #tpu.memory_space<vmem>>, vector<1x64x128xf32>
    %429 = vector.shape_cast %428 : vector<1x64x128xf32> to vector<64x128xf32>
    %430 = vector.extract_strided_slice %429 {offsets = [0, 0], sizes = [64, 32], strides = [1, 1]} : vector<64x128xf32> to vector<64x32xf32>
    %c7 = arith.constant 7 : index
    %c0_144 = arith.constant 0 : index
    %c0_145 = arith.constant 0 : index
    %431 = vector.load %arg9[%c7, %c0_144, %c0_145] : memref<8x64x128xf32, #tpu.memory_space<vmem>>, vector<1x64x128xf32>
    %432 = vector.shape_cast %431 : vector<1x64x128xf32> to vector<64x128xf32>
    %433 = vector.extract_strided_slice %432 {offsets = [0, 0], sizes = [32, 128], strides = [1, 1]} : vector<64x128xf32> to vector<32x128xf32>
    %c0_146 = arith.constant 0 : index
    %c0_147 = arith.constant 0 : index
    %434 = vector.load %arg7[%c0_146, %c0_147] : memref<16x16xf32, #tpu.memory_space<vmem>>, vector<16x16xf32>
    %c0_148 = arith.constant 0 : index
    %c0_149 = arith.constant 0 : index
    %435 = vector.load %arg8[%c0_148, %c0_149] : memref<16x128xf32, #tpu.memory_space<vmem>>, vector<16x128xf32>
    %c0_150 = arith.constant 0 : index
    %c0_151 = arith.constant 0 : index
    %436 = vector.load %arg6[%c0_150, %c0_151] : memref<16x32xf32, #tpu.memory_space<vmem>>, vector<16x32xf32>
    %cst_152 = arith.constant dense<0.000000e+00> : vector<16xf32>
    %437 = vector.multi_reduction <add>, %436, %cst_152 [1] : vector<16x32xf32> to vector<16xf32>
    %438 = vector.shape_cast %437 : vector<16xf32> to vector<16x1xf32>
    %cst_153 = arith.constant 3.200000e+01 : f32
    %439 = vector.broadcast %cst_153 : f32 to vector<16x1xf32>
    %440 = arith.divf %438, %439 : vector<16x1xf32>
    %441 = vector.broadcast %440 : vector<16x1xf32> to vector<16x32xf32>
    %442 = arith.subf %436, %441 : vector<16x32xf32>
    %443 = arith.mulf %442, %442 : vector<16x32xf32>
    %cst_154 = arith.constant dense<0.000000e+00> : vector<16xf32>
    %444 = vector.multi_reduction <add>, %443, %cst_154 [1] : vector<16x32xf32> to vector<16xf32>
    %445 = vector.shape_cast %444 : vector<16xf32> to vector<16x1xf32>
    %cst_155 = arith.constant 3.200000e+01 : f32
    %446 = vector.broadcast %cst_155 : f32 to vector<16x1xf32>
    %447 = arith.divf %445, %446 : vector<16x1xf32>
    %448 = vector.broadcast %440 : vector<16x1xf32> to vector<16x32xf32>
    %449 = arith.subf %436, %448 : vector<16x32xf32>
    %cst_156 = arith.constant 9.99999974E-6 : f32
    %450 = vector.broadcast %cst_156 : f32 to vector<16x1xf32>
    %451 = arith.addf %447, %450 : vector<16x1xf32>
    %452 = math.rsqrt %451 : vector<16x1xf32>
    %453 = vector.broadcast %452 : vector<16x1xf32> to vector<16x32xf32>
    %454 = arith.mulf %449, %453 : vector<16x32xf32>
    %455 = vector.broadcast %394 : vector<1x32xf32> to vector<16x32xf32>
    %456 = arith.mulf %454, %455 : vector<16x32xf32>
    %457 = vector.broadcast %395 : vector<1x32xf32> to vector<16x32xf32>
    %458 = arith.addf %456, %457 : vector<16x32xf32>
    %cst_157 = arith.constant dense<0.000000e+00> : vector<16x96xf32>
    %459 = tpu.matmul %458, %412, %cst_157 {dimension_numbers = #tpu.dot_dimension_numbers<[1], [0], [0], [1], [0, 0, 1, 1], [], []>} : vector<16x32xf32>, vector<32x96xf32>, vector<16x96xf32> -> vector<16x96xf32>
    %460 = vector.broadcast %396 : vector<1x96xf32> to vector<16x96xf32>
    %461 = arith.addf %459, %460 : vector<16x96xf32>
    %462 = vector.extract_strided_slice %461 {offsets = [0, 0], sizes = [16, 32], strides = [1, 1]} : vector<16x96xf32> to vector<16x32xf32>
    %463 = vector.extract_strided_slice %461 {offsets = [0, 32], sizes = [16, 32], strides = [1, 1]} : vector<16x96xf32> to vector<16x32xf32>
    %464 = vector.extract_strided_slice %461 {offsets = [0, 64], sizes = [16, 32], strides = [1, 1]} : vector<16x96xf32> to vector<16x32xf32>
    %465 = vector.extract_strided_slice %462 {offsets = [0, 0], sizes = [16, 8], strides = [1, 1]} : vector<16x32xf32> to vector<16x8xf32>
    %466 = vector.extract_strided_slice %463 {offsets = [0, 0], sizes = [16, 8], strides = [1, 1]} : vector<16x32xf32> to vector<16x8xf32>
    %cst_158 = arith.constant dense<0.000000e+00> : vector<16x16xf32>
    %467 = tpu.matmul %465, %466, %cst_158 {dimension_numbers = #tpu.dot_dimension_numbers<[1], [1], [0], [0], [0, 0, 1, 0], [], []>} : vector<16x8xf32>, vector<16x8xf32>, vector<16x16xf32> -> vector<16x16xf32>
    %468 = arith.addf %467, %434 : vector<16x16xf32>
    %cst_159 = arith.constant dense<0xFF800000> : vector<16xf32>
    %469 = vector.multi_reduction <maximumf>, %468, %cst_159 [1] : vector<16x16xf32> to vector<16xf32>
    %470 = vector.shape_cast %469 : vector<16xf32> to vector<16x1xf32>
    %471 = vector.broadcast %470 : vector<16x1xf32> to vector<16x16xf32>
    %472 = arith.subf %468, %471 : vector<16x16xf32>
    %473 = math.exp %472 : vector<16x16xf32>
    %cst_160 = arith.constant dense<0.000000e+00> : vector<16xf32>
    %474 = vector.multi_reduction <add>, %473, %cst_160 [1] : vector<16x16xf32> to vector<16xf32>
    %475 = vector.shape_cast %474 : vector<16xf32> to vector<16x1xf32>
    %476 = tpu.reciprocal %475 {approx = true} : vector<16x1xf32> -> vector<16x1xf32>
    %477 = vector.broadcast %476 : vector<16x1xf32> to vector<16x16xf32>
    %478 = arith.mulf %473, %477 : vector<16x16xf32>
    %479 = vector.extract_strided_slice %464 {offsets = [0, 0], sizes = [16, 8], strides = [1, 1]} : vector<16x32xf32> to vector<16x8xf32>
    %cst_161 = arith.constant dense<0.000000e+00> : vector<16x8xf32>
    %480 = tpu.matmul %478, %479, %cst_161 {dimension_numbers = #tpu.dot_dimension_numbers<[1], [0], [0], [1], [0, 0, 1, 1], [], []>} : vector<16x16xf32>, vector<16x8xf32>, vector<16x8xf32> -> vector<16x8xf32>
    %481 = vector.extract_strided_slice %462 {offsets = [0, 8], sizes = [16, 8], strides = [1, 1]} : vector<16x32xf32> to vector<16x8xf32>
    %482 = vector.extract_strided_slice %463 {offsets = [0, 8], sizes = [16, 8], strides = [1, 1]} : vector<16x32xf32> to vector<16x8xf32>
    %cst_162 = arith.constant dense<0.000000e+00> : vector<16x16xf32>
    %483 = tpu.matmul %481, %482, %cst_162 {dimension_numbers = #tpu.dot_dimension_numbers<[1], [1], [0], [0], [0, 0, 1, 0], [], []>} : vector<16x8xf32>, vector<16x8xf32>, vector<16x16xf32> -> vector<16x16xf32>
    %484 = arith.addf %483, %434 : vector<16x16xf32>
    %cst_163 = arith.constant dense<0xFF800000> : vector<16xf32>
    %485 = vector.multi_reduction <maximumf>, %484, %cst_163 [1] : vector<16x16xf32> to vector<16xf32>
    %486 = vector.shape_cast %485 : vector<16xf32> to vector<16x1xf32>
    %487 = vector.broadcast %486 : vector<16x1xf32> to vector<16x16xf32>
    %488 = arith.subf %484, %487 : vector<16x16xf32>
    %489 = math.exp %488 : vector<16x16xf32>
    %cst_164 = arith.constant dense<0.000000e+00> : vector<16xf32>
    %490 = vector.multi_reduction <add>, %489, %cst_164 [1] : vector<16x16xf32> to vector<16xf32>
    %491 = vector.shape_cast %490 : vector<16xf32> to vector<16x1xf32>
    %492 = tpu.reciprocal %491 {approx = true} : vector<16x1xf32> -> vector<16x1xf32>
    %493 = vector.broadcast %492 : vector<16x1xf32> to vector<16x16xf32>
    %494 = arith.mulf %489, %493 : vector<16x16xf32>
    %495 = vector.extract_strided_slice %464 {offsets = [0, 8], sizes = [16, 8], strides = [1, 1]} : vector<16x32xf32> to vector<16x8xf32>
    %cst_165 = arith.constant dense<0.000000e+00> : vector<16x8xf32>
    %496 = tpu.matmul %494, %495, %cst_165 {dimension_numbers = #tpu.dot_dimension_numbers<[1], [0], [0], [1], [0, 0, 1, 1], [], []>} : vector<16x16xf32>, vector<16x8xf32>, vector<16x8xf32> -> vector<16x8xf32>
    %497 = vector.extract_strided_slice %462 {offsets = [0, 16], sizes = [16, 8], strides = [1, 1]} : vector<16x32xf32> to vector<16x8xf32>
    %498 = vector.extract_strided_slice %463 {offsets = [0, 16], sizes = [16, 8], strides = [1, 1]} : vector<16x32xf32> to vector<16x8xf32>
    %cst_166 = arith.constant dense<0.000000e+00> : vector<16x16xf32>
    %499 = tpu.matmul %497, %498, %cst_166 {dimension_numbers = #tpu.dot_dimension_numbers<[1], [1], [0], [0], [0, 0, 1, 0], [], []>} : vector<16x8xf32>, vector<16x8xf32>, vector<16x16xf32> -> vector<16x16xf32>
    %500 = arith.addf %499, %434 : vector<16x16xf32>
    %cst_167 = arith.constant dense<0xFF800000> : vector<16xf32>
    %501 = vector.multi_reduction <maximumf>, %500, %cst_167 [1] : vector<16x16xf32> to vector<16xf32>
    %502 = vector.shape_cast %501 : vector<16xf32> to vector<16x1xf32>
    %503 = vector.broadcast %502 : vector<16x1xf32> to vector<16x16xf32>
    %504 = arith.subf %500, %503 : vector<16x16xf32>
    %505 = math.exp %504 : vector<16x16xf32>
    %cst_168 = arith.constant dense<0.000000e+00> : vector<16xf32>
    %506 = vector.multi_reduction <add>, %505, %cst_168 [1] : vector<16x16xf32> to vector<16xf32>
    %507 = vector.shape_cast %506 : vector<16xf32> to vector<16x1xf32>
    %508 = tpu.reciprocal %507 {approx = true} : vector<16x1xf32> -> vector<16x1xf32>
    %509 = vector.broadcast %508 : vector<16x1xf32> to vector<16x16xf32>
    %510 = arith.mulf %505, %509 : vector<16x16xf32>
    %511 = vector.extract_strided_slice %464 {offsets = [0, 16], sizes = [16, 8], strides = [1, 1]} : vector<16x32xf32> to vector<16x8xf32>
    %cst_169 = arith.constant dense<0.000000e+00> : vector<16x8xf32>
    %512 = tpu.matmul %510, %511, %cst_169 {dimension_numbers = #tpu.dot_dimension_numbers<[1], [0], [0], [1], [0, 0, 1, 1], [], []>} : vector<16x16xf32>, vector<16x8xf32>, vector<16x8xf32> -> vector<16x8xf32>
    %513 = vector.extract_strided_slice %462 {offsets = [0, 24], sizes = [16, 8], strides = [1, 1]} : vector<16x32xf32> to vector<16x8xf32>
    %514 = vector.extract_strided_slice %463 {offsets = [0, 24], sizes = [16, 8], strides = [1, 1]} : vector<16x32xf32> to vector<16x8xf32>
    %cst_170 = arith.constant dense<0.000000e+00> : vector<16x16xf32>
    %515 = tpu.matmul %513, %514, %cst_170 {dimension_numbers = #tpu.dot_dimension_numbers<[1], [1], [0], [0], [0, 0, 1, 0], [], []>} : vector<16x8xf32>, vector<16x8xf32>, vector<16x16xf32> -> vector<16x16xf32>
    %516 = arith.addf %515, %434 : vector<16x16xf32>
    %cst_171 = arith.constant dense<0xFF800000> : vector<16xf32>
    %517 = vector.multi_reduction <maximumf>, %516, %cst_171 [1] : vector<16x16xf32> to vector<16xf32>
    %518 = vector.shape_cast %517 : vector<16xf32> to vector<16x1xf32>
    %519 = vector.broadcast %518 : vector<16x1xf32> to vector<16x16xf32>
    %520 = arith.subf %516, %519 : vector<16x16xf32>
    %521 = math.exp %520 : vector<16x16xf32>
    %cst_172 = arith.constant dense<0.000000e+00> : vector<16xf32>
    %522 = vector.multi_reduction <add>, %521, %cst_172 [1] : vector<16x16xf32> to vector<16xf32>
    %523 = vector.shape_cast %522 : vector<16xf32> to vector<16x1xf32>
    %524 = tpu.reciprocal %523 {approx = true} : vector<16x1xf32> -> vector<16x1xf32>
    %525 = vector.broadcast %524 : vector<16x1xf32> to vector<16x16xf32>
    %526 = arith.mulf %521, %525 : vector<16x16xf32>
    %527 = vector.extract_strided_slice %464 {offsets = [0, 24], sizes = [16, 8], strides = [1, 1]} : vector<16x32xf32> to vector<16x8xf32>
    %cst_173 = arith.constant dense<0.000000e+00> : vector<16x8xf32>
    %528 = tpu.matmul %526, %527, %cst_173 {dimension_numbers = #tpu.dot_dimension_numbers<[1], [0], [0], [1], [0, 0, 1, 1], [], []>} : vector<16x16xf32>, vector<16x8xf32>, vector<16x8xf32> -> vector<16x8xf32>
    %529 = tpu.concatenate %480, %496, %512, %528 in 1 : vector<16x8xf32>, vector<16x8xf32>, vector<16x8xf32>, vector<16x8xf32> -> vector<16x32xf32>
    %cst_174 = arith.constant dense<0.000000e+00> : vector<16x32xf32>
    %530 = tpu.matmul %529, %421, %cst_174 {dimension_numbers = #tpu.dot_dimension_numbers<[1], [0], [0], [1], [0, 0, 1, 1], [], []>} : vector<16x32xf32>, vector<32x32xf32>, vector<16x32xf32> -> vector<16x32xf32>
    %531 = vector.broadcast %397 : vector<1x32xf32> to vector<16x32xf32>
    %532 = arith.addf %530, %531 : vector<16x32xf32>
    %533 = arith.addf %458, %532 : vector<16x32xf32>
    %cst_175 = arith.constant dense<0.000000e+00> : vector<16xf32>
    %534 = vector.multi_reduction <add>, %533, %cst_175 [1] : vector<16x32xf32> to vector<16xf32>
    %535 = vector.shape_cast %534 : vector<16xf32> to vector<16x1xf32>
    %cst_176 = arith.constant 3.200000e+01 : f32
    %536 = vector.broadcast %cst_176 : f32 to vector<16x1xf32>
    %537 = arith.divf %535, %536 : vector<16x1xf32>
    %538 = vector.broadcast %537 : vector<16x1xf32> to vector<16x32xf32>
    %539 = arith.subf %533, %538 : vector<16x32xf32>
    %540 = arith.mulf %539, %539 : vector<16x32xf32>
    %cst_177 = arith.constant dense<0.000000e+00> : vector<16xf32>
    %541 = vector.multi_reduction <add>, %540, %cst_177 [1] : vector<16x32xf32> to vector<16xf32>
    %542 = vector.shape_cast %541 : vector<16xf32> to vector<16x1xf32>
    %cst_178 = arith.constant 3.200000e+01 : f32
    %543 = vector.broadcast %cst_178 : f32 to vector<16x1xf32>
    %544 = arith.divf %542, %543 : vector<16x1xf32>
    %545 = vector.broadcast %537 : vector<16x1xf32> to vector<16x32xf32>
    %546 = arith.subf %533, %545 : vector<16x32xf32>
    %cst_179 = arith.constant 9.99999974E-6 : f32
    %547 = vector.broadcast %cst_179 : f32 to vector<16x1xf32>
    %548 = arith.addf %544, %547 : vector<16x1xf32>
    %549 = math.rsqrt %548 : vector<16x1xf32>
    %550 = vector.broadcast %549 : vector<16x1xf32> to vector<16x32xf32>
    %551 = arith.mulf %546, %550 : vector<16x32xf32>
    %552 = vector.broadcast %401 : vector<1x32xf32> to vector<16x32xf32>
    %553 = arith.mulf %551, %552 : vector<16x32xf32>
    %554 = vector.broadcast %402 : vector<1x32xf32> to vector<16x32xf32>
    %555 = arith.addf %553, %554 : vector<16x32xf32>
    %cst_180 = arith.constant dense<0.000000e+00> : vector<16x32xf32>
    %556 = tpu.matmul %555, %415, %cst_180 {dimension_numbers = #tpu.dot_dimension_numbers<[1], [0], [0], [1], [0, 0, 1, 1], [], []>} : vector<16x32xf32>, vector<32x32xf32>, vector<16x32xf32> -> vector<16x32xf32>
    %557 = vector.broadcast %398 : vector<1x32xf32> to vector<16x32xf32>
    %558 = arith.addf %556, %557 : vector<16x32xf32>
    %cst_181 = arith.constant dense<0.000000e+00> : vector<128x64xf32>
    %559 = tpu.matmul %392, %418, %cst_181 {dimension_numbers = #tpu.dot_dimension_numbers<[1], [0], [0], [1], [0, 0, 1, 1], [], []>} : vector<128x32xf32>, vector<32x64xf32>, vector<128x64xf32> -> vector<128x64xf32>
    %560 = vector.broadcast %399 : vector<1x64xf32> to vector<128x64xf32>
    %561 = arith.addf %559, %560 : vector<128x64xf32>
    %562 = vector.extract_strided_slice %561 {offsets = [0, 0], sizes = [128, 32], strides = [1, 1]} : vector<128x64xf32> to vector<128x32xf32>
    %563 = vector.extract_strided_slice %561 {offsets = [0, 32], sizes = [128, 32], strides = [1, 1]} : vector<128x64xf32> to vector<128x32xf32>
    %564 = vector.extract_strided_slice %558 {offsets = [0, 0], sizes = [16, 8], strides = [1, 1]} : vector<16x32xf32> to vector<16x8xf32>
    %565 = vector.extract_strided_slice %562 {offsets = [0, 0], sizes = [128, 8], strides = [1, 1]} : vector<128x32xf32> to vector<128x8xf32>
    %cst_182 = arith.constant dense<0.000000e+00> : vector<16x128xf32>
    %566 = tpu.matmul %564, %565, %cst_182 {dimension_numbers = #tpu.dot_dimension_numbers<[1], [1], [0], [0], [0, 0, 1, 0], [], []>} : vector<16x8xf32>, vector<128x8xf32>, vector<16x128xf32> -> vector<16x128xf32>
    %567 = arith.addf %566, %435 : vector<16x128xf32>
    %cst_183 = arith.constant dense<0xFF800000> : vector<16xf32>
    %568 = vector.multi_reduction <maximumf>, %567, %cst_183 [1] : vector<16x128xf32> to vector<16xf32>
    %569 = vector.shape_cast %568 : vector<16xf32> to vector<16x1xf32>
    %570 = vector.broadcast %569 : vector<16x1xf32> to vector<16x128xf32>
    %571 = arith.subf %567, %570 : vector<16x128xf32>
    %572 = math.exp %571 : vector<16x128xf32>
    %cst_184 = arith.constant dense<0.000000e+00> : vector<16xf32>
    %573 = vector.multi_reduction <add>, %572, %cst_184 [1] : vector<16x128xf32> to vector<16xf32>
    %574 = vector.shape_cast %573 : vector<16xf32> to vector<16x1xf32>
    %575 = tpu.reciprocal %574 {approx = true} : vector<16x1xf32> -> vector<16x1xf32>
    %576 = vector.broadcast %575 : vector<16x1xf32> to vector<16x128xf32>
    %577 = arith.mulf %572, %576 : vector<16x128xf32>
    %578 = vector.extract_strided_slice %563 {offsets = [0, 0], sizes = [128, 8], strides = [1, 1]} : vector<128x32xf32> to vector<128x8xf32>
    %cst_185 = arith.constant dense<0.000000e+00> : vector<16x8xf32>
    %579 = tpu.matmul %577, %578, %cst_185 {dimension_numbers = #tpu.dot_dimension_numbers<[1], [0], [0], [1], [0, 0, 1, 1], [], []>} : vector<16x128xf32>, vector<128x8xf32>, vector<16x8xf32> -> vector<16x8xf32>
    %580 = vector.extract_strided_slice %558 {offsets = [0, 8], sizes = [16, 8], strides = [1, 1]} : vector<16x32xf32> to vector<16x8xf32>
    %581 = vector.extract_strided_slice %562 {offsets = [0, 8], sizes = [128, 8], strides = [1, 1]} : vector<128x32xf32> to vector<128x8xf32>
    %cst_186 = arith.constant dense<0.000000e+00> : vector<16x128xf32>
    %582 = tpu.matmul %580, %581, %cst_186 {dimension_numbers = #tpu.dot_dimension_numbers<[1], [1], [0], [0], [0, 0, 1, 0], [], []>} : vector<16x8xf32>, vector<128x8xf32>, vector<16x128xf32> -> vector<16x128xf32>
    %583 = arith.addf %582, %435 : vector<16x128xf32>
    %cst_187 = arith.constant dense<0xFF800000> : vector<16xf32>
    %584 = vector.multi_reduction <maximumf>, %583, %cst_187 [1] : vector<16x128xf32> to vector<16xf32>
    %585 = vector.shape_cast %584 : vector<16xf32> to vector<16x1xf32>
    %586 = vector.broadcast %585 : vector<16x1xf32> to vector<16x128xf32>
    %587 = arith.subf %583, %586 : vector<16x128xf32>
    %588 = math.exp %587 : vector<16x128xf32>
    %cst_188 = arith.constant dense<0.000000e+00> : vector<16xf32>
    %589 = vector.multi_reduction <add>, %588, %cst_188 [1] : vector<16x128xf32> to vector<16xf32>
    %590 = vector.shape_cast %589 : vector<16xf32> to vector<16x1xf32>
    %591 = tpu.reciprocal %590 {approx = true} : vector<16x1xf32> -> vector<16x1xf32>
    %592 = vector.broadcast %591 : vector<16x1xf32> to vector<16x128xf32>
    %593 = arith.mulf %588, %592 : vector<16x128xf32>
    %594 = vector.extract_strided_slice %563 {offsets = [0, 8], sizes = [128, 8], strides = [1, 1]} : vector<128x32xf32> to vector<128x8xf32>
    %cst_189 = arith.constant dense<0.000000e+00> : vector<16x8xf32>
    %595 = tpu.matmul %593, %594, %cst_189 {dimension_numbers = #tpu.dot_dimension_numbers<[1], [0], [0], [1], [0, 0, 1, 1], [], []>} : vector<16x128xf32>, vector<128x8xf32>, vector<16x8xf32> -> vector<16x8xf32>
    %596 = vector.extract_strided_slice %558 {offsets = [0, 16], sizes = [16, 8], strides = [1, 1]} : vector<16x32xf32> to vector<16x8xf32>
    %597 = vector.extract_strided_slice %562 {offsets = [0, 16], sizes = [128, 8], strides = [1, 1]} : vector<128x32xf32> to vector<128x8xf32>
    %cst_190 = arith.constant dense<0.000000e+00> : vector<16x128xf32>
    %598 = tpu.matmul %596, %597, %cst_190 {dimension_numbers = #tpu.dot_dimension_numbers<[1], [1], [0], [0], [0, 0, 1, 0], [], []>} : vector<16x8xf32>, vector<128x8xf32>, vector<16x128xf32> -> vector<16x128xf32>
    %599 = arith.addf %598, %435 : vector<16x128xf32>
    %cst_191 = arith.constant dense<0xFF800000> : vector<16xf32>
    %600 = vector.multi_reduction <maximumf>, %599, %cst_191 [1] : vector<16x128xf32> to vector<16xf32>
    %601 = vector.shape_cast %600 : vector<16xf32> to vector<16x1xf32>
    %602 = vector.broadcast %601 : vector<16x1xf32> to vector<16x128xf32>
    %603 = arith.subf %599, %602 : vector<16x128xf32>
    %604 = math.exp %603 : vector<16x128xf32>
    %cst_192 = arith.constant dense<0.000000e+00> : vector<16xf32>
    %605 = vector.multi_reduction <add>, %604, %cst_192 [1] : vector<16x128xf32> to vector<16xf32>
    %606 = vector.shape_cast %605 : vector<16xf32> to vector<16x1xf32>
    %607 = tpu.reciprocal %606 {approx = true} : vector<16x1xf32> -> vector<16x1xf32>
    %608 = vector.broadcast %607 : vector<16x1xf32> to vector<16x128xf32>
    %609 = arith.mulf %604, %608 : vector<16x128xf32>
    %610 = vector.extract_strided_slice %563 {offsets = [0, 16], sizes = [128, 8], strides = [1, 1]} : vector<128x32xf32> to vector<128x8xf32>
    %cst_193 = arith.constant dense<0.000000e+00> : vector<16x8xf32>
    %611 = tpu.matmul %609, %610, %cst_193 {dimension_numbers = #tpu.dot_dimension_numbers<[1], [0], [0], [1], [0, 0, 1, 1], [], []>} : vector<16x128xf32>, vector<128x8xf32>, vector<16x8xf32> -> vector<16x8xf32>
    %612 = vector.extract_strided_slice %558 {offsets = [0, 24], sizes = [16, 8], strides = [1, 1]} : vector<16x32xf32> to vector<16x8xf32>
    %613 = vector.extract_strided_slice %562 {offsets = [0, 24], sizes = [128, 8], strides = [1, 1]} : vector<128x32xf32> to vector<128x8xf32>
    %cst_194 = arith.constant dense<0.000000e+00> : vector<16x128xf32>
    %614 = tpu.matmul %612, %613, %cst_194 {dimension_numbers = #tpu.dot_dimension_numbers<[1], [1], [0], [0], [0, 0, 1, 0], [], []>} : vector<16x8xf32>, vector<128x8xf32>, vector<16x128xf32> -> vector<16x128xf32>
    %615 = arith.addf %614, %435 : vector<16x128xf32>
    %cst_195 = arith.constant dense<0xFF800000> : vector<16xf32>
    %616 = vector.multi_reduction <maximumf>, %615, %cst_195 [1] : vector<16x128xf32> to vector<16xf32>
    %617 = vector.shape_cast %616 : vector<16xf32> to vector<16x1xf32>
    %618 = vector.broadcast %617 : vector<16x1xf32> to vector<16x128xf32>
    %619 = arith.subf %615, %618 : vector<16x128xf32>
    %620 = math.exp %619 : vector<16x128xf32>
    %cst_196 = arith.constant dense<0.000000e+00> : vector<16xf32>
    %621 = vector.multi_reduction <add>, %620, %cst_196 [1] : vector<16x128xf32> to vector<16xf32>
    %622 = vector.shape_cast %621 : vector<16xf32> to vector<16x1xf32>
    %623 = tpu.reciprocal %622 {approx = true} : vector<16x1xf32> -> vector<16x1xf32>
    %624 = vector.broadcast %623 : vector<16x1xf32> to vector<16x128xf32>
    %625 = arith.mulf %620, %624 : vector<16x128xf32>
    %626 = vector.extract_strided_slice %563 {offsets = [0, 24], sizes = [128, 8], strides = [1, 1]} : vector<128x32xf32> to vector<128x8xf32>
    %cst_197 = arith.constant dense<0.000000e+00> : vector<16x8xf32>
    %627 = tpu.matmul %625, %626, %cst_197 {dimension_numbers = #tpu.dot_dimension_numbers<[1], [0], [0], [1], [0, 0, 1, 1], [], []>} : vector<16x128xf32>, vector<128x8xf32>, vector<16x8xf32> -> vector<16x8xf32>
    %628 = tpu.concatenate %579, %595, %611, %627 in 1 : vector<16x8xf32>, vector<16x8xf32>, vector<16x8xf32>, vector<16x8xf32> -> vector<16x32xf32>
    %cst_198 = arith.constant dense<0.000000e+00> : vector<16x32xf32>
    %629 = tpu.matmul %628, %424, %cst_198 {dimension_numbers = #tpu.dot_dimension_numbers<[1], [0], [0], [1], [0, 0, 1, 1], [], []>} : vector<16x32xf32>, vector<32x32xf32>, vector<16x32xf32> -> vector<16x32xf32>
    %630 = vector.broadcast %400 : vector<1x32xf32> to vector<16x32xf32>
    %631 = arith.addf %629, %630 : vector<16x32xf32>
    %632 = arith.addf %555, %631 : vector<16x32xf32>
    %cst_199 = arith.constant dense<0.000000e+00> : vector<16xf32>
    %633 = vector.multi_reduction <add>, %632, %cst_199 [1] : vector<16x32xf32> to vector<16xf32>
    %634 = vector.shape_cast %633 : vector<16xf32> to vector<16x1xf32>
    %cst_200 = arith.constant 3.200000e+01 : f32
    %635 = vector.broadcast %cst_200 : f32 to vector<16x1xf32>
    %636 = arith.divf %634, %635 : vector<16x1xf32>
    %637 = vector.broadcast %636 : vector<16x1xf32> to vector<16x32xf32>
    %638 = arith.subf %632, %637 : vector<16x32xf32>
    %639 = arith.mulf %638, %638 : vector<16x32xf32>
    %cst_201 = arith.constant dense<0.000000e+00> : vector<16xf32>
    %640 = vector.multi_reduction <add>, %639, %cst_201 [1] : vector<16x32xf32> to vector<16xf32>
    %641 = vector.shape_cast %640 : vector<16xf32> to vector<16x1xf32>
    %cst_202 = arith.constant 3.200000e+01 : f32
    %642 = vector.broadcast %cst_202 : f32 to vector<16x1xf32>
    %643 = arith.divf %641, %642 : vector<16x1xf32>
    %644 = vector.broadcast %636 : vector<16x1xf32> to vector<16x32xf32>
    %645 = arith.subf %632, %644 : vector<16x32xf32>
    %cst_203 = arith.constant 9.99999974E-6 : f32
    %646 = vector.broadcast %cst_203 : f32 to vector<16x1xf32>
    %647 = arith.addf %643, %646 : vector<16x1xf32>
    %648 = math.rsqrt %647 : vector<16x1xf32>
    %649 = vector.broadcast %648 : vector<16x1xf32> to vector<16x32xf32>
    %650 = arith.mulf %645, %649 : vector<16x32xf32>
    %651 = vector.broadcast %403 : vector<1x32xf32> to vector<16x32xf32>
    %652 = arith.mulf %650, %651 : vector<16x32xf32>
    %653 = vector.broadcast %404 : vector<1x32xf32> to vector<16x32xf32>
    %654 = arith.addf %652, %653 : vector<16x32xf32>
    %cst_204 = arith.constant dense<0.000000e+00> : vector<16x64xf32>
    %655 = tpu.matmul %654, %427, %cst_204 {dimension_numbers = #tpu.dot_dimension_numbers<[1], [0], [0], [1], [0, 0, 1, 1], [], []>} : vector<16x32xf32>, vector<32x64xf32>, vector<16x64xf32> -> vector<16x64xf32>
    %656 = vector.broadcast %407 : vector<1x64xf32> to vector<16x64xf32>
    %657 = arith.addf %655, %656 : vector<16x64xf32>
    %cst_205 = arith.constant 0.000000e+00 : f32
    %658 = vector.broadcast %cst_205 : f32 to vector<16x64xf32>
    %659 = arith.maximumf %657, %658 : vector<16x64xf32>
    %cst_206 = arith.constant dense<0.000000e+00> : vector<16x32xf32>
    %660 = tpu.matmul %659, %430, %cst_206 {dimension_numbers = #tpu.dot_dimension_numbers<[1], [0], [0], [1], [0, 0, 1, 1], [], []>} : vector<16x64xf32>, vector<64x32xf32>, vector<16x32xf32> -> vector<16x32xf32>
    %661 = vector.broadcast %408 : vector<1x32xf32> to vector<16x32xf32>
    %662 = arith.addf %660, %661 : vector<16x32xf32>
    %663 = arith.addf %654, %662 : vector<16x32xf32>
    %cst_207 = arith.constant dense<0.000000e+00> : vector<16xf32>
    %664 = vector.multi_reduction <add>, %663, %cst_207 [1] : vector<16x32xf32> to vector<16xf32>
    %665 = vector.shape_cast %664 : vector<16xf32> to vector<16x1xf32>
    %cst_208 = arith.constant 3.200000e+01 : f32
    %666 = vector.broadcast %cst_208 : f32 to vector<16x1xf32>
    %667 = arith.divf %665, %666 : vector<16x1xf32>
    %668 = vector.broadcast %667 : vector<16x1xf32> to vector<16x32xf32>
    %669 = arith.subf %663, %668 : vector<16x32xf32>
    %670 = arith.mulf %669, %669 : vector<16x32xf32>
    %cst_209 = arith.constant dense<0.000000e+00> : vector<16xf32>
    %671 = vector.multi_reduction <add>, %670, %cst_209 [1] : vector<16x32xf32> to vector<16xf32>
    %672 = vector.shape_cast %671 : vector<16xf32> to vector<16x1xf32>
    %cst_210 = arith.constant 3.200000e+01 : f32
    %673 = vector.broadcast %cst_210 : f32 to vector<16x1xf32>
    %674 = arith.divf %672, %673 : vector<16x1xf32>
    %675 = vector.broadcast %667 : vector<16x1xf32> to vector<16x32xf32>
    %676 = arith.subf %663, %675 : vector<16x32xf32>
    %cst_211 = arith.constant 9.99999974E-6 : f32
    %677 = vector.broadcast %cst_211 : f32 to vector<16x1xf32>
    %678 = arith.addf %674, %677 : vector<16x1xf32>
    %679 = math.rsqrt %678 : vector<16x1xf32>
    %680 = vector.broadcast %679 : vector<16x1xf32> to vector<16x32xf32>
    %681 = arith.mulf %676, %680 : vector<16x32xf32>
    %682 = vector.broadcast %405 : vector<1x32xf32> to vector<16x32xf32>
    %683 = arith.mulf %681, %682 : vector<16x32xf32>
    %684 = vector.broadcast %406 : vector<1x32xf32> to vector<16x32xf32>
    %685 = arith.addf %683, %684 : vector<16x32xf32>
    %cst_212 = arith.constant dense<0.000000e+00> : vector<16x128xf32>
    %686 = tpu.matmul %685, %433, %cst_212 {dimension_numbers = #tpu.dot_dimension_numbers<[1], [0], [0], [1], [0, 0, 1, 1], [], []>} : vector<16x32xf32>, vector<32x128xf32>, vector<16x128xf32> -> vector<16x128xf32>
    %687 = vector.broadcast %409 : vector<1x128xf32> to vector<16x128xf32>
    %688 = arith.addf %686, %687 : vector<16x128xf32>
    %c0_213 = arith.constant 0 : index
    %c0_214 = arith.constant 0 : index
    %689 = vector.load %arg11[%c0_213, %c0_214] : memref<16x128xf32, #tpu.memory_space<vmem>>, vector<16x128xf32>
    tpu.vector_store %arg11[%c0_213, %c0_214], %688 {strides = array<i32>} : memref<16x128xf32, #tpu.memory_space<vmem>>, vector<16x128xf32>,
    return
  }
}

</mosaic_0001>

<llo_original>
// kernel: transformer_attn_recognizer_forward.1
$region0: #{transformer_attn_recognizer_forward.1}
  #allocation0 [shape = 'u32[]', space=smem, size = 0x4, offset = 0x4, fixed_abs, tag = 'smem constant byte address 0x4 - core index']
  #allocation1 [shape = 'u32[144,128]{1,0:T(1,128)}', space=vmem, size = 0x12000, scoped, tag = 'internal scratch']
  %s0 = inlined_call_operand.vmem [shape: f32[32,512], index: 0, kind: input, shape index: {}]
  %s1 = inlined_call_operand.vmem [shape: f32[6,32,288], index: 1, kind: input, shape index: {}]
  %s2 = inlined_call_operand.vmem [shape: f32[6,32,8], index: 2, kind: input, shape index: {}]
  %s3 = inlined_call_operand.vmem [shape: f32[16,512], index: 3, kind: input, shape index: {}]
  %s4 = inlined_call_operand.vmem [shape: f32[16,128], index: 4, kind: input, shape index: {}]
  %s5 = inlined_call_operand.vmem [shape: f32[512,128], index: 5, kind: input, shape index: {}]
  %s6 = inlined_call_operand.vmem [shape: f32[16,32], index: 6, kind: input, shape index: {}]
  %s7 = inlined_call_operand.vmem [shape: f32[16,16], index: 7, kind: input, shape index: {}]
  %s8 = inlined_call_operand.vmem [shape: f32[16,128], index: 8, kind: input, shape index: {}]
  %s9 = inlined_call_operand.vmem [shape: f32[8,64,128], index: 9, kind: input, shape index: {}]
  %s10 = inlined_call_operand.vmem [shape: f32[16,128], index: 10, kind: input, shape index: {}]
  %s11 = inlined_call_operand.vmem [shape: f32[16,128], index: 11, kind: output, shape index: {}]
  %s12 = sld [smem:[#allocation0]]
  $region54: #{transformer_attn_recognizer_forward.1} parent=0
    _
  %s14 = ssub.s32 1, %s12
  %s15 = scalar_select 0, %s14, %s12
  // Predicated region
  $region2: #{transformer_attn_recognizer_forward.1} parent=0 // pred_check
    _
  $region3: #{transformer_attn_recognizer_forward.1} parent=0 // pred_check_branch
    %17 = sbr.rel (0) target = $region5
  $region4: #{transformer_attn_recognizer_forward.1} parent=0 // pred_region
    _
  $region5: #{transformer_attn_recognizer_forward.1} parent=0 // pred_fallthru
    _
  // Predicated region
  $region6: #{transformer_attn_recognizer_forward.1} parent=0 // pred_check
    _
  $region7: #{transformer_attn_recognizer_forward.1} parent=0 // pred_check_branch
    %19 = sbr.rel (0) target = $region9
  $region8: #{transformer_attn_recognizer_forward.1} parent=0 // pred_region
    _
  $region9: #{transformer_attn_recognizer_forward.1} parent=0 // pred_fallthru
    _
  // Predicated region
  $region10: #{transformer_attn_recognizer_forward.1} parent=0 // pred_check
    _
  $region11: #{transformer_attn_recognizer_forward.1} parent=0 // pred_check_branch
    %21 = sbr.rel (0) target = $region13
  $region12: #{transformer_attn_recognizer_forward.1} parent=0 // pred_region
    _
  $region13: #{transformer_attn_recognizer_forward.1} parent=0 // pred_fallthru
    _
  // Predicated region
  $region14: #{transformer_attn_recognizer_forward.1} parent=0 // pred_check
    _
  $region15: #{transformer_attn_recognizer_forward.1} parent=0 // pred_check_branch
    %23 = sbr.rel (0) target = $region17
  $region16: #{transformer_attn_recognizer_forward.1} parent=0 // pred_region
    _
  $region17: #{transformer_attn_recognizer_forward.1} parent=0 // pred_fallthru
    _
  // Predicated region
  $region18: #{transformer_attn_recognizer_forward.1} parent=0 // pred_check
    _
  $region19: #{transformer_attn_recognizer_forward.1} parent=0 // pred_check_branch
    %25 = sbr.rel (0) target = $region21
  $region20: #{transformer_attn_recognizer_forward.1} parent=0 // pred_region
    _
  $region21: #{transformer_attn_recognizer_forward.1} parent=0 // pred_fallthru
    _
  // Predicated region
  $region22: #{transformer_attn_recognizer_forward.1} parent=0 // pred_check
    _
  $region23: #{transformer_attn_recognizer_forward.1} parent=0 // pred_check_branch
    %27 = sbr.rel (0) target = $region25
  $region24: #{transformer_attn_recognizer_forward.1} parent=0 // pred_region
    _
  $region25: #{transformer_attn_recognizer_forward.1} parent=0 // pred_fallthru
    _
  // Predicated region
  $region26: #{transformer_attn_recognizer_forward.1} parent=0 // pred_check
    _
  $region27: #{transformer_attn_recognizer_forward.1} parent=0 // pred_check_branch
    %29 = sbr.rel (0) target = $region29
  $region28: #{transformer_attn_recognizer_forward.1} parent=0 // pred_region
    _
  $region29: #{transformer_attn_recognizer_forward.1} parent=0 // pred_fallthru
    _
  // Predicated region
  $region30: #{transformer_attn_recognizer_forward.1} parent=0 // pred_check
    _
  $region31: #{transformer_attn_recognizer_forward.1} parent=0 // pred_check_branch
    %31 = sbr.rel (0) target = $region33
  $region32: #{transformer_attn_recognizer_forward.1} parent=0 // pred_region
    _
  $region33: #{transformer_attn_recognizer_forward.1} parent=0 // pred_fallthru
    _
  // Predicated region
  $region34: #{transformer_attn_recognizer_forward.1} parent=0 // pred_check
    _
  $region35: #{transformer_attn_recognizer_forward.1} parent=0 // pred_check_branch
    %33 = sbr.rel (0) target = $region37
  $region36: #{transformer_attn_recognizer_forward.1} parent=0 // pred_region
    _
  $region37: #{transformer_attn_recognizer_forward.1} parent=0 // pred_fallthru
    _
  // Predicated region
  $region38: #{transformer_attn_recognizer_forward.1} parent=0 // pred_check
    _
  $region39: #{transformer_attn_recognizer_forward.1} parent=0 // pred_check_branch
    %35 = sbr.rel (0) target = $region41
  $region40: #{transformer_attn_recognizer_forward.1} parent=0 // pred_region
    _
  $region41: #{transformer_attn_recognizer_forward.1} parent=0 // pred_fallthru
    _
  // Predicated region
  $region42: #{transformer_attn_recognizer_forward.1} parent=0 // pred_check
    _
  $region43: #{transformer_attn_recognizer_forward.1} parent=0 // pred_check_branch
    %37 = sbr.rel (0) target = $region45
  $region44: #{transformer_attn_recognizer_forward.1} parent=0 // pred_region
    _
  $region45: #{transformer_attn_recognizer_forward.1} parent=0 // pred_fallthru
    _
  %v38 = vld [vmem:[%s3] sm:$0xff]
  %v39 = vld [vmem:[%s3 + $0x8] sm:$0xff]
  %v40 = vld [vmem:[%s3 + $0x10] sm:$0xff]
  %v41 = vld [vmem:[%s3 + $0x18] sm:$0xff]
  %v42 = vld [vmem:[%s3 + $0x20] sm:$0xff]
  %v43 = vld [vmem:[%s3 + $0x28] sm:$0xff]
  %v44 = vld [vmem:[%s3 + $0x30] sm:$0xff]
  %v45 = vld [vmem:[%s3 + $0x38] sm:$0xff]
  %v46 = vld [vmem:[%s4] sm:$0xff]
  %v47 = vld [vmem:[%s4 + $0x8] sm:$0xff]
  %v48 = vld [vmem:[%s0] sm:$0xff]
  %v49 = vld [vmem:[%s0 + $0x8] sm:$0xff]
  %v50 = vld [vmem:[%s0 + $0x10] sm:$0xff]
  %v51 = vld [vmem:[%s0 + $0x18] sm:$0xff]
  %v52 = vld [vmem:[%s0 + $0x20] sm:$0xff]
  %v53 = vld [vmem:[%s0 + $0x28] sm:$0xff]
  %v54 = vld [vmem:[%s0 + $0x30] sm:$0xff]
  %v55 = vld [vmem:[%s0 + $0x38] sm:$0xff]
  %v56 = vld [vmem:[%s0 + $0x40] sm:$0xff]
  %v57 = vld [vmem:[%s0 + $0x48] sm:$0xff]
  %v58 = vld [vmem:[%s0 + $0x50] sm:$0xff]
  %v59 = vld [vmem:[%s0 + $0x58] sm:$0xff]
  %v60 = vld [vmem:[%s0 + $0x60] sm:$0xff]
  %v61 = vld [vmem:[%s0 + $0x68] sm:$0xff]
  %v62 = vld [vmem:[%s0 + $0x70] sm:$0xff]
  %v63 = vld [vmem:[%s0 + $0x78] sm:$0xff]
  %64 = vrot.lane.b32.xlu0 %v48, 17
  %v65 = vpop.permute.xlu0 %64
  %66 = vrot.lane.b32.xlu0 %v52, 17
  %v67 = vpop.permute.xlu0 %66
  %68 = vrot.lane.b32.xlu0 %v56, 17
  %v69 = vpop.permute.xlu0 %68
  %70 = vrot.lane.b32.xlu0 %v60, 17
  %v71 = vpop.permute.xlu0 %70
  %72 = vrot.lane.b32.xlu0 %v49, 17
  %v73 = vpop.permute.xlu0 %72
  %74 = vrot.lane.b32.xlu0 %v53, 17
  %v75 = vpop.permute.xlu0 %74
  %76 = vrot.lane.b32.xlu0 %v57, 17
  %v77 = vpop.permute.xlu0 %76
  %78 = vrot.lane.b32.xlu0 %v61, 17
  %v79 = vpop.permute.xlu0 %78
  %80 = vrot.lane.b32.xlu0 %v50, 17
  %v81 = vpop.permute.xlu0 %80
  %82 = vrot.lane.b32.xlu0 %v54, 17
  %v83 = vpop.permute.xlu0 %82
  %84 = vrot.lane.b32.xlu0 %v58, 17
  %v85 = vpop.permute.xlu0 %84
  %86 = vrot.lane.b32.xlu0 %v62, 17
  %v87 = vpop.permute.xlu0 %86
  %88 = vrot.lane.b32.xlu0 %v51, 17
  %v89 = vpop.permute.xlu0 %88
  %90 = vrot.lane.b32.xlu0 %v55, 17
  %v91 = vpop.permute.xlu0 %90
  %92 = vrot.lane.b32.xlu0 %v59, 17
  %v93 = vpop.permute.xlu0 %92
  %94 = vrot.lane.b32.xlu0 %v63, 17
  %v95 = vpop.permute.xlu0 %94
  %v96 = vlaneseq
  %v97 = vand.u32 %v96, 127
  %vm98 = vcmp.lt.s32.totalorder %v97, 17
  %v99 = vsel %vm98, %v81, %v89
  %v100 = vsel %vm98, %v83, %v91
  %v101 = vsel %vm98, %v85, %v93
  %v102 = vsel %vm98, %v87, %v95
  %v103 = vsel %vm98, %v73, %v81
  %v104 = vsel %vm98, %v75, %v83
  %v105 = vsel %vm98, %v77, %v85
  %v106 = vsel %vm98, %v79, %v87
  %v107 = vsel %vm98, %v65, %v73
  %v108 = vsel %vm98, %v67, %v75
  %v109 = vsel %vm98, %v69, %v77
  %v110 = vsel %vm98, %v71, %v79
  %v111 = vsel %vm98, %v89, %v65
  %v112 = vsel %vm98, %v91, %v67
  %v113 = vsel %vm98, %v93, %v69
  %v114 = vsel %vm98, %v95, %v71
  %v115 = vlaneseq
  %v116 = vshrl.u32 %v115, 7
  %v117 = vsub.s32 0, %v116
  %v118 = vrot.slane %v38, %v117
  %v119 = vlaneseq
  %v120 = vshrl.u32 %v119, 7
  %v121 = vsub.s32 0, %v120
  %v122 = vrot.slane %v39, %v121
  %v123 = vlaneseq
  %v124 = vshrl.u32 %v123, 7
  %v125 = vsub.s32 0, %v124
  %v126 = vrot.slane %v40, %v125
  %v127 = vlaneseq
  %v128 = vshrl.u32 %v127, 7
  %v129 = vsub.s32 0, %v128
  %v130 = vrot.slane %v41, %v129
  %v131 = vmul.f32 %v111, %v118
  %v132 = vmul.f32 %v107, %v122
  %v133 = vmul.f32 %v103, %v126
  %v134 = vmul.f32 %v99, %v130
  %v135 = vmul.f32 %v112, %v118
  %v136 = vmul.f32 %v108, %v122
  %v137 = vmul.f32 %v104, %v126
  %v138 = vmul.f32 %v100, %v130
  %v139 = vmul.f32 %v113, %v118
  %v140 = vmul.f32 %v109, %v122
  %v141 = vmul.f32 %v105, %v126
  %v142 = vmul.f32 %v101, %v130
  %v143 = vmul.f32 %v114, %v118
  %v144 = vmul.f32 %v110, %v122
  %v145 = vmul.f32 %v106, %v126
  %v146 = vmul.f32 %v102, %v130
  %147 = vrot.lane.b32.xlu0 %v48, 16
  %v148 = vpop.permute.xlu0 %147
  %149 = vrot.lane.b32.xlu0 %v52, 16
  %v150 = vpop.permute.xlu0 %149
  %151 = vrot.lane.b32.xlu0 %v56, 16
  %v152 = vpop.permute.xlu0 %151
  %153 = vrot.lane.b32.xlu0 %v60, 16
  %v154 = vpop.permute.xlu0 %153
  %155 = vrot.lane.b32.xlu0 %v49, 16
  %v156 = vpop.permute.xlu0 %155
  %157 = vrot.lane.b32.xlu0 %v53, 16
  %v158 = vpop.permute.xlu0 %157
  %159 = vrot.lane.b32.xlu0 %v57, 16
  %v160 = vpop.permute.xlu0 %159
  %161 = vrot.lane.b32.xlu0 %v61, 16
  %v162 = vpop.permute.xlu0 %161
  %163 = vrot.lane.b32.xlu0 %v50, 16
  %v164 = vpop.permute.xlu0 %163
  %165 = vrot.lane.b32.xlu0 %v54, 16
  %v166 = vpop.permute.xlu0 %165
  %167 = vrot.lane.b32.xlu0 %v58, 16
  %v168 = vpop.permute.xlu0 %167
  %169 = vrot.lane.b32.xlu0 %v62, 16
  %v170 = vpop.permute.xlu0 %169
  %171 = vrot.lane.b32.xlu0 %v51, 16
  %v172 = vpop.permute.xlu0 %171
  %173 = vrot.lane.b32.xlu0 %v55, 16
  %v174 = vpop.permute.xlu0 %173
  %175 = vrot.lane.b32.xlu0 %v59, 16
  %v176 = vpop.permute.xlu0 %175
  %177 = vrot.lane.b32.xlu0 %v63, 16
  %v178 = vpop.permute.xlu0 %177
  %vm179 = vcmp.lt.s32.totalorder %v97, 16
  %v180 = vsel %vm179, %v164, %v172
  %v181 = vsel %vm179, %v166, %v174
  %v182 = vsel %vm179, %v168, %v176
  %v183 = vsel %vm179, %v170, %v178
  %v184 = vsel %vm179, %v156, %v164
  %v185 = vsel %vm179, %v158, %v166
  %v186 = vsel %vm179, %v160, %v168
  %v187 = vsel %vm179, %v162, %v170
  %v188 = vsel %vm179, %v148, %v156
  %v189 = vsel %vm179, %v150, %v158
  %v190 = vsel %vm179, %v152, %v160
  %v191 = vsel %vm179, %v154, %v162
  %v192 = vsel %vm179, %v172, %v148
  %v193 = vsel %vm179, %v174, %v150
  %v194 = vsel %vm179, %v176, %v152
  %v195 = vsel %vm179, %v178, %v154
  %v196 = vlaneseq
  %v197 = vshrl.u32 %v196, 7
  %v198 = vsub.s32 1, %v197
  %v199 = vrot.slane %v38, %v198
  %v200 = vlaneseq
  %v201 = vshrl.u32 %v200, 7
  %v202 = vsub.s32 1, %v201
  %v203 = vrot.slane %v39, %v202
  %v204 = vlaneseq
  %v205 = vshrl.u32 %v204, 7
  %v206 = vsub.s32 1, %v205
  %v207 = vrot.slane %v40, %v206
  %v208 = vlaneseq
  %v209 = vshrl.u32 %v208, 7
  %v210 = vsub.s32 1, %v209
  %v211 = vrot.slane %v41, %v210
  %v212 = vmul.f32 %v192, %v199
  %v213 = vmul.f32 %v188, %v203
  %v214 = vmul.f32 %v184, %v207
  %v215 = vmul.f32 %v180, %v211
  %v216 = vmul.f32 %v193, %v199
  %v217 = vmul.f32 %v189, %v203
  %v218 = vmul.f32 %v185, %v207
  %v219 = vmul.f32 %v181, %v211
  %v220 = vmul.f32 %v194, %v199
  %v221 = vmul.f32 %v190, %v203
  %v222 = vmul.f32 %v186, %v207
  %v223 = vmul.f32 %v182, %v211
  %v224 = vmul.f32 %v195, %v199
  %v225 = vmul.f32 %v191, %v203
  %v226 = vmul.f32 %v187, %v207
  %v227 = vmul.f32 %v183, %v211
  %228 = vrot.lane.b32.xlu0 %v48, 15
  %v229 = vpop.permute.xlu0 %228
  %230 = vrot.lane.b32.xlu0 %v52, 15
  %v231 = vpop.permute.xlu0 %230
  %232 = vrot.lane.b32.xlu0 %v56, 15
  %v233 = vpop.permute.xlu0 %232
  %234 = vrot.lane.b32.xlu0 %v60, 15
  %v235 = vpop.permute.xlu0 %234
  %236 = vrot.lane.b32.xlu0 %v49, 15
  %v237 = vpop.permute.xlu0 %236
  %238 = vrot.lane.b32.xlu0 %v53, 15
  %v239 = vpop.permute.xlu0 %238
  %240 = vrot.lane.b32.xlu0 %v57, 15
  %v241 = vpop.permute.xlu0 %240
  %242 = vrot.lane.b32.xlu0 %v61, 15
  %v243 = vpop.permute.xlu0 %242
  %244 = vrot.lane.b32.xlu0 %v50, 15
  %v245 = vpop.permute.xlu0 %244
  %246 = vrot.lane.b32.xlu0 %v54, 15
  %v247 = vpop.permute.xlu0 %246
  %248 = vrot.lane.b32.xlu0 %v58, 15
  %v249 = vpop.permute.xlu0 %248
  %250 = vrot.lane.b32.xlu0 %v62, 15
  %v251 = vpop.permute.xlu0 %250
  %252 = vrot.lane.b32.xlu0 %v51, 15
  %v253 = vpop.permute.xlu0 %252
  %254 = vrot.lane.b32.xlu0 %v55, 15
  %v255 = vpop.permute.xlu0 %254
  %256 = vrot.lane.b32.xlu0 %v59, 15
  %v257 = vpop.permute.xlu0 %256
  %258 = vrot.lane.b32.xlu0 %v63, 15
  %v259 = vpop.permute.xlu0 %258
  %vm260 = vcmp.lt.s32.totalorder %v97, 15
  %v261 = vsel %vm260, %v245, %v253
  %v262 = vsel %vm260, %v247, %v255
  %v263 = vsel %vm260, %v249, %v257
  %v264 = vsel %vm260, %v251, %v259
  %v265 = vsel %vm260, %v237, %v245
  %v266 = vsel %vm260, %v239, %v247
  %v267 = vsel %vm260, %v241, %v249
  %v268 = vsel %vm260, %v243, %v251
  %v269 = vsel %vm260, %v229, %v237
  %v270 = vsel %vm260, %v231, %v239
  %v271 = vsel %vm260, %v233, %v241
  %v272 = vsel %vm260, %v235, %v243
  %v273 = vsel %vm260, %v253, %v229
  %v274 = vsel %vm260, %v255, %v231
  %v275 = vsel %vm260, %v257, %v233
  %v276 = vsel %vm260, %v259, %v235
  %v277 = vlaneseq
  %v278 = vshrl.u32 %v277, 7
  %v279 = vsub.s32 2, %v278
  %v280 = vrot.slane %v38, %v279
  %v281 = vlaneseq
  %v282 = vshrl.u32 %v281, 7
  %v283 = vsub.s32 2, %v282
  %v284 = vrot.slane %v39, %v283
  %v285 = vlaneseq
  %v286 = vshrl.u32 %v285, 7
  %v287 = vsub.s32 2, %v286
  %v288 = vrot.slane %v40, %v287
  %v289 = vlaneseq
  %v290 = vshrl.u32 %v289, 7
  %v291 = vsub.s32 2, %v290
  %v292 = vrot.slane %v41, %v291
  %v293 = vmul.f32 %v273, %v280
  %v294 = vmul.f32 %v269, %v284
  %v295 = vmul.f32 %v265, %v288
  %v296 = vmul.f32 %v261, %v292
  %v297 = vmul.f32 %v274, %v280
  %v298 = vmul.f32 %v270, %v284
  %v299 = vmul.f32 %v266, %v288
  %v300 = vmul.f32 %v262, %v292
  %v301 = vmul.f32 %v275, %v280
  %v302 = vmul.f32 %v271, %v284
  %v303 = vmul.f32 %v267, %v288
  %v304 = vmul.f32 %v263, %v292
  %v305 = vmul.f32 %v276, %v280
  %v306 = vmul.f32 %v272, %v284
  %v307 = vmul.f32 %v268, %v288
  %v308 = vmul.f32 %v264, %v292
  %309 = vrot.lane.b32.xlu0 %v48, 1
  %v310 = vpop.permute.xlu0 %309
  %311 = vrot.lane.b32.xlu0 %v52, 1
  %v312 = vpop.permute.xlu0 %311
  %313 = vrot.lane.b32.xlu0 %v56, 1
  %v314 = vpop.permute.xlu0 %313
  %315 = vrot.lane.b32.xlu0 %v60, 1
  %v316 = vpop.permute.xlu0 %315
  %317 = vrot.lane.b32.xlu0 %v49, 1
  %v318 = vpop.permute.xlu0 %317
  %319 = vrot.lane.b32.xlu0 %v53, 1
  %v320 = vpop.permute.xlu0 %319
  %321 = vrot.lane.b32.xlu0 %v57, 1
  %v322 = vpop.permute.xlu0 %321
  %323 = vrot.lane.b32.xlu0 %v61, 1
  %v324 = vpop.permute.xlu0 %323
  %325 = vrot.lane.b32.xlu0 %v50, 1
  %v326 = vpop.permute.xlu0 %325
  %327 = vrot.lane.b32.xlu0 %v54, 1
  %v328 = vpop.permute.xlu0 %327
  %329 = vrot.lane.b32.xlu0 %v58, 1
  %v330 = vpop.permute.xlu0 %329
  %331 = vrot.lane.b32.xlu0 %v62, 1
  %v332 = vpop.permute.xlu0 %331
  %333 = vrot.lane.b32.xlu0 %v51, 1
  %v334 = vpop.permute.xlu0 %333
  %335 = vrot.lane.b32.xlu0 %v55, 1
  %v336 = vpop.permute.xlu0 %335
  %337 = vrot.lane.b32.xlu0 %v59, 1
  %v338 = vpop.permute.xlu0 %337
  %339 = vrot.lane.b32.xlu0 %v63, 1
  %v340 = vpop.permute.xlu0 %339
  %vm341 = vcmp.lt.s32.totalorder %v97, 1
  %v342 = vsel %vm341, %v326, %v334
  %v343 = vsel %vm341, %v328, %v336
  %v344 = vsel %vm341, %v330, %v338
  %v345 = vsel %vm341, %v332, %v340
  %v346 = vsel %vm341, %v318, %v326
  %v347 = vsel %vm341, %v320, %v328
  %v348 = vsel %vm341, %v322, %v330
  %v349 = vsel %vm341, %v324, %v332
  %v350 = vsel %vm341, %v310, %v318
  %v351 = vsel %vm341, %v312, %v320
  %v352 = vsel %vm341, %v314, %v322
  %v353 = vsel %vm341, %v316, %v324
  %v354 = vsel %vm341, %v334, %v310
  %v355 = vsel %vm341, %v336, %v312
  %v356 = vsel %vm341, %v338, %v314
  %v357 = vsel %vm341, %v340, %v316
  %v358 = vlaneseq
  %v359 = vshrl.u32 %v358, 7
  %v360 = vsub.s32 3, %v359
  %v361 = vrot.slane %v38, %v360
  %v362 = vlaneseq
  %v363 = vshrl.u32 %v362, 7
  %v364 = vsub.s32 3, %v363
  %v365 = vrot.slane %v39, %v364
  %v366 = vlaneseq
  %v367 = vshrl.u32 %v366, 7
  %v368 = vsub.s32 3, %v367
  %v369 = vrot.slane %v40, %v368
  %v370 = vlaneseq
  %v371 = vshrl.u32 %v370, 7
  %v372 = vsub.s32 3, %v371
  %v373 = vrot.slane %v41, %v372
  %v374 = vmul.f32 %v354, %v361
  %v375 = vmul.f32 %v350, %v365
  %v376 = vmul.f32 %v346, %v369
  %v377 = vmul.f32 %v342, %v373
  %v378 = vmul.f32 %v355, %v361
  %v379 = vmul.f32 %v351, %v365
  %v380 = vmul.f32 %v347, %v369
  %v381 = vmul.f32 %v343, %v373
  %v382 = vmul.f32 %v356, %v361
  %v383 = vmul.f32 %v352, %v365
  %v384 = vmul.f32 %v348, %v369
  %v385 = vmul.f32 %v344, %v373
  %v386 = vmul.f32 %v357, %v361
  %v387 = vmul.f32 %v353, %v365
  %v388 = vmul.f32 %v349, %v369
  %v389 = vmul.f32 %v345, %v373
  %390 = vrot.lane.b32.xlu0 %v48, 127
  %v391 = vpop.permute.xlu0 %390
  %392 = vrot.lane.b32.xlu0 %v52, 127
  %v393 = vpop.permute.xlu0 %392
  %394 = vrot.lane.b32.xlu0 %v56, 127
  %v395 = vpop.permute.xlu0 %394
  %396 = vrot.lane.b32.xlu0 %v60, 127
  %v397 = vpop.permute.xlu0 %396
  %398 = vrot.lane.b32.xlu0 %v49, 127
  %v399 = vpop.permute.xlu0 %398
  %400 = vrot.lane.b32.xlu0 %v53, 127
  %v401 = vpop.permute.xlu0 %400
  %402 = vrot.lane.b32.xlu0 %v57, 127
  %v403 = vpop.permute.xlu0 %402
  %404 = vrot.lane.b32.xlu0 %v61, 127
  %v405 = vpop.permute.xlu0 %404
  %406 = vrot.lane.b32.xlu0 %v50, 127
  %v407 = vpop.permute.xlu0 %406
  %408 = vrot.lane.b32.xlu0 %v54, 127
  %v409 = vpop.permute.xlu0 %408
  %410 = vrot.lane.b32.xlu0 %v58, 127
  %v411 = vpop.permute.xlu0 %410
  %412 = vrot.lane.b32.xlu0 %v62, 127
  %v413 = vpop.permute.xlu0 %412
  %414 = vrot.lane.b32.xlu0 %v51, 127
  %v415 = vpop.permute.xlu0 %414
  %416 = vrot.lane.b32.xlu0 %v55, 127
  %v417 = vpop.permute.xlu0 %416
  %418 = vrot.lane.b32.xlu0 %v59, 127
  %v419 = vpop.permute.xlu0 %418
  %420 = vrot.lane.b32.xlu0 %v63, 127
  %v421 = vpop.permute.xlu0 %420
  %vm422 = vcmp.lt.s32.totalorder %v97, 127
  %v423 = vsel %vm422, %v407, %v415
  %v424 = vsel %vm422, %v409, %v417
  %v425 = vsel %vm422, %v411, %v419
  %v426 = vsel %vm422, %v413, %v421
  %v427 = vsel %vm422, %v399, %v407
  %v428 = vsel %vm422, %v401, %v409
  %v429 = vsel %vm422, %v403, %v411
  %v430 = vsel %vm422, %v405, %v413
  %v431 = vsel %vm422, %v391, %v399
  %v432 = vsel %vm422, %v393, %v401
  %v433 = vsel %vm422, %v395, %v403
  %v434 = vsel %vm422, %v397, %v405
  %v435 = vsel %vm422, %v415, %v391
  %v436 = vsel %vm422, %v417, %v393
  %v437 = vsel %vm422, %v419, %v395
  %v438 = vsel %vm422, %v421, %v397
  %v439 = vlaneseq
  %v440 = vshrl.u32 %v439, 7
  %v441 = vsub.s32 5, %v440
  %v442 = vrot.slane %v38, %v441
  %v443 = vlaneseq
  %v444 = vshrl.u32 %v443, 7
  %v445 = vsub.s32 5, %v444
  %v446 = vrot.slane %v39, %v445
  %v447 = vlaneseq
  %v448 = vshrl.u32 %v447, 7
  %v449 = vsub.s32 5, %v448
  %v450 = vrot.slane %v40, %v449
  %v451 = vlaneseq
  %v452 = vshrl.u32 %v451, 7
  %v453 = vsub.s32 5, %v452
  %v454 = vrot.slane %v41, %v453
  %v455 = vmul.f32 %v431, %v442
  %v456 = vmul.f32 %v427, %v446
  %v457 = vmul.f32 %v423, %v450
  %v458 = vmul.f32 %v435, %v454
  %v459 = vmul.f32 %v432, %v442
  %v460 = vmul.f32 %v428, %v446
  %v461 = vmul.f32 %v424, %v450
  %v462 = vmul.f32 %v436, %v454
  %v463 = vmul.f32 %v433, %v442
  %v464 = vmul.f32 %v429, %v446
  %v465 = vmul.f32 %v425, %v450
  %v466 = vmul.f32 %v437, %v454
  %v467 = vmul.f32 %v434, %v442
  %v468 = vmul.f32 %v430, %v446
  %v469 = vmul.f32 %v426, %v450
  %v470 = vmul.f32 %v438, %v454
  %471 = vrot.lane.b32.xlu0 %v48, 113
  %v472 = vpop.permute.xlu0 %471
  %473 = vrot.lane.b32.xlu0 %v52, 113
  %v474 = vpop.permute.xlu0 %473
  %475 = vrot.lane.b32.xlu0 %v56, 113
  %v476 = vpop.permute.xlu0 %475
  %477 = vrot.lane.b32.xlu0 %v60, 113
  %v478 = vpop.permute.xlu0 %477
  %479 = vrot.lane.b32.xlu0 %v49, 113
  %v480 = vpop.permute.xlu0 %479
  %481 = vrot.lane.b32.xlu0 %v53, 113
  %v482 = vpop.permute.xlu0 %481
  %483 = vrot.lane.b32.xlu0 %v57, 113
  %v484 = vpop.permute.xlu0 %483
  %485 = vrot.lane.b32.xlu0 %v61, 113
  %v486 = vpop.permute.xlu0 %485
  %487 = vrot.lane.b32.xlu0 %v50, 113
  %v488 = vpop.permute.xlu0 %487
  %489 = vrot.lane.b32.xlu0 %v54, 113
  %v490 = vpop.permute.xlu0 %489
  %491 = vrot.lane.b32.xlu0 %v58, 113
  %v492 = vpop.permute.xlu0 %491
  %493 = vrot.lane.b32.xlu0 %v62, 113
  %v494 = vpop.permute.xlu0 %493
  %495 = vrot.lane.b32.xlu0 %v51, 113
  %v496 = vpop.permute.xlu0 %495
  %497 = vrot.lane.b32.xlu0 %v55, 113
  %v498 = vpop.permute.xlu0 %497
  %499 = vrot.lane.b32.xlu0 %v59, 113
  %v500 = vpop.permute.xlu0 %499
  %501 = vrot.lane.b32.xlu0 %v63, 113
  %v502 = vpop.permute.xlu0 %501
  %vm503 = vcmp.lt.s32.totalorder %v97, 113
  %v504 = vsel %vm503, %v488, %v496
  %v505 = vsel %vm503, %v490, %v498
  %v506 = vsel %vm503, %v492, %v500
  %v507 = vsel %vm503, %v494, %v502
  %v508 = vsel %vm503, %v480, %v488
  %v509 = vsel %vm503, %v482, %v490
  %v510 = vsel %vm503, %v484, %v492
  %v511 = vsel %vm503, %v486, %v494
  %v512 = vsel %vm503, %v472, %v480
  %v513 = vsel %vm503, %v474, %v482
  %v514 = vsel %vm503, %v476, %v484
  %v515 = vsel %vm503, %v478, %v486
  %v516 = vsel %vm503, %v496, %v472
  %v517 = vsel %vm503, %v498, %v474
  %v518 = vsel %vm503, %v500, %v476
  %v519 = vsel %vm503, %v502, %v478
  %v520 = vlaneseq
  %v521 = vshrl.u32 %v520, 7
  %v522 = vsub.s32 6, %v521
  %v523 = vrot.slane %v38, %v522
  %v524 = vlaneseq
  %v525 = vshrl.u32 %v524, 7
  %v526 = vsub.s32 6, %v525
  %v527 = vrot.slane %v39, %v526
  %v528 = vlaneseq
  %v529 = vshrl.u32 %v528, 7
  %v530 = vsub.s32 6, %v529
  %v531 = vrot.slane %v40, %v530
  %v532 = vlaneseq
  %v533 = vshrl.u32 %v532, 7
  %v534 = vsub.s32 6, %v533
  %v535 = vrot.slane %v41, %v534
  %v536 = vmul.f32 %v512, %v523
  %v537 = vmul.f32 %v508, %v527
  %v538 = vmul.f32 %v504, %v531
  %v539 = vmul.f32 %v516, %v535
  %v540 = vmul.f32 %v513, %v523
  %v541 = vmul.f32 %v509, %v527
  %v542 = vmul.f32 %v505, %v531
  %v543 = vmul.f32 %v517, %v535
  %v544 = vmul.f32 %v514, %v523
  %v545 = vmul.f32 %v510, %v527
  %v546 = vmul.f32 %v506, %v531
  %v547 = vmul.f32 %v518, %v535
  %v548 = vmul.f32 %v515, %v523
  %v549 = vmul.f32 %v511, %v527
  %v550 = vmul.f32 %v507, %v531
  %v551 = vmul.f32 %v519, %v535
  %552 = vrot.lane.b32.xlu0 %v48, 112
  %v553 = vpop.permute.xlu0 %552
  %554 = vrot.lane.b32.xlu0 %v52, 112
  %v555 = vpop.permute.xlu0 %554
  %556 = vrot.lane.b32.xlu0 %v56, 112
  %v557 = vpop.permute.xlu0 %556
  %558 = vrot.lane.b32.xlu0 %v60, 112
  %v559 = vpop.permute.xlu0 %558
  %560 = vrot.lane.b32.xlu0 %v49, 112
  %v561 = vpop.permute.xlu0 %560
  %562 = vrot.lane.b32.xlu0 %v53, 112
  %v563 = vpop.permute.xlu0 %562
  %564 = vrot.lane.b32.xlu0 %v57, 112
  %v565 = vpop.permute.xlu0 %564
  %566 = vrot.lane.b32.xlu0 %v61, 112
  %v567 = vpop.permute.xlu0 %566
  %568 = vrot.lane.b32.xlu0 %v50, 112
  %v569 = vpop.permute.xlu0 %568
  %570 = vrot.lane.b32.xlu0 %v54, 112
  %v571 = vpop.permute.xlu0 %570
  %572 = vrot.lane.b32.xlu0 %v58, 112
  %v573 = vpop.permute.xlu0 %572
  %574 = vrot.lane.b32.xlu0 %v62, 112
  %v575 = vpop.permute.xlu0 %574
  %576 = vrot.lane.b32.xlu0 %v51, 112
  %v577 = vpop.permute.xlu0 %576
  %578 = vrot.lane.b32.xlu0 %v55, 112
  %v579 = vpop.permute.xlu0 %578
  %580 = vrot.lane.b32.xlu0 %v59, 112
  %v581 = vpop.permute.xlu0 %580
  %582 = vrot.lane.b32.xlu0 %v63, 112
  %v583 = vpop.permute.xlu0 %582
  %vm584 = vcmp.lt.s32.totalorder %v97, 112
  %v585 = vsel %vm584, %v569, %v577
  %v586 = vsel %vm584, %v571, %v579
  %v587 = vsel %vm584, %v573, %v581
  %v588 = vsel %vm584, %v575, %v583
  %v589 = vsel %vm584, %v561, %v569
  %v590 = vsel %vm584, %v563, %v571
  %v591 = vsel %vm584, %v565, %v573
  %v592 = vsel %vm584, %v567, %v575
  %v593 = vsel %vm584, %v553, %v561
  %v594 = vsel %vm584, %v555, %v563
  %v595 = vsel %vm584, %v557, %v565
  %v596 = vsel %vm584, %v559, %v567
  %v597 = vsel %vm584, %v577, %v553
  %v598 = vsel %vm584, %v579, %v555
  %v599 = vsel %vm584, %v581, %v557
  %v600 = vsel %vm584, %v583, %v559
  %v601 = vlaneseq
  %v602 = vshrl.u32 %v601, 7
  %v603 = vsub.s32 7, %v602
  %v604 = vrot.slane %v38, %v603
  %v605 = vlaneseq
  %v606 = vshrl.u32 %v605, 7
  %v607 = vsub.s32 7, %v606
  %v608 = vrot.slane %v39, %v607
  %v609 = vlaneseq
  %v610 = vshrl.u32 %v609, 7
  %v611 = vsub.s32 7, %v610
  %v612 = vrot.slane %v40, %v611
  %v613 = vlaneseq
  %v614 = vshrl.u32 %v613, 7
  %v615 = vsub.s32 7, %v614
  %v616 = vrot.slane %v41, %v615
  %v617 = vmul.f32 %v593, %v604
  %v618 = vmul.f32 %v589, %v608
  %v619 = vmul.f32 %v585, %v612
  %v620 = vmul.f32 %v597, %v616
  %v621 = vmul.f32 %v594, %v604
  %v622 = vmul.f32 %v590, %v608
  %v623 = vmul.f32 %v586, %v612
  %v624 = vmul.f32 %v598, %v616
  %v625 = vmul.f32 %v595, %v604
  %v626 = vmul.f32 %v591, %v608
  %v627 = vmul.f32 %v587, %v612
  %v628 = vmul.f32 %v599, %v616
  %v629 = vmul.f32 %v596, %v604
  %v630 = vmul.f32 %v592, %v608
  %v631 = vmul.f32 %v588, %v612
  %v632 = vmul.f32 %v600, %v616
  %633 = vrot.lane.b32.xlu0 %v48, 111
  %v634 = vpop.permute.xlu0 %633
  %635 = vrot.lane.b32.xlu0 %v52, 111
  %v636 = vpop.permute.xlu0 %635
  %637 = vrot.lane.b32.xlu0 %v56, 111
  %v638 = vpop.permute.xlu0 %637
  %639 = vrot.lane.b32.xlu0 %v60, 111
  %v640 = vpop.permute.xlu0 %639
  %641 = vrot.lane.b32.xlu0 %v49, 111
  %v642 = vpop.permute.xlu0 %641
  %643 = vrot.lane.b32.xlu0 %v53, 111
  %v644 = vpop.permute.xlu0 %643
  %645 = vrot.lane.b32.xlu0 %v57, 111
  %v646 = vpop.permute.xlu0 %645
  %647 = vrot.lane.b32.xlu0 %v61, 111
  %v648 = vpop.permute.xlu0 %647
  %649 = vrot.lane.b32.xlu0 %v50, 111
  %v650 = vpop.permute.xlu0 %649
  %651 = vrot.lane.b32.xlu0 %v54, 111
  %v652 = vpop.permute.xlu0 %651
  %653 = vrot.lane.b32.xlu0 %v58, 111
  %v654 = vpop.permute.xlu0 %653
  %655 = vrot.lane.b32.xlu0 %v62, 111
  %v656 = vpop.permute.xlu0 %655
  %657 = vrot.lane.b32.xlu0 %v51, 111
  %v658 = vpop.permute.xlu0 %657
  %659 = vrot.lane.b32.xlu0 %v55, 111
  %v660 = vpop.permute.xlu0 %659
  %661 = vrot.lane.b32.xlu0 %v59, 111
  %v662 = vpop.permute.xlu0 %661
  %663 = vrot.lane.b32.xlu0 %v63, 111
  %v664 = vpop.permute.xlu0 %663
  %vm665 = vcmp.lt.s32.totalorder %v97, 111
  %v666 = vsel %vm665, %v650, %v658
  %v667 = vsel %vm665, %v652, %v660
  %v668 = vsel %vm665, %v654, %v662
  %v669 = vsel %vm665, %v656, %v664
  %v670 = vsel %vm665, %v642, %v650
  %v671 = vsel %vm665, %v644, %v652
  %v672 = vsel %vm665, %v646, %v654
  %v673 = vsel %vm665, %v648, %v656
  %v674 = vsel %vm665, %v634, %v642
  %v675 = vsel %vm665, %v636, %v644
  %v676 = vsel %vm665, %v638, %v646
  %v677 = vsel %vm665, %v640, %v648
  %v678 = vsel %vm665, %v658, %v634
  %v679 = vsel %vm665, %v660, %v636
  %v680 = vsel %vm665, %v662, %v638
  %v681 = vsel %vm665, %v664, %v640
  %v682 = vlaneseq
  %v683 = vshrl.u32 %v682, 7
  %v684 = vsub.s32 0, %v683
  %v685 = vrot.slane %v42, %v684
  %v686 = vlaneseq
  %v687 = vshrl.u32 %v686, 7
  %v688 = vsub.s32 0, %v687
  %v689 = vrot.slane %v43, %v688
  %v690 = vlaneseq
  %v691 = vshrl.u32 %v690, 7
  %v692 = vsub.s32 0, %v691
  %v693 = vrot.slane %v44, %v692
  %v694 = vlaneseq
  %v695 = vshrl.u32 %v694, 7
  %v696 = vsub.s32 0, %v695
  %v697 = vrot.slane %v45, %v696
  %v698 = vmul.f32 %v674, %v685
  %v699 = vmul.f32 %v670, %v689
  %v700 = vmul.f32 %v666, %v693
  %v701 = vmul.f32 %v678, %v697
  %v702 = vmul.f32 %v675, %v685
  %v703 = vmul.f32 %v671, %v689
  %v704 = vmul.f32 %v667, %v693
  %v705 = vmul.f32 %v679, %v697
  %v706 = vmul.f32 %v676, %v685
  %v707 = vmul.f32 %v672, %v689
  %v708 = vmul.f32 %v668, %v693
  %v709 = vmul.f32 %v680, %v697
  %v710 = vmul.f32 %v677, %v685
  %v711 = vmul.f32 %v673, %v689
  %v712 = vmul.f32 %v669, %v693
  %v713 = vmul.f32 %v681, %v697
  %v714 = vld [vmem:[%s1] sm:$0xff]
  %v715 = vld [vmem:[%s1 + $0x8] sm:$0xff]
  %v716 = vld [vmem:[%s1 + $0x10] sm:$0xff]
  %v717 = vld [vmem:[%s1 + $0x18] sm:$0xff]
  %v718 = vld [vmem:[%s1 + $0x20] sm:$0xff]
  %v719 = vld [vmem:[%s1 + $0x28] sm:$0xff]
  %v720 = vld [vmem:[%s1 + $0x30] sm:$0xff]
  %v721 = vld [vmem:[%s1 + $0x38] sm:$0xff]
  %v722 = vld [vmem:[%s1 + $0x40] sm:$0xff]
  %v723 = vld [vmem:[%s1 + $0x48] sm:$0xff]
  %v724 = vld [vmem:[%s1 + $0x50] sm:$0xff]
  %v725 = vld [vmem:[%s1 + $0x58] sm:$0xff]
  %v726 = vld [vmem:[%s2] sm:$0xff]
  %v727 = vld [vmem:[%s2 + $0x8] sm:$0xff]
  %v728 = vld [vmem:[%s2 + $0x10] sm:$0xff]
  %v729 = vld [vmem:[%s2 + $0x18] sm:$0xff]
  %731 = vset.pattern.permute.xlu0 0
  %732 = vperm.xlu0 %731, %v726
  %v733 = vpop.permute.xlu0 %732
  %736 = vset.pattern.permute.xlu0 0
  %737 = vperm.xlu0 %736, %v727
  %v738 = vpop.permute.xlu0 %737
  %741 = vset.pattern.permute.xlu0 0
  %742 = vperm.xlu0 %741, %v728
  %v743 = vpop.permute.xlu0 %742
  %746 = vset.pattern.permute.xlu0 0
  %747 = vperm.xlu0 %746, %v729
  %v748 = vpop.permute.xlu0 %747
  %vm750 = vcmask 261120
  %v752 = vsel %vm750, %v716, 0
  %v755 = vsel %vm750, %v719, 0
  %v758 = vsel %vm750, %v722, 0
  %v761 = vsel %vm750, %v725, 0
  %763 = vmatprep.subr.mxu0 %v132
  %764 = vmatpush1.msra.mxu0 %v131
  %765 = vmatprep.subr.mxu0 %v136
  %766 = vmatpush1.msra.mxu0 %v135
  %767 = vmatprep.subr.mxu0 %v140
  %768 = vmatpush1.msra.mxu0 %v139
  %769 = vmatprep.subr.mxu0 %v144
  %770 = vmatpush1.msra.mxu0 %v143
  %771 = vmatprep.subr.mxu0 %v213
  %772 = vmatpush1.msra.mxu0 %v212
  %773 = vmatprep.subr.mxu0 %v217
  %774 = vmatpush1.msra.mxu0 %v216
  %775 = vmatprep.subr.mxu0 %v221
  %776 = vmatpush1.msra.mxu0 %v220
  %777 = vmatprep.subr.mxu0 %v225
  %778 = vmatpush1.msra.mxu0 %v224
  %779 = vmatprep.subr.mxu0 %v294
  %780 = vmatpush1.msra.mxu0 %v293
  %781 = vmatprep.subr.mxu0 %v298
  %782 = vmatpush1.msra.mxu0 %v297
  %783 = vmatprep.subr.mxu0 %v302
  %784 = vmatpush1.msra.mxu0 %v301
  %785 = vmatprep.subr.mxu0 %v306
  %786 = vmatpush1.msra.mxu0 %v305
  %787 = vmatprep.subr.mxu0 %v375
  %788 = vmatpush1.msra.mxu0 %v374
  %789 = vmatprep.subr.mxu0 %v379
  %790 = vmatpush1.msra.mxu0 %v378
  %791 = vmatprep.subr.mxu0 %v383
  %792 = vmatpush1.msra.mxu0 %v382
  %793 = vmatprep.subr.mxu0 %v387
  %794 = vmatpush1.msra.mxu0 %v386
  %795 = vmatprep.subr.mxu0 %v49
  %796 = vmatpush1.msra.mxu0 %v48
  %797 = vmatprep.subr.mxu0 %v53
  %798 = vmatpush1.msra.mxu0 %v52
  %799 = vmatprep.subr.mxu0 %v57
  %800 = vmatpush1.msra.mxu0 %v56
  %801 = vmatprep.subr.mxu0 %v61
  %802 = vmatpush1.msra.mxu0 %v60
  %803 = vmatprep.subr.mxu0 %v456
  %804 = vmatpush1.msra.mxu0 %v455
  %805 = vmatprep.subr.mxu0 %v460
  %806 = vmatpush1.msra.mxu0 %v459
  %807 = vmatprep.subr.mxu0 %v464
  %808 = vmatpush1.msra.mxu0 %v463
  %809 = vmatprep.subr.mxu0 %v468
  %810 = vmatpush1.msra.mxu0 %v467
  %811 = vmatprep.subr.mxu0 %v537
  %812 = vmatpush1.msra.mxu0 %v536
  %813 = vmatprep.subr.mxu0 %v541
  %814 = vmatpush1.msra.mxu0 %v540
  %815 = vmatprep.subr.mxu0 %v545
  %816 = vmatpush1.msra.mxu0 %v544
  %817 = vmatprep.subr.mxu0 %v549
  %818 = vmatpush1.msra.mxu0 %v548
  %819 = vmatprep.subr.mxu0 %v618
  %820 = vmatpush1.msra.mxu0 %v617
  %821 = vmatprep.subr.mxu0 %v622
  %822 = vmatpush1.msra.mxu0 %v621
  %823 = vmatprep.subr.mxu0 %v626
  %824 = vmatpush1.msra.mxu0 %v625
  %825 = vmatprep.subr.mxu0 %v630
  %826 = vmatpush1.msra.mxu0 %v629
  %827 = vmatprep.mubr.f32.mxu0 %v715
  %828 = vmatmul.mubr.f32.gmra.mrb[0].mxu0 %v714
  %v829 = vpop.f32.mrb[0].mxu0
  %v830 = vadd.f32 %v733, %v829
  %v831 = vpop.f32.mrb[0].mxu0
  %v832 = vadd.f32 %v733, %v831
  %833 = vmatprep.mubr.f32.mxu0 %v718
  %834 = vmatmul.mubr.f32.gmra.mrb[0].mxu0 %v717
  %v835 = vpop.f32.mrb[0].mxu0
  %v836 = vadd.f32 %v738, %v835
  %v837 = vpop.f32.mrb[0].mxu0
  %v838 = vadd.f32 %v738, %v837
  %839 = vmatprep.mubr.f32.mxu0 %v721
  %840 = vmatmul.mubr.f32.gmra.mrb[0].mxu0 %v720
  %v841 = vpop.f32.mrb[0].mxu0
  %v842 = vadd.f32 %v743, %v841
  %v843 = vpop.f32.mrb[0].mxu0
  %v844 = vadd.f32 %v743, %v843
  %845 = vmatprep.mubr.f32.mxu0 %v724
  %846 = vmatmul.mubr.f32.gmra.mrb[0].mxu0 %v723
  %v847 = vpop.f32.mrb[0].mxu0
  %v848 = vadd.f32 %v748, %v847
  %v849 = vpop.f32.mrb[0].mxu0
  %v850 = vadd.f32 %v748, %v849
  %851 = vdwg.mxu0
  %852 = vmatprep.subr.mxu0 %v699
  %853 = vmatpush1.msra.mxu0 %v698
  %854 = vmatprep.subr.mxu0 %v703
  %855 = vmatpush1.msra.mxu0 %v702
  %856 = vmatprep.subr.mxu0 %v707
  %857 = vmatpush1.msra.mxu0 %v706
  %858 = vmatprep.subr.mxu0 %v711
  %859 = vmatpush1.msra.mxu0 %v710
  %860 = vmatprep.subr.mxu0 0.0
  %861 = vmatpush1.msra.mxu0 0.0
  %862 = vmatprep.subr.mxu0 0.0
  %863 = vmatpush1.msra.mxu0 0.0
  %864 = vmatprep.subr.mxu0 0.0
  %865 = vmatpush1.msra.mxu0 0.0
  %866 = vmatprep.subr.mxu0 0.0
  %867 = vmatpush1.msra.mxu0 0.0
  %868 = vmatprep.subr.mxu0 0.0
  %869 = vmatpush1.msra.mxu0 0.0
  %870 = vmatprep.subr.mxu0 0.0
  %871 = vmatpush1.msra.mxu0 0.0
  %872 = vmatprep.subr.mxu0 0.0
  %873 = vmatpush1.msra.mxu0 0.0
  %874 = vmatprep.subr.mxu0 0.0
  %875 = vmatpush1.msra.mxu0 0.0
  %876 = vmatprep.subr.mxu0 0.0
  %877 = vmatpush1.msra.mxu0 0.0
  %878 = vmatprep.subr.mxu0 0.0
  %879 = vmatpush1.msra.mxu0 0.0
  %880 = vmatprep.subr.mxu0 0.0
  %881 = vmatpush1.msra.mxu0 0.0
  %882 = vmatprep.subr.mxu0 0.0
  %883 = vmatpush1.msra.mxu0 0.0
  %884 = vmatprep.subr.mxu0 0.0
  %885 = vmatpush1.msra.mxu0 0.0
  %886 = vmatprep.subr.mxu0 0.0
  %887 = vmatpush1.msra.mxu0 0.0
  %888 = vmatprep.subr.mxu0 0.0
  %889 = vmatpush1.msra.mxu0 0.0
  %890 = vmatprep.subr.mxu0 0.0
  %891 = vmatpush1.msra.mxu0 0.0
  %892 = vmatprep.subr.mxu0 0.0
  %893 = vmatpush1.msra.mxu0 0.0
  %894 = vmatprep.subr.mxu0 0.0
  %895 = vmatpush1.msra.mxu0 0.0
  %896 = vmatprep.subr.mxu0 0.0
  %897 = vmatpush1.msra.mxu0 0.0
  %898 = vmatprep.subr.mxu0 0.0
  %899 = vmatpush1.msra.mxu0 0.0
  %900 = vmatprep.subr.mxu0 0.0
  %901 = vmatpush1.msra.mxu0 0.0
  %902 = vmatprep.subr.mxu0 0.0
  %903 = vmatpush1.msra.mxu0 0.0
  %904 = vmatprep.subr.mxu0 0.0
  %905 = vmatpush1.msra.mxu0 0.0
  %906 = vmatprep.subr.mxu0 0.0
  %907 = vmatpush1.msra.mxu0 0.0
  %908 = vmatprep.subr.mxu0 0.0
  %909 = vmatpush1.msra.mxu0 0.0
  %910 = vmatprep.subr.mxu0 0.0
  %911 = vmatpush1.msra.mxu0 0.0
  %912 = vmatprep.subr.mxu0 0.0
  %913 = vmatpush1.msra.mxu0 0.0
  %914 = vmatprep.subr.mxu0 0.0
  %915 = vmatpush1.msra.mxu0 0.0
  %916 = vmatprep.mubr.f32.mxu0 0.0
  %917 = vmatmul.mubr.f32.gmra.mrb[0].mxu0 %v752
  %v918 = vpop.f32.mrb[0].mxu0
  %v919 = vadd.f32 %v830, %v918
  %v920 = vpop.f32.mrb[0].mxu0
  %v921 = vadd.f32 %v832, %v920
  %922 = vmatprep.mubr.f32.mxu0 0.0
  %923 = vmatmul.mubr.f32.gmra.mrb[0].mxu0 %v755
  %v924 = vpop.f32.mrb[0].mxu0
  %v925 = vadd.f32 %v836, %v924
  %v926 = vpop.f32.mrb[0].mxu0
  %v927 = vadd.f32 %v838, %v926
  %928 = vmatprep.mubr.f32.mxu0 0.0
  %929 = vmatmul.mubr.f32.gmra.mrb[0].mxu0 %v758
  %v930 = vpop.f32.mrb[0].mxu0
  %v931 = vadd.f32 %v842, %v930
  %v932 = vpop.f32.mrb[0].mxu0
  %v933 = vadd.f32 %v844, %v932
  %934 = vmatprep.mubr.f32.mxu0 0.0
  %935 = vmatmul.mubr.f32.gmra.mrb[0].mxu0 %v761
  %v936 = vpop.f32.mrb[0].mxu0
  %v937 = vadd.f32 %v848, %v936
  %v938 = vpop.f32.mrb[0].mxu0
  %v939 = vadd.f32 %v850, %v938
  %940 = vdwg.mxu0
  %941 = vmatprep.subr.mxu0 %v134
  %942 = vmatpush1.msra.mxu0 %v133
  %943 = vmatprep.subr.mxu0 %v138
  %944 = vmatpush1.msra.mxu0 %v137
  %945 = vmatprep.subr.mxu0 %v142
  %946 = vmatpush1.msra.mxu0 %v141
  %947 = vmatprep.subr.mxu0 %v146
  %948 = vmatpush1.msra.mxu0 %v145
  %949 = vmatprep.subr.mxu0 %v215
  %950 = vmatpush1.msra.mxu0 %v214
  %951 = vmatprep.subr.mxu0 %v219
  %952 = vmatpush1.msra.mxu0 %v218
  %953 = vmatprep.subr.mxu0 %v223
  %954 = vmatpush1.msra.mxu0 %v222
  %955 = vmatprep.subr.mxu0 %v227
  %956 = vmatpush1.msra.mxu0 %v226
  %957 = vmatprep.subr.mxu0 %v296
  %958 = vmatpush1.msra.mxu0 %v295
  %959 = vmatprep.subr.mxu0 %v300
  %960 = vmatpush1.msra.mxu0 %v299
  %961 = vmatprep.subr.mxu0 %v304
  %962 = vmatpush1.msra.mxu0 %v303
  %963 = vmatprep.subr.mxu0 %v308
  %964 = vmatpush1.msra.mxu0 %v307
  %965 = vmatprep.subr.mxu0 %v377
  %966 = vmatpush1.msra.mxu0 %v376
  %967 = vmatprep.subr.mxu0 %v381
  %968 = vmatpush1.msra.mxu0 %v380
  %969 = vmatprep.subr.mxu0 %v385
  %970 = vmatpush1.msra.mxu0 %v384
  %971 = vmatprep.subr.mxu0 %v389
  %972 = vmatpush1.msra.mxu0 %v388
  %973 = vmatprep.subr.mxu0 %v51
  %974 = vmatpush1.msra.mxu0 %v50
  %975 = vmatprep.subr.mxu0 %v55
  %976 = vmatpush1.msra.mxu0 %v54
  %977 = vmatprep.subr.mxu0 %v59
  %978 = vmatpush1.msra.mxu0 %v58
  %979 = vmatprep.subr.mxu0 %v63
  %980 = vmatpush1.msra.mxu0 %v62
  %981 = vmatprep.subr.mxu0 %v458
  %982 = vmatpush1.msra.mxu0 %v457
  %983 = vmatprep.subr.mxu0 %v462
  %984 = vmatpush1.msra.mxu0 %v461
  %985 = vmatprep.subr.mxu0 %v466
  %986 = vmatpush1.msra.mxu0 %v465
  %987 = vmatprep.subr.mxu0 %v470
  %988 = vmatpush1.msra.mxu0 %v469
  %989 = vmatprep.subr.mxu0 %v539
  %990 = vmatpush1.msra.mxu0 %v538
  %991 = vmatprep.subr.mxu0 %v543
  %992 = vmatpush1.msra.mxu0 %v542
  %993 = vmatprep.subr.mxu0 %v547
  %994 = vmatpush1.msra.mxu0 %v546
  %995 = vmatprep.subr.mxu0 %v551
  %996 = vmatpush1.msra.mxu0 %v550
  %997 = vmatprep.subr.mxu0 %v620
  %998 = vmatpush1.msra.mxu0 %v619
  %999 = vmatprep.subr.mxu0 %v624
  %1000 = vmatpush1.msra.mxu0 %v623
  %1001 = vmatprep.subr.mxu0 %v628
  %1002 = vmatpush1.msra.mxu0 %v627
  %1003 = vmatprep.subr.mxu0 %v632
  %1004 = vmatpush1.msra.mxu0 %v631
  %1005 = vmatprep.mubr.f32.mxu0 %v715
  %1006 = vmatmul.mubr.f32.gmra.mrb[0].mxu0 %v714
  %v1007 = vpop.f32.mrb[0].mxu0
  %v1008 = vadd.f32 %v733, %v1007
  %v1009 = vpop.f32.mrb[0].mxu0
  %v1010 = vadd.f32 %v733, %v1009
  %1011 = vmatprep.mubr.f32.mxu0 %v718
  %1012 = vmatmul.mubr.f32.gmra.mrb[0].mxu0 %v717
  %v1013 = vpop.f32.mrb[0].mxu0
  %v1014 = vadd.f32 %v738, %v1013
  %v1015 = vpop.f32.mrb[0].mxu0
  %v1016 = vadd.f32 %v738, %v1015
  %1017 = vmatprep.mubr.f32.mxu0 %v721
  %1018 = vmatmul.mubr.f32.gmra.mrb[0].mxu0 %v720
  %v1019 = vpop.f32.mrb[0].mxu0
  %v1020 = vadd.f32 %v743, %v1019
  %v1021 = vpop.f32.mrb[0].mxu0
  %v1022 = vadd.f32 %v743, %v1021
  %1023 = vmatprep.mubr.f32.mxu0 %v724
  %1024 = vmatmul.mubr.f32.gmra.mrb[0].mxu0 %v723
  %v1025 = vpop.f32.mrb[0].mxu0
  %v1026 = vadd.f32 %v748, %v1025
  %v1027 = vpop.f32.mrb[0].mxu0
  %v1028 = vadd.f32 %v748, %v1027
  %1029 = vdwg.mxu0
  %1030 = vmatprep.subr.mxu0 %v701
  %1031 = vmatpush1.msra.mxu0 %v700
  %1032 = vmatprep.subr.mxu0 %v705
  %1033 = vmatpush1.msra.mxu0 %v704
  %1034 = vmatprep.subr.mxu0 %v709
  %1035 = vmatpush1.msra.mxu0 %v708
  %1036 = vmatprep.subr.mxu0 %v713
  %1037 = vmatpush1.msra.mxu0 %v712
  %1038 = vmatprep.subr.mxu0 0.0
  %1039 = vmatpush1.msra.mxu0 0.0
  %1040 = vmatprep.subr.mxu0 0.0
  %1041 = vmatpush1.msra.mxu0 0.0
  %1042 = vmatprep.subr.mxu0 0.0
  %1043 = vmatpush1.msra.mxu0 0.0
  %1044 = vmatprep.subr.mxu0 0.0
  %1045 = vmatpush1.msra.mxu0 0.0
  %1046 = vmatprep.subr.mxu0 0.0
  %1047 = vmatpush1.msra.mxu0 0.0
  %1048 = vmatprep.subr.mxu0 0.0
  %1049 = vmatpush1.msra.mxu0 0.0
  %1050 = vmatprep.subr.mxu0 0.0
  %1051 = vmatpush1.msra.mxu0 0.0
  %1052 = vmatprep.subr.mxu0 0.0
  %1053 = vmatpush1.msra.mxu0 0.0
  %1054 = vmatprep.subr.mxu0 0.0
  %1055 = vmatpush1.msra.mxu0 0.0
  %1056 = vmatprep.subr.mxu0 0.0
  %1057 = vmatpush1.msra.mxu0 0.0
  %1058 = vmatprep.subr.mxu0 0.0
  %1059 = vmatpush1.msra.mxu0 0.0
  %1060 = vmatprep.subr.mxu0 0.0
  %1061 = vmatpush1.msra.mxu0 0.0
  %1062 = vmatprep.subr.mxu0 0.0
  %1063 = vmatpush1.msra.mxu0 0.0
  %1064 = vmatprep.subr.mxu0 0.0
  %1065 = vmatpush1.msra.mxu0 0.0
  %1066 = vmatprep.subr.mxu0 0.0
  %1067 = vmatpush1.msra.mxu0 0.0
  %1068 = vmatprep.subr.mxu0 0.0
  %1069 = vmatpush1.msra.mxu0 0.0
  %1070 = vmatprep.subr.mxu0 0.0
  %1071 = vmatpush1.msra.mxu0 0.0
  %1072 = vmatprep.subr.mxu0 0.0
  %1073 = vmatpush1.msra.mxu0 0.0
  %1074 = vmatprep.subr.mxu0 0.0
  %1075 = vmatpush1.msra.mxu0 0.0
  %1076 = vmatprep.subr.mxu0 0.0
  %1077 = vmatpush1.msra.mxu0 0.0
  %1078 = vmatprep.subr.mxu0 0.0
  %1079 = vmatpush1.msra.mxu0 0.0
  %1080 = vmatprep.subr.mxu0 0.0
  %1081 = vmatpush1.msra.mxu0 0.0
  %1082 = vmatprep.subr.mxu0 0.0
  %1083 = vmatpush1.msra.mxu0 0.0
  %1084 = vmatprep.subr.mxu0 0.0
  %1085 = vmatpush1.msra.mxu0 0.0
  %1086 = vmatprep.subr.mxu0 0.0
  %1087 = vmatpush1.msra.mxu0 0.0
  %1088 = vmatprep.subr.mxu0 0.0
  %1089 = vmatpush1.msra.mxu0 0.0
  %1090 = vmatprep.subr.mxu0 0.0
  %1091 = vmatpush1.msra.mxu0 0.0
  %1092 = vmatprep.subr.mxu0 0.0
  %1093 = vmatpush1.msra.mxu0 0.0
  %1094 = vmatprep.mubr.f32.mxu0 0.0
  %1095 = vmatmul.mubr.f32.gmra.mrb[0].mxu0 %v752
  %v1096 = vpop.f32.mrb[0].mxu0
  %v1097 = vadd.f32 %v1008, %v1096
  %v1098 = vpop.f32.mrb[0].mxu0
  %v1099 = vadd.f32 %v1010, %v1098
  %1100 = vmatprep.mubr.f32.mxu0 0.0
  %1101 = vmatmul.mubr.f32.gmra.mrb[0].mxu0 %v755
  %v1102 = vpop.f32.mrb[0].mxu0
  %v1103 = vadd.f32 %v1014, %v1102
  %v1104 = vpop.f32.mrb[0].mxu0
  %v1105 = vadd.f32 %v1016, %v1104
  %1106 = vmatprep.mubr.f32.mxu0 0.0
  %1107 = vmatmul.mubr.f32.gmra.mrb[0].mxu0 %v758
  %v1108 = vpop.f32.mrb[0].mxu0
  %v1109 = vadd.f32 %v1020, %v1108
  %v1110 = vpop.f32.mrb[0].mxu0
  %v1111 = vadd.f32 %v1022, %v1110
  %1112 = vmatprep.mubr.f32.mxu0 0.0
  %1113 = vmatmul.mubr.f32.gmra.mrb[0].mxu0 %v761
  %v1114 = vpop.f32.mrb[0].mxu0
  %v1115 = vadd.f32 %v1026, %v1114
  %v1116 = vpop.f32.mrb[0].mxu0
  %v1117 = vadd.f32 %v1028, %v1116
  %1118 = vdwg.mxu0
  %1119 = vmatprep.subr.mxu0 0.0
  %1120 = vmatpush1.msra.mxu0 1.0
  %1121 = vmatprep.subr.mxu0 0.0
  %1122 = vmatpush1.msra.mxu0 1.0
  %1123 = vmatprep.subr.mxu0 0.0
  %1124 = vmatpush1.msra.mxu0 1.0
  %1125 = vmatprep.subr.mxu0 0.0
  %1126 = vmatpush1.msra.mxu0 1.0
  %1127 = vmatprep.subr.mxu0 0.0
  %1128 = vmatpush1.msra.mxu0 1.0
  %1129 = vmatprep.subr.mxu0 0.0
  %1130 = vmatpush1.msra.mxu0 1.0
  %1131 = vmatprep.subr.mxu0 0.0
  %1132 = vmatpush1.msra.mxu0 1.0
  %1133 = vmatprep.subr.mxu0 0.0
  %1134 = vmatpush1.msra.mxu0 1.0
  %1135 = vmatprep.subr.mxu0 0.0
  %1136 = vmatpush1.msra.mxu0 1.0
  %1137 = vmatprep.subr.mxu0 0.0
  %1138 = vmatpush1.msra.mxu0 1.0
  %1139 = vmatprep.subr.mxu0 0.0
  %1140 = vmatpush1.msra.mxu0 1.0
  %1141 = vmatprep.subr.mxu0 0.0
  %1142 = vmatpush1.msra.mxu0 1.0
  %1143 = vmatprep.subr.mxu0 0.0
  %1144 = vmatpush1.msra.mxu0 1.0
  %1145 = vmatprep.subr.mxu0 0.0
  %1146 = vmatpush1.msra.mxu0 1.0
  %1147 = vmatprep.subr.mxu0 0.0
  %1148 = vmatpush1.msra.mxu0 1.0
  %1149 = vmatprep.subr.mxu0 0.0
  %1150 = vmatpush1.msra.mxu0 1.0
  %1151 = vmatprep.subr.mxu0 0.0
  %1152 = vmatpush1.msra.mxu0 1.0
  %1153 = vmatprep.subr.mxu0 0.0
  %1154 = vmatpush1.msra.mxu0 1.0
  %1155 = vmatprep.subr.mxu0 0.0
  %1156 = vmatpush1.msra.mxu0 1.0
  %1157 = vmatprep.subr.mxu0 0.0
  %1158 = vmatpush1.msra.mxu0 1.0
  %1159 = vmatprep.subr.mxu0 0.0
  %1160 = vmatpush1.msra.mxu0 1.0
  %1161 = vmatprep.subr.mxu0 0.0
  %1162 = vmatpush1.msra.mxu0 1.0
  %1163 = vmatprep.subr.mxu0 0.0
  %1164 = vmatpush1.msra.mxu0 1.0
  %1165 = vmatprep.subr.mxu0 0.0
  %1166 = vmatpush1.msra.mxu0 1.0
  %1167 = vmatprep.subr.mxu0 0.0
  %1168 = vmatpush1.msra.mxu0 1.0
  %1169 = vmatprep.subr.mxu0 0.0
  %1170 = vmatpush1.msra.mxu0 1.0
  %1171 = vmatprep.subr.mxu0 0.0
  %1172 = vmatpush1.msra.mxu0 1.0
  %1173 = vmatprep.subr.mxu0 0.0
  %1174 = vmatpush1.msra.mxu0 1.0
  %1175 = vmatprep.subr.mxu0 0.0
  %1176 = vmatpush1.msra.mxu0 1.0
  %1177 = vmatprep.subr.mxu0 0.0
  %1178 = vmatpush1.msra.mxu0 1.0
  %1179 = vmatprep.subr.mxu0 0.0
  %1180 = vmatpush1.msra.mxu0 1.0
  %1181 = vmatprep.subr.mxu0 0.0
  %1182 = vmatpush1.msra.mxu0 1.0
  %1183 = vmatprep.mubr.f32.mxu0 %v921
  %1184 = vmatmul.mubr.f32.gmra.mrb[0].mxu0 %v919
  %v1185 = vpop.f32.mrb[0].mxu0
  %v1186 = vadd.f32 0.0, %v1185
  %v1187 = vpop.f32.mrb[0].mxu0
  %1188 = vmatprep.mubr.f32.mxu0 %v927
  %1189 = vmatmul.mubr.f32.gmra.mrb[0].mxu0 %v925
  %v1190 = vpop.f32.mrb[0].mxu0
  %v1191 = vadd.f32 0.0, %v1190
  %v1192 = vpop.f32.mrb[0].mxu0
  %1193 = vmatprep.mubr.f32.mxu0 %v933
  %1194 = vmatmul.mubr.f32.gmra.mrb[0].mxu0 %v931
  %v1195 = vpop.f32.mrb[0].mxu0
  %v1196 = vadd.f32 0.0, %v1195
  %v1197 = vpop.f32.mrb[0].mxu0
  %1198 = vmatprep.mubr.f32.mxu0 %v939
  %1199 = vmatmul.mubr.f32.gmra.mrb[0].mxu0 %v937
  %v1200 = vpop.f32.mrb[0].mxu0
  %v1201 = vadd.f32 0.0, %v1200
  %v1202 = vpop.f32.mrb[0].mxu0
  %1203 = vdwg.mxu0
  %1204 = vmatprep.subr.mxu0 0.0
  %1205 = vmatpush1.msra.mxu0 1.0
  %1206 = vmatprep.subr.mxu0 0.0
  %1207 = vmatpush1.msra.mxu0 1.0
  %1208 = vmatprep.subr.mxu0 0.0
  %1209 = vmatpush1.msra.mxu0 1.0
  %1210 = vmatprep.subr.mxu0 0.0
  %1211 = vmatpush1.msra.mxu0 1.0
  %1212 = vmatprep.subr.mxu0 0.0
  %1213 = vmatpush1.msra.mxu0 1.0
  %1214 = vmatprep.subr.mxu0 0.0
  %1215 = vmatpush1.msra.mxu0 1.0
  %1216 = vmatprep.subr.mxu0 0.0
  %1217 = vmatpush1.msra.mxu0 1.0
  %1218 = vmatprep.subr.mxu0 0.0
  %1219 = vmatpush1.msra.mxu0 1.0
  %1220 = vmatprep.subr.mxu0 0.0
  %1221 = vmatpush1.msra.mxu0 1.0
  %1222 = vmatprep.subr.mxu0 0.0
  %1223 = vmatpush1.msra.mxu0 1.0
  %1224 = vmatprep.subr.mxu0 0.0
  %1225 = vmatpush1.msra.mxu0 1.0
  %1226 = vmatprep.subr.mxu0 0.0
  %1227 = vmatpush1.msra.mxu0 1.0
  %1228 = vmatprep.subr.mxu0 0.0
  %1229 = vmatpush1.msra.mxu0 1.0
  %1230 = vmatprep.subr.mxu0 0.0
  %1231 = vmatpush1.msra.mxu0 1.0
  %1232 = vmatprep.subr.mxu0 0.0
  %1233 = vmatpush1.msra.mxu0 1.0
  %1234 = vmatprep.subr.mxu0 0.0
  %1235 = vmatpush1.msra.mxu0 1.0
  %1236 = vmatprep.subr.mxu0 0.0
  %1237 = vmatpush1.msra.mxu0 1.0
  %1238 = vmatprep.subr.mxu0 0.0
  %1239 = vmatpush1.msra.mxu0 1.0
  %1240 = vmatprep.subr.mxu0 0.0
  %1241 = vmatpush1.msra.mxu0 1.0
  %1242 = vmatprep.subr.mxu0 0.0
  %1243 = vmatpush1.msra.mxu0 1.0
  %1244 = vmatprep.subr.mxu0 0.0
  %1245 = vmatpush1.msra.mxu0 1.0
  %1246 = vmatprep.subr.mxu0 0.0
  %1247 = vmatpush1.msra.mxu0 1.0
  %1248 = vmatprep.subr.mxu0 0.0
  %1249 = vmatpush1.msra.mxu0 1.0
  %1250 = vmatprep.subr.mxu0 0.0
  %1251 = vmatpush1.msra.mxu0 1.0
  %1252 = vmatprep.subr.mxu0 0.0
  %1253 = vmatpush1.msra.mxu0 1.0
  %1254 = vmatprep.subr.mxu0 0.0
  %1255 = vmatpush1.msra.mxu0 1.0
  %1256 = vmatprep.subr.mxu0 0.0
  %1257 = vmatpush1.msra.mxu0 1.0
  %1258 = vmatprep.subr.mxu0 0.0
  %1259 = vmatpush1.msra.mxu0 1.0
  %1260 = vmatprep.subr.mxu0 0.0
  %1261 = vmatpush1.msra.mxu0 1.0
  %1262 = vmatprep.subr.mxu0 0.0
  %1263 = vmatpush1.msra.mxu0 1.0
  %1264 = vmatprep.subr.mxu0 0.0
  %1265 = vmatpush1.msra.mxu0 1.0
  %1266 = vmatprep.subr.mxu0 0.0
  %1267 = vmatpush1.msra.mxu0 1.0
  %1268 = vmatprep.mubr.f32.mxu0 %v1099
  %1269 = vmatmul.mubr.f32.gmra.mrb[0].mxu0 %v1097
  %v1270 = vpop.f32.mrb[0].mxu0
  %v1271 = vadd.f32 %v1186, %v1270
  %v1272 = vpop.f32.mrb[0].mxu0
  %1273 = vmatprep.mubr.f32.mxu0 %v1105
  %1274 = vmatmul.mubr.f32.gmra.mrb[0].mxu0 %v1103
  %v1275 = vpop.f32.mrb[0].mxu0
  %v1276 = vadd.f32 %v1191, %v1275
  %v1277 = vpop.f32.mrb[0].mxu0
  %1278 = vmatprep.mubr.f32.mxu0 %v1111
  %1279 = vmatmul.mubr.f32.gmra.mrb[0].mxu0 %v1109
  %v1280 = vpop.f32.mrb[0].mxu0
  %v1281 = vadd.f32 %v1196, %v1280
  %v1282 = vpop.f32.mrb[0].mxu0
  %1283 = vmatprep.mubr.f32.mxu0 %v1117
  %1284 = vmatmul.mubr.f32.gmra.mrb[0].mxu0 %v1115
  %v1285 = vpop.f32.mrb[0].mxu0
  %v1286 = vadd.f32 %v1201, %v1285
  %v1287 = vpop.f32.mrb[0].mxu0
  %1288 = vdwg.mxu0
  %v1289 = vmul.f32 %v1271, 0.001953125
  %v1290 = vmul.f32 %v1276, 0.001953125
  %v1291 = vmul.f32 %v1281, 0.001953125
  %v1292 = vmul.f32 %v1286, 0.001953125
  %1294 = vset.pattern.permute.xlu0 0
  %1295 = vperm.xlu0 %1294, %v1289
  %v1296 = vpop.permute.xlu0 %1295
  %1299 = vset.pattern.permute.xlu0 0
  %1300 = vperm.xlu0 %1299, %v1290
  %v1301 = vpop.permute.xlu0 %1300
  %1304 = vset.pattern.permute.xlu0 0
  %1305 = vperm.xlu0 %1304, %v1291
  %v1306 = vpop.permute.xlu0 %1305
  %1309 = vset.pattern.permute.xlu0 0
  %1310 = vperm.xlu0 %1309, %v1292
  %v1311 = vpop.permute.xlu0 %1310
  %v1313 = vsub.f32 %v919, %v1296
  %v1314 = vsub.f32 %v921, %v1296
  %v1315 = vsub.f32 %v1097, %v1296
  %v1316 = vsub.f32 %v1099, %v1296
  %v1317 = vsub.f32 %v925, %v1301
  %v1318 = vsub.f32 %v927, %v1301
  %v1319 = vsub.f32 %v1103, %v1301
  %v1320 = vsub.f32 %v1105, %v1301
  %v1321 = vsub.f32 %v931, %v1306
  %v1322 = vsub.f32 %v933, %v1306
  %v1323 = vsub.f32 %v1109, %v1306
  %v1324 = vsub.f32 %v1111, %v1306
  %v1325 = vsub.f32 %v937, %v1311
  %v1326 = vsub.f32 %v939, %v1311
  %v1327 = vsub.f32 %v1115, %v1311
  %v1328 = vsub.f32 %v1117, %v1311
  %v1329 = vmul.f32 %v1313, %v1313
  %v1330 = vmul.f32 %v1314, %v1314
  %v1331 = vmul.f32 %v1315, %v1315
  %v1332 = vmul.f32 %v1316, %v1316
  %v1333 = vmul.f32 %v1317, %v1317
  %v1334 = vmul.f32 %v1318, %v1318
  %v1335 = vmul.f32 %v1319, %v1319
  %v1336 = vmul.f32 %v1320, %v1320
  %v1337 = vmul.f32 %v1321, %v1321
  %v1338 = vmul.f32 %v1322, %v1322
  %v1339 = vmul.f32 %v1323, %v1323
  %v1340 = vmul.f32 %v1324, %v1324
  %v1341 = vmul.f32 %v1325, %v1325
  %v1342 = vmul.f32 %v1326, %v1326
  %v1343 = vmul.f32 %v1327, %v1327
  %v1344 = vmul.f32 %v1328, %v1328
  %1345 = vmatprep.subr.mxu0 0.0
  %1346 = vmatpush1.msra.mxu0 1.0
  %1347 = vmatprep.subr.mxu0 0.0
  %1348 = vmatpush1.msra.mxu0 1.0
  %1349 = vmatprep.subr.mxu0 0.0
  %1350 = vmatpush1.msra.mxu0 1.0
  %1351 = vmatprep.subr.mxu0 0.0
  %1352 = vmatpush1.msra.mxu0 1.0
  %1353 = vmatprep.subr.mxu0 0.0
  %1354 = vmatpush1.msra.mxu0 1.0
  %1355 = vmatprep.subr.mxu0 0.0
  %1356 = vmatpush1.msra.mxu0 1.0
  %1357 = vmatprep.subr.mxu0 0.0
  %1358 = vmatpush1.msra.mxu0 1.0
  %1359 = vmatprep.subr.mxu0 0.0
  %1360 = vmatpush1.msra.mxu0 1.0
  %1361 = vmatprep.subr.mxu0 0.0
  %1362 = vmatpush1.msra.mxu0 1.0
  %1363 = vmatprep.subr.mxu0 0.0
  %1364 = vmatpush1.msra.mxu0 1.0
  %1365 = vmatprep.subr.mxu0 0.0
  %1366 = vmatpush1.msra.mxu0 1.0
  %1367 = vmatprep.subr.mxu0 0.0
  %1368 = vmatpush1.msra.mxu0 1.0
  %1369 = vmatprep.subr.mxu0 0.0
  %1370 = vmatpush1.msra.mxu0 1.0
  %1371 = vmatprep.subr.mxu0 0.0
  %1372 = vmatpush1.msra.mxu0 1.0
  %1373 = vmatprep.subr.mxu0 0.0
  %1374 = vmatpush1.msra.mxu0 1.0
  %1375 = vmatprep.subr.mxu0 0.0
  %1376 = vmatpush1.msra.mxu0 1.0
  %1377 = vmatprep.subr.mxu0 0.0
  %1378 = vmatpush1.msra.mxu0 1.0
  %1379 = vmatprep.subr.mxu0 0.0
  %1380 = vmatpush1.msra.mxu0 1.0
  %1381 = vmatprep.subr.mxu0 0.0
  %1382 = vmatpush1.msra.mxu0 1.0
  %1383 = vmatprep.subr.mxu0 0.0
  %1384 = vmatpush1.msra.mxu0 1.0
  %1385 = vmatprep.subr.mxu0 0.0
  %1386 = vmatpush1.msra.mxu0 1.0
  %1387 = vmatprep.subr.mxu0 0.0
  %1388 = vmatpush1.msra.mxu0 1.0
  %1389 = vmatprep.subr.mxu0 0.0
  %1390 = vmatpush1.msra.mxu0 1.0
  %1391 = vmatprep.subr.mxu0 0.0
  %1392 = vmatpush1.msra.mxu0 1.0
  %1393 = vmatprep.subr.mxu0 0.0
  %1394 = vmatpush1.msra.mxu0 1.0
  %1395 = vmatprep.subr.mxu0 0.0
  %1396 = vmatpush1.msra.mxu0 1.0
  %1397 = vmatprep.subr.mxu0 0.0
  %1398 = vmatpush1.msra.mxu0 1.0
  %1399 = vmatprep.subr.mxu0 0.0
  %1400 = vmatpush1.msra.mxu0 1.0
  %1401 = vmatprep.subr.mxu0 0.0
  %1402 = vmatpush1.msra.mxu0 1.0
  %1403 = vmatprep.subr.mxu0 0.0
  %1404 = vmatpush1.msra.mxu0 1.0
  %1405 = vmatprep.subr.mxu0 0.0
  %1406 = vmatpush1.msra.mxu0 1.0
  %1407 = vmatprep.subr.mxu0 0.0
  %1408 = vmatpush1.msra.mxu0 1.0
  %1409 = vmatprep.mubr.f32.mxu0 %v1330
  %1410 = vmatmul.mubr.f32.gmra.mrb[0].mxu0 %v1329
  %v1411 = vpop.f32.mrb[0].mxu0
  %v1412 = vadd.f32 0.0, %v1411
  %v1413 = vpop.f32.mrb[0].mxu0
  %1414 = vmatprep.mubr.f32.mxu0 %v1334
  %1415 = vmatmul.mubr.f32.gmra.mrb[0].mxu0 %v1333
  %v1416 = vpop.f32.mrb[0].mxu0
  %v1417 = vadd.f32 0.0, %v1416
  %v1418 = vpop.f32.mrb[0].mxu0
  %1419 = vmatprep.mubr.f32.mxu0 %v1338
  %1420 = vmatmul.mubr.f32.gmra.mrb[0].mxu0 %v1337
  %v1421 = vpop.f32.mrb[0].mxu0
  %v1422 = vadd.f32 0.0, %v1421
  %v1423 = vpop.f32.mrb[0].mxu0
  %1424 = vmatprep.mubr.f32.mxu0 %v1342
  %1425 = vmatmul.mubr.f32.gmra.mrb[0].mxu0 %v1341
  %v1426 = vpop.f32.mrb[0].mxu0
  %v1427 = vadd.f32 0.0, %v1426
  %v1428 = vpop.f32.mrb[0].mxu0
  %1429 = vdwg.mxu0
  %1430 = vmatprep.subr.mxu0 0.0
  %1431 = vmatpush1.msra.mxu0 1.0
  %1432 = vmatprep.subr.mxu0 0.0
  %1433 = vmatpush1.msra.mxu0 1.0
  %1434 = vmatprep.subr.mxu0 0.0
  %1435 = vmatpush1.msra.mxu0 1.0
  %1436 = vmatprep.subr.mxu0 0.0
  %1437 = vmatpush1.msra.mxu0 1.0
  %1438 = vmatprep.subr.mxu0 0.0
  %1439 = vmatpush1.msra.mxu0 1.0
  %1440 = vmatprep.subr.mxu0 0.0
  %1441 = vmatpush1.msra.mxu0 1.0
  %1442 = vmatprep.subr.mxu0 0.0
  %1443 = vmatpush1.msra.mxu0 1.0
  %1444 = vmatprep.subr.mxu0 0.0
  %1445 = vmatpush1.msra.mxu0 1.0
  %1446 = vmatprep.subr.mxu0 0.0
  %1447 = vmatpush1.msra.mxu0 1.0
  %1448 = vmatprep.subr.mxu0 0.0
  %1449 = vmatpush1.msra.mxu0 1.0
  %1450 = vmatprep.subr.mxu0 0.0
  %1451 = vmatpush1.msra.mxu0 1.0
  %1452 = vmatprep.subr.mxu0 0.0
  %1453 = vmatpush1.msra.mxu0 1.0
  %1454 = vmatprep.subr.mxu0 0.0
  %1455 = vmatpush1.msra.mxu0 1.0
  %1456 = vmatprep.subr.mxu0 0.0
  %1457 = vmatpush1.msra.mxu0 1.0
  %1458 = vmatprep.subr.mxu0 0.0
  %1459 = vmatpush1.msra.mxu0 1.0
  %1460 = vmatprep.subr.mxu0 0.0
  %1461 = vmatpush1.msra.mxu0 1.0
  %1462 = vmatprep.subr.mxu0 0.0
  %1463 = vmatpush1.msra.mxu0 1.0
  %1464 = vmatprep.subr.mxu0 0.0
  %1465 = vmatpush1.msra.mxu0 1.0
  %1466 = vmatprep.subr.mxu0 0.0
  %1467 = vmatpush1.msra.mxu0 1.0
  %1468 = vmatprep.subr.mxu0 0.0
  %1469 = vmatpush1.msra.mxu0 1.0
  %1470 = vmatprep.subr.mxu0 0.0
  %1471 = vmatpush1.msra.mxu0 1.0
  %1472 = vmatprep.subr.mxu0 0.0
  %1473 = vmatpush1.msra.mxu0 1.0
  %1474 = vmatprep.subr.mxu0 0.0
  %1475 = vmatpush1.msra.mxu0 1.0
  %1476 = vmatprep.subr.mxu0 0.0
  %1477 = vmatpush1.msra.mxu0 1.0
  %1478 = vmatprep.subr.mxu0 0.0
  %1479 = vmatpush1.msra.mxu0 1.0
  %1480 = vmatprep.subr.mxu0 0.0
  %1481 = vmatpush1.msra.mxu0 1.0
  %1482 = vmatprep.subr.mxu0 0.0
  %1483 = vmatpush1.msra.mxu0 1.0
  %1484 = vmatprep.subr.mxu0 0.0
  %1485 = vmatpush1.msra.mxu0 1.0
  %1486 = vmatprep.subr.mxu0 0.0
  %1487 = vmatpush1.msra.mxu0 1.0
  %1488 = vmatprep.subr.mxu0 0.0
  %1489 = vmatpush1.msra.mxu0 1.0
  %1490 = vmatprep.subr.mxu0 0.0
  %1491 = vmatpush1.msra.mxu0 1.0
  %1492 = vmatprep.subr.mxu0 0.0
  %1493 = vmatpush1.msra.mxu0 1.0
  %1494 = vmatprep.mubr.f32.mxu0 %v1332
  %1495 = vmatmul.mubr.f32.gmra.mrb[0].mxu0 %v1331
  %v1496 = vpop.f32.mrb[0].mxu0
  %v1497 = vadd.f32 %v1412, %v1496
  %v1498 = vpop.f32.mrb[0].mxu0
  %1499 = vmatprep.mubr.f32.mxu0 %v1336
  %1500 = vmatmul.mubr.f32.gmra.mrb[0].mxu0 %v1335
  %v1501 = vpop.f32.mrb[0].mxu0
  %v1502 = vadd.f32 %v1417, %v1501
  %v1503 = vpop.f32.mrb[0].mxu0
  %1504 = vmatprep.mubr.f32.mxu0 %v1340
  %1505 = vmatmul.mubr.f32.gmra.mrb[0].mxu0 %v1339
  %v1506 = vpop.f32.mrb[0].mxu0
  %v1507 = vadd.f32 %v1422, %v1506
  %v1508 = vpop.f32.mrb[0].mxu0
  %1509 = vmatprep.mubr.f32.mxu0 %v1344
  %1510 = vmatmul.mubr.f32.gmra.mrb[0].mxu0 %v1343
  %v1511 = vpop.f32.mrb[0].mxu0
  %v1512 = vadd.f32 %v1427, %v1511
  %v1513 = vpop.f32.mrb[0].mxu0
  %1514 = vdwg.mxu0
  %v1515 = vmul.f32 %v1497, 0.001953125
  %v1516 = vmul.f32 %v1502, 0.001953125
  %v1517 = vmul.f32 %v1507, 0.001953125
  %v1518 = vmul.f32 %v1512, 0.001953125
  %v1519 = vadd.f32 %v1515, 1e-05
  %v1520 = vadd.f32 %v1516, 1e-05
  %v1521 = vadd.f32 %v1517, 1e-05
  %v1522 = vadd.f32 %v1518, 1e-05
  %v1523 = vrsqrt.pop %v1519
  %v1524 = vrsqrt.pop %v1520
  %v1525 = vrsqrt.pop %v1521
  %v1526 = vrsqrt.pop %v1522
  %1527 = vrot.lane.b32.xlu0 %v726, 127
  %v1528 = vpop.permute.xlu0 %1527
  %1529 = vrot.lane.b32.xlu0 %v727, 127
  %v1530 = vpop.permute.xlu0 %1529
  %1531 = vrot.lane.b32.xlu0 %v728, 127
  %v1532 = vpop.permute.xlu0 %1531
  %1533 = vrot.lane.b32.xlu0 %v729, 127
  %v1534 = vpop.permute.xlu0 %1533
  %v1539 = vmul.f32 %v1523, %v1528
  %v1540 = vmul.f32 %v1524, %v1530
  %v1541 = vmul.f32 %v1525, %v1532
  %v1542 = vmul.f32 %v1526, %v1534
  %1544 = vset.pattern.permute.xlu0 0
  %1545 = vperm.xlu0 %1544, %v1539
  %v1546 = vpop.permute.xlu0 %1545
  %1549 = vset.pattern.permute.xlu0 0
  %1550 = vperm.xlu0 %1549, %v1540
  %v1551 = vpop.permute.xlu0 %1550
  %1554 = vset.pattern.permute.xlu0 0
  %1555 = vperm.xlu0 %1554, %v1541
  %v1556 = vpop.permute.xlu0 %1555
  %1559 = vset.pattern.permute.xlu0 0
  %1560 = vperm.xlu0 %1559, %v1542
  %v1561 = vpop.permute.xlu0 %1560
  %v1563 = vmul.f32 %v1313, %v1546
  %v1564 = vmul.f32 %v1314, %v1546
  %v1565 = vmul.f32 %v1315, %v1546
  %v1566 = vmul.f32 %v1316, %v1546
  %v1567 = vmul.f32 %v1317, %v1551
  %v1568 = vmul.f32 %v1318, %v1551
  %v1569 = vmul.f32 %v1319, %v1551
  %v1570 = vmul.f32 %v1320, %v1551
  %v1571 = vmul.f32 %v1321, %v1556
  %v1572 = vmul.f32 %v1322, %v1556
  %v1573 = vmul.f32 %v1323, %v1556
  %v1574 = vmul.f32 %v1324, %v1556
  %v1575 = vmul.f32 %v1325, %v1561
  %v1576 = vmul.f32 %v1326, %v1561
  %v1577 = vmul.f32 %v1327, %v1561
  %v1578 = vmul.f32 %v1328, %v1561
  %1579 = vset.pattern.permute.xlu0 2
  %1580 = vperm.xlu0 %1579, %v726
  %v1581 = vpop.permute.xlu0 %1580
  %1583 = vset.pattern.permute.xlu0 2
  %1584 = vperm.xlu0 %1583, %v727
  %v1585 = vpop.permute.xlu0 %1584
  %1587 = vset.pattern.permute.xlu0 2
  %1588 = vperm.xlu0 %1587, %v728
  %v1589 = vpop.permute.xlu0 %1588
  %1591 = vset.pattern.permute.xlu0 2
  %1592 = vperm.xlu0 %1591, %v729
  %v1593 = vpop.permute.xlu0 %1592
  %v1595 = vadd.f32 %v1563, %v1581
  %v1596 = vadd.f32 %v1564, %v1581
  %v1597 = vadd.f32 %v1565, %v1581
  %v1598 = vadd.f32 %v1566, %v1581
  %v1599 = vadd.f32 %v1567, %v1585
  %v1600 = vadd.f32 %v1568, %v1585
  %v1601 = vadd.f32 %v1569, %v1585
  %v1602 = vadd.f32 %v1570, %v1585
  %v1603 = vadd.f32 %v1571, %v1589
  %v1604 = vadd.f32 %v1572, %v1589
  %v1605 = vadd.f32 %v1573, %v1589
  %v1606 = vadd.f32 %v1574, %v1589
  %v1607 = vadd.f32 %v1575, %v1593
  %v1608 = vadd.f32 %v1576, %v1593
  %v1609 = vadd.f32 %v1577, %v1593
  %v1610 = vadd.f32 %v1578, %v1593
  %v1611 = vmax.f32 %v1595, 0.0
  %v1612 = vmax.f32 %v1596, 0.0
  %v1613 = vmax.f32 %v1597, 0.0
  %v1614 = vmax.f32 %v1598, 0.0
  %v1615 = vmax.f32 %v1599, 0.0
  %v1616 = vmax.f32 %v1600, 0.0
  %v1617 = vmax.f32 %v1601, 0.0
  %v1618 = vmax.f32 %v1602, 0.0
  %v1619 = vmax.f32 %v1603, 0.0
  %v1620 = vmax.f32 %v1604, 0.0
  %v1621 = vmax.f32 %v1605, 0.0
  %v1622 = vmax.f32 %v1606, 0.0
  %v1623 = vmax.f32 %v1607, 0.0
  %v1624 = vmax.f32 %v1608, 0.0
  %v1625 = vmax.f32 %v1609, 0.0
  %v1626 = vmax.f32 %v1610, 0.0
  %1627 = vrot.lane.b32.xlu0 %v1611, 17
  %v1628 = vpop.permute.xlu0 %1627
  %1629 = vrot.lane.b32.xlu0 %v1615, 17
  %v1630 = vpop.permute.xlu0 %1629
  %1631 = vrot.lane.b32.xlu0 %v1619, 17
  %v1632 = vpop.permute.xlu0 %1631
  %1633 = vrot.lane.b32.xlu0 %v1623, 17
  %v1634 = vpop.permute.xlu0 %1633
  %1635 = vrot.lane.b32.xlu0 %v1612, 17
  %v1636 = vpop.permute.xlu0 %1635
  %1637 = vrot.lane.b32.xlu0 %v1616, 17
  %v1638 = vpop.permute.xlu0 %1637
  %1639 = vrot.lane.b32.xlu0 %v1620, 17
  %v1640 = vpop.permute.xlu0 %1639
  %1641 = vrot.lane.b32.xlu0 %v1624, 17
  %v1642 = vpop.permute.xlu0 %1641
  %1643 = vrot.lane.b32.xlu0 %v1613, 17
  %v1644 = vpop.permute.xlu0 %1643
  %1645 = vrot.lane.b32.xlu0 %v1617, 17
  %v1646 = vpop.permute.xlu0 %1645
  %1647 = vrot.lane.b32.xlu0 %v1621, 17
  %v1648 = vpop.permute.xlu0 %1647
  %1649 = vrot.lane.b32.xlu0 %v1625, 17
  %v1650 = vpop.permute.xlu0 %1649
  %1651 = vrot.lane.b32.xlu0 %v1614, 17
  %v1652 = vpop.permute.xlu0 %1651
  %1653 = vrot.lane.b32.xlu0 %v1618, 17
  %v1654 = vpop.permute.xlu0 %1653
  %1655 = vrot.lane.b32.xlu0 %v1622, 17
  %v1656 = vpop.permute.xlu0 %1655
  %1657 = vrot.lane.b32.xlu0 %v1626, 17
  %v1658 = vpop.permute.xlu0 %1657
  %v1659 = vsel %vm98, %v1644, %v1652
  %v1660 = vsel %vm98, %v1646, %v1654
  %v1661 = vsel %vm98, %v1648, %v1656
  %v1662 = vsel %vm98, %v1650, %v1658
  %v1663 = vsel %vm98, %v1636, %v1644
  %v1664 = vsel %vm98, %v1638, %v1646
  %v1665 = vsel %vm98, %v1640, %v1648
  %v1666 = vsel %vm98, %v1642, %v1650
  %v1667 = vsel %vm98, %v1628, %v1636
  %v1668 = vsel %vm98, %v1630, %v1638
  %v1669 = vsel %vm98, %v1632, %v1640
  %v1670 = vsel %vm98, %v1634, %v1642
  %v1671 = vsel %vm98, %v1652, %v1628
  %v1672 = vsel %vm98, %v1654, %v1630
  %v1673 = vsel %vm98, %v1656, %v1632
  %v1674 = vsel %vm98, %v1658, %v1634
  %v1675 = vmul.f32 %v1671, %v118
  %v1676 = vmul.f32 %v1667, %v122
  %v1677 = vmul.f32 %v1663, %v126
  %v1678 = vmul.f32 %v1659, %v130
  %v1679 = vmul.f32 %v1672, %v118
  %v1680 = vmul.f32 %v1668, %v122
  %v1681 = vmul.f32 %v1664, %v126
  %v1682 = vmul.f32 %v1660, %v130
  %v1683 = vmul.f32 %v1673, %v118
  %v1684 = vmul.f32 %v1669, %v122
  %v1685 = vmul.f32 %v1665, %v126
  %v1686 = vmul.f32 %v1661, %v130
  %v1687 = vmul.f32 %v1674, %v118
  %v1688 = vmul.f32 %v1670, %v122
  %v1689 = vmul.f32 %v1666, %v126
  %v1690 = vmul.f32 %v1662, %v130
  %1691 = vrot.lane.b32.xlu0 %v1611, 16
  %v1692 = vpop.permute.xlu0 %1691
  %1693 = vrot.lane.b32.xlu0 %v1615, 16
  %v1694 = vpop.permute.xlu0 %1693
  %1695 = vrot.lane.b32.xlu0 %v1619, 16
  %v1696 = vpop.permute.xlu0 %1695
  %1697 = vrot.lane.b32.xlu0 %v1623, 16
  %v1698 = vpop.permute.xlu0 %1697
  %1699 = vrot.lane.b32.xlu0 %v1612, 16
  %v1700 = vpop.permute.xlu0 %1699
  %1701 = vrot.lane.b32.xlu0 %v1616, 16
  %v1702 = vpop.permute.xlu0 %1701
  %1703 = vrot.lane.b32.xlu0 %v1620, 16
  %v1704 = vpop.permute.xlu0 %1703
  %1705 = vrot.lane.b32.xlu0 %v1624, 16
  %v1706 = vpop.permute.xlu0 %1705
  %1707 = vrot.lane.b32.xlu0 %v1613, 16
  %v1708 = vpop.permute.xlu0 %1707
  %1709 = vrot.lane.b32.xlu0 %v1617, 16
  %v1710 = vpop.permute.xlu0 %1709
  %1711 = vrot.lane.b32.xlu0 %v1621, 16
  %v1712 = vpop.permute.xlu0 %1711
  %1713 = vrot.lane.b32.xlu0 %v1625, 16
  %v1714 = vpop.permute.xlu0 %1713
  %1715 = vrot.lane.b32.xlu0 %v1614, 16
  %v1716 = vpop.permute.xlu0 %1715
  %1717 = vrot.lane.b32.xlu0 %v1618, 16
  %v1718 = vpop.permute.xlu0 %1717
  %1719 = vrot.lane.b32.xlu0 %v1622, 16
  %v1720 = vpop.permute.xlu0 %1719
  %1721 = vrot.lane.b32.xlu0 %v1626, 16
  %v1722 = vpop.permute.xlu0 %1721
  %v1723 = vsel %vm179, %v1708, %v1716
  %v1724 = vsel %vm179, %v1710, %v1718
  %v1725 = vsel %vm179, %v1712, %v1720
  %v1726 = vsel %vm179, %v1714, %v1722
  %v1727 = vsel %vm179, %v1700, %v1708
  %v1728 = vsel %vm179, %v1702, %v1710
  %v1729 = vsel %vm179, %v1704, %v1712
  %v1730 = vsel %vm179, %v1706, %v1714
  %v1731 = vsel %vm179, %v1692, %v1700
  %v1732 = vsel %vm179, %v1694, %v1702
  %v1733 = vsel %vm179, %v1696, %v1704
  %v1734 = vsel %vm179, %v1698, %v1706
  %v1735 = vsel %vm179, %v1716, %v1692
  %v1736 = vsel %vm179, %v1718, %v1694
  %v1737 = vsel %vm179, %v1720, %v1696
  %v1738 = vsel %vm179, %v1722, %v1698
  %v1739 = vmul.f32 %v1735, %v199
  %v1740 = vmul.f32 %v1731, %v203
  %v1741 = vmul.f32 %v1727, %v207
  %v1742 = vmul.f32 %v1723, %v211
  %v1743 = vmul.f32 %v1736, %v199
  %v1744 = vmul.f32 %v1732, %v203
  %v1745 = vmul.f32 %v1728, %v207
  %v1746 = vmul.f32 %v1724, %v211
  %v1747 = vmul.f32 %v1737, %v199
  %v1748 = vmul.f32 %v1733, %v203
  %v1749 = vmul.f32 %v1729, %v207
  %v1750 = vmul.f32 %v1725, %v211
  %v1751 = vmul.f32 %v1738, %v199
  %v1752 = vmul.f32 %v1734, %v203
  %v1753 = vmul.f32 %v1730, %v207
  %v1754 = vmul.f32 %v1726, %v211
  %1755 = vrot.lane.b32.xlu0 %v1611, 15
  %v1756 = vpop.permute.xlu0 %1755
  %1757 = vrot.lane.b32.xlu0 %v1615, 15
  %v1758 = vpop.permute.xlu0 %1757
  %1759 = vrot.lane.b32.xlu0 %v1619, 15
  %v1760 = vpop.permute.xlu0 %1759
  %1761 = vrot.lane.b32.xlu0 %v1623, 15
  %v1762 = vpop.permute.xlu0 %1761
  %1763 = vrot.lane.b32.xlu0 %v1612, 15
  %v1764 = vpop.permute.xlu0 %1763
  %1765 = vrot.lane.b32.xlu0 %v1616, 15
  %v1766 = vpop.permute.xlu0 %1765
  %1767 = vrot.lane.b32.xlu0 %v1620, 15
  %v1768 = vpop.permute.xlu0 %1767
  %1769 = vrot.lane.b32.xlu0 %v1624, 15
  %v1770 = vpop.permute.xlu0 %1769
  %1771 = vrot.lane.b32.xlu0 %v1613, 15
  %v1772 = vpop.permute.xlu0 %1771
  %1773 = vrot.lane.b32.xlu0 %v1617, 15
  %v1774 = vpop.permute.xlu0 %1773
  %1775 = vrot.lane.b32.xlu0 %v1621, 15
  %v1776 = vpop.permute.xlu0 %1775
  %1777 = vrot.lane.b32.xlu0 %v1625, 15
  %v1778 = vpop.permute.xlu0 %1777
  %1779 = vrot.lane.b32.xlu0 %v1614, 15
  %v1780 = vpop.permute.xlu0 %1779
  %1781 = vrot.lane.b32.xlu0 %v1618, 15
  %v1782 = vpop.permute.xlu0 %1781
  %1783 = vrot.lane.b32.xlu0 %v1622, 15
  %v1784 = vpop.permute.xlu0 %1783
  %1785 = vrot.lane.b32.xlu0 %v1626, 15
  %v1786 = vpop.permute.xlu0 %1785
  %v1787 = vsel %vm260, %v1772, %v1780
  %v1788 = vsel %vm260, %v1774, %v1782
  %v1789 = vsel %vm260, %v1776, %v1784
  %v1790 = vsel %vm260, %v1778, %v1786
  %v1791 = vsel %vm260, %v1764, %v1772
  %v1792 = vsel %vm260, %v1766, %v1774
  %v1793 = vsel %vm260, %v1768, %v1776
  %v1794 = vsel %vm260, %v1770, %v1778
  %v1795 = vsel %vm260, %v1756, %v1764
  %v1796 = vsel %vm260, %v1758, %v1766
  %v1797 = vsel %vm260, %v1760, %v1768
  %v1798 = vsel %vm260, %v1762, %v1770
  %v1799 = vsel %vm260, %v1780, %v1756
  %v1800 = vsel %vm260, %v1782, %v1758
  %v1801 = vsel %vm260, %v1784, %v1760
  %v1802 = vsel %vm260, %v1786, %v1762
  %v1803 = vmul.f32 %v1799, %v280
  %v1804 = vmul.f32 %v1795, %v284
  %v1805 = vmul.f32 %v1791, %v288
  %v1806 = vmul.f32 %v1787, %v292
  %v1807 = vmul.f32 %v1800, %v280
  %v1808 = vmul.f32 %v1796, %v284
  %v1809 = vmul.f32 %v1792, %v288
  %v1810 = vmul.f32 %v1788, %v292
  %v1811 = vmul.f32 %v1801, %v280
  %v1812 = vmul.f32 %v1797, %v284
  %v1813 = vmul.f32 %v1793, %v288
  %v1814 = vmul.f32 %v1789, %v292
  %v1815 = vmul.f32 %v1802, %v280
  %v1816 = vmul.f32 %v1798, %v284
  %v1817 = vmul.f32 %v1794, %v288
  %v1818 = vmul.f32 %v1790, %v292
  %1819 = vrot.lane.b32.xlu0 %v1611, 1
  %v1820 = vpop.permute.xlu0 %1819
  %1821 = vrot.lane.b32.xlu0 %v1615, 1
  %v1822 = vpop.permute.xlu0 %1821
  %1823 = vrot.lane.b32.xlu0 %v1619, 1
  %v1824 = vpop.permute.xlu0 %1823
  %1825 = vrot.lane.b32.xlu0 %v1623, 1
  %v1826 = vpop.permute.xlu0 %1825
  %1827 = vrot.lane.b32.xlu0 %v1612, 1
  %v1828 = vpop.permute.xlu0 %1827
  %1829 = vrot.lane.b32.xlu0 %v1616, 1
  %v1830 = vpop.permute.xlu0 %1829
  %1831 = vrot.lane.b32.xlu0 %v1620, 1
  %v1832 = vpop.permute.xlu0 %1831
  %1833 = vrot.lane.b32.xlu0 %v1624, 1
  %v1834 = vpop.permute.xlu0 %1833
  %1835 = vrot.lane.b32.xlu0 %v1613, 1
  %v1836 = vpop.permute.xlu0 %1835
  %1837 = vrot.lane.b32.xlu0 %v1617, 1
  %v1838 = vpop.permute.xlu0 %1837
  %1839 = vrot.lane.b32.xlu0 %v1621, 1
  %v1840 = vpop.permute.xlu0 %1839
  %1841 = vrot.lane.b32.xlu0 %v1625, 1
  %v1842 = vpop.permute.xlu0 %1841
  %1843 = vrot.lane.b32.xlu0 %v1614, 1
  %v1844 = vpop.permute.xlu0 %1843
  %1845 = vrot.lane.b32.xlu0 %v1618, 1
  %v1846 = vpop.permute.xlu0 %1845
  %1847 = vrot.lane.b32.xlu0 %v1622, 1
  %v1848 = vpop.permute.xlu0 %1847
  %1849 = vrot.lane.b32.xlu0 %v1626, 1
  %v1850 = vpop.permute.xlu0 %1849
  %v1851 = vsel %vm341, %v1836, %v1844
  %v1852 = vsel %vm341, %v1838, %v1846
  %v1853 = vsel %vm341, %v1840, %v1848
  %v1854 = vsel %vm341, %v1842, %v1850
  %v1855 = vsel %vm341, %v1828, %v1836
  %v1856 = vsel %vm341, %v1830, %v1838
  %v1857 = vsel %vm341, %v1832, %v1840
  %v1858 = vsel %vm341, %v1834, %v1842
  %v1859 = vsel %vm341, %v1820, %v1828
  %v1860 = vsel %vm341, %v1822, %v1830
  %v1861 = vsel %vm341, %v1824, %v1832
  %v1862 = vsel %vm341, %v1826, %v1834
  %v1863 = vsel %vm341, %v1844, %v1820
  %v1864 = vsel %vm341, %v1846, %v1822
  %v1865 = vsel %vm341, %v1848, %v1824
  %v1866 = vsel %vm341, %v1850, %v1826
  %v1867 = vmul.f32 %v1863, %v361
  %v1868 = vmul.f32 %v1859, %v365
  %v1869 = vmul.f32 %v1855, %v369
  %v1870 = vmul.f32 %v1851, %v373
  %v1871 = vmul.f32 %v1864, %v361
  %v1872 = vmul.f32 %v1860, %v365
  %v1873 = vmul.f32 %v1856, %v369
  %v1874 = vmul.f32 %v1852, %v373
  %v1875 = vmul.f32 %v1865, %v361
  %v1876 = vmul.f32 %v1861, %v365
  %v1877 = vmul.f32 %v1857, %v369
  %v1878 = vmul.f32 %v1853, %v373
  %v1879 = vmul.f32 %v1866, %v361
  %v1880 = vmul.f32 %v1862, %v365
  %v1881 = vmul.f32 %v1858, %v369
  %v1882 = vmul.f32 %v1854, %v373
  %1883 = vrot.lane.b32.xlu0 %v1611, 127
  %v1884 = vpop.permute.xlu0 %1883
  %1885 = vrot.lane.b32.xlu0 %v1615, 127
  %v1886 = vpop.permute.xlu0 %1885
  %1887 = vrot.lane.b32.xlu0 %v1619, 127
  %v1888 = vpop.permute.xlu0 %1887
  %1889 = vrot.lane.b32.xlu0 %v1623, 127
  %v1890 = vpop.permute.xlu0 %1889
  %1891 = vrot.lane.b32.xlu0 %v1612, 127
  %v1892 = vpop.permute.xlu0 %1891
  %1893 = vrot.lane.b32.xlu0 %v1616, 127
  %v1894 = vpop.permute.xlu0 %1893
  %1895 = vrot.lane.b32.xlu0 %v1620, 127
  %v1896 = vpop.permute.xlu0 %1895
  %1897 = vrot.lane.b32.xlu0 %v1624, 127
  %v1898 = vpop.permute.xlu0 %1897
  %1899 = vrot.lane.b32.xlu0 %v1613, 127
  %v1900 = vpop.permute.xlu0 %1899
  %1901 = vrot.lane.b32.xlu0 %v1617, 127
  %v1902 = vpop.permute.xlu0 %1901
  %1903 = vrot.lane.b32.xlu0 %v1621, 127
  %v1904 = vpop.permute.xlu0 %1903
  %1905 = vrot.lane.b32.xlu0 %v1625, 127
  %v1906 = vpop.permute.xlu0 %1905
  %1907 = vrot.lane.b32.xlu0 %v1614, 127
  %v1908 = vpop.permute.xlu0 %1907
  %1909 = vrot.lane.b32.xlu0 %v1618, 127
  %v1910 = vpop.permute.xlu0 %1909
  %1911 = vrot.lane.b32.xlu0 %v1622, 127
  %v1912 = vpop.permute.xlu0 %1911
  %1913 = vrot.lane.b32.xlu0 %v1626, 127
  %v1914 = vpop.permute.xlu0 %1913
  %v1915 = vsel %vm422, %v1900, %v1908
  %v1916 = vsel %vm422, %v1902, %v1910
  %v1917 = vsel %vm422, %v1904, %v1912
  %v1918 = vsel %vm422, %v1906, %v1914
  %v1919 = vsel %vm422, %v1892, %v1900
  %v1920 = vsel %vm422, %v1894, %v1902
  %v1921 = vsel %vm422, %v1896, %v1904
  %v1922 = vsel %vm422, %v1898, %v1906
  %v1923 = vsel %vm422, %v1884, %v1892
  %v1924 = vsel %vm422, %v1886, %v1894
  %v1925 = vsel %vm422, %v1888, %v1896
  %v1926 = vsel %vm422, %v1890, %v1898
  %v1927 = vsel %vm422, %v1908, %v1884
  %v1928 = vsel %vm422, %v1910, %v1886
  %v1929 = vsel %vm422, %v1912, %v1888
  %v1930 = vsel %vm422, %v1914, %v1890
  %v1931 = vmul.f32 %v1923, %v442
  %v1932 = vmul.f32 %v1919, %v446
  %v1933 = vmul.f32 %v1915, %v450
  %v1934 = vmul.f32 %v1927, %v454
  %v1935 = vmul.f32 %v1924, %v442
  %v1936 = vmul.f32 %v1920, %v446
  %v1937 = vmul.f32 %v1916, %v450
  %v1938 = vmul.f32 %v1928, %v454
  %v1939 = vmul.f32 %v1925, %v442
  %v1940 = vmul.f32 %v1921, %v446
  %v1941 = vmul.f32 %v1917, %v450
  %v1942 = vmul.f32 %v1929, %v454
  %v1943 = vmul.f32 %v1926, %v442
  %v1944 = vmul.f32 %v1922, %v446
  %v1945 = vmul.f32 %v1918, %v450
  %v1946 = vmul.f32 %v1930, %v454
  %1947 = vrot.lane.b32.xlu0 %v1611, 113
  %v1948 = vpop.permute.xlu0 %1947
  %1949 = vrot.lane.b32.xlu0 %v1615, 113
  %v1950 = vpop.permute.xlu0 %1949
  %1951 = vrot.lane.b32.xlu0 %v1619, 113
  %v1952 = vpop.permute.xlu0 %1951
  %1953 = vrot.lane.b32.xlu0 %v1623, 113
  %v1954 = vpop.permute.xlu0 %1953
  %1955 = vrot.lane.b32.xlu0 %v1612, 113
  %v1956 = vpop.permute.xlu0 %1955
  %1957 = vrot.lane.b32.xlu0 %v1616, 113
  %v1958 = vpop.permute.xlu0 %1957
  %1959 = vrot.lane.b32.xlu0 %v1620, 113
  %v1960 = vpop.permute.xlu0 %1959
  %1961 = vrot.lane.b32.xlu0 %v1624, 113
  %v1962 = vpop.permute.xlu0 %1961
  %1963 = vrot.lane.b32.xlu0 %v1613, 113
  %v1964 = vpop.permute.xlu0 %1963
  %1965 = vrot.lane.b32.xlu0 %v1617, 113
  %v1966 = vpop.permute.xlu0 %1965
  %1967 = vrot.lane.b32.xlu0 %v1621, 113
  %v1968 = vpop.permute.xlu0 %1967
  %1969 = vrot.lane.b32.xlu0 %v1625, 113
  %v1970 = vpop.permute.xlu0 %1969
  %1971 = vrot.lane.b32.xlu0 %v1614, 113
  %v1972 = vpop.permute.xlu0 %1971
  %1973 = vrot.lane.b32.xlu0 %v1618, 113
  %v1974 = vpop.permute.xlu0 %1973
  %1975 = vrot.lane.b32.xlu0 %v1622, 113
  %v1976 = vpop.permute.xlu0 %1975
  %1977 = vrot.lane.b32.xlu0 %v1626, 113
  %v1978 = vpop.permute.xlu0 %1977
  %v1979 = vsel %vm503, %v1964, %v1972
  %v1980 = vsel %vm503, %v1966, %v1974
  %v1981 = vsel %vm503, %v1968, %v1976
  %v1982 = vsel %vm503, %v1970, %v1978
  %v1983 = vsel %vm503, %v1956, %v1964
  %v1984 = vsel %vm503, %v1958, %v1966
  %v1985 = vsel %vm503, %v1960, %v1968
  %v1986 = vsel %vm503, %v1962, %v1970
  %v1987 = vsel %vm503, %v1948, %v1956
  %v1988 = vsel %vm503, %v1950, %v1958
  %v1989 = vsel %vm503, %v1952, %v1960
  %v1990 = vsel %vm503, %v1954, %v1962
  %v1991 = vsel %vm503, %v1972, %v1948
  %v1992 = vsel %vm503, %v1974, %v1950
  %v1993 = vsel %vm503, %v1976, %v1952
  %v1994 = vsel %vm503, %v1978, %v1954
  %v1995 = vmul.f32 %v1987, %v523
  %v1996 = vmul.f32 %v1983, %v527
  %v1997 = vmul.f32 %v1979, %v531
  %v1998 = vmul.f32 %v1991, %v535
  %v1999 = vmul.f32 %v1988, %v523
  %v2000 = vmul.f32 %v1984, %v527
  %v2001 = vmul.f32 %v1980, %v531
  %v2002 = vmul.f32 %v1992, %v535
  %v2003 = vmul.f32 %v1989, %v523
  %v2004 = vmul.f32 %v1985, %v527
  %v2005 = vmul.f32 %v1981, %v531
  %v2006 = vmul.f32 %v1993, %v535
  %v2007 = vmul.f32 %v1990, %v523
  %v2008 = vmul.f32 %v1986, %v527
  %v2009 = vmul.f32 %v1982, %v531
  %v2010 = vmul.f32 %v1994, %v535
  %2011 = vrot.lane.b32.xlu0 %v1611, 112
  %v2012 = vpop.permute.xlu0 %2011
  %2013 = vrot.lane.b32.xlu0 %v1615, 112
  %v2014 = vpop.permute.xlu0 %2013
  %2015 = vrot.lane.b32.xlu0 %v1619, 112
  %v2016 = vpop.permute.xlu0 %2015
  %2017 = vrot.lane.b32.xlu0 %v1623, 112
  %v2018 = vpop.permute.xlu0 %2017
  %2019 = vrot.lane.b32.xlu0 %v1612, 112
  %v2020 = vpop.permute.xlu0 %2019
  %2021 = vrot.lane.b32.xlu0 %v1616, 112
  %v2022 = vpop.permute.xlu0 %2021
  %2023 = vrot.lane.b32.xlu0 %v1620, 112
  %v2024 = vpop.permute.xlu0 %2023
  %2025 = vrot.lane.b32.xlu0 %v1624, 112
  %v2026 = vpop.permute.xlu0 %2025
  %2027 = vrot.lane.b32.xlu0 %v1613, 112
  %v2028 = vpop.permute.xlu0 %2027
  %2029 = vrot.lane.b32.xlu0 %v1617, 112
  %v2030 = vpop.permute.xlu0 %2029
  %2031 = vrot.lane.b32.xlu0 %v1621, 112
  %v2032 = vpop.permute.xlu0 %2031
  %2033 = vrot.lane.b32.xlu0 %v1625, 112
  %v2034 = vpop.permute.xlu0 %2033
  %2035 = vrot.lane.b32.xlu0 %v1614, 112
  %v2036 = vpop.permute.xlu0 %2035
  %2037 = vrot.lane.b32.xlu0 %v1618, 112
  %v2038 = vpop.permute.xlu0 %2037
  %2039 = vrot.lane.b32.xlu0 %v1622, 112
  %v2040 = vpop.permute.xlu0 %2039
  %2041 = vrot.lane.b32.xlu0 %v1626, 112
  %v2042 = vpop.permute.xlu0 %2041
  %v2043 = vsel %vm584, %v2028, %v2036
  %v2044 = vsel %vm584, %v2030, %v2038
  %v2045 = vsel %vm584, %v2032, %v2040
  %v2046 = vsel %vm584, %v2034, %v2042
  %v2047 = vsel %vm584, %v2020, %v2028
  %v2048 = vsel %vm584, %v2022, %v2030
  %v2049 = vsel %vm584, %v2024, %v2032
  %v2050 = vsel %vm584, %v2026, %v2034
  %v2051 = vsel %vm584, %v2012, %v2020
  %v2052 = vsel %vm584, %v2014, %v2022
  %v2053 = vsel %vm584, %v2016, %v2024
  %v2054 = vsel %vm584, %v2018, %v2026
  %v2055 = vsel %vm584, %v2036, %v2012
  %v2056 = vsel %vm584, %v2038, %v2014
  %v2057 = vsel %vm584, %v2040, %v2016
  %v2058 = vsel %vm584, %v2042, %v2018
  %v2059 = vmul.f32 %v2051, %v604
  %v2060 = vmul.f32 %v2047, %v608
  %v2061 = vmul.f32 %v2043, %v612
  %v2062 = vmul.f32 %v2055, %v616
  %v2063 = vmul.f32 %v2052, %v604
  %v2064 = vmul.f32 %v2048, %v608
  %v2065 = vmul.f32 %v2044, %v612
  %v2066 = vmul.f32 %v2056, %v616
  %v2067 = vmul.f32 %v2053, %v604
  %v2068 = vmul.f32 %v2049, %v608
  %v2069 = vmul.f32 %v2045, %v612
  %v2070 = vmul.f32 %v2057, %v616
  %v2071 = vmul.f32 %v2054, %v604
  %v2072 = vmul.f32 %v2050, %v608
  %v2073 = vmul.f32 %v2046, %v612
  %v2074 = vmul.f32 %v2058, %v616
  %2075 = vrot.lane.b32.xlu0 %v1611, 111
  %v2076 = vpop.permute.xlu0 %2075
  %2077 = vrot.lane.b32.xlu0 %v1615, 111
  %v2078 = vpop.permute.xlu0 %2077
  %2079 = vrot.lane.b32.xlu0 %v1619, 111
  %v2080 = vpop.permute.xlu0 %2079
  %2081 = vrot.lane.b32.xlu0 %v1623, 111
  %v2082 = vpop.permute.xlu0 %2081
  %2083 = vrot.lane.b32.xlu0 %v1612, 111
  %v2084 = vpop.permute.xlu0 %2083
  %2085 = vrot.lane.b32.xlu0 %v1616, 111
  %v2086 = vpop.permute.xlu0 %2085
  %2087 = vrot.lane.b32.xlu0 %v1620, 111
  %v2088 = vpop.permute.xlu0 %2087
  %2089 = vrot.lane.b32.xlu0 %v1624, 111
  %v2090 = vpop.permute.xlu0 %2089
  %2091 = vrot.lane.b32.xlu0 %v1613, 111
  %v2092 = vpop.permute.xlu0 %2091
  %2093 = vrot.lane.b32.xlu0 %v1617, 111
  %v2094 = vpop.permute.xlu0 %2093
  %2095 = vrot.lane.b32.xlu0 %v1621, 111
  %v2096 = vpop.permute.xlu0 %2095
  %2097 = vrot.lane.b32.xlu0 %v1625, 111
  %v2098 = vpop.permute.xlu0 %2097
  %2099 = vrot.lane.b32.xlu0 %v1614, 111
  %v2100 = vpop.permute.xlu0 %2099
  %2101 = vrot.lane.b32.xlu0 %v1618, 111
  %v2102 = vpop.permute.xlu0 %2101
  %2103 = vrot.lane.b32.xlu0 %v1622, 111
  %v2104 = vpop.permute.xlu0 %2103
  %2105 = vrot.lane.b32.xlu0 %v1626, 111
  %v2106 = vpop.permute.xlu0 %2105
  %v2107 = vsel %vm665, %v2092, %v2100
  %v2108 = vsel %vm665, %v2094, %v2102
  %v2109 = vsel %vm665, %v2096, %v2104
  %v2110 = vsel %vm665, %v2098, %v2106
  %v2111 = vsel %vm665, %v2084, %v2092
  %v2112 = vsel %vm665, %v2086, %v2094
  %v2113 = vsel %vm665, %v2088, %v2096
  %v2114 = vsel %vm665, %v2090, %v2098
  %v2115 = vsel %vm665, %v2076, %v2084
  %v2116 = vsel %vm665, %v2078, %v2086
  %v2117 = vsel %vm665, %v2080, %v2088
  %v2118 = vsel %vm665, %v2082, %v2090
  %v2119 = vsel %vm665, %v2100, %v2076
  %v2120 = vsel %vm665, %v2102, %v2078
  %v2121 = vsel %vm665, %v2104, %v2080
  %v2122 = vsel %vm665, %v2106, %v2082
  %v2123 = vmul.f32 %v2115, %v685
  %v2124 = vmul.f32 %v2111, %v689
  %v2125 = vmul.f32 %v2107, %v693
  %v2126 = vmul.f32 %v2119, %v697
  %v2127 = vmul.f32 %v2116, %v685
  %v2128 = vmul.f32 %v2112, %v689
  %v2129 = vmul.f32 %v2108, %v693
  %v2130 = vmul.f32 %v2120, %v697
  %v2131 = vmul.f32 %v2117, %v685
  %v2132 = vmul.f32 %v2113, %v689
  %v2133 = vmul.f32 %v2109, %v693
  %v2134 = vmul.f32 %v2121, %v697
  %v2135 = vmul.f32 %v2118, %v685
  %v2136 = vmul.f32 %v2114, %v689
  %v2137 = vmul.f32 %v2110, %v693
  %v2138 = vmul.f32 %v2122, %v697
  %s2139 = scalar_lea.vmem %s1, 96
  %v2140 = vld [vmem:[%s2139] sm:$0xff]
  %v2141 = vld [vmem:[%s2139 + $0x8] sm:$0xff]
  %v2142 = vld [vmem:[%s2139 + $0x10] sm:$0xff]
  %v2143 = vld [vmem:[%s2139 + $0x18] sm:$0xff]
  %v2144 = vld [vmem:[%s2139 + $0x20] sm:$0xff]
  %v2145 = vld [vmem:[%s2139 + $0x28] sm:$0xff]
  %v2146 = vld [vmem:[%s2139 + $0x30] sm:$0xff]
  %v2147 = vld [vmem:[%s2139 + $0x38] sm:$0xff]
  %v2148 = vld [vmem:[%s2139 + $0x40] sm:$0xff]
  %v2149 = vld [vmem:[%s2139 + $0x48] sm:$0xff]
  %v2150 = vld [vmem:[%s2139 + $0x50] sm:$0xff]
  %v2151 = vld [vmem:[%s2139 + $0x58] sm:$0xff]
  %s2152 = scalar_lea.vmem %s2, 32
  %v2153 = vld [vmem:[%s2152] sm:$0xff]
  %v2154 = vld [vmem:[%s2152 + $0x8] sm:$0xff]
  %v2155 = vld [vmem:[%s2152 + $0x10] sm:$0xff]
  %v2156 = vld [vmem:[%s2152 + $0x18] sm:$0xff]
  %2158 = vset.pattern.permute.xlu0 0
  %2159 = vperm.xlu0 %2158, %v2153
  %v2160 = vpop.permute.xlu0 %2159
  %2163 = vset.pattern.permute.xlu0 0
  %2164 = vperm.xlu0 %2163, %v2154
  %v2165 = vpop.permute.xlu0 %2164
  %2168 = vset.pattern.permute.xlu0 0
  %2169 = vperm.xlu0 %2168, %v2155
  %v2170 = vpop.permute.xlu0 %2169
  %2173 = vset.pattern.permute.xlu0 0
  %2174 = vperm.xlu0 %2173, %v2156
  %v2175 = vpop.permute.xlu0 %2174
  %v2178 = vsel %vm750, %v2142, 0
  %v2181 = vsel %vm750, %v2145, 0
  %v2184 = vsel %vm750, %v2148, 0
  %v2187 = vsel %vm750, %v2151, 0
  %2189 = vmatprep.subr.mxu0 %v1676
  %2190 = vmatpush1.msra.mxu0 %v1675
  %2191 = vmatprep.subr.mxu0 %v1680
  %2192 = vmatpush1.msra.mxu0 %v1679
  %2193 = vmatprep.subr.mxu0 %v1684
  %2194 = vmatpush1.msra.mxu0 %v1683
  %2195 = vmatprep.subr.mxu0 %v1688
  %2196 = vmatpush1.msra.mxu0 %v1687
  %2197 = vmatprep.subr.mxu0 %v1740
  %2198 = vmatpush1.msra.mxu0 %v1739
  %2199 = vmatprep.subr.mxu0 %v1744
  %2200 = vmatpush1.msra.mxu0 %v1743
  %2201 = vmatprep.subr.mxu0 %v1748
  %2202 = vmatpush1.msra.mxu0 %v1747
  %2203 = vmatprep.subr.mxu0 %v1752
  %2204 = vmatpush1.msra.mxu0 %v1751
  %2205 = vmatprep.subr.mxu0 %v1804
  %2206 = vmatpush1.msra.mxu0 %v1803
  %2207 = vmatprep.subr.mxu0 %v1808
  %2208 = vmatpush1.msra.mxu0 %v1807
  %2209 = vmatprep.subr.mxu0 %v1812
  %2210 = vmatpush1.msra.mxu0 %v1811
  %2211 = vmatprep.subr.mxu0 %v1816
  %2212 = vmatpush1.msra.mxu0 %v1815
  %2213 = vmatprep.subr.mxu0 %v1868
  %2214 = vmatpush1.msra.mxu0 %v1867
  %2215 = vmatprep.subr.mxu0 %v1872
  %2216 = vmatpush1.msra.mxu0 %v1871
  %2217 = vmatprep.subr.mxu0 %v1876
  %2218 = vmatpush1.msra.mxu0 %v1875
  %2219 = vmatprep.subr.mxu0 %v1880
  %2220 = vmatpush1.msra.mxu0 %v1879
  %2221 = vmatprep.subr.mxu0 %v1612
  %2222 = vmatpush1.msra.mxu0 %v1611
  %2223 = vmatprep.subr.mxu0 %v1616
  %2224 = vmatpush1.msra.mxu0 %v1615
  %2225 = vmatprep.subr.mxu0 %v1620
  %2226 = vmatpush1.msra.mxu0 %v1619
  %2227 = vmatprep.subr.mxu0 %v1624
  %2228 = vmatpush1.msra.mxu0 %v1623
  %2229 = vmatprep.subr.mxu0 %v1932
  %2230 = vmatpush1.msra.mxu0 %v1931
  %2231 = vmatprep.subr.mxu0 %v1936
  %2232 = vmatpush1.msra.mxu0 %v1935
  %2233 = vmatprep.subr.mxu0 %v1940
  %2234 = vmatpush1.msra.mxu0 %v1939
  %2235 = vmatprep.subr.mxu0 %v1944
  %2236 = vmatpush1.msra.mxu0 %v1943
  %2237 = vmatprep.subr.mxu0 %v1996
  %2238 = vmatpush1.msra.mxu0 %v1995
  %2239 = vmatprep.subr.mxu0 %v2000
  %2240 = vmatpush1.msra.mxu0 %v1999
  %2241 = vmatprep.subr.mxu0 %v2004
  %2242 = vmatpush1.msra.mxu0 %v2003
  %2243 = vmatprep.subr.mxu0 %v2008
  %2244 = vmatpush1.msra.mxu0 %v2007
  %2245 = vmatprep.subr.mxu0 %v2060
  %2246 = vmatpush1.msra.mxu0 %v2059
  %2247 = vmatprep.subr.mxu0 %v2064
  %2248 = vmatpush1.msra.mxu0 %v2063
  %2249 = vmatprep.subr.mxu0 %v2068
  %2250 = vmatpush1.msra.mxu0 %v2067
  %2251 = vmatprep.subr.mxu0 %v2072
  %2252 = vmatpush1.msra.mxu0 %v2071
  %2253 = vmatprep.mubr.f32.mxu0 %v2141
  %2254 = vmatmul.mubr.f32.gmra.mrb[0].mxu0 %v2140
  %v2255 = vpop.f32.mrb[0].mxu0
  %v2256 = vadd.f32 %v2160, %v2255
  %v2257 = vpop.f32.mrb[0].mxu0
  %v2258 = vadd.f32 %v2160, %v2257
  %2259 = vmatprep.mubr.f32.mxu0 %v2144
  %2260 = vmatmul.mubr.f32.gmra.mrb[0].mxu0 %v2143
  %v2261 = vpop.f32.mrb[0].mxu0
  %v2262 = vadd.f32 %v2165, %v2261
  %v2263 = vpop.f32.mrb[0].mxu0
  %v2264 = vadd.f32 %v2165, %v2263
  %2265 = vmatprep.mubr.f32.mxu0 %v2147
  %2266 = vmatmul.mubr.f32.gmra.mrb[0].mxu0 %v2146
  %v2267 = vpop.f32.mrb[0].mxu0
  %v2268 = vadd.f32 %v2170, %v2267
  %v2269 = vpop.f32.mrb[0].mxu0
  %v2270 = vadd.f32 %v2170, %v2269
  %2271 = vmatprep.mubr.f32.mxu0 %v2150
  %2272 = vmatmul.mubr.f32.gmra.mrb[0].mxu0 %v2149
  %v2273 = vpop.f32.mrb[0].mxu0
  %v2274 = vadd.f32 %v2175, %v2273
  %v2275 = vpop.f32.mrb[0].mxu0
  %v2276 = vadd.f32 %v2175, %v2275
  %2277 = vdwg.mxu0
  %2278 = vmatprep.subr.mxu0 %v2124
  %2279 = vmatpush1.msra.mxu0 %v2123
  %2280 = vmatprep.subr.mxu0 %v2128
  %2281 = vmatpush1.msra.mxu0 %v2127
  %2282 = vmatprep.subr.mxu0 %v2132
  %2283 = vmatpush1.msra.mxu0 %v2131
  %2284 = vmatprep.subr.mxu0 %v2136
  %2285 = vmatpush1.msra.mxu0 %v2135
  %2286 = vmatprep.subr.mxu0 0.0
  %2287 = vmatpush1.msra.mxu0 0.0
  %2288 = vmatprep.subr.mxu0 0.0
  %2289 = vmatpush1.msra.mxu0 0.0
  %2290 = vmatprep.subr.mxu0 0.0
  %2291 = vmatpush1.msra.mxu0 0.0
  %2292 = vmatprep.subr.mxu0 0.0
  %2293 = vmatpush1.msra.mxu0 0.0
  %2294 = vmatprep.subr.mxu0 0.0
  %2295 = vmatpush1.msra.mxu0 0.0
  %2296 = vmatprep.subr.mxu0 0.0
  %2297 = vmatpush1.msra.mxu0 0.0
  %2298 = vmatprep.subr.mxu0 0.0
  %2299 = vmatpush1.msra.mxu0 0.0
  %2300 = vmatprep.subr.mxu0 0.0
  %2301 = vmatpush1.msra.mxu0 0.0
  %2302 = vmatprep.subr.mxu0 0.0
  %2303 = vmatpush1.msra.mxu0 0.0
  %2304 = vmatprep.subr.mxu0 0.0
  %2305 = vmatpush1.msra.mxu0 0.0
  %2306 = vmatprep.subr.mxu0 0.0
  %2307 = vmatpush1.msra.mxu0 0.0
  %2308 = vmatprep.subr.mxu0 0.0
  %2309 = vmatpush1.msra.mxu0 0.0
  %2310 = vmatprep.subr.mxu0 0.0
  %2311 = vmatpush1.msra.mxu0 0.0
  %2312 = vmatprep.subr.mxu0 0.0
  %2313 = vmatpush1.msra.mxu0 0.0
  %2314 = vmatprep.subr.mxu0 0.0
  %2315 = vmatpush1.msra.mxu0 0.0
  %2316 = vmatprep.subr.mxu0 0.0
  %2317 = vmatpush1.msra.mxu0 0.0
  %2318 = vmatprep.subr.mxu0 0.0
  %2319 = vmatpush1.msra.mxu0 0.0
  %2320 = vmatprep.subr.mxu0 0.0
  %2321 = vmatpush1.msra.mxu0 0.0
  %2322 = vmatprep.subr.mxu0 0.0
  %2323 = vmatpush1.msra.mxu0 0.0
  %2324 = vmatprep.subr.mxu0 0.0
  %2325 = vmatpush1.msra.mxu0 0.0
  %2326 = vmatprep.subr.mxu0 0.0
  %2327 = vmatpush1.msra.mxu0 0.0
  %2328 = vmatprep.subr.mxu0 0.0
  %2329 = vmatpush1.msra.mxu0 0.0
  %2330 = vmatprep.subr.mxu0 0.0
  %2331 = vmatpush1.msra.mxu0 0.0
  %2332 = vmatprep.subr.mxu0 0.0
  %2333 = vmatpush1.msra.mxu0 0.0
  %2334 = vmatprep.subr.mxu0 0.0
  %2335 = vmatpush1.msra.mxu0 0.0
  %2336 = vmatprep.subr.mxu0 0.0
  %2337 = vmatpush1.msra.mxu0 0.0
  %2338 = vmatprep.subr.mxu0 0.0
  %2339 = vmatpush1.msra.mxu0 0.0
  %2340 = vmatprep.subr.mxu0 0.0
  %2341 = vmatpush1.msra.mxu0 0.0
  %2342 = vmatprep.mubr.f32.mxu0 0.0
  %2343 = vmatmul.mubr.f32.gmra.mrb[0].mxu0 %v2178
  %v2344 = vpop.f32.mrb[0].mxu0
  %v2345 = vadd.f32 %v2256, %v2344
  %v2346 = vpop.f32.mrb[0].mxu0
  %v2347 = vadd.f32 %v2258, %v2346
  %2348 = vmatprep.mubr.f32.mxu0 0.0
  %2349 = vmatmul.mubr.f32.gmra.mrb[0].mxu0 %v2181
  %v2350 = vpop.f32.mrb[0].mxu0
  %v2351 = vadd.f32 %v2262, %v2350
  %v2352 = vpop.f32.mrb[0].mxu0
  %v2353 = vadd.f32 %v2264, %v2352
  %2354 = vmatprep.mubr.f32.mxu0 0.0
  %2355 = vmatmul.mubr.f32.gmra.mrb[0].mxu0 %v2184
  %v2356 = vpop.f32.mrb[0].mxu0
  %v2357 = vadd.f32 %v2268, %v2356
  %v2358 = vpop.f32.mrb[0].mxu0
  %v2359 = vadd.f32 %v2270, %v2358
  %2360 = vmatprep.mubr.f32.mxu0 0.0
  %2361 = vmatmul.mubr.f32.gmra.mrb[0].mxu0 %v2187
  %v2362 = vpop.f32.mrb[0].mxu0
  %v2363 = vadd.f32 %v2274, %v2362
  %v2364 = vpop.f32.mrb[0].mxu0
  %v2365 = vadd.f32 %v2276, %v2364
  %2366 = vdwg.mxu0
  %2367 = vmatprep.subr.mxu0 %v1678
  %2368 = vmatpush1.msra.mxu0 %v1677
  %2369 = vmatprep.subr.mxu0 %v1682
  %2370 = vmatpush1.msra.mxu0 %v1681
  %2371 = vmatprep.subr.mxu0 %v1686
  %2372 = vmatpush1.msra.mxu0 %v1685
  %2373 = vmatprep.subr.mxu0 %v1690
  %2374 = vmatpush1.msra.mxu0 %v1689
  %2375 = vmatprep.subr.mxu0 %v1742
  %2376 = vmatpush1.msra.mxu0 %v1741
  %2377 = vmatprep.subr.mxu0 %v1746
  %2378 = vmatpush1.msra.mxu0 %v1745
  %2379 = vmatprep.subr.mxu0 %v1750
  %2380 = vmatpush1.msra.mxu0 %v1749
  %2381 = vmatprep.subr.mxu0 %v1754
  %2382 = vmatpush1.msra.mxu0 %v1753
  %2383 = vmatprep.subr.mxu0 %v1806
  %2384 = vmatpush1.msra.mxu0 %v1805
  %2385 = vmatprep.subr.mxu0 %v1810
  %2386 = vmatpush1.msra.mxu0 %v1809
  %2387 = vmatprep.subr.mxu0 %v1814
  %2388 = vmatpush1.msra.mxu0 %v1813
  %2389 = vmatprep.subr.mxu0 %v1818
  %2390 = vmatpush1.msra.mxu0 %v1817
  %2391 = vmatprep.subr.mxu0 %v1870
  %2392 = vmatpush1.msra.mxu0 %v1869
  %2393 = vmatprep.subr.mxu0 %v1874
  %2394 = vmatpush1.msra.mxu0 %v1873
  %2395 = vmatprep.subr.mxu0 %v1878
  %2396 = vmatpush1.msra.mxu0 %v1877
  %2397 = vmatprep.subr.mxu0 %v1882
  %2398 = vmatpush1.msra.mxu0 %v1881
  %2399 = vmatprep.subr.mxu0 %v1614
  %2400 = vmatpush1.msra.mxu0 %v1613
  %2401 = vmatprep.subr.mxu0 %v1618
  %2402 = vmatpush1.msra.mxu0 %v1617
  %2403 = vmatprep.subr.mxu0 %v1622
  %2404 = vmatpush1.msra.mxu0 %v1621
  %2405 = vmatprep.subr.mxu0 %v1626
  %2406 = vmatpush1.msra.mxu0 %v1625
  %2407 = vmatprep.subr.mxu0 %v1934
  %2408 = vmatpush1.msra.mxu0 %v1933
  %2409 = vmatprep.subr.mxu0 %v1938
  %2410 = vmatpush1.msra.mxu0 %v1937
  %2411 = vmatprep.subr.mxu0 %v1942
  %2412 = vmatpush1.msra.mxu0 %v1941
  %2413 = vmatprep.subr.mxu0 %v1946
  %2414 = vmatpush1.msra.mxu0 %v1945
  %2415 = vmatprep.subr.mxu0 %v1998
  %2416 = vmatpush1.msra.mxu0 %v1997
  %2417 = vmatprep.subr.mxu0 %v2002
  %2418 = vmatpush1.msra.mxu0 %v2001
  %2419 = vmatprep.subr.mxu0 %v2006
  %2420 = vmatpush1.msra.mxu0 %v2005
  %2421 = vmatprep.subr.mxu0 %v2010
  %2422 = vmatpush1.msra.mxu0 %v2009
  %2423 = vmatprep.subr.mxu0 %v2062
  %2424 = vmatpush1.msra.mxu0 %v2061
  %2425 = vmatprep.subr.mxu0 %v2066
  %2426 = vmatpush1.msra.mxu0 %v2065
  %2427 = vmatprep.subr.mxu0 %v2070
  %2428 = vmatpush1.msra.mxu0 %v2069
  %2429 = vmatprep.subr.mxu0 %v2074
  %2430 = vmatpush1.msra.mxu0 %v2073
  %2431 = vmatprep.mubr.f32.mxu0 %v2141
  %2432 = vmatmul.mubr.f32.gmra.mrb[0].mxu0 %v2140
  %v2433 = vpop.f32.mrb[0].mxu0
  %v2434 = vadd.f32 %v2160, %v2433
  %v2435 = vpop.f32.mrb[0].mxu0
  %v2436 = vadd.f32 %v2160, %v2435
  %2437 = vmatprep.mubr.f32.mxu0 %v2144
  %2438 = vmatmul.mubr.f32.gmra.mrb[0].mxu0 %v2143
  %v2439 = vpop.f32.mrb[0].mxu0
  %v2440 = vadd.f32 %v2165, %v2439
  %v2441 = vpop.f32.mrb[0].mxu0
  %v2442 = vadd.f32 %v2165, %v2441
  %2443 = vmatprep.mubr.f32.mxu0 %v2147
  %2444 = vmatmul.mubr.f32.gmra.mrb[0].mxu0 %v2146
  %v2445 = vpop.f32.mrb[0].mxu0
  %v2446 = vadd.f32 %v2170, %v2445
  %v2447 = vpop.f32.mrb[0].mxu0
  %v2448 = vadd.f32 %v2170, %v2447
  %2449 = vmatprep.mubr.f32.mxu0 %v2150
  %2450 = vmatmul.mubr.f32.gmra.mrb[0].mxu0 %v2149
  %v2451 = vpop.f32.mrb[0].mxu0
  %v2452 = vadd.f32 %v2175, %v2451
  %v2453 = vpop.f32.mrb[0].mxu0
  %v2454 = vadd.f32 %v2175, %v2453
  %2455 = vdwg.mxu0
  %2456 = vmatprep.subr.mxu0 %v2126
  %2457 = vmatpush1.msra.mxu0 %v2125
  %2458 = vmatprep.subr.mxu0 %v2130
  %2459 = vmatpush1.msra.mxu0 %v2129
  %2460 = vmatprep.subr.mxu0 %v2134
  %2461 = vmatpush1.msra.mxu0 %v2133
  %2462 = vmatprep.subr.mxu0 %v2138
  %2463 = vmatpush1.msra.mxu0 %v2137
  %2464 = vmatprep.subr.mxu0 0.0
  %2465 = vmatpush1.msra.mxu0 0.0
  %2466 = vmatprep.subr.mxu0 0.0
  %2467 = vmatpush1.msra.mxu0 0.0
  %2468 = vmatprep.subr.mxu0 0.0
  %2469 = vmatpush1.msra.mxu0 0.0
  %2470 = vmatprep.subr.mxu0 0.0
  %2471 = vmatpush1.msra.mxu0 0.0
  %2472 = vmatprep.subr.mxu0 0.0
  %2473 = vmatpush1.msra.mxu0 0.0
  %2474 = vmatprep.subr.mxu0 0.0
  %2475 = vmatpush1.msra.mxu0 0.0
  %2476 = vmatprep.subr.mxu0 0.0
  %2477 = vmatpush1.msra.mxu0 0.0
  %2478 = vmatprep.subr.mxu0 0.0
  %2479 = vmatpush1.msra.mxu0 0.0
  %2480 = vmatprep.subr.mxu0 0.0
  %2481 = vmatpush1.msra.mxu0 0.0
  %2482 = vmatprep.subr.mxu0 0.0
  %2483 = vmatpush1.msra.mxu0 0.0
  %2484 = vmatprep.subr.mxu0 0.0
  %2485 = vmatpush1.msra.mxu0 0.0
  %2486 = vmatprep.subr.mxu0 0.0
  %2487 = vmatpush1.msra.mxu0 0.0
  %2488 = vmatprep.subr.mxu0 0.0
  %2489 = vmatpush1.msra.mxu0 0.0
  %2490 = vmatprep.subr.mxu0 0.0
  %2491 = vmatpush1.msra.mxu0 0.0
  %2492 = vmatprep.subr.mxu0 0.0
  %2493 = vmatpush1.msra.mxu0 0.0
  %2494 = vmatprep.subr.mxu0 0.0
  %2495 = vmatpush1.msra.mxu0 0.0
  %2496 = vmatprep.subr.mxu0 0.0
  %2497 = vmatpush1.msra.mxu0 0.0
  %2498 = vmatprep.subr.mxu0 0.0
  %2499 = vmatpush1.msra.mxu0 0.0
  %2500 = vmatprep.subr.mxu0 0.0
  %2501 = vmatpush1.msra.mxu0 0.0
  %2502 = vmatprep.subr.mxu0 0.0
  %2503 = vmatpush1.msra.mxu0 0.0
  %2504 = vmatprep.subr.mxu0 0.0
  %2505 = vmatpush1.msra.mxu0 0.0
  %2506 = vmatprep.subr.mxu0 0.0
  %2507 = vmatpush1.msra.mxu0 0.0
  %2508 = vmatprep.subr.mxu0 0.0
  %2509 = vmatpush1.msra.mxu0 0.0
  %2510 = vmatprep.subr.mxu0 0.0
  %2511 = vmatpush1.msra.mxu0 0.0
  %2512 = vmatprep.subr.mxu0 0.0
  %2513 = vmatpush1.msra.mxu0 0.0
  %2514 = vmatprep.subr.mxu0 0.0
  %2515 = vmatpush1.msra.mxu0 0.0
  %2516 = vmatprep.subr.mxu0 0.0
  %2517 = vmatpush1.msra.mxu0 0.0
  %2518 = vmatprep.subr.mxu0 0.0
  %2519 = vmatpush1.msra.mxu0 0.0
  %2520 = vmatprep.mubr.f32.mxu0 0.0
  %2521 = vmatmul.mubr.f32.gmra.mrb[0].mxu0 %v2178
  %v2522 = vpop.f32.mrb[0].mxu0
  %v2523 = vadd.f32 %v2434, %v2522
  %v2524 = vpop.f32.mrb[0].mxu0
  %v2525 = vadd.f32 %v2436, %v2524
  %2526 = vmatprep.mubr.f32.mxu0 0.0
  %2527 = vmatmul.mubr.f32.gmra.mrb[0].mxu0 %v2181
  %v2528 = vpop.f32.mrb[0].mxu0
  %v2529 = vadd.f32 %v2440, %v2528
  %v2530 = vpop.f32.mrb[0].mxu0
  %v2531 = vadd.f32 %v2442, %v2530
  %2532 = vmatprep.mubr.f32.mxu0 0.0
  %2533 = vmatmul.mubr.f32.gmra.mrb[0].mxu0 %v2184
  %v2534 = vpop.f32.mrb[0].mxu0
  %v2535 = vadd.f32 %v2446, %v2534
  %v2536 = vpop.f32.mrb[0].mxu0
  %v2537 = vadd.f32 %v2448, %v2536
  %2538 = vmatprep.mubr.f32.mxu0 0.0
  %2539 = vmatmul.mubr.f32.gmra.mrb[0].mxu0 %v2187
  %v2540 = vpop.f32.mrb[0].mxu0
  %v2541 = vadd.f32 %v2452, %v2540
  %v2542 = vpop.f32.mrb[0].mxu0
  %v2543 = vadd.f32 %v2454, %v2542
  %2544 = vdwg.mxu0
  %2545 = vmatprep.subr.mxu0 0.0
  %2546 = vmatpush1.msra.mxu0 1.0
  %2547 = vmatprep.subr.mxu0 0.0
  %2548 = vmatpush1.msra.mxu0 1.0
  %2549 = vmatprep.subr.mxu0 0.0
  %2550 = vmatpush1.msra.mxu0 1.0
  %2551 = vmatprep.subr.mxu0 0.0
  %2552 = vmatpush1.msra.mxu0 1.0
  %2553 = vmatprep.subr.mxu0 0.0
  %2554 = vmatpush1.msra.mxu0 1.0
  %2555 = vmatprep.subr.mxu0 0.0
  %2556 = vmatpush1.msra.mxu0 1.0
  %2557 = vmatprep.subr.mxu0 0.0
  %2558 = vmatpush1.msra.mxu0 1.0
  %2559 = vmatprep.subr.mxu0 0.0
  %2560 = vmatpush1.msra.mxu0 1.0
  %2561 = vmatprep.subr.mxu0 0.0
  %2562 = vmatpush1.msra.mxu0 1.0
  %2563 = vmatprep.subr.mxu0 0.0
  %2564 = vmatpush1.msra.mxu0 1.0
  %2565 = vmatprep.subr.mxu0 0.0
  %2566 = vmatpush1.msra.mxu0 1.0
  %2567 = vmatprep.subr.mxu0 0.0
  %2568 = vmatpush1.msra.mxu0 1.0
  %2569 = vmatprep.subr.mxu0 0.0
  %2570 = vmatpush1.msra.mxu0 1.0
  %2571 = vmatprep.subr.mxu0 0.0
  %2572 = vmatpush1.msra.mxu0 1.0
  %2573 = vmatprep.subr.mxu0 0.0
  %2574 = vmatpush1.msra.mxu0 1.0
  %2575 = vmatprep.subr.mxu0 0.0
  %2576 = vmatpush1.msra.mxu0 1.0
  %2577 = vmatprep.subr.mxu0 0.0
  %2578 = vmatpush1.msra.mxu0 1.0
  %2579 = vmatprep.subr.mxu0 0.0
  %2580 = vmatpush1.msra.mxu0 1.0
  %2581 = vmatprep.subr.mxu0 0.0
  %2582 = vmatpush1.msra.mxu0 1.0
  %2583 = vmatprep.subr.mxu0 0.0
  %2584 = vmatpush1.msra.mxu0 1.0
  %2585 = vmatprep.subr.mxu0 0.0
  %2586 = vmatpush1.msra.mxu0 1.0
  %2587 = vmatprep.subr.mxu0 0.0
  %2588 = vmatpush1.msra.mxu0 1.0
  %2589 = vmatprep.subr.mxu0 0.0
  %2590 = vmatpush1.msra.mxu0 1.0
  %2591 = vmatprep.subr.mxu0 0.0
  %2592 = vmatpush1.msra.mxu0 1.0
  %2593 = vmatprep.subr.mxu0 0.0
  %2594 = vmatpush1.msra.mxu0 1.0
  %2595 = vmatprep.subr.mxu0 0.0
  %2596 = vmatpush1.msra.mxu0 1.0
  %2597 = vmatprep.subr.mxu0 0.0
  %2598 = vmatpush1.msra.mxu0 1.0
  %2599 = vmatprep.subr.mxu0 0.0
  %2600 = vmatpush1.msra.mxu0 1.0
  %2601 = vmatprep.subr.mxu0 0.0
  %2602 = vmatpush1.msra.mxu0 1.0
  %2603 = vmatprep.subr.mxu0 0.0
  %2604 = vmatpush1.msra.mxu0 1.0
  %2605 = vmatprep.subr.mxu0 0.0
  %2606 = vmatpush1.msra.mxu0 1.0
  %2607 = vmatprep.subr.mxu0 0.0
  %2608 = vmatpush1.msra.mxu0 1.0
  %2609 = vmatprep.mubr.f32.mxu0 %v2347
  %2610 = vmatmul.mubr.f32.gmra.mrb[0].mxu0 %v2345
  %v2611 = vpop.f32.mrb[0].mxu0
  %v2612 = vadd.f32 0.0, %v2611
  %v2613 = vpop.f32.mrb[0].mxu0
  %2614 = vmatprep.mubr.f32.mxu0 %v2353
  %2615 = vmatmul.mubr.f32.gmra.mrb[0].mxu0 %v2351
  %v2616 = vpop.f32.mrb[0].mxu0
  %v2617 = vadd.f32 0.0, %v2616
  %v2618 = vpop.f32.mrb[0].mxu0
  %2619 = vmatprep.mubr.f32.mxu0 %v2359
  %2620 = vmatmul.mubr.f32.gmra.mrb[0].mxu0 %v2357
  %v2621 = vpop.f32.mrb[0].mxu0
  %v2622 = vadd.f32 0.0, %v2621
  %v2623 = vpop.f32.mrb[0].mxu0
  %2624 = vmatprep.mubr.f32.mxu0 %v2365
  %2625 = vmatmul.mubr.f32.gmra.mrb[0].mxu0 %v2363
  %v2626 = vpop.f32.mrb[0].mxu0
  %v2627 = vadd.f32 0.0, %v2626
  %v2628 = vpop.f32.mrb[0].mxu0
  %2629 = vdwg.mxu0
  %2630 = vmatprep.subr.mxu0 0.0
  %2631 = vmatpush1.msra.mxu0 1.0
  %2632 = vmatprep.subr.mxu0 0.0
  %2633 = vmatpush1.msra.mxu0 1.0
  %2634 = vmatprep.subr.mxu0 0.0
  %2635 = vmatpush1.msra.mxu0 1.0
  %2636 = vmatprep.subr.mxu0 0.0
  %2637 = vmatpush1.msra.mxu0 1.0
  %2638 = vmatprep.subr.mxu0 0.0
  %2639 = vmatpush1.msra.mxu0 1.0
  %2640 = vmatprep.subr.mxu0 0.0
  %2641 = vmatpush1.msra.mxu0 1.0
  %2642 = vmatprep.subr.mxu0 0.0
  %2643 = vmatpush1.msra.mxu0 1.0
  %2644 = vmatprep.subr.mxu0 0.0
  %2645 = vmatpush1.msra.mxu0 1.0
  %2646 = vmatprep.subr.mxu0 0.0
  %2647 = vmatpush1.msra.mxu0 1.0
  %2648 = vmatprep.subr.mxu0 0.0
  %2649 = vmatpush1.msra.mxu0 1.0
  %2650 = vmatprep.subr.mxu0 0.0
  %2651 = vmatpush1.msra.mxu0 1.0
  %2652 = vmatprep.subr.mxu0 0.0
  %2653 = vmatpush1.msra.mxu0 1.0
  %2654 = vmatprep.subr.mxu0 0.0
  %2655 = vmatpush1.msra.mxu0 1.0
  %2656 = vmatprep.subr.mxu0 0.0
  %2657 = vmatpush1.msra.mxu0 1.0
  %2658 = vmatprep.subr.mxu0 0.0
  %2659 = vmatpush1.msra.mxu0 1.0
  %2660 = vmatprep.subr.mxu0 0.0
  %2661 = vmatpush1.msra.mxu0 1.0
  %2662 = vmatprep.subr.mxu0 0.0
  %2663 = vmatpush1.msra.mxu0 1.0
  %2664 = vmatprep.subr.mxu0 0.0
  %2665 = vmatpush1.msra.mxu0 1.0
  %2666 = vmatprep.subr.mxu0 0.0
  %2667 = vmatpush1.msra.mxu0 1.0
  %2668 = vmatprep.subr.mxu0 0.0
  %2669 = vmatpush1.msra.mxu0 1.0
  %2670 = vmatprep.subr.mxu0 0.0
  %2671 = vmatpush1.msra.mxu0 1.0
  %2672 = vmatprep.subr.mxu0 0.0
  %2673 = vmatpush1.msra.mxu0 1.0
  %2674 = vmatprep.subr.mxu0 0.0
  %2675 = vmatpush1.msra.mxu0 1.0
  %2676 = vmatprep.subr.mxu0 0.0
  %2677 = vmatpush1.msra.mxu0 1.0
  %2678 = vmatprep.subr.mxu0 0.0
  %2679 = vmatpush1.msra.mxu0 1.0
  %2680 = vmatprep.subr.mxu0 0.0
  %2681 = vmatpush1.msra.mxu0 1.0
  %2682 = vmatprep.subr.mxu0 0.0
  %2683 = vmatpush1.msra.mxu0 1.0
  %2684 = vmatprep.subr.mxu0 0.0
  %2685 = vmatpush1.msra.mxu0 1.0
  %2686 = vmatprep.subr.mxu0 0.0
  %2687 = vmatpush1.msra.mxu0 1.0
  %2688 = vmatprep.subr.mxu0 0.0
  %2689 = vmatpush1.msra.mxu0 1.0
  %2690 = vmatprep.subr.mxu0 0.0
  %2691 = vmatpush1.msra.mxu0 1.0
  %2692 = vmatprep.subr.mxu0 0.0
  %2693 = vmatpush1.msra.mxu0 1.0
  %2694 = vmatprep.mubr.f32.mxu0 %v2525
  %2695 = vmatmul.mubr.f32.gmra.mrb[0].mxu0 %v2523
  %v2696 = vpop.f32.mrb[0].mxu0
  %v2697 = vadd.f32 %v2612, %v2696
  %v2698 = vpop.f32.mrb[0].mxu0
  %2699 = vmatprep.mubr.f32.mxu0 %v2531
  %2700 = vmatmul.mubr.f32.gmra.mrb[0].mxu0 %v2529
  %v2701 = vpop.f32.mrb[0].mxu0
  %v2702 = vadd.f32 %v2617, %v2701
  %v2703 = vpop.f32.mrb[0].mxu0
  %2704 = vmatprep.mubr.f32.mxu0 %v2537
  %2705 = vmatmul.mubr.f32.gmra.mrb[0].mxu0 %v2535
  %v2706 = vpop.f32.mrb[0].mxu0
  %v2707 = vadd.f32 %v2622, %v2706
  %v2708 = vpop.f32.mrb[0].mxu0
  %2709 = vmatprep.mubr.f32.mxu0 %v2543
  %2710 = vmatmul.mubr.f32.gmra.mrb[0].mxu0 %v2541
  %v2711 = vpop.f32.mrb[0].mxu0
  %v2712 = vadd.f32 %v2627, %v2711
  %v2713 = vpop.f32.mrb[0].mxu0
  %2714 = vdwg.mxu0
  %v2715 = vmul.f32 %v2697, 0.001953125
  %v2716 = vmul.f32 %v2702, 0.001953125
  %v2717 = vmul.f32 %v2707, 0.001953125
  %v2718 = vmul.f32 %v2712, 0.001953125
  %2720 = vset.pattern.permute.xlu0 0
  %2721 = vperm.xlu0 %2720, %v2715
  %v2722 = vpop.permute.xlu0 %2721
  %2725 = vset.pattern.permute.xlu0 0
  %2726 = vperm.xlu0 %2725, %v2716
  %v2727 = vpop.permute.xlu0 %2726
  %2730 = vset.pattern.permute.xlu0 0
  %2731 = vperm.xlu0 %2730, %v2717
  %v2732 = vpop.permute.xlu0 %2731
  %2735 = vset.pattern.permute.xlu0 0
  %2736 = vperm.xlu0 %2735, %v2718
  %v2737 = vpop.permute.xlu0 %2736
  %v2739 = vsub.f32 %v2345, %v2722
  %v2740 = vsub.f32 %v2347, %v2722
  %v2741 = vsub.f32 %v2523, %v2722
  %v2742 = vsub.f32 %v2525, %v2722
  %v2743 = vsub.f32 %v2351, %v2727
  %v2744 = vsub.f32 %v2353, %v2727
  %v2745 = vsub.f32 %v2529, %v2727
  %v2746 = vsub.f32 %v2531, %v2727
  %v2747 = vsub.f32 %v2357, %v2732
  %v2748 = vsub.f32 %v2359, %v2732
  %v2749 = vsub.f32 %v2535, %v2732
  %v2750 = vsub.f32 %v2537, %v2732
  %v2751 = vsub.f32 %v2363, %v2737
  %v2752 = vsub.f32 %v2365, %v2737
  %v2753 = vsub.f32 %v2541, %v2737
  %v2754 = vsub.f32 %v2543, %v2737
  %v2755 = vmul.f32 %v2739, %v2739
  %v2756 = vmul.f32 %v2740, %v2740
  %v2757 = vmul.f32 %v2741, %v2741
  %v2758 = vmul.f32 %v2742, %v2742
  %v2759 = vmul.f32 %v2743, %v2743
  %v2760 = vmul.f32 %v2744, %v2744
  %v2761 = vmul.f32 %v2745, %v2745
  %v2762 = vmul.f32 %v2746, %v2746
  %v2763 = vmul.f32 %v2747, %v2747
  %v2764 = vmul.f32 %v2748, %v2748
  %v2765 = vmul.f32 %v2749, %v2749
  %v2766 = vmul.f32 %v2750, %v2750
  %v2767 = vmul.f32 %v2751, %v2751
  %v2768 = vmul.f32 %v2752, %v2752
  %v2769 = vmul.f32 %v2753, %v2753
  %v2770 = vmul.f32 %v2754, %v2754
  %2771 = vmatprep.subr.mxu0 0.0
  %2772 = vmatpush1.msra.mxu0 1.0
  %2773 = vmatprep.subr.mxu0 0.0
  %2774 = vmatpush1.msra.mxu0 1.0
  %2775 = vmatprep.subr.mxu0 0.0
  %2776 = vmatpush1.msra.mxu0 1.0
  %2777 = vmatprep.subr.mxu0 0.0
  %2778 = vmatpush1.msra.mxu0 1.0
  %2779 = vmatprep.subr.mxu0 0.0
  %2780 = vmatpush1.msra.mxu0 1.0
  %2781 = vmatprep.subr.mxu0 0.0
  %2782 = vmatpush1.msra.mxu0 1.0
  %2783 = vmatprep.subr.mxu0 0.0
  %2784 = vmatpush1.msra.mxu0 1.0
  %2785 = vmatprep.subr.mxu0 0.0
  %2786 = vmatpush1.msra.mxu0 1.0
  %2787 = vmatprep.subr.mxu0 0.0
  %2788 = vmatpush1.msra.mxu0 1.0
  %2789 = vmatprep.subr.mxu0 0.0
  %2790 = vmatpush1.msra.mxu0 1.0
  %2791 = vmatprep.subr.mxu0 0.0
  %2792 = vmatpush1.msra.mxu0 1.0
  %2793 = vmatprep.subr.mxu0 0.0
  %2794 = vmatpush1.msra.mxu0 1.0
  %2795 = vmatprep.subr.mxu0 0.0
  %2796 = vmatpush1.msra.mxu0 1.0
  %2797 = vmatprep.subr.mxu0 0.0
  %2798 = vmatpush1.msra.mxu0 1.0
  %2799 = vmatprep.subr.mxu0 0.0
  %2800 = vmatpush1.msra.mxu0 1.0
  %2801 = vmatprep.subr.mxu0 0.0
  %2802 = vmatpush1.msra.mxu0 1.0
  %2803 = vmatprep.subr.mxu0 0.0
  %2804 = vmatpush1.msra.mxu0 1.0
  %2805 = vmatprep.subr.mxu0 0.0
  %2806 = vmatpush1.msra.mxu0 1.0
  %2807 = vmatprep.subr.mxu0 0.0
  %2808 = vmatpush1.msra.mxu0 1.0
  %2809 = vmatprep.subr.mxu0 0.0
  %2810 = vmatpush1.msra.mxu0 1.0
  %2811 = vmatprep.subr.mxu0 0.0
  %2812 = vmatpush1.msra.mxu0 1.0
  %2813 = vmatprep.subr.mxu0 0.0
  %2814 = vmatpush1.msra.mxu0 1.0
  %2815 = vmatprep.subr.mxu0 0.0
  %2816 = vmatpush1.msra.mxu0 1.0
  %2817 = vmatprep.subr.mxu0 0.0
  %2818 = vmatpush1.msra.mxu0 1.0
  %2819 = vmatprep.subr.mxu0 0.0
  %2820 = vmatpush1.msra.mxu0 1.0
  %2821 = vmatprep.subr.mxu0 0.0
  %2822 = vmatpush1.msra.mxu0 1.0
  %2823 = vmatprep.subr.mxu0 0.0
  %2824 = vmatpush1.msra.mxu0 1.0
  %2825 = vmatprep.subr.mxu0 0.0
  %2826 = vmatpush1.msra.mxu0 1.0
  %2827 = vmatprep.subr.mxu0 0.0
  %2828 = vmatpush1.msra.mxu0 1.0
  %2829 = vmatprep.subr.mxu0 0.0
  %2830 = vmatpush1.msra.mxu0 1.0
  %2831 = vmatprep.subr.mxu0 0.0
  %2832 = vmatpush1.msra.mxu0 1.0
  %2833 = vmatprep.subr.mxu0 0.0
  %2834 = vmatpush1.msra.mxu0 1.0
  %2835 = vmatprep.mubr.f32.mxu0 %v2756
  %2836 = vmatmul.mubr.f32.gmra.mrb[0].mxu0 %v2755
  %v2837 = vpop.f32.mrb[0].mxu0
  %v2838 = vadd.f32 0.0, %v2837
  %v2839 = vpop.f32.mrb[0].mxu0
  %2840 = vmatprep.mubr.f32.mxu0 %v2760
  %2841 = vmatmul.mubr.f32.gmra.mrb[0].mxu0 %v2759
  %v2842 = vpop.f32.mrb[0].mxu0
  %v2843 = vadd.f32 0.0, %v2842
  %v2844 = vpop.f32.mrb[0].mxu0
  %2845 = vmatprep.mubr.f32.mxu0 %v2764
  %2846 = vmatmul.mubr.f32.gmra.mrb[0].mxu0 %v2763
  %v2847 = vpop.f32.mrb[0].mxu0
  %v2848 = vadd.f32 0.0, %v2847
  %v2849 = vpop.f32.mrb[0].mxu0
  %2850 = vmatprep.mubr.f32.mxu0 %v2768
  %2851 = vmatmul.mubr.f32.gmra.mrb[0].mxu0 %v2767
  %v2852 = vpop.f32.mrb[0].mxu0
  %v2853 = vadd.f32 0.0, %v2852
  %v2854 = vpop.f32.mrb[0].mxu0
  %2855 = vdwg.mxu0
  %2856 = vmatprep.subr.mxu0 0.0
  %2857 = vmatpush1.msra.mxu0 1.0
  %2858 = vmatprep.subr.mxu0 0.0
  %2859 = vmatpush1.msra.mxu0 1.0
  %2860 = vmatprep.subr.mxu0 0.0
  %2861 = vmatpush1.msra.mxu0 1.0
  %2862 = vmatprep.subr.mxu0 0.0
  %2863 = vmatpush1.msra.mxu0 1.0
  %2864 = vmatprep.subr.mxu0 0.0
  %2865 = vmatpush1.msra.mxu0 1.0
  %2866 = vmatprep.subr.mxu0 0.0
  %2867 = vmatpush1.msra.mxu0 1.0
  %2868 = vmatprep.subr.mxu0 0.0
  %2869 = vmatpush1.msra.mxu0 1.0
  %2870 = vmatprep.subr.mxu0 0.0
  %2871 = vmatpush1.msra.mxu0 1.0
  %2872 = vmatprep.subr.mxu0 0.0
  %2873 = vmatpush1.msra.mxu0 1.0
  %2874 = vmatprep.subr.mxu0 0.0
  %2875 = vmatpush1.msra.mxu0 1.0
  %2876 = vmatprep.subr.mxu0 0.0
  %2877 = vmatpush1.msra.mxu0 1.0
  %2878 = vmatprep.subr.mxu0 0.0
  %2879 = vmatpush1.msra.mxu0 1.0
  %2880 = vmatprep.subr.mxu0 0.0
  %2881 = vmatpush1.msra.mxu0 1.0
  %2882 = vmatprep.subr.mxu0 0.0
  %2883 = vmatpush1.msra.mxu0 1.0
  %2884 = vmatprep.subr.mxu0 0.0
  %2885 = vmatpush1.msra.mxu0 1.0
  %2886 = vmatprep.subr.mxu0 0.0
  %2887 = vmatpush1.msra.mxu0 1.0
  %2888 = vmatprep.subr.mxu0 0.0
  %2889 = vmatpush1.msra.mxu0 1.0
  %2890 = vmatprep.subr.mxu0 0.0
  %2891 = vmatpush1.msra.mxu0 1.0
  %2892 = vmatprep.subr.mxu0 0.0
  %2893 = vmatpush1.msra.mxu0 1.0
  %2894 = vmatprep.subr.mxu0 0.0
  %2895 = vmatpush1.msra.mxu0 1.0
  %2896 = vmatprep.subr.mxu0 0.0
  %2897 = vmatpush1.msra.mxu0 1.0
  %2898 = vmatprep.subr.mxu0 0.0
  %2899 = vmatpush1.msra.mxu0 1.0
  %2900 = vmatprep.subr.mxu0 0.0
  %2901 = vmatpush1.msra.mxu0 1.0
  %2902 = vmatprep.subr.mxu0 0.0
  %2903 = vmatpush1.msra.mxu0 1.0
  %2904 = vmatprep.subr.mxu0 0.0
  %2905 = vmatpush1.msra.mxu0 1.0
  %2906 = vmatprep.subr.mxu0 0.0
  %2907 = vmatpush1.msra.mxu0 1.0
  %2908 = vmatprep.subr.mxu0 0.0
  %2909 = vmatpush1.msra.mxu0 1.0
  %2910 = vmatprep.subr.mxu0 0.0
  %2911 = vmatpush1.msra.mxu0 1.0
  %2912 = vmatprep.subr.mxu0 0.0
  %2913 = vmatpush1.msra.mxu0 1.0
  %2914 = vmatprep.subr.mxu0 0.0
  %2915 = vmatpush1.msra.mxu0 1.0
  %2916 = vmatprep.subr.mxu0 0.0
  %2917 = vmatpush1.msra.mxu0 1.0
  %2918 = vmatprep.subr.mxu0 0.0
  %2919 = vmatpush1.msra.mxu0 1.0
  %2920 = vmatprep.mubr.f32.mxu0 %v2758
  %2921 = vmatmul.mubr.f32.gmra.mrb[0].mxu0 %v2757
  %v2922 = vpop.f32.mrb[0].mxu0
  %v2923 = vadd.f32 %v2838, %v2922
  %v2924 = vpop.f32.mrb[0].mxu0
  %2925 = vmatprep.mubr.f32.mxu0 %v2762
  %2926 = vmatmul.mubr.f32.gmra.mrb[0].mxu0 %v2761
  %v2927 = vpop.f32.mrb[0].mxu0
  %v2928 = vadd.f32 %v2843, %v2927
  %v2929 = vpop.f32.mrb[0].mxu0
  %2930 = vmatprep.mubr.f32.mxu0 %v2766
  %2931 = vmatmul.mubr.f32.gmra.mrb[0].mxu0 %v2765
  %v2932 = vpop.f32.mrb[0].mxu0
  %v2933 = vadd.f32 %v2848, %v2932
  %v2934 = vpop.f32.mrb[0].mxu0
  %2935 = vmatprep.mubr.f32.mxu0 %v2770
  %2936 = vmatmul.mubr.f32.gmra.mrb[0].mxu0 %v2769
  %v2937 = vpop.f32.mrb[0].mxu0
  %v2938 = vadd.f32 %v2853, %v2937
  %v2939 = vpop.f32.mrb[0].mxu0
  %2940 = vdwg.mxu0
  %v2941 = vmul.f32 %v2923, 0.001953125
  %v2942 = vmul.f32 %v2928, 0.001953125
  %v2943 = vmul.f32 %v2933, 0.001953125
  %v2944 = vmul.f32 %v2938, 0.001953125
  %v2945 = vadd.f32 %v2941, 1e-05
  %v2946 = vadd.f32 %v2942, 1e-05
  %v2947 = vadd.f32 %v2943, 1e-05
  %v2948 = vadd.f32 %v2944, 1e-05
  %v2949 = vrsqrt.pop %v2945
  %v2950 = vrsqrt.pop %v2946
  %v2951 = vrsqrt.pop %v2947
  %v2952 = vrsqrt.pop %v2948
  %2953 = vrot.lane.b32.xlu0 %v2153, 127
  %v2954 = vpop.permute.xlu0 %2953
  %2955 = vrot.lane.b32.xlu0 %v2154, 127
  %v2956 = vpop.permute.xlu0 %2955
  %2957 = vrot.lane.b32.xlu0 %v2155, 127
  %v2958 = vpop.permute.xlu0 %2957
  %2959 = vrot.lane.b32.xlu0 %v2156, 127
  %v2960 = vpop.permute.xlu0 %2959
  %v2965 = vmul.f32 %v2949, %v2954
  %v2966 = vmul.f32 %v2950, %v2956
  %v2967 = vmul.f32 %v2951, %v2958
  %v2968 = vmul.f32 %v2952, %v2960
  %2970 = vset.pattern.permute.xlu0 0
  %2971 = vperm.xlu0 %2970, %v2965
  %v2972 = vpop.permute.xlu0 %2971
  %2975 = vset.pattern.permute.xlu0 0
  %2976 = vperm.xlu0 %2975, %v2966
  %v2977 = vpop.permute.xlu0 %2976
  %2980 = vset.pattern.permute.xlu0 0
  %2981 = vperm.xlu0 %2980, %v2967
  %v2982 = vpop.permute.xlu0 %2981
  %2985 = vset.pattern.permute.xlu0 0
  %2986 = vperm.xlu0 %2985, %v2968
  %v2987 = vpop.permute.xlu0 %2986
  %v2989 = vmul.f32 %v2739, %v2972
  %v2990 = vmul.f32 %v2740, %v2972
  %v2991 = vmul.f32 %v2741, %v2972
  %v2992 = vmul.f32 %v2742, %v2972
  %v2993 = vmul.f32 %v2743, %v2977
  %v2994 = vmul.f32 %v2744, %v2977
  %v2995 = vmul.f32 %v2745, %v2977
  %v2996 = vmul.f32 %v2746, %v2977
  %v2997 = vmul.f32 %v2747, %v2982
  %v2998 = vmul.f32 %v2748, %v2982
  %v2999 = vmul.f32 %v2749, %v2982
  %v3000 = vmul.f32 %v2750, %v2982
  %v3001 = vmul.f32 %v2751, %v2987
  %v3002 = vmul.f32 %v2752, %v2987
  %v3003 = vmul.f32 %v2753, %v2987
  %v3004 = vmul.f32 %v2754, %v2987
  %3005 = vset.pattern.permute.xlu0 2
  %3006 = vperm.xlu0 %3005, %v2153
  %v3007 = vpop.permute.xlu0 %3006
  %3009 = vset.pattern.permute.xlu0 2
  %3010 = vperm.xlu0 %3009, %v2154
  %v3011 = vpop.permute.xlu0 %3010
  %3013 = vset.pattern.permute.xlu0 2
  %3014 = vperm.xlu0 %3013, %v2155
  %v3015 = vpop.permute.xlu0 %3014
  %3017 = vset.pattern.permute.xlu0 2
  %3018 = vperm.xlu0 %3017, %v2156
  %v3019 = vpop.permute.xlu0 %3018
  %v3021 = vadd.f32 %v2989, %v3007
  %v3022 = vadd.f32 %v2990, %v3007
  %v3023 = vadd.f32 %v2991, %v3007
  %v3024 = vadd.f32 %v2992, %v3007
  %v3025 = vadd.f32 %v2993, %v3011
  %v3026 = vadd.f32 %v2994, %v3011
  %v3027 = vadd.f32 %v2995, %v3011
  %v3028 = vadd.f32 %v2996, %v3011
  %v3029 = vadd.f32 %v2997, %v3015
  %v3030 = vadd.f32 %v2998, %v3015
  %v3031 = vadd.f32 %v2999, %v3015
  %v3032 = vadd.f32 %v3000, %v3015
  %v3033 = vadd.f32 %v3001, %v3019
  %v3034 = vadd.f32 %v3002, %v3019
  %v3035 = vadd.f32 %v3003, %v3019
  %v3036 = vadd.f32 %v3004, %v3019
  %v3037 = vmax.f32 %v3021, 0.0
  %v3038 = vmax.f32 %v3022, 0.0
  %v3039 = vmax.f32 %v3023, 0.0
  %v3040 = vmax.f32 %v3024, 0.0
  %v3041 = vmax.f32 %v3025, 0.0
  %v3042 = vmax.f32 %v3026, 0.0
  %v3043 = vmax.f32 %v3027, 0.0
  %v3044 = vmax.f32 %v3028, 0.0
  %v3045 = vmax.f32 %v3029, 0.0
  %v3046 = vmax.f32 %v3030, 0.0
  %v3047 = vmax.f32 %v3031, 0.0
  %v3048 = vmax.f32 %v3032, 0.0
  %v3049 = vmax.f32 %v3033, 0.0
  %v3050 = vmax.f32 %v3034, 0.0
  %v3051 = vmax.f32 %v3035, 0.0
  %v3052 = vmax.f32 %v3036, 0.0
  %3053 = vrot.lane.b32.xlu0 %v3037, 17
  %v3054 = vpop.permute.xlu0 %3053
  %3055 = vrot.lane.b32.xlu0 %v3041, 17
  %v3056 = vpop.permute.xlu0 %3055
  %3057 = vrot.lane.b32.xlu0 %v3045, 17
  %v3058 = vpop.permute.xlu0 %3057
  %3059 = vrot.lane.b32.xlu0 %v3049, 17
  %v3060 = vpop.permute.xlu0 %3059
  %3061 = vrot.lane.b32.xlu0 %v3038, 17
  %v3062 = vpop.permute.xlu0 %3061
  %3063 = vrot.lane.b32.xlu0 %v3042, 17
  %v3064 = vpop.permute.xlu0 %3063
  %3065 = vrot.lane.b32.xlu0 %v3046, 17
  %v3066 = vpop.permute.xlu0 %3065
  %3067 = vrot.lane.b32.xlu0 %v3050, 17
  %v3068 = vpop.permute.xlu0 %3067
  %3069 = vrot.lane.b32.xlu0 %v3039, 17
  %v3070 = vpop.permute.xlu0 %3069
  %3071 = vrot.lane.b32.xlu0 %v3043, 17
  %v3072 = vpop.permute.xlu0 %3071
  %3073 = vrot.lane.b32.xlu0 %v3047, 17
  %v3074 = vpop.permute.xlu0 %3073
  %3075 = vrot.lane.b32.xlu0 %v3051, 17
  %v3076 = vpop.permute.xlu0 %3075
  %3077 = vrot.lane.b32.xlu0 %v3040, 17
  %v3078 = vpop.permute.xlu0 %3077
  %3079 = vrot.lane.b32.xlu0 %v3044, 17
  %v3080 = vpop.permute.xlu0 %3079
  %3081 = vrot.lane.b32.xlu0 %v3048, 17
  %v3082 = vpop.permute.xlu0 %3081
  %3083 = vrot.lane.b32.xlu0 %v3052, 17
  %v3084 = vpop.permute.xlu0 %3083
  %v3085 = vsel %vm98, %v3070, %v3078
  %v3086 = vsel %vm98, %v3072, %v3080
  %v3087 = vsel %vm98, %v3074, %v3082
  %v3088 = vsel %vm98, %v3076, %v3084
  %v3089 = vsel %vm98, %v3062, %v3070
  %v3090 = vsel %vm98, %v3064, %v3072
  %v3091 = vsel %vm98, %v3066, %v3074
  %v3092 = vsel %vm98, %v3068, %v3076
  %v3093 = vsel %vm98, %v3054, %v3062
  %v3094 = vsel %vm98, %v3056, %v3064
  %v3095 = vsel %vm98, %v3058, %v3066
  %v3096 = vsel %vm98, %v3060, %v3068
  %v3097 = vsel %vm98, %v3078, %v3054
  %v3098 = vsel %vm98, %v3080, %v3056
  %v3099 = vsel %vm98, %v3082, %v3058
  %v3100 = vsel %vm98, %v3084, %v3060
  %v3101 = vmul.f32 %v3097, %v118
  %v3102 = vmul.f32 %v3093, %v122
  %v3103 = vmul.f32 %v3089, %v126
  %v3104 = vmul.f32 %v3085, %v130
  %v3105 = vmul.f32 %v3098, %v118
  %v3106 = vmul.f32 %v3094, %v122
  %v3107 = vmul.f32 %v3090, %v126
  %v3108 = vmul.f32 %v3086, %v130
  %v3109 = vmul.f32 %v3099, %v118
  %v3110 = vmul.f32 %v3095, %v122
  %v3111 = vmul.f32 %v3091, %v126
  %v3112 = vmul.f32 %v3087, %v130
  %v3113 = vmul.f32 %v3100, %v118
  %v3114 = vmul.f32 %v3096, %v122
  %v3115 = vmul.f32 %v3092, %v126
  %v3116 = vmul.f32 %v3088, %v130
  %3117 = vrot.lane.b32.xlu0 %v3037, 16
  %v3118 = vpop.permute.xlu0 %3117
  %3119 = vrot.lane.b32.xlu0 %v3041, 16
  %v3120 = vpop.permute.xlu0 %3119
  %3121 = vrot.lane.b32.xlu0 %v3045, 16
  %v3122 = vpop.permute.xlu0 %3121
  %3123 = vrot.lane.b32.xlu0 %v3049, 16
  %v3124 = vpop.permute.xlu0 %3123
  %3125 = vrot.lane.b32.xlu0 %v3038, 16
  %v3126 = vpop.permute.xlu0 %3125
  %3127 = vrot.lane.b32.xlu0 %v3042, 16
  %v3128 = vpop.permute.xlu0 %3127
  %3129 = vrot.lane.b32.xlu0 %v3046, 16
  %v3130 = vpop.permute.xlu0 %3129
  %3131 = vrot.lane.b32.xlu0 %v3050, 16
  %v3132 = vpop.permute.xlu0 %3131
  %3133 = vrot.lane.b32.xlu0 %v3039, 16
  %v3134 = vpop.permute.xlu0 %3133
  %3135 = vrot.lane.b32.xlu0 %v3043, 16
  %v3136 = vpop.permute.xlu0 %3135
  %3137 = vrot.lane.b32.xlu0 %v3047, 16
  %v3138 = vpop.permute.xlu0 %3137
  %3139 = vrot.lane.b32.xlu0 %v3051, 16
  %v3140 = vpop.permute.xlu0 %3139
  %3141 = vrot.lane.b32.xlu0 %v3040, 16
  %v3142 = vpop.permute.xlu0 %3141
  %3143 = vrot.lane.b32.xlu0 %v3044, 16
  %v3144 = vpop.permute.xlu0 %3143
  %3145 = vrot.lane.b32.xlu0 %v3048, 16
  %v3146 = vpop.permute.xlu0 %3145
  %3147 = vrot.lane.b32.xlu0 %v3052, 16
  %v3148 = vpop.permute.xlu0 %3147
  %v3149 = vsel %vm179, %v3134, %v3142
  %v3150 = vsel %vm179, %v3136, %v3144
  %v3151 = vsel %vm179, %v3138, %v3146
  %v3152 = vsel %vm179, %v3140, %v3148
  %v3153 = vsel %vm179, %v3126, %v3134
  %v3154 = vsel %vm179, %v3128, %v3136
  %v3155 = vsel %vm179, %v3130, %v3138
  %v3156 = vsel %vm179, %v3132, %v3140
  %v3157 = vsel %vm179, %v3118, %v3126
  %v3158 = vsel %vm179, %v3120, %v3128
  %v3159 = vsel %vm179, %v3122, %v3130
  %v3160 = vsel %vm179, %v3124, %v3132
  %v3161 = vsel %vm179, %v3142, %v3118
  %v3162 = vsel %vm179, %v3144, %v3120
  %v3163 = vsel %vm179, %v3146, %v3122
  %v3164 = vsel %vm179, %v3148, %v3124
  %v3165 = vmul.f32 %v3161, %v199
  %v3166 = vmul.f32 %v3157, %v203
  %v3167 = vmul.f32 %v3153, %v207
  %v3168 = vmul.f32 %v3149, %v211
  %v3169 = vmul.f32 %v3162, %v199
  %v3170 = vmul.f32 %v3158, %v203
  %v3171 = vmul.f32 %v3154, %v207
  %v3172 = vmul.f32 %v3150, %v211
  %v3173 = vmul.f32 %v3163, %v199
  %v3174 = vmul.f32 %v3159, %v203
  %v3175 = vmul.f32 %v3155, %v207
  %v3176 = vmul.f32 %v3151, %v211
  %v3177 = vmul.f32 %v3164, %v199
  %v3178 = vmul.f32 %v3160, %v203
  %v3179 = vmul.f32 %v3156, %v207
  %v3180 = vmul.f32 %v3152, %v211
  %3181 = vrot.lane.b32.xlu0 %v3037, 15
  %v3182 = vpop.permute.xlu0 %3181
  %3183 = vrot.lane.b32.xlu0 %v3041, 15
  %v3184 = vpop.permute.xlu0 %3183
  %3185 = vrot.lane.b32.xlu0 %v3045, 15
  %v3186 = vpop.permute.xlu0 %3185
  %3187 = vrot.lane.b32.xlu0 %v3049, 15
  %v3188 = vpop.permute.xlu0 %3187
  %3189 = vrot.lane.b32.xlu0 %v3038, 15
  %v3190 = vpop.permute.xlu0 %3189
  %3191 = vrot.lane.b32.xlu0 %v3042, 15
  %v3192 = vpop.permute.xlu0 %3191
  %3193 = vrot.lane.b32.xlu0 %v3046, 15
  %v3194 = vpop.permute.xlu0 %3193
  %3195 = vrot.lane.b32.xlu0 %v3050, 15
  %v3196 = vpop.permute.xlu0 %3195
  %3197 = vrot.lane.b32.xlu0 %v3039, 15
  %v3198 = vpop.permute.xlu0 %3197
  %3199 = vrot.lane.b32.xlu0 %v3043, 15
  %v3200 = vpop.permute.xlu0 %3199
  %3201 = vrot.lane.b32.xlu0 %v3047, 15
  %v3202 = vpop.permute.xlu0 %3201
  %3203 = vrot.lane.b32.xlu0 %v3051, 15
  %v3204 = vpop.permute.xlu0 %3203
  %3205 = vrot.lane.b32.xlu0 %v3040, 15
  %v3206 = vpop.permute.xlu0 %3205
  %3207 = vrot.lane.b32.xlu0 %v3044, 15
  %v3208 = vpop.permute.xlu0 %3207
  %3209 = vrot.lane.b32.xlu0 %v3048, 15
  %v3210 = vpop.permute.xlu0 %3209
  %3211 = vrot.lane.b32.xlu0 %v3052, 15
  %v3212 = vpop.permute.xlu0 %3211
  %v3213 = vsel %vm260, %v3198, %v3206
  %v3214 = vsel %vm260, %v3200, %v3208
  %v3215 = vsel %vm260, %v3202, %v3210
  %v3216 = vsel %vm260, %v3204, %v3212
  %v3217 = vsel %vm260, %v3190, %v3198
  %v3218 = vsel %vm260, %v3192, %v3200
  %v3219 = vsel %vm260, %v3194, %v3202
  %v3220 = vsel %vm260, %v3196, %v3204
  %v3221 = vsel %vm260, %v3182, %v3190
  %v3222 = vsel %vm260, %v3184, %v3192
  %v3223 = vsel %vm260, %v3186, %v3194
  %v3224 = vsel %vm260, %v3188, %v3196
  %v3225 = vsel %vm260, %v3206, %v3182
  %v3226 = vsel %vm260, %v3208, %v3184
  %v3227 = vsel %vm260, %v3210, %v3186
  %v3228 = vsel %vm260, %v3212, %v3188
  %v3229 = vmul.f32 %v3225, %v280
  %v3230 = vmul.f32 %v3221, %v284
  %v3231 = vmul.f32 %v3217, %v288
  %v3232 = vmul.f32 %v3213, %v292
  %v3233 = vmul.f32 %v3226, %v280
  %v3234 = vmul.f32 %v3222, %v284
  %v3235 = vmul.f32 %v3218, %v288
  %v3236 = vmul.f32 %v3214, %v292
  %v3237 = vmul.f32 %v3227, %v280
  %v3238 = vmul.f32 %v3223, %v284
  %v3239 = vmul.f32 %v3219, %v288
  %v3240 = vmul.f32 %v3215, %v292
  %v3241 = vmul.f32 %v3228, %v280
  %v3242 = vmul.f32 %v3224, %v284
  %v3243 = vmul.f32 %v3220, %v288
  %v3244 = vmul.f32 %v3216, %v292
  %3245 = vrot.lane.b32.xlu0 %v3037, 1
  %v3246 = vpop.permute.xlu0 %3245
  %3247 = vrot.lane.b32.xlu0 %v3041, 1
  %v3248 = vpop.permute.xlu0 %3247
  %3249 = vrot.lane.b32.xlu0 %v3045, 1
  %v3250 = vpop.permute.xlu0 %3249
  %3251 = vrot.lane.b32.xlu0 %v3049, 1
  %v3252 = vpop.permute.xlu0 %3251
  %3253 = vrot.lane.b32.xlu0 %v3038, 1
  %v3254 = vpop.permute.xlu0 %3253
  %3255 = vrot.lane.b32.xlu0 %v3042, 1
  %v3256 = vpop.permute.xlu0 %3255
  %3257 = vrot.lane.b32.xlu0 %v3046, 1
  %v3258 = vpop.permute.xlu0 %3257
  %3259 = vrot.lane.b32.xlu0 %v3050, 1
  %v3260 = vpop.permute.xlu0 %3259
  %3261 = vrot.lane.b32.xlu0 %v3039, 1
  %v3262 = vpop.permute.xlu0 %3261
  %3263 = vrot.lane.b32.xlu0 %v3043, 1
  %v3264 = vpop.permute.xlu0 %3263
  %3265 = vrot.lane.b32.xlu0 %v3047, 1
  %v3266 = vpop.permute.xlu0 %3265
  %3267 = vrot.lane.b32.xlu0 %v3051, 1
  %v3268 = vpop.permute.xlu0 %3267
  %3269 = vrot.lane.b32.xlu0 %v3040, 1
  %v3270 = vpop.permute.xlu0 %3269
  %3271 = vrot.lane.b32.xlu0 %v3044, 1
  %v3272 = vpop.permute.xlu0 %3271
  %3273 = vrot.lane.b32.xlu0 %v3048, 1
  %v3274 = vpop.permute.xlu0 %3273
  %3275 = vrot.lane.b32.xlu0 %v3052, 1
  %v3276 = vpop.permute.xlu0 %3275
  %v3277 = vsel %vm341, %v3262, %v3270
  %v3278 = vsel %vm341, %v3264, %v3272
  %v3279 = vsel %vm341, %v3266, %v3274
  %v3280 = vsel %vm341, %v3268, %v3276
  %v3281 = vsel %vm341, %v3254, %v3262
  %v3282 = vsel %vm341, %v3256, %v3264
  %v3283 = vsel %vm341, %v3258, %v3266
  %v3284 = vsel %vm341, %v3260, %v3268
  %v3285 = vsel %vm341, %v3246, %v3254
  %v3286 = vsel %vm341, %v3248, %v3256
  %v3287 = vsel %vm341, %v3250, %v3258
  %v3288 = vsel %vm341, %v3252, %v3260
  %v3289 = vsel %vm341, %v3270, %v3246
  %v3290 = vsel %vm341, %v3272, %v3248
  %v3291 = vsel %vm341, %v3274, %v3250
  %v3292 = vsel %vm341, %v3276, %v3252
  %v3293 = vmul.f32 %v3289, %v361
  %v3294 = vmul.f32 %v3285, %v365
  %v3295 = vmul.f32 %v3281, %v369
  %v3296 = vmul.f32 %v3277, %v373
  %v3297 = vmul.f32 %v3290, %v361
  %v3298 = vmul.f32 %v3286, %v365
  %v3299 = vmul.f32 %v3282, %v369
  %v3300 = vmul.f32 %v3278, %v373
  %v3301 = vmul.f32 %v3291, %v361
  %v3302 = vmul.f32 %v3287, %v365
  %v3303 = vmul.f32 %v3283, %v369
  %v3304 = vmul.f32 %v3279, %v373
  %v3305 = vmul.f32 %v3292, %v361
  %v3306 = vmul.f32 %v3288, %v365
  %v3307 = vmul.f32 %v3284, %v369
  %v3308 = vmul.f32 %v3280, %v373
  %3309 = vrot.lane.b32.xlu0 %v3037, 127
  %v3310 = vpop.permute.xlu0 %3309
  %3311 = vrot.lane.b32.xlu0 %v3041, 127
  %v3312 = vpop.permute.xlu0 %3311
  %3313 = vrot.lane.b32.xlu0 %v3045, 127
  %v3314 = vpop.permute.xlu0 %3313
  %3315 = vrot.lane.b32.xlu0 %v3049, 127
  %v3316 = vpop.permute.xlu0 %3315
  %3317 = vrot.lane.b32.xlu0 %v3038, 127
  %v3318 = vpop.permute.xlu0 %3317
  %3319 = vrot.lane.b32.xlu0 %v3042, 127
  %v3320 = vpop.permute.xlu0 %3319
  %3321 = vrot.lane.b32.xlu0 %v3046, 127
  %v3322 = vpop.permute.xlu0 %3321
  %3323 = vrot.lane.b32.xlu0 %v3050, 127
  %v3324 = vpop.permute.xlu0 %3323
  %3325 = vrot.lane.b32.xlu0 %v3039, 127
  %v3326 = vpop.permute.xlu0 %3325
  %3327 = vrot.lane.b32.xlu0 %v3043, 127
  %v3328 = vpop.permute.xlu0 %3327
  %3329 = vrot.lane.b32.xlu0 %v3047, 127
  %v3330 = vpop.permute.xlu0 %3329
  %3331 = vrot.lane.b32.xlu0 %v3051, 127
  %v3332 = vpop.permute.xlu0 %3331
  %3333 = vrot.lane.b32.xlu0 %v3040, 127
  %v3334 = vpop.permute.xlu0 %3333
  %3335 = vrot.lane.b32.xlu0 %v3044, 127
  %v3336 = vpop.permute.xlu0 %3335
  %3337 = vrot.lane.b32.xlu0 %v3048, 127
  %v3338 = vpop.permute.xlu0 %3337
  %3339 = vrot.lane.b32.xlu0 %v3052, 127
  %v3340 = vpop.permute.xlu0 %3339
  %v3341 = vsel %vm422, %v3326, %v3334
  %v3342 = vsel %vm422, %v3328, %v3336
  %v3343 = vsel %vm422, %v3330, %v3338
  %v3344 = vsel %vm422, %v3332, %v3340
  %v3345 = vsel %vm422, %v3318, %v3326
  %v3346 = vsel %vm422, %v3320, %v3328
  %v3347 = vsel %vm422, %v3322, %v3330
  %v3348 = vsel %vm422, %v3324, %v3332
  %v3349 = vsel %vm422, %v3310, %v3318
  %v3350 = vsel %vm422, %v3312, %v3320
  %v3351 = vsel %vm422, %v3314, %v3322
  %v3352 = vsel %vm422, %v3316, %v3324
  %v3353 = vsel %vm422, %v3334, %v3310
  %v3354 = vsel %vm422, %v3336, %v3312
  %v3355 = vsel %vm422, %v3338, %v3314
  %v3356 = vsel %vm422, %v3340, %v3316
  %v3357 = vmul.f32 %v3349, %v442
  %v3358 = vmul.f32 %v3345, %v446
  %v3359 = vmul.f32 %v3341, %v450
  %v3360 = vmul.f32 %v3353, %v454
  %v3361 = vmul.f32 %v3350, %v442
  %v3362 = vmul.f32 %v3346, %v446
  %v3363 = vmul.f32 %v3342, %v450
  %v3364 = vmul.f32 %v3354, %v454
  %v3365 = vmul.f32 %v3351, %v442
  %v3366 = vmul.f32 %v3347, %v446
  %v3367 = vmul.f32 %v3343, %v450
  %v3368 = vmul.f32 %v3355, %v454
  %v3369 = vmul.f32 %v3352, %v442
  %v3370 = vmul.f32 %v3348, %v446
  %v3371 = vmul.f32 %v3344, %v450
  %v3372 = vmul.f32 %v3356, %v454
  %3373 = vrot.lane.b32.xlu0 %v3037, 113
  %v3374 = vpop.permute.xlu0 %3373
  %3375 = vrot.lane.b32.xlu0 %v3041, 113
  %v3376 = vpop.permute.xlu0 %3375
  %3377 = vrot.lane.b32.xlu0 %v3045, 113
  %v3378 = vpop.permute.xlu0 %3377
  %3379 = vrot.lane.b32.xlu0 %v3049, 113
  %v3380 = vpop.permute.xlu0 %3379
  %3381 = vrot.lane.b32.xlu0 %v3038, 113
  %v3382 = vpop.permute.xlu0 %3381
  %3383 = vrot.lane.b32.xlu0 %v3042, 113
  %v3384 = vpop.permute.xlu0 %3383
  %3385 = vrot.lane.b32.xlu0 %v3046, 113
  %v3386 = vpop.permute.xlu0 %3385
  %3387 = vrot.lane.b32.xlu0 %v3050, 113
  %v3388 = vpop.permute.xlu0 %3387
  %3389 = vrot.lane.b32.xlu0 %v3039, 113
  %v3390 = vpop.permute.xlu0 %3389
  %3391 = vrot.lane.b32.xlu0 %v3043, 113
  %v3392 = vpop.permute.xlu0 %3391
  %3393 = vrot.lane.b32.xlu0 %v3047, 113
  %v3394 = vpop.permute.xlu0 %3393
  %3395 = vrot.lane.b32.xlu0 %v3051, 113
  %v3396 = vpop.permute.xlu0 %3395
  %3397 = vrot.lane.b32.xlu0 %v3040, 113
  %v3398 = vpop.permute.xlu0 %3397
  %3399 = vrot.lane.b32.xlu0 %v3044, 113
  %v3400 = vpop.permute.xlu0 %3399
  %3401 = vrot.lane.b32.xlu0 %v3048, 113
  %v3402 = vpop.permute.xlu0 %3401
  %3403 = vrot.lane.b32.xlu0 %v3052, 113
  %v3404 = vpop.permute.xlu0 %3403
  %v3405 = vsel %vm503, %v3390, %v3398
  %v3406 = vsel %vm503, %v3392, %v3400
  %v3407 = vsel %vm503, %v3394, %v3402
  %v3408 = vsel %vm503, %v3396, %v3404
  %v3409 = vsel %vm503, %v3382, %v3390
  %v3410 = vsel %vm503, %v3384, %v3392
  %v3411 = vsel %vm503, %v3386, %v3394
  %v3412 = vsel %vm503, %v3388, %v3396
  %v3413 = vsel %vm503, %v3374, %v3382
  %v3414 = vsel %vm503, %v3376, %v3384
  %v3415 = vsel %vm503, %v3378, %v3386
  %v3416 = vsel %vm503, %v3380, %v3388
  %v3417 = vsel %vm503, %v3398, %v3374
  %v3418 = vsel %vm503, %v3400, %v3376
  %v3419 = vsel %vm503, %v3402, %v3378
  %v3420 = vsel %vm503, %v3404, %v3380
  %v3421 = vmul.f32 %v3413, %v523
  %v3422 = vmul.f32 %v3409, %v527
  %v3423 = vmul.f32 %v3405, %v531
  %v3424 = vmul.f32 %v3417, %v535
  %v3425 = vmul.f32 %v3414, %v523
  %v3426 = vmul.f32 %v3410, %v527
  %v3427 = vmul.f32 %v3406, %v531
  %v3428 = vmul.f32 %v3418, %v535
  %v3429 = vmul.f32 %v3415, %v523
  %v3430 = vmul.f32 %v3411, %v527
  %v3431 = vmul.f32 %v3407, %v531
  %v3432 = vmul.f32 %v3419, %v535
  %v3433 = vmul.f32 %v3416, %v523
  %v3434 = vmul.f32 %v3412, %v527
  %v3435 = vmul.f32 %v3408, %v531
  %v3436 = vmul.f32 %v3420, %v535
  %3437 = vrot.lane.b32.xlu0 %v3037, 112
  %v3438 = vpop.permute.xlu0 %3437
  %3439 = vrot.lane.b32.xlu0 %v3041, 112
  %v3440 = vpop.permute.xlu0 %3439
  %3441 = vrot.lane.b32.xlu0 %v3045, 112
  %v3442 = vpop.permute.xlu0 %3441
  %3443 = vrot.lane.b32.xlu0 %v3049, 112
  %v3444 = vpop.permute.xlu0 %3443
  %3445 = vrot.lane.b32.xlu0 %v3038, 112
  %v3446 = vpop.permute.xlu0 %3445
  %3447 = vrot.lane.b32.xlu0 %v3042, 112
  %v3448 = vpop.permute.xlu0 %3447
  %3449 = vrot.lane.b32.xlu0 %v3046, 112
  %v3450 = vpop.permute.xlu0 %3449
  %3451 = vrot.lane.b32.xlu0 %v3050, 112
  %v3452 = vpop.permute.xlu0 %3451
  %3453 = vrot.lane.b32.xlu0 %v3039, 112
  %v3454 = vpop.permute.xlu0 %3453
  %3455 = vrot.lane.b32.xlu0 %v3043, 112
  %v3456 = vpop.permute.xlu0 %3455
  %3457 = vrot.lane.b32.xlu0 %v3047, 112
  %v3458 = vpop.permute.xlu0 %3457
  %3459 = vrot.lane.b32.xlu0 %v3051, 112
  %v3460 = vpop.permute.xlu0 %3459
  %3461 = vrot.lane.b32.xlu0 %v3040, 112
  %v3462 = vpop.permute.xlu0 %3461
  %3463 = vrot.lane.b32.xlu0 %v3044, 112
  %v3464 = vpop.permute.xlu0 %3463
  %3465 = vrot.lane.b32.xlu0 %v3048, 112
  %v3466 = vpop.permute.xlu0 %3465
  %3467 = vrot.lane.b32.xlu0 %v3052, 112
  %v3468 = vpop.permute.xlu0 %3467
  %v3469 = vsel %vm584, %v3454, %v3462
  %v3470 = vsel %vm584, %v3456, %v3464
  %v3471 = vsel %vm584, %v3458, %v3466
  %v3472 = vsel %vm584, %v3460, %v3468
  %v3473 = vsel %vm584, %v3446, %v3454
  %v3474 = vsel %vm584, %v3448, %v3456
  %v3475 = vsel %vm584, %v3450, %v3458
  %v3476 = vsel %vm584, %v3452, %v3460
  %v3477 = vsel %vm584, %v3438, %v3446
  %v3478 = vsel %vm584, %v3440, %v3448
  %v3479 = vsel %vm584, %v3442, %v3450
  %v3480 = vsel %vm584, %v3444, %v3452
  %v3481 = vsel %vm584, %v3462, %v3438
  %v3482 = vsel %vm584, %v3464, %v3440
  %v3483 = vsel %vm584, %v3466, %v3442
  %v3484 = vsel %vm584, %v3468, %v3444
  %v3485 = vmul.f32 %v3477, %v604
  %v3486 = vmul.f32 %v3473, %v608
  %v3487 = vmul.f32 %v3469, %v612
  %v3488 = vmul.f32 %v3481, %v616
  %v3489 = vmul.f32 %v3478, %v604
  %v3490 = vmul.f32 %v3474, %v608
  %v3491 = vmul.f32 %v3470, %v612
  %v3492 = vmul.f32 %v3482, %v616
  %v3493 = vmul.f32 %v3479, %v604
  %v3494 = vmul.f32 %v3475, %v608
  %v3495 = vmul.f32 %v3471, %v612
  %v3496 = vmul.f32 %v3483, %v616
  %v3497 = vmul.f32 %v3480, %v604
  %v3498 = vmul.f32 %v3476, %v608
  %v3499 = vmul.f32 %v3472, %v612
  %v3500 = vmul.f32 %v3484, %v616
  %3501 = vrot.lane.b32.xlu0 %v3037, 111
  %v3502 = vpop.permute.xlu0 %3501
  %3503 = vrot.lane.b32.xlu0 %v3041, 111
  %v3504 = vpop.permute.xlu0 %3503
  %3505 = vrot.lane.b32.xlu0 %v3045, 111
  %v3506 = vpop.permute.xlu0 %3505
  %3507 = vrot.lane.b32.xlu0 %v3049, 111
  %v3508 = vpop.permute.xlu0 %3507
  %3509 = vrot.lane.b32.xlu0 %v3038, 111
  %v3510 = vpop.permute.xlu0 %3509
  %3511 = vrot.lane.b32.xlu0 %v3042, 111
  %v3512 = vpop.permute.xlu0 %3511
  %3513 = vrot.lane.b32.xlu0 %v3046, 111
  %v3514 = vpop.permute.xlu0 %3513
  %3515 = vrot.lane.b32.xlu0 %v3050, 111
  %v3516 = vpop.permute.xlu0 %3515
  %3517 = vrot.lane.b32.xlu0 %v3039, 111
  %v3518 = vpop.permute.xlu0 %3517
  %3519 = vrot.lane.b32.xlu0 %v3043, 111
  %v3520 = vpop.permute.xlu0 %3519
  %3521 = vrot.lane.b32.xlu0 %v3047, 111
  %v3522 = vpop.permute.xlu0 %3521
  %3523 = vrot.lane.b32.xlu0 %v3051, 111
  %v3524 = vpop.permute.xlu0 %3523
  %3525 = vrot.lane.b32.xlu0 %v3040, 111
  %v3526 = vpop.permute.xlu0 %3525
  %3527 = vrot.lane.b32.xlu0 %v3044, 111
  %v3528 = vpop.permute.xlu0 %3527
  %3529 = vrot.lane.b32.xlu0 %v3048, 111
  %v3530 = vpop.permute.xlu0 %3529
  %3531 = vrot.lane.b32.xlu0 %v3052, 111
  %v3532 = vpop.permute.xlu0 %3531
  %v3533 = vsel %vm665, %v3518, %v3526
  %v3534 = vsel %vm665, %v3520, %v3528
  %v3535 = vsel %vm665, %v3522, %v3530
  %v3536 = vsel %vm665, %v3524, %v3532
  %v3537 = vsel %vm665, %v3510, %v3518
  %v3538 = vsel %vm665, %v3512, %v3520
  %v3539 = vsel %vm665, %v3514, %v3522
  %v3540 = vsel %vm665, %v3516, %v3524
  %v3541 = vsel %vm665, %v3502, %v3510
  %v3542 = vsel %vm665, %v3504, %v3512
  %v3543 = vsel %vm665, %v3506, %v3514
  %v3544 = vsel %vm665, %v3508, %v3516
  %v3545 = vsel %vm665, %v3526, %v3502
  %v3546 = vsel %vm665, %v3528, %v3504
  %v3547 = vsel %vm665, %v3530, %v3506
  %v3548 = vsel %vm665, %v3532, %v3508
  %v3549 = vmul.f32 %v3541, %v685
  %v3550 = vmul.f32 %v3537, %v689
  %v3551 = vmul.f32 %v3533, %v693
  %v3552 = vmul.f32 %v3545, %v697
  %v3553 = vmul.f32 %v3542, %v685
  %v3554 = vmul.f32 %v3538, %v689
  %v3555 = vmul.f32 %v3534, %v693
  %v3556 = vmul.f32 %v3546, %v697
  %v3557 = vmul.f32 %v3543, %v685
  %v3558 = vmul.f32 %v3539, %v689
  %v3559 = vmul.f32 %v3535, %v693
  %v3560 = vmul.f32 %v3547, %v697
  %v3561 = vmul.f32 %v3544, %v685
  %v3562 = vmul.f32 %v3540, %v689
  %v3563 = vmul.f32 %v3536, %v693
  %v3564 = vmul.f32 %v3548, %v697
  %s3565 = scalar_lea.vmem %s1, 192
  %v3566 = vld [vmem:[%s3565] sm:$0xff]
  %v3567 = vld [vmem:[%s3565 + $0x8] sm:$0xff]
  %v3568 = vld [vmem:[%s3565 + $0x10] sm:$0xff]
  %v3569 = vld [vmem:[%s3565 + $0x18] sm:$0xff]
  %v3570 = vld [vmem:[%s3565 + $0x20] sm:$0xff]
  %v3571 = vld [vmem:[%s3565 + $0x28] sm:$0xff]
  %v3572 = vld [vmem:[%s3565 + $0x30] sm:$0xff]
  %v3573 = vld [vmem:[%s3565 + $0x38] sm:$0xff]
  %v3574 = vld [vmem:[%s3565 + $0x40] sm:$0xff]
  %v3575 = vld [vmem:[%s3565 + $0x48] sm:$0xff]
  %v3576 = vld [vmem:[%s3565 + $0x50] sm:$0xff]
  %v3577 = vld [vmem:[%s3565 + $0x58] sm:$0xff]
  %s3578 = scalar_lea.vmem %s2, 64
  %v3579 = vld [vmem:[%s3578] sm:$0xff]
  %v3580 = vld [vmem:[%s3578 + $0x8] sm:$0xff]
  %v3581 = vld [vmem:[%s3578 + $0x10] sm:$0xff]
  %v3582 = vld [vmem:[%s3578 + $0x18] sm:$0xff]
  %3584 = vset.pattern.permute.xlu0 0
  %3585 = vperm.xlu0 %3584, %v3579
  %v3586 = vpop.permute.xlu0 %3585
  %3589 = vset.pattern.permute.xlu0 0
  %3590 = vperm.xlu0 %3589, %v3580
  %v3591 = vpop.permute.xlu0 %3590
  %3594 = vset.pattern.permute.xlu0 0
  %3595 = vperm.xlu0 %3594, %v3581
  %v3596 = vpop.permute.xlu0 %3595
  %3599 = vset.pattern.permute.xlu0 0
  %3600 = vperm.xlu0 %3599, %v3582
  %v3601 = vpop.permute.xlu0 %3600
  %v3604 = vsel %vm750, %v3568, 0
  %v3607 = vsel %vm750, %v3571, 0
  %v3610 = vsel %vm750, %v3574, 0
  %v3613 = vsel %vm750, %v3577, 0
  %3615 = vmatprep.subr.mxu0 %v3102
  %3616 = vmatpush1.msra.mxu0 %v3101
  %3617 = vmatprep.subr.mxu0 %v3106
  %3618 = vmatpush1.msra.mxu0 %v3105
  %3619 = vmatprep.subr.mxu0 %v3110
  %3620 = vmatpush1.msra.mxu0 %v3109
  %3621 = vmatprep.subr.mxu0 %v3114
  %3622 = vmatpush1.msra.mxu0 %v3113
  %3623 = vmatprep.subr.mxu0 %v3166
  %3624 = vmatpush1.msra.mxu0 %v3165
  %3625 = vmatprep.subr.mxu0 %v3170
  %3626 = vmatpush1.msra.mxu0 %v3169
  %3627 = vmatprep.subr.mxu0 %v3174
  %3628 = vmatpush1.msra.mxu0 %v3173
  %3629 = vmatprep.subr.mxu0 %v3178
  %3630 = vmatpush1.msra.mxu0 %v3177
  %3631 = vmatprep.subr.mxu0 %v3230
  %3632 = vmatpush1.msra.mxu0 %v3229
  %3633 = vmatprep.subr.mxu0 %v3234
  %3634 = vmatpush1.msra.mxu0 %v3233
  %3635 = vmatprep.subr.mxu0 %v3238
  %3636 = vmatpush1.msra.mxu0 %v3237
  %3637 = vmatprep.subr.mxu0 %v3242
  %3638 = vmatpush1.msra.mxu0 %v3241
  %3639 = vmatprep.subr.mxu0 %v3294
  %3640 = vmatpush1.msra.mxu0 %v3293
  %3641 = vmatprep.subr.mxu0 %v3298
  %3642 = vmatpush1.msra.mxu0 %v3297
  %3643 = vmatprep.subr.mxu0 %v3302
  %3644 = vmatpush1.msra.mxu0 %v3301
  %3645 = vmatprep.subr.mxu0 %v3306
  %3646 = vmatpush1.msra.mxu0 %v3305
  %3647 = vmatprep.subr.mxu0 %v3038
  %3648 = vmatpush1.msra.mxu0 %v3037
  %3649 = vmatprep.subr.mxu0 %v3042
  %3650 = vmatpush1.msra.mxu0 %v3041
  %3651 = vmatprep.subr.mxu0 %v3046
  %3652 = vmatpush1.msra.mxu0 %v3045
  %3653 = vmatprep.subr.mxu0 %v3050
  %3654 = vmatpush1.msra.mxu0 %v3049
  %3655 = vmatprep.subr.mxu0 %v3358
  %3656 = vmatpush1.msra.mxu0 %v3357
  %3657 = vmatprep.subr.mxu0 %v3362
  %3658 = vmatpush1.msra.mxu0 %v3361
  %3659 = vmatprep.subr.mxu0 %v3366
  %3660 = vmatpush1.msra.mxu0 %v3365
  %3661 = vmatprep.subr.mxu0 %v3370
  %3662 = vmatpush1.msra.mxu0 %v3369
  %3663 = vmatprep.subr.mxu0 %v3422
  %3664 = vmatpush1.msra.mxu0 %v3421
  %3665 = vmatprep.subr.mxu0 %v3426
  %3666 = vmatpush1.msra.mxu0 %v3425
  %3667 = vmatprep.subr.mxu0 %v3430
  %3668 = vmatpush1.msra.mxu0 %v3429
  %3669 = vmatprep.subr.mxu0 %v3434
  %3670 = vmatpush1.msra.mxu0 %v3433
  %3671 = vmatprep.subr.mxu0 %v3486
  %3672 = vmatpush1.msra.mxu0 %v3485
  %3673 = vmatprep.subr.mxu0 %v3490
  %3674 = vmatpush1.msra.mxu0 %v3489
  %3675 = vmatprep.subr.mxu0 %v3494
  %3676 = vmatpush1.msra.mxu0 %v3493
  %3677 = vmatprep.subr.mxu0 %v3498
  %3678 = vmatpush1.msra.mxu0 %v3497
  %3679 = vmatprep.mubr.f32.mxu0 %v3567
  %3680 = vmatmul.mubr.f32.gmra.mrb[0].mxu0 %v3566
  %v3681 = vpop.f32.mrb[0].mxu0
  %v3682 = vadd.f32 %v3586, %v3681
  %v3683 = vpop.f32.mrb[0].mxu0
  %v3684 = vadd.f32 %v3586, %v3683
  %3685 = vmatprep.mubr.f32.mxu0 %v3570
  %3686 = vmatmul.mubr.f32.gmra.mrb[0].mxu0 %v3569
  %v3687 = vpop.f32.mrb[0].mxu0
  %v3688 = vadd.f32 %v3591, %v3687
  %v3689 = vpop.f32.mrb[0].mxu0
  %v3690 = vadd.f32 %v3591, %v3689
  %3691 = vmatprep.mubr.f32.mxu0 %v3573
  %3692 = vmatmul.mubr.f32.gmra.mrb[0].mxu0 %v3572
  %v3693 = vpop.f32.mrb[0].mxu0
  %v3694 = vadd.f32 %v3596, %v3693
  %v3695 = vpop.f32.mrb[0].mxu0
  %v3696 = vadd.f32 %v3596, %v3695
  %3697 = vmatprep.mubr.f32.mxu0 %v3576
  %3698 = vmatmul.mubr.f32.gmra.mrb[0].mxu0 %v3575
  %v3699 = vpop.f32.mrb[0].mxu0
  %v3700 = vadd.f32 %v3601, %v3699
  %v3701 = vpop.f32.mrb[0].mxu0
  %v3702 = vadd.f32 %v3601, %v3701
  %3703 = vdwg.mxu0
  %3704 = vmatprep.subr.mxu0 %v3550
  %3705 = vmatpush1.msra.mxu0 %v3549
  %3706 = vmatprep.subr.mxu0 %v3554
  %3707 = vmatpush1.msra.mxu0 %v3553
  %3708 = vmatprep.subr.mxu0 %v3558
  %3709 = vmatpush1.msra.mxu0 %v3557
  %3710 = vmatprep.subr.mxu0 %v3562
  %3711 = vmatpush1.msra.mxu0 %v3561
  %3712 = vmatprep.subr.mxu0 0.0
  %3713 = vmatpush1.msra.mxu0 0.0
  %3714 = vmatprep.subr.mxu0 0.0
  %3715 = vmatpush1.msra.mxu0 0.0
  %3716 = vmatprep.subr.mxu0 0.0
  %3717 = vmatpush1.msra.mxu0 0.0
  %3718 = vmatprep.subr.mxu0 0.0
  %3719 = vmatpush1.msra.mxu0 0.0
  %3720 = vmatprep.subr.mxu0 0.0
  %3721 = vmatpush1.msra.mxu0 0.0
  %3722 = vmatprep.subr.mxu0 0.0
  %3723 = vmatpush1.msra.mxu0 0.0
  %3724 = vmatprep.subr.mxu0 0.0
  %3725 = vmatpush1.msra.mxu0 0.0
  %3726 = vmatprep.subr.mxu0 0.0
  %3727 = vmatpush1.msra.mxu0 0.0
  %3728 = vmatprep.subr.mxu0 0.0
  %3729 = vmatpush1.msra.mxu0 0.0
  %3730 = vmatprep.subr.mxu0 0.0
  %3731 = vmatpush1.msra.mxu0 0.0
  %3732 = vmatprep.subr.mxu0 0.0
  %3733 = vmatpush1.msra.mxu0 0.0
  %3734 = vmatprep.subr.mxu0 0.0
  %3735 = vmatpush1.msra.mxu0 0.0
  %3736 = vmatprep.subr.mxu0 0.0
  %3737 = vmatpush1.msra.mxu0 0.0
  %3738 = vmatprep.subr.mxu0 0.0
  %3739 = vmatpush1.msra.mxu0 0.0
  %3740 = vmatprep.subr.mxu0 0.0
  %3741 = vmatpush1.msra.mxu0 0.0
  %3742 = vmatprep.subr.mxu0 0.0
  %3743 = vmatpush1.msra.mxu0 0.0
  %3744 = vmatprep.subr.mxu0 0.0
  %3745 = vmatpush1.msra.mxu0 0.0
  %3746 = vmatprep.subr.mxu0 0.0
  %3747 = vmatpush1.msra.mxu0 0.0
  %3748 = vmatprep.subr.mxu0 0.0
  %3749 = vmatpush1.msra.mxu0 0.0
  %3750 = vmatprep.subr.mxu0 0.0
  %3751 = vmatpush1.msra.mxu0 0.0
  %3752 = vmatprep.subr.mxu0 0.0
  %3753 = vmatpush1.msra.mxu0 0.0
  %3754 = vmatprep.subr.mxu0 0.0
  %3755 = vmatpush1.msra.mxu0 0.0
  %3756 = vmatprep.subr.mxu0 0.0
  %3757 = vmatpush1.msra.mxu0 0.0
  %3758 = vmatprep.subr.mxu0 0.0
  %3759 = vmatpush1.msra.mxu0 0.0
  %3760 = vmatprep.subr.mxu0 0.0
  %3761 = vmatpush1.msra.mxu0 0.0
  %3762 = vmatprep.subr.mxu0 0.0
  %3763 = vmatpush1.msra.mxu0 0.0
  %3764 = vmatprep.subr.mxu0 0.0
  %3765 = vmatpush1.msra.mxu0 0.0
  %3766 = vmatprep.subr.mxu0 0.0
  %3767 = vmatpush1.msra.mxu0 0.0
  %3768 = vmatprep.mubr.f32.mxu0 0.0
  %3769 = vmatmul.mubr.f32.gmra.mrb[0].mxu0 %v3604
  %v3770 = vpop.f32.mrb[0].mxu0
  %v3771 = vadd.f32 %v3682, %v3770
  %v3772 = vpop.f32.mrb[0].mxu0
  %v3773 = vadd.f32 %v3684, %v3772
  %3774 = vmatprep.mubr.f32.mxu0 0.0
  %3775 = vmatmul.mubr.f32.gmra.mrb[0].mxu0 %v3607
  %v3776 = vpop.f32.mrb[0].mxu0
  %v3777 = vadd.f32 %v3688, %v3776
  %v3778 = vpop.f32.mrb[0].mxu0
  %v3779 = vadd.f32 %v3690, %v3778
  %3780 = vmatprep.mubr.f32.mxu0 0.0
  %3781 = vmatmul.mubr.f32.gmra.mrb[0].mxu0 %v3610
  %v3782 = vpop.f32.mrb[0].mxu0
  %v3783 = vadd.f32 %v3694, %v3782
  %v3784 = vpop.f32.mrb[0].mxu0
  %v3785 = vadd.f32 %v3696, %v3784
  %3786 = vmatprep.mubr.f32.mxu0 0.0
  %3787 = vmatmul.mubr.f32.gmra.mrb[0].mxu0 %v3613
  %v3788 = vpop.f32.mrb[0].mxu0
  %v3789 = vadd.f32 %v3700, %v3788
  %v3790 = vpop.f32.mrb[0].mxu0
  %v3791 = vadd.f32 %v3702, %v3790
  %3792 = vdwg.mxu0
  %3793 = vmatprep.subr.mxu0 %v3104
  %3794 = vmatpush1.msra.mxu0 %v3103
  %3795 = vmatprep.subr.mxu0 %v3108
  %3796 = vmatpush1.msra.mxu0 %v3107
  %3797 = vmatprep.subr.mxu0 %v3112
  %3798 = vmatpush1.msra.mxu0 %v3111
  %3799 = vmatprep.subr.mxu0 %v3116
  %3800 = vmatpush1.msra.mxu0 %v3115
  %3801 = vmatprep.subr.mxu0 %v3168
  %3802 = vmatpush1.msra.mxu0 %v3167
  %3803 = vmatprep.subr.mxu0 %v3172
  %3804 = vmatpush1.msra.mxu0 %v3171
  %3805 = vmatprep.subr.mxu0 %v3176
  %3806 = vmatpush1.msra.mxu0 %v3175
  %3807 = vmatprep.subr.mxu0 %v3180
  %3808 = vmatpush1.msra.mxu0 %v3179
  %3809 = vmatprep.subr.mxu0 %v3232
  %3810 = vmatpush1.msra.mxu0 %v3231
  %3811 = vmatprep.subr.mxu0 %v3236
  %3812 = vmatpush1.msra.mxu0 %v3235
  %3813 = vmatprep.subr.mxu0 %v3240
  %3814 = vmatpush1.msra.mxu0 %v3239
  %3815 = vmatprep.subr.mxu0 %v3244
  %3816 = vmatpush1.msra.mxu0 %v3243
  %3817 = vmatprep.subr.mxu0 %v3296
  %3818 = vmatpush1.msra.mxu0 %v3295
  %3819 = vmatprep.subr.mxu0 %v3300
  %3820 = vmatpush1.msra.mxu0 %v3299
  %3821 = vmatprep.subr.mxu0 %v3304
  %3822 = vmatpush1.msra.mxu0 %v3303
  %3823 = vmatprep.subr.mxu0 %v3308
  %3824 = vmatpush1.msra.mxu0 %v3307
  %3825 = vmatprep.subr.mxu0 %v3040
  %3826 = vmatpush1.msra.mxu0 %v3039
  %3827 = vmatprep.subr.mxu0 %v3044
  %3828 = vmatpush1.msra.mxu0 %v3043
  %3829 = vmatprep.subr.mxu0 %v3048
  %3830 = vmatpush1.msra.mxu0 %v3047
  %3831 = vmatprep.subr.mxu0 %v3052
  %3832 = vmatpush1.msra.mxu0 %v3051
  %3833 = vmatprep.subr.mxu0 %v3360
  %3834 = vmatpush1.msra.mxu0 %v3359
  %3835 = vmatprep.subr.mxu0 %v3364
  %3836 = vmatpush1.msra.mxu0 %v3363
  %3837 = vmatprep.subr.mxu0 %v3368
  %3838 = vmatpush1.msra.mxu0 %v3367
  %3839 = vmatprep.subr.mxu0 %v3372
  %3840 = vmatpush1.msra.mxu0 %v3371
  %3841 = vmatprep.subr.mxu0 %v3424
  %3842 = vmatpush1.msra.mxu0 %v3423
  %3843 = vmatprep.subr.mxu0 %v3428
  %3844 = vmatpush1.msra.mxu0 %v3427
  %3845 = vmatprep.subr.mxu0 %v3432
  %3846 = vmatpush1.msra.mxu0 %v3431
  %3847 = vmatprep.subr.mxu0 %v3436
  %3848 = vmatpush1.msra.mxu0 %v3435
  %3849 = vmatprep.subr.mxu0 %v3488
  %3850 = vmatpush1.msra.mxu0 %v3487
  %3851 = vmatprep.subr.mxu0 %v3492
  %3852 = vmatpush1.msra.mxu0 %v3491
  %3853 = vmatprep.subr.mxu0 %v3496
  %3854 = vmatpush1.msra.mxu0 %v3495
  %3855 = vmatprep.subr.mxu0 %v3500
  %3856 = vmatpush1.msra.mxu0 %v3499
  %3857 = vmatprep.mubr.f32.mxu0 %v3567
  %3858 = vmatmul.mubr.f32.gmra.mrb[0].mxu0 %v3566
  %v3859 = vpop.f32.mrb[0].mxu0
  %v3860 = vadd.f32 %v3586, %v3859
  %v3861 = vpop.f32.mrb[0].mxu0
  %v3862 = vadd.f32 %v3586, %v3861
  %3863 = vmatprep.mubr.f32.mxu0 %v3570
  %3864 = vmatmul.mubr.f32.gmra.mrb[0].mxu0 %v3569
  %v3865 = vpop.f32.mrb[0].mxu0
  %v3866 = vadd.f32 %v3591, %v3865
  %v3867 = vpop.f32.mrb[0].mxu0
  %v3868 = vadd.f32 %v3591, %v3867
  %3869 = vmatprep.mubr.f32.mxu0 %v3573
  %3870 = vmatmul.mubr.f32.gmra.mrb[0].mxu0 %v3572
  %v3871 = vpop.f32.mrb[0].mxu0
  %v3872 = vadd.f32 %v3596, %v3871
  %v3873 = vpop.f32.mrb[0].mxu0
  %v3874 = vadd.f32 %v3596, %v3873
  %3875 = vmatprep.mubr.f32.mxu0 %v3576
  %3876 = vmatmul.mubr.f32.gmra.mrb[0].mxu0 %v3575
  %v3877 = vpop.f32.mrb[0].mxu0
  %v3878 = vadd.f32 %v3601, %v3877
  %v3879 = vpop.f32.mrb[0].mxu0
  %v3880 = vadd.f32 %v3601, %v3879
  %3881 = vdwg.mxu0
  %3882 = vmatprep.subr.mxu0 %v3552
  %3883 = vmatpush1.msra.mxu0 %v3551
  %3884 = vmatprep.subr.mxu0 %v3556
  %3885 = vmatpush1.msra.mxu0 %v3555
  %3886 = vmatprep.subr.mxu0 %v3560
  %3887 = vmatpush1.msra.mxu0 %v3559
  %3888 = vmatprep.subr.mxu0 %v3564
  %3889 = vmatpush1.msra.mxu0 %v3563
  %3890 = vmatprep.subr.mxu0 0.0
  %3891 = vmatpush1.msra.mxu0 0.0
  %3892 = vmatprep.subr.mxu0 0.0
  %3893 = vmatpush1.msra.mxu0 0.0
  %3894 = vmatprep.subr.mxu0 0.0
  %3895 = vmatpush1.msra.mxu0 0.0
  %3896 = vmatprep.subr.mxu0 0.0
  %3897 = vmatpush1.msra.mxu0 0.0
  %3898 = vmatprep.subr.mxu0 0.0
  %3899 = vmatpush1.msra.mxu0 0.0
  %3900 = vmatprep.subr.mxu0 0.0
  %3901 = vmatpush1.msra.mxu0 0.0
  %3902 = vmatprep.subr.mxu0 0.0
  %3903 = vmatpush1.msra.mxu0 0.0
  %3904 = vmatprep.subr.mxu0 0.0
  %3905 = vmatpush1.msra.mxu0 0.0
  %3906 = vmatprep.subr.mxu0 0.0
  %3907 = vmatpush1.msra.mxu0 0.0
  %3908 = vmatprep.subr.mxu0 0.0
  %3909 = vmatpush1.msra.mxu0 0.0
  %3910 = vmatprep.subr.mxu0 0.0
  %3911 = vmatpush1.msra.mxu0 0.0
  %3912 = vmatprep.subr.mxu0 0.0
  %3913 = vmatpush1.msra.mxu0 0.0
  %3914 = vmatprep.subr.mxu0 0.0
  %3915 = vmatpush1.msra.mxu0 0.0
  %3916 = vmatprep.subr.mxu0 0.0
  %3917 = vmatpush1.msra.mxu0 0.0
  %3918 = vmatprep.subr.mxu0 0.0
  %3919 = vmatpush1.msra.mxu0 0.0
  %3920 = vmatprep.subr.mxu0 0.0
  %3921 = vmatpush1.msra.mxu0 0.0
  %3922 = vmatprep.subr.mxu0 0.0
  %3923 = vmatpush1.msra.mxu0 0.0
  %3924 = vmatprep.subr.mxu0 0.0
  %3925 = vmatpush1.msra.mxu0 0.0
  %3926 = vmatprep.subr.mxu0 0.0
  %3927 = vmatpush1.msra.mxu0 0.0
  %3928 = vmatprep.subr.mxu0 0.0
  %3929 = vmatpush1.msra.mxu0 0.0
  %3930 = vmatprep.subr.mxu0 0.0
  %3931 = vmatpush1.msra.mxu0 0.0
  %3932 = vmatprep.subr.mxu0 0.0
  %3933 = vmatpush1.msra.mxu0 0.0
  %3934 = vmatprep.subr.mxu0 0.0
  %3935 = vmatpush1.msra.mxu0 0.0
  %3936 = vmatprep.subr.mxu0 0.0
  %3937 = vmatpush1.msra.mxu0 0.0
  %3938 = vmatprep.subr.mxu0 0.0
  %3939 = vmatpush1.msra.mxu0 0.0
  %3940 = vmatprep.subr.mxu0 0.0
  %3941 = vmatpush1.msra.mxu0 0.0
  %3942 = vmatprep.subr.mxu0 0.0
  %3943 = vmatpush1.msra.mxu0 0.0
  %3944 = vmatprep.subr.mxu0 0.0
  %3945 = vmatpush1.msra.mxu0 0.0
  %3946 = vmatprep.mubr.f32.mxu0 0.0
  %3947 = vmatmul.mubr.f32.gmra.mrb[0].mxu0 %v3604
  %v3948 = vpop.f32.mrb[0].mxu0
  %v3949 = vadd.f32 %v3860, %v3948
  %v3950 = vpop.f32.mrb[0].mxu0
  %v3951 = vadd.f32 %v3862, %v3950
  %3952 = vmatprep.mubr.f32.mxu0 0.0
  %3953 = vmatmul.mubr.f32.gmra.mrb[0].mxu0 %v3607
  %v3954 = vpop.f32.mrb[0].mxu0
  %v3955 = vadd.f32 %v3866, %v3954
  %v3956 = vpop.f32.mrb[0].mxu0
  %v3957 = vadd.f32 %v3868, %v3956
  %3958 = vmatprep.mubr.f32.mxu0 0.0
  %3959 = vmatmul.mubr.f32.gmra.mrb[0].mxu0 %v3610
  %v3960 = vpop.f32.mrb[0].mxu0
  %v3961 = vadd.f32 %v3872, %v3960
  %v3962 = vpop.f32.mrb[0].mxu0
  %v3963 = vadd.f32 %v3874, %v3962
  %3964 = vmatprep.mubr.f32.mxu0 0.0
  %3965 = vmatmul.mubr.f32.gmra.mrb[0].mxu0 %v3613
  %v3966 = vpop.f32.mrb[0].mxu0
  %v3967 = vadd.f32 %v3878, %v3966
  %v3968 = vpop.f32.mrb[0].mxu0
  %v3969 = vadd.f32 %v3880, %v3968
  %3970 = vdwg.mxu0
  %3971 = vmatprep.subr.mxu0 0.0
  %3972 = vmatpush1.msra.mxu0 1.0
  %3973 = vmatprep.subr.mxu0 0.0
  %3974 = vmatpush1.msra.mxu0 1.0
  %3975 = vmatprep.subr.mxu0 0.0
  %3976 = vmatpush1.msra.mxu0 1.0
  %3977 = vmatprep.subr.mxu0 0.0
  %3978 = vmatpush1.msra.mxu0 1.0
  %3979 = vmatprep.subr.mxu0 0.0
  %3980 = vmatpush1.msra.mxu0 1.0
  %3981 = vmatprep.subr.mxu0 0.0
  %3982 = vmatpush1.msra.mxu0 1.0
  %3983 = vmatprep.subr.mxu0 0.0
  %3984 = vmatpush1.msra.mxu0 1.0
  %3985 = vmatprep.subr.mxu0 0.0
  %3986 = vmatpush1.msra.mxu0 1.0
  %3987 = vmatprep.subr.mxu0 0.0
  %3988 = vmatpush1.msra.mxu0 1.0
  %3989 = vmatprep.subr.mxu0 0.0
  %3990 = vmatpush1.msra.mxu0 1.0
  %3991 = vmatprep.subr.mxu0 0.0
  %3992 = vmatpush1.msra.mxu0 1.0
  %3993 = vmatprep.subr.mxu0 0.0
  %3994 = vmatpush1.msra.mxu0 1.0
  %3995 = vmatprep.subr.mxu0 0.0
  %3996 = vmatpush1.msra.mxu0 1.0
  %3997 = vmatprep.subr.mxu0 0.0
  %3998 = vmatpush1.msra.mxu0 1.0
  %3999 = vmatprep.subr.mxu0 0.0
  %4000 = vmatpush1.msra.mxu0 1.0
  %4001 = vmatprep.subr.mxu0 0.0
  %4002 = vmatpush1.msra.mxu0 1.0
  %4003 = vmatprep.subr.mxu0 0.0
  %4004 = vmatpush1.msra.mxu0 1.0
  %4005 = vmatprep.subr.mxu0 0.0
  %4006 = vmatpush1.msra.mxu0 1.0
  %4007 = vmatprep.subr.mxu0 0.0
  %4008 = vmatpush1.msra.mxu0 1.0
  %4009 = vmatprep.subr.mxu0 0.0
  %4010 = vmatpush1.msra.mxu0 1.0
  %4011 = vmatprep.subr.mxu0 0.0
  %4012 = vmatpush1.msra.mxu0 1.0
  %4013 = vmatprep.subr.mxu0 0.0
  %4014 = vmatpush1.msra.mxu0 1.0
  %4015 = vmatprep.subr.mxu0 0.0
  %4016 = vmatpush1.msra.mxu0 1.0
  %4017 = vmatprep.subr.mxu0 0.0
  %4018 = vmatpush1.msra.mxu0 1.0
  %4019 = vmatprep.subr.mxu0 0.0
  %4020 = vmatpush1.msra.mxu0 1.0
  %4021 = vmatprep.subr.mxu0 0.0
  %4022 = vmatpush1.msra.mxu0 1.0
  %4023 = vmatprep.subr.mxu0 0.0
  %4024 = vmatpush1.msra.mxu0 1.0
  %4025 = vmatprep.subr.mxu0 0.0
  %4026 = vmatpush1.msra.mxu0 1.0
  %4027 = vmatprep.subr.mxu0 0.0
  %4028 = vmatpush1.msra.mxu0 1.0
  %4029 = vmatprep.subr.mxu0 0.0
  %4030 = vmatpush1.msra.mxu0 1.0
  %4031 = vmatprep.subr.mxu0 0.0
  %4032 = vmatpush1.msra.mxu0 1.0
  %4033 = vmatprep.subr.mxu0 0.0
  %4034 = vmatpush1.msra.mxu0 1.0
  %4035 = vmatprep.mubr.f32.mxu0 %v3773
  %4036 = vmatmul.mubr.f32.gmra.mrb[0].mxu0 %v3771
  %v4037 = vpop.f32.mrb[0].mxu0
  %v4038 = vadd.f32 0.0, %v4037
  %v4039 = vpop.f32.mrb[0].mxu0
  %4040 = vmatprep.mubr.f32.mxu0 %v3779
  %4041 = vmatmul.mubr.f32.gmra.mrb[0].mxu0 %v3777
  %v4042 = vpop.f32.mrb[0].mxu0
  %v4043 = vadd.f32 0.0, %v4042
  %v4044 = vpop.f32.mrb[0].mxu0
  %4045 = vmatprep.mubr.f32.mxu0 %v3785
  %4046 = vmatmul.mubr.f32.gmra.mrb[0].mxu0 %v3783
  %v4047 = vpop.f32.mrb[0].mxu0
  %v4048 = vadd.f32 0.0, %v4047
  %v4049 = vpop.f32.mrb[0].mxu0
  %4050 = vmatprep.mubr.f32.mxu0 %v3791
  %4051 = vmatmul.mubr.f32.gmra.mrb[0].mxu0 %v3789
  %v4052 = vpop.f32.mrb[0].mxu0
  %v4053 = vadd.f32 0.0, %v4052
  %v4054 = vpop.f32.mrb[0].mxu0
  %4055 = vdwg.mxu0
  %4056 = vmatprep.subr.mxu0 0.0
  %4057 = vmatpush1.msra.mxu0 1.0
  %4058 = vmatprep.subr.mxu0 0.0
  %4059 = vmatpush1.msra.mxu0 1.0
  %4060 = vmatprep.subr.mxu0 0.0
  %4061 = vmatpush1.msra.mxu0 1.0
  %4062 = vmatprep.subr.mxu0 0.0
  %4063 = vmatpush1.msra.mxu0 1.0
  %4064 = vmatprep.subr.mxu0 0.0
  %4065 = vmatpush1.msra.mxu0 1.0
  %4066 = vmatprep.subr.mxu0 0.0
  %4067 = vmatpush1.msra.mxu0 1.0
  %4068 = vmatprep.subr.mxu0 0.0
  %4069 = vmatpush1.msra.mxu0 1.0
  %4070 = vmatprep.subr.mxu0 0.0
  %4071 = vmatpush1.msra.mxu0 1.0
  %4072 = vmatprep.subr.mxu0 0.0
  %4073 = vmatpush1.msra.mxu0 1.0
  %4074 = vmatprep.subr.mxu0 0.0
  %4075 = vmatpush1.msra.mxu0 1.0
  %4076 = vmatprep.subr.mxu0 0.0
  %4077 = vmatpush1.msra.mxu0 1.0
  %4078 = vmatprep.subr.mxu0 0.0
  %4079 = vmatpush1.msra.mxu0 1.0
  %4080 = vmatprep.subr.mxu0 0.0
  %4081 = vmatpush1.msra.mxu0 1.0
  %4082 = vmatprep.subr.mxu0 0.0
  %4083 = vmatpush1.msra.mxu0 1.0
  %4084 = vmatprep.subr.mxu0 0.0
  %4085 = vmatpush1.msra.mxu0 1.0
  %4086 = vmatprep.subr.mxu0 0.0
  %4087 = vmatpush1.msra.mxu0 1.0
  %4088 = vmatprep.subr.mxu0 0.0
  %4089 = vmatpush1.msra.mxu0 1.0
  %4090 = vmatprep.subr.mxu0 0.0
  %4091 = vmatpush1.msra.mxu0 1.0
  %4092 = vmatprep.subr.mxu0 0.0
  %4093 = vmatpush1.msra.mxu0 1.0
  %4094 = vmatprep.subr.mxu0 0.0
  %4095 = vmatpush1.msra.mxu0 1.0
  %4096 = vmatprep.subr.mxu0 0.0
  %4097 = vmatpush1.msra.mxu0 1.0
  %4098 = vmatprep.subr.mxu0 0.0
  %4099 = vmatpush1.msra.mxu0 1.0
  %4100 = vmatprep.subr.mxu0 0.0
  %4101 = vmatpush1.msra.mxu0 1.0
  %4102 = vmatprep.subr.mxu0 0.0
  %4103 = vmatpush1.msra.mxu0 1.0
  %4104 = vmatprep.subr.mxu0 0.0
  %4105 = vmatpush1.msra.mxu0 1.0
  %4106 = vmatprep.subr.mxu0 0.0
  %4107 = vmatpush1.msra.mxu0 1.0
  %4108 = vmatprep.subr.mxu0 0.0
  %4109 = vmatpush1.msra.mxu0 1.0
  %4110 = vmatprep.subr.mxu0 0.0
  %4111 = vmatpush1.msra.mxu0 1.0
  %4112 = vmatprep.subr.mxu0 0.0
  %4113 = vmatpush1.msra.mxu0 1.0
  %4114 = vmatprep.subr.mxu0 0.0
  %4115 = vmatpush1.msra.mxu0 1.0
  %4116 = vmatprep.subr.mxu0 0.0
  %4117 = vmatpush1.msra.mxu0 1.0
  %4118 = vmatprep.subr.mxu0 0.0
  %4119 = vmatpush1.msra.mxu0 1.0
  %4120 = vmatprep.mubr.f32.mxu0 %v3951
  %4121 = vmatmul.mubr.f32.gmra.mrb[0].mxu0 %v3949
  %v4122 = vpop.f32.mrb[0].mxu0
  %v4123 = vadd.f32 %v4038, %v4122
  %v4124 = vpop.f32.mrb[0].mxu0
  %4125 = vmatprep.mubr.f32.mxu0 %v3957
  %4126 = vmatmul.mubr.f32.gmra.mrb[0].mxu0 %v3955
  %v4127 = vpop.f32.mrb[0].mxu0
  %v4128 = vadd.f32 %v4043, %v4127
  %v4129 = vpop.f32.mrb[0].mxu0
  %4130 = vmatprep.mubr.f32.mxu0 %v3963
  %4131 = vmatmul.mubr.f32.gmra.mrb[0].mxu0 %v3961
  %v4132 = vpop.f32.mrb[0].mxu0
  %v4133 = vadd.f32 %v4048, %v4132
  %v4134 = vpop.f32.mrb[0].mxu0
  %4135 = vmatprep.mubr.f32.mxu0 %v3969
  %4136 = vmatmul.mubr.f32.gmra.mrb[0].mxu0 %v3967
  %v4137 = vpop.f32.mrb[0].mxu0
  %v4138 = vadd.f32 %v4053, %v4137
  %v4139 = vpop.f32.mrb[0].mxu0
  %4140 = vdwg.mxu0
  %v4141 = vmul.f32 %v4123, 0.001953125
  %v4142 = vmul.f32 %v4128, 0.001953125
  %v4143 = vmul.f32 %v4133, 0.001953125
  %v4144 = vmul.f32 %v4138, 0.001953125
  %4146 = vset.pattern.permute.xlu0 0
  %4147 = vperm.xlu0 %4146, %v4141
  %v4148 = vpop.permute.xlu0 %4147
  %4151 = vset.pattern.permute.xlu0 0
  %4152 = vperm.xlu0 %4151, %v4142
  %v4153 = vpop.permute.xlu0 %4152
  %4156 = vset.pattern.permute.xlu0 0
  %4157 = vperm.xlu0 %4156, %v4143
  %v4158 = vpop.permute.xlu0 %4157
  %4161 = vset.pattern.permute.xlu0 0
  %4162 = vperm.xlu0 %4161, %v4144
  %v4163 = vpop.permute.xlu0 %4162
  %v4165 = vsub.f32 %v3771, %v4148
  %v4166 = vsub.f32 %v3773, %v4148
  %v4167 = vsub.f32 %v3949, %v4148
  %v4168 = vsub.f32 %v3951, %v4148
  %v4169 = vsub.f32 %v3777, %v4153
  %v4170 = vsub.f32 %v3779, %v4153
  %v4171 = vsub.f32 %v3955, %v4153
  %v4172 = vsub.f32 %v3957, %v4153
  %v4173 = vsub.f32 %v3783, %v4158
  %v4174 = vsub.f32 %v3785, %v4158
  %v4175 = vsub.f32 %v3961, %v4158
  %v4176 = vsub.f32 %v3963, %v4158
  %v4177 = vsub.f32 %v3789, %v4163
  %v4178 = vsub.f32 %v3791, %v4163
  %v4179 = vsub.f32 %v3967, %v4163
  %v4180 = vsub.f32 %v3969, %v4163
  %v4181 = vmul.f32 %v4165, %v4165
  %v4182 = vmul.f32 %v4166, %v4166
  %v4183 = vmul.f32 %v4167, %v4167
  %v4184 = vmul.f32 %v4168, %v4168
  %v4185 = vmul.f32 %v4169, %v4169
  %v4186 = vmul.f32 %v4170, %v4170
  %v4187 = vmul.f32 %v4171, %v4171
  %v4188 = vmul.f32 %v4172, %v4172
  %v4189 = vmul.f32 %v4173, %v4173
  %v4190 = vmul.f32 %v4174, %v4174
  %v4191 = vmul.f32 %v4175, %v4175
  %v4192 = vmul.f32 %v4176, %v4176
  %v4193 = vmul.f32 %v4177, %v4177
  %v4194 = vmul.f32 %v4178, %v4178
  %v4195 = vmul.f32 %v4179, %v4179
  %v4196 = vmul.f32 %v4180, %v4180
  %4197 = vmatprep.subr.mxu0 0.0
  %4198 = vmatpush1.msra.mxu0 1.0
  %4199 = vmatprep.subr.mxu0 0.0
  %4200 = vmatpush1.msra.mxu0 1.0
  %4201 = vmatprep.subr.mxu0 0.0
  %4202 = vmatpush1.msra.mxu0 1.0
  %4203 = vmatprep.subr.mxu0 0.0
  %4204 = vmatpush1.msra.mxu0 1.0
  %4205 = vmatprep.subr.mxu0 0.0
  %4206 = vmatpush1.msra.mxu0 1.0
  %4207 = vmatprep.subr.mxu0 0.0
  %4208 = vmatpush1.msra.mxu0 1.0
  %4209 = vmatprep.subr.mxu0 0.0
  %4210 = vmatpush1.msra.mxu0 1.0
  %4211 = vmatprep.subr.mxu0 0.0
  %4212 = vmatpush1.msra.mxu0 1.0
  %4213 = vmatprep.subr.mxu0 0.0
  %4214 = vmatpush1.msra.mxu0 1.0
  %4215 = vmatprep.subr.mxu0 0.0
  %4216 = vmatpush1.msra.mxu0 1.0
  %4217 = vmatprep.subr.mxu0 0.0
  %4218 = vmatpush1.msra.mxu0 1.0
  %4219 = vmatprep.subr.mxu0 0.0
  %4220 = vmatpush1.msra.mxu0 1.0
  %4221 = vmatprep.subr.mxu0 0.0
  %4222 = vmatpush1.msra.mxu0 1.0
  %4223 = vmatprep.subr.mxu0 0.0
  %4224 = vmatpush1.msra.mxu0 1.0
  %4225 = vmatprep.subr.mxu0 0.0
  %4226 = vmatpush1.msra.mxu0 1.0
  %4227 = vmatprep.subr.mxu0 0.0
  %4228 = vmatpush1.msra.mxu0 1.0
  %4229 = vmatprep.subr.mxu0 0.0
  %4230 = vmatpush1.msra.mxu0 1.0
  %4231 = vmatprep.subr.mxu0 0.0
  %4232 = vmatpush1.msra.mxu0 1.0
  %4233 = vmatprep.subr.mxu0 0.0
  %4234 = vmatpush1.msra.mxu0 1.0
  %4235 = vmatprep.subr.mxu0 0.0
  %4236 = vmatpush1.msra.mxu0 1.0
  %4237 = vmatprep.subr.mxu0 0.0
  %4238 = vmatpush1.msra.mxu0 1.0
  %4239 = vmatprep.subr.mxu0 0.0
  %4240 = vmatpush1.msra.mxu0 1.0
  %4241 = vmatprep.subr.mxu0 0.0
  %4242 = vmatpush1.msra.mxu0 1.0
  %4243 = vmatprep.subr.mxu0 0.0
  %4244 = vmatpush1.msra.mxu0 1.0
  %4245 = vmatprep.subr.mxu0 0.0
  %4246 = vmatpush1.msra.mxu0 1.0
  %4247 = vmatprep.subr.mxu0 0.0
  %4248 = vmatpush1.msra.mxu0 1.0
  %4249 = vmatprep.subr.mxu0 0.0
  %4250 = vmatpush1.msra.mxu0 1.0
  %4251 = vmatprep.subr.mxu0 0.0
  %4252 = vmatpush1.msra.mxu0 1.0
  %4253 = vmatprep.subr.mxu0 0.0
  %4254 = vmatpush1.msra.mxu0 1.0
  %4255 = vmatprep.subr.mxu0 0.0
  %4256 = vmatpush1.msra.mxu0 1.0
  %4257 = vmatprep.subr.mxu0 0.0
  %4258 = vmatpush1.msra.mxu0 1.0
  %4259 = vmatprep.subr.mxu0 0.0
  %4260 = vmatpush1.msra.mxu0 1.0
  %4261 = vmatprep.mubr.f32.mxu0 %v4182
  %4262 = vmatmul.mubr.f32.gmra.mrb[0].mxu0 %v4181
  %v4263 = vpop.f32.mrb[0].mxu0
  %v4264 = vadd.f32 0.0, %v4263
  %v4265 = vpop.f32.mrb[0].mxu0
  %4266 = vmatprep.mubr.f32.mxu0 %v4186
  %4267 = vmatmul.mubr.f32.gmra.mrb[0].mxu0 %v4185
  %v4268 = vpop.f32.mrb[0].mxu0
  %v4269 = vadd.f32 0.0, %v4268
  %v4270 = vpop.f32.mrb[0].mxu0
  %4271 = vmatprep.mubr.f32.mxu0 %v4190
  %4272 = vmatmul.mubr.f32.gmra.mrb[0].mxu0 %v4189
  %v4273 = vpop.f32.mrb[0].mxu0
  %v4274 = vadd.f32 0.0, %v4273
  %v4275 = vpop.f32.mrb[0].mxu0
  %4276 = vmatprep.mubr.f32.mxu0 %v4194
  %4277 = vmatmul.mubr.f32.gmra.mrb[0].mxu0 %v4193
  %v4278 = vpop.f32.mrb[0].mxu0
  %v4279 = vadd.f32 0.0, %v4278
  %v4280 = vpop.f32.mrb[0].mxu0
  %4281 = vdwg.mxu0
  %4282 = vmatprep.subr.mxu0 0.0
  %4283 = vmatpush1.msra.mxu0 1.0
  %4284 = vmatprep.subr.mxu0 0.0
  %4285 = vmatpush1.msra.mxu0 1.0
  %4286 = vmatprep.subr.mxu0 0.0
  %4287 = vmatpush1.msra.mxu0 1.0
  %4288 = vmatprep.subr.mxu0 0.0
  %4289 = vmatpush1.msra.mxu0 1.0
  %4290 = vmatprep.subr.mxu0 0.0
  %4291 = vmatpush1.msra.mxu0 1.0
  %4292 = vmatprep.subr.mxu0 0.0
  %4293 = vmatpush1.msra.mxu0 1.0
  %4294 = vmatprep.subr.mxu0 0.0
  %4295 = vmatpush1.msra.mxu0 1.0
  %4296 = vmatprep.subr.mxu0 0.0
  %4297 = vmatpush1.msra.mxu0 1.0
  %4298 = vmatprep.subr.mxu0 0.0
  %4299 = vmatpush1.msra.mxu0 1.0
  %4300 = vmatprep.subr.mxu0 0.0
  %4301 = vmatpush1.msra.mxu0 1.0
  %4302 = vmatprep.subr.mxu0 0.0
  %4303 = vmatpush1.msra.mxu0 1.0
  %4304 = vmatprep.subr.mxu0 0.0
  %4305 = vmatpush1.msra.mxu0 1.0
  %4306 = vmatprep.subr.mxu0 0.0
  %4307 = vmatpush1.msra.mxu0 1.0
  %4308 = vmatprep.subr.mxu0 0.0
  %4309 = vmatpush1.msra.mxu0 1.0
  %4310 = vmatprep.subr.mxu0 0.0
  %4311 = vmatpush1.msra.mxu0 1.0
  %4312 = vmatprep.subr.mxu0 0.0
  %4313 = vmatpush1.msra.mxu0 1.0
  %4314 = vmatprep.subr.mxu0 0.0
  %4315 = vmatpush1.msra.mxu0 1.0
  %4316 = vmatprep.subr.mxu0 0.0
  %4317 = vmatpush1.msra.mxu0 1.0
  %4318 = vmatprep.subr.mxu0 0.0
  %4319 = vmatpush1.msra.mxu0 1.0
  %4320 = vmatprep.subr.mxu0 0.0
  %4321 = vmatpush1.msra.mxu0 1.0
  %4322 = vmatprep.subr.mxu0 0.0
  %4323 = vmatpush1.msra.mxu0 1.0
  %4324 = vmatprep.subr.mxu0 0.0
  %4325 = vmatpush1.msra.mxu0 1.0
  %4326 = vmatprep.subr.mxu0 0.0
  %4327 = vmatpush1.msra.mxu0 1.0
  %4328 = vmatprep.subr.mxu0 0.0
  %4329 = vmatpush1.msra.mxu0 1.0
  %4330 = vmatprep.subr.mxu0 0.0
  %4331 = vmatpush1.msra.mxu0 1.0
  %4332 = vmatprep.subr.mxu0 0.0
  %4333 = vmatpush1.msra.mxu0 1.0
  %4334 = vmatprep.subr.mxu0 0.0
  %4335 = vmatpush1.msra.mxu0 1.0
  %4336 = vmatprep.subr.mxu0 0.0
  %4337 = vmatpush1.msra.mxu0 1.0
  %4338 = vmatprep.subr.mxu0 0.0
  %4339 = vmatpush1.msra.mxu0 1.0
  %4340 = vmatprep.subr.mxu0 0.0
  %4341 = vmatpush1.msra.mxu0 1.0
  %4342 = vmatprep.subr.mxu0 0.0
  %4343 = vmatpush1.msra.mxu0 1.0
  %4344 = vmatprep.subr.mxu0 0.0
  %4345 = vmatpush1.msra.mxu0 1.0
  %4346 = vmatprep.mubr.f32.mxu0 %v4184
  %4347 = vmatmul.mubr.f32.gmra.mrb[0].mxu0 %v4183
  %v4348 = vpop.f32.mrb[0].mxu0
  %v4349 = vadd.f32 %v4264, %v4348
  %v4350 = vpop.f32.mrb[0].mxu0
  %4351 = vmatprep.mubr.f32.mxu0 %v4188
  %4352 = vmatmul.mubr.f32.gmra.mrb[0].mxu0 %v4187
  %v4353 = vpop.f32.mrb[0].mxu0
  %v4354 = vadd.f32 %v4269, %v4353
  %v4355 = vpop.f32.mrb[0].mxu0
  %4356 = vmatprep.mubr.f32.mxu0 %v4192
  %4357 = vmatmul.mubr.f32.gmra.mrb[0].mxu0 %v4191
  %v4358 = vpop.f32.mrb[0].mxu0
  %v4359 = vadd.f32 %v4274, %v4358
  %v4360 = vpop.f32.mrb[0].mxu0
  %4361 = vmatprep.mubr.f32.mxu0 %v4196
  %4362 = vmatmul.mubr.f32.gmra.mrb[0].mxu0 %v4195
  %v4363 = vpop.f32.mrb[0].mxu0
  %v4364 = vadd.f32 %v4279, %v4363
  %v4365 = vpop.f32.mrb[0].mxu0
  %4366 = vdwg.mxu0
  %v4367 = vmul.f32 %v4349, 0.001953125
  %v4368 = vmul.f32 %v4354, 0.001953125
  %v4369 = vmul.f32 %v4359, 0.001953125
  %v4370 = vmul.f32 %v4364, 0.001953125
  %v4371 = vadd.f32 %v4367, 1e-05
  %v4372 = vadd.f32 %v4368, 1e-05
  %v4373 = vadd.f32 %v4369, 1e-05
  %v4374 = vadd.f32 %v4370, 1e-05
  %v4375 = vrsqrt.pop %v4371
  %v4376 = vrsqrt.pop %v4372
  %v4377 = vrsqrt.pop %v4373
  %v4378 = vrsqrt.pop %v4374
  %4379 = vrot.lane.b32.xlu0 %v3579, 127
  %v4380 = vpop.permute.xlu0 %4379
  %4381 = vrot.lane.b32.xlu0 %v3580, 127
  %v4382 = vpop.permute.xlu0 %4381
  %4383 = vrot.lane.b32.xlu0 %v3581, 127
  %v4384 = vpop.permute.xlu0 %4383
  %4385 = vrot.lane.b32.xlu0 %v3582, 127
  %v4386 = vpop.permute.xlu0 %4385
  %v4391 = vmul.f32 %v4375, %v4380
  %v4392 = vmul.f32 %v4376, %v4382
  %v4393 = vmul.f32 %v4377, %v4384
  %v4394 = vmul.f32 %v4378, %v4386
  %4396 = vset.pattern.permute.xlu0 0
  %4397 = vperm.xlu0 %4396, %v4391
  %v4398 = vpop.permute.xlu0 %4397
  %4401 = vset.pattern.permute.xlu0 0
  %4402 = vperm.xlu0 %4401, %v4392
  %v4403 = vpop.permute.xlu0 %4402
  %4406 = vset.pattern.permute.xlu0 0
  %4407 = vperm.xlu0 %4406, %v4393
  %v4408 = vpop.permute.xlu0 %4407
  %4411 = vset.pattern.permute.xlu0 0
  %4412 = vperm.xlu0 %4411, %v4394
  %v4413 = vpop.permute.xlu0 %4412
  %v4415 = vmul.f32 %v4165, %v4398
  %v4416 = vmul.f32 %v4166, %v4398
  %v4417 = vmul.f32 %v4167, %v4398
  %v4418 = vmul.f32 %v4168, %v4398
  %v4419 = vmul.f32 %v4169, %v4403
  %v4420 = vmul.f32 %v4170, %v4403
  %v4421 = vmul.f32 %v4171, %v4403
  %v4422 = vmul.f32 %v4172, %v4403
  %v4423 = vmul.f32 %v4173, %v4408
  %v4424 = vmul.f32 %v4174, %v4408
  %v4425 = vmul.f32 %v4175, %v4408
  %v4426 = vmul.f32 %v4176, %v4408
  %v4427 = vmul.f32 %v4177, %v4413
  %v4428 = vmul.f32 %v4178, %v4413
  %v4429 = vmul.f32 %v4179, %v4413
  %v4430 = vmul.f32 %v4180, %v4413
  %4431 = vset.pattern.permute.xlu0 2
  %4432 = vperm.xlu0 %4431, %v3579
  %v4433 = vpop.permute.xlu0 %4432
  %4435 = vset.pattern.permute.xlu0 2
  %4436 = vperm.xlu0 %4435, %v3580
  %v4437 = vpop.permute.xlu0 %4436
  %4439 = vset.pattern.permute.xlu0 2
  %4440 = vperm.xlu0 %4439, %v3581
  %v4441 = vpop.permute.xlu0 %4440
  %4443 = vset.pattern.permute.xlu0 2
  %4444 = vperm.xlu0 %4443, %v3582
  %v4445 = vpop.permute.xlu0 %4444
  %v4447 = vadd.f32 %v4415, %v4433
  %v4448 = vadd.f32 %v4416, %v4433
  %v4449 = vadd.f32 %v4417, %v4433
  %v4450 = vadd.f32 %v4418, %v4433
  %v4451 = vadd.f32 %v4419, %v4437
  %v4452 = vadd.f32 %v4420, %v4437
  %v4453 = vadd.f32 %v4421, %v4437
  %v4454 = vadd.f32 %v4422, %v4437
  %v4455 = vadd.f32 %v4423, %v4441
  %v4456 = vadd.f32 %v4424, %v4441
  %v4457 = vadd.f32 %v4425, %v4441
  %v4458 = vadd.f32 %v4426, %v4441
  %v4459 = vadd.f32 %v4427, %v4445
  %v4460 = vadd.f32 %v4428, %v4445
  %v4461 = vadd.f32 %v4429, %v4445
  %v4462 = vadd.f32 %v4430, %v4445
  %v4463 = vmax.f32 %v4447, 0.0
  %v4464 = vmax.f32 %v4448, 0.0
  %v4465 = vmax.f32 %v4449, 0.0
  %v4466 = vmax.f32 %v4450, 0.0
  %v4467 = vmax.f32 %v4451, 0.0
  %v4468 = vmax.f32 %v4452, 0.0
  %v4469 = vmax.f32 %v4453, 0.0
  %v4470 = vmax.f32 %v4454, 0.0
  %v4471 = vmax.f32 %v4455, 0.0
  %v4472 = vmax.f32 %v4456, 0.0
  %v4473 = vmax.f32 %v4457, 0.0
  %v4474 = vmax.f32 %v4458, 0.0
  %v4475 = vmax.f32 %v4459, 0.0
  %v4476 = vmax.f32 %v4460, 0.0
  %v4477 = vmax.f32 %v4461, 0.0
  %v4478 = vmax.f32 %v4462, 0.0
  %4479 = vrot.lane.b32.xlu0 %v4463, 17
  %v4480 = vpop.permute.xlu0 %4479
  %4481 = vrot.lane.b32.xlu0 %v4467, 17
  %v4482 = vpop.permute.xlu0 %4481
  %4483 = vrot.lane.b32.xlu0 %v4471, 17
  %v4484 = vpop.permute.xlu0 %4483
  %4485 = vrot.lane.b32.xlu0 %v4475, 17
  %v4486 = vpop.permute.xlu0 %4485
  %4487 = vrot.lane.b32.xlu0 %v4464, 17
  %v4488 = vpop.permute.xlu0 %4487
  %4489 = vrot.lane.b32.xlu0 %v4468, 17
  %v4490 = vpop.permute.xlu0 %4489
  %4491 = vrot.lane.b32.xlu0 %v4472, 17
  %v4492 = vpop.permute.xlu0 %4491
  %4493 = vrot.lane.b32.xlu0 %v4476, 17
  %v4494 = vpop.permute.xlu0 %4493
  %4495 = vrot.lane.b32.xlu0 %v4465, 17
  %v4496 = vpop.permute.xlu0 %4495
  %4497 = vrot.lane.b32.xlu0 %v4469, 17
  %v4498 = vpop.permute.xlu0 %4497
  %4499 = vrot.lane.b32.xlu0 %v4473, 17
  %v4500 = vpop.permute.xlu0 %4499
  %4501 = vrot.lane.b32.xlu0 %v4477, 17
  %v4502 = vpop.permute.xlu0 %4501
  %4503 = vrot.lane.b32.xlu0 %v4466, 17
  %v4504 = vpop.permute.xlu0 %4503
  %4505 = vrot.lane.b32.xlu0 %v4470, 17
  %v4506 = vpop.permute.xlu0 %4505
  %4507 = vrot.lane.b32.xlu0 %v4474, 17
  %v4508 = vpop.permute.xlu0 %4507
  %4509 = vrot.lane.b32.xlu0 %v4478, 17
  %v4510 = vpop.permute.xlu0 %4509
  %v4511 = vsel %vm98, %v4496, %v4504
  %v4512 = vsel %vm98, %v4498, %v4506
  %v4513 = vsel %vm98, %v4500, %v4508
  %v4514 = vsel %vm98, %v4502, %v4510
  %v4515 = vsel %vm98, %v4488, %v4496
  %v4516 = vsel %vm98, %v4490, %v4498
  %v4517 = vsel %vm98, %v4492, %v4500
  %v4518 = vsel %vm98, %v4494, %v4502
  %v4519 = vsel %vm98, %v4480, %v4488
  %v4520 = vsel %vm98, %v4482, %v4490
  %v4521 = vsel %vm98, %v4484, %v4492
  %v4522 = vsel %vm98, %v4486, %v4494
  %v4523 = vsel %vm98, %v4504, %v4480
  %v4524 = vsel %vm98, %v4506, %v4482
  %v4525 = vsel %vm98, %v4508, %v4484
  %v4526 = vsel %vm98, %v4510, %v4486
  %v4527 = vmul.f32 %v4523, %v118
  %v4528 = vmul.f32 %v4519, %v122
  %v4529 = vmul.f32 %v4515, %v126
  %v4530 = vmul.f32 %v4511, %v130
  %v4531 = vmul.f32 %v4524, %v118
  %v4532 = vmul.f32 %v4520, %v122
  %v4533 = vmul.f32 %v4516, %v126
  %v4534 = vmul.f32 %v4512, %v130
  %v4535 = vmul.f32 %v4525, %v118
  %v4536 = vmul.f32 %v4521, %v122
  %v4537 = vmul.f32 %v4517, %v126
  %v4538 = vmul.f32 %v4513, %v130
  %v4539 = vmul.f32 %v4526, %v118
  %v4540 = vmul.f32 %v4522, %v122
  %v4541 = vmul.f32 %v4518, %v126
  %v4542 = vmul.f32 %v4514, %v130
  %4543 = vrot.lane.b32.xlu0 %v4463, 16
  %v4544 = vpop.permute.xlu0 %4543
  %4545 = vrot.lane.b32.xlu0 %v4467, 16
  %v4546 = vpop.permute.xlu0 %4545
  %4547 = vrot.lane.b32.xlu0 %v4471, 16
  %v4548 = vpop.permute.xlu0 %4547
  %4549 = vrot.lane.b32.xlu0 %v4475, 16
  %v4550 = vpop.permute.xlu0 %4549
  %4551 = vrot.lane.b32.xlu0 %v4464, 16
  %v4552 = vpop.permute.xlu0 %4551
  %4553 = vrot.lane.b32.xlu0 %v4468, 16
  %v4554 = vpop.permute.xlu0 %4553
  %4555 = vrot.lane.b32.xlu0 %v4472, 16
  %v4556 = vpop.permute.xlu0 %4555
  %4557 = vrot.lane.b32.xlu0 %v4476, 16
  %v4558 = vpop.permute.xlu0 %4557
  %4559 = vrot.lane.b32.xlu0 %v4465, 16
  %v4560 = vpop.permute.xlu0 %4559
  %4561 = vrot.lane.b32.xlu0 %v4469, 16
  %v4562 = vpop.permute.xlu0 %4561
  %4563 = vrot.lane.b32.xlu0 %v4473, 16
  %v4564 = vpop.permute.xlu0 %4563
  %4565 = vrot.lane.b32.xlu0 %v4477, 16
  %v4566 = vpop.permute.xlu0 %4565
  %4567 = vrot.lane.b32.xlu0 %v4466, 16
  %v4568 = vpop.permute.xlu0 %4567
  %4569 = vrot.lane.b32.xlu0 %v4470, 16
  %v4570 = vpop.permute.xlu0 %4569
  %4571 = vrot.lane.b32.xlu0 %v4474, 16
  %v4572 = vpop.permute.xlu0 %4571
  %4573 = vrot.lane.b32.xlu0 %v4478, 16
  %v4574 = vpop.permute.xlu0 %4573
  %v4575 = vsel %vm179, %v4560, %v4568
  %v4576 = vsel %vm179, %v4562, %v4570
  %v4577 = vsel %vm179, %v4564, %v4572
  %v4578 = vsel %vm179, %v4566, %v4574
  %v4579 = vsel %vm179, %v4552, %v4560
  %v4580 = vsel %vm179, %v4554, %v4562
  %v4581 = vsel %vm179, %v4556, %v4564
  %v4582 = vsel %vm179, %v4558, %v4566
  %v4583 = vsel %vm179, %v4544, %v4552
  %v4584 = vsel %vm179, %v4546, %v4554
  %v4585 = vsel %vm179, %v4548, %v4556
  %v4586 = vsel %vm179, %v4550, %v4558
  %v4587 = vsel %vm179, %v4568, %v4544
  %v4588 = vsel %vm179, %v4570, %v4546
  %v4589 = vsel %vm179, %v4572, %v4548
  %v4590 = vsel %vm179, %v4574, %v4550
  %v4591 = vmul.f32 %v4587, %v199
  %v4592 = vmul.f32 %v4583, %v203
  %v4593 = vmul.f32 %v4579, %v207
  %v4594 = vmul.f32 %v4575, %v211
  %v4595 = vmul.f32 %v4588, %v199
  %v4596 = vmul.f32 %v4584, %v203
  %v4597 = vmul.f32 %v4580, %v207
  %v4598 = vmul.f32 %v4576, %v211
  %v4599 = vmul.f32 %v4589, %v199
  %v4600 = vmul.f32 %v4585, %v203
  %v4601 = vmul.f32 %v4581, %v207
  %v4602 = vmul.f32 %v4577, %v211
  %v4603 = vmul.f32 %v4590, %v199
  %v4604 = vmul.f32 %v4586, %v203
  %v4605 = vmul.f32 %v4582, %v207
  %v4606 = vmul.f32 %v4578, %v211
  %4607 = vrot.lane.b32.xlu0 %v4463, 15
  %v4608 = vpop.permute.xlu0 %4607
  %4609 = vrot.lane.b32.xlu0 %v4467, 15
  %v4610 = vpop.permute.xlu0 %4609
  %4611 = vrot.lane.b32.xlu0 %v4471, 15
  %v4612 = vpop.permute.xlu0 %4611
  %4613 = vrot.lane.b32.xlu0 %v4475, 15
  %v4614 = vpop.permute.xlu0 %4613
  %4615 = vrot.lane.b32.xlu0 %v4464, 15
  %v4616 = vpop.permute.xlu0 %4615
  %4617 = vrot.lane.b32.xlu0 %v4468, 15
  %v4618 = vpop.permute.xlu0 %4617
  %4619 = vrot.lane.b32.xlu0 %v4472, 15
  %v4620 = vpop.permute.xlu0 %4619
  %4621 = vrot.lane.b32.xlu0 %v4476, 15
  %v4622 = vpop.permute.xlu0 %4621
  %4623 = vrot.lane.b32.xlu0 %v4465, 15
  %v4624 = vpop.permute.xlu0 %4623
  %4625 = vrot.lane.b32.xlu0 %v4469, 15
  %v4626 = vpop.permute.xlu0 %4625
  %4627 = vrot.lane.b32.xlu0 %v4473, 15
  %v4628 = vpop.permute.xlu0 %4627
  %4629 = vrot.lane.b32.xlu0 %v4477, 15
  %v4630 = vpop.permute.xlu0 %4629
  %4631 = vrot.lane.b32.xlu0 %v4466, 15
  %v4632 = vpop.permute.xlu0 %4631
  %4633 = vrot.lane.b32.xlu0 %v4470, 15
  %v4634 = vpop.permute.xlu0 %4633
  %4635 = vrot.lane.b32.xlu0 %v4474, 15
  %v4636 = vpop.permute.xlu0 %4635
  %4637 = vrot.lane.b32.xlu0 %v4478, 15
  %v4638 = vpop.permute.xlu0 %4637
  %v4639 = vsel %vm260, %v4624, %v4632
  %v4640 = vsel %vm260, %v4626, %v4634
  %v4641 = vsel %vm260, %v4628, %v4636
  %v4642 = vsel %vm260, %v4630, %v4638
  %v4643 = vsel %vm260, %v4616, %v4624
  %v4644 = vsel %vm260, %v4618, %v4626
  %v4645 = vsel %vm260, %v4620, %v4628
  %v4646 = vsel %vm260, %v4622, %v4630
  %v4647 = vsel %vm260, %v4608, %v4616
  %v4648 = vsel %vm260, %v4610, %v4618
  %v4649 = vsel %vm260, %v4612, %v4620
  %v4650 = vsel %vm260, %v4614, %v4622
  %v4651 = vsel %vm260, %v4632, %v4608
  %v4652 = vsel %vm260, %v4634, %v4610
  %v4653 = vsel %vm260, %v4636, %v4612
  %v4654 = vsel %vm260, %v4638, %v4614
  %v4655 = vmul.f32 %v4651, %v280
  %v4656 = vmul.f32 %v4647, %v284
  %v4657 = vmul.f32 %v4643, %v288
  %v4658 = vmul.f32 %v4639, %v292
  %v4659 = vmul.f32 %v4652, %v280
  %v4660 = vmul.f32 %v4648, %v284
  %v4661 = vmul.f32 %v4644, %v288
  %v4662 = vmul.f32 %v4640, %v292
  %v4663 = vmul.f32 %v4653, %v280
  %v4664 = vmul.f32 %v4649, %v284
  %v4665 = vmul.f32 %v4645, %v288
  %v4666 = vmul.f32 %v4641, %v292
  %v4667 = vmul.f32 %v4654, %v280
  %v4668 = vmul.f32 %v4650, %v284
  %v4669 = vmul.f32 %v4646, %v288
  %v4670 = vmul.f32 %v4642, %v292
  %4671 = vrot.lane.b32.xlu0 %v4463, 1
  %v4672 = vpop.permute.xlu0 %4671
  %4673 = vrot.lane.b32.xlu0 %v4467, 1
  %v4674 = vpop.permute.xlu0 %4673
  %4675 = vrot.lane.b32.xlu0 %v4471, 1
  %v4676 = vpop.permute.xlu0 %4675
  %4677 = vrot.lane.b32.xlu0 %v4475, 1
  %v4678 = vpop.permute.xlu0 %4677
  %4679 = vrot.lane.b32.xlu0 %v4464, 1
  %v4680 = vpop.permute.xlu0 %4679
  %4681 = vrot.lane.b32.xlu0 %v4468, 1
  %v4682 = vpop.permute.xlu0 %4681
  %4683 = vrot.lane.b32.xlu0 %v4472, 1
  %v4684 = vpop.permute.xlu0 %4683
  %4685 = vrot.lane.b32.xlu0 %v4476, 1
  %v4686 = vpop.permute.xlu0 %4685
  %4687 = vrot.lane.b32.xlu0 %v4465, 1
  %v4688 = vpop.permute.xlu0 %4687
  %4689 = vrot.lane.b32.xlu0 %v4469, 1
  %v4690 = vpop.permute.xlu0 %4689
  %4691 = vrot.lane.b32.xlu0 %v4473, 1
  %v4692 = vpop.permute.xlu0 %4691
  %4693 = vrot.lane.b32.xlu0 %v4477, 1
  %v4694 = vpop.permute.xlu0 %4693
  %4695 = vrot.lane.b32.xlu0 %v4466, 1
  %v4696 = vpop.permute.xlu0 %4695
  %4697 = vrot.lane.b32.xlu0 %v4470, 1
  %v4698 = vpop.permute.xlu0 %4697
  %4699 = vrot.lane.b32.xlu0 %v4474, 1
  %v4700 = vpop.permute.xlu0 %4699
  %4701 = vrot.lane.b32.xlu0 %v4478, 1
  %v4702 = vpop.permute.xlu0 %4701
  %v4703 = vsel %vm341, %v4688, %v4696
  %v4704 = vsel %vm341, %v4690, %v4698
  %v4705 = vsel %vm341, %v4692, %v4700
  %v4706 = vsel %vm341, %v4694, %v4702
  %v4707 = vsel %vm341, %v4680, %v4688
  %v4708 = vsel %vm341, %v4682, %v4690
  %v4709 = vsel %vm341, %v4684, %v4692
  %v4710 = vsel %vm341, %v4686, %v4694
  %v4711 = vsel %vm341, %v4672, %v4680
  %v4712 = vsel %vm341, %v4674, %v4682
  %v4713 = vsel %vm341, %v4676, %v4684
  %v4714 = vsel %vm341, %v4678, %v4686
  %v4715 = vsel %vm341, %v4696, %v4672
  %v4716 = vsel %vm341, %v4698, %v4674
  %v4717 = vsel %vm341, %v4700, %v4676
  %v4718 = vsel %vm341, %v4702, %v4678
  %v4719 = vmul.f32 %v4715, %v361
  %v4720 = vmul.f32 %v4711, %v365
  %v4721 = vmul.f32 %v4707, %v369
  %v4722 = vmul.f32 %v4703, %v373
  %v4723 = vmul.f32 %v4716, %v361
  %v4724 = vmul.f32 %v4712, %v365
  %v4725 = vmul.f32 %v4708, %v369
  %v4726 = vmul.f32 %v4704, %v373
  %v4727 = vmul.f32 %v4717, %v361
  %v4728 = vmul.f32 %v4713, %v365
  %v4729 = vmul.f32 %v4709, %v369
  %v4730 = vmul.f32 %v4705, %v373
  %v4731 = vmul.f32 %v4718, %v361
  %v4732 = vmul.f32 %v4714, %v365
  %v4733 = vmul.f32 %v4710, %v369
  %v4734 = vmul.f32 %v4706, %v373
  %4735 = vrot.lane.b32.xlu0 %v4463, 127
  %v4736 = vpop.permute.xlu0 %4735
  %4737 = vrot.lane.b32.xlu0 %v4467, 127
  %v4738 = vpop.permute.xlu0 %4737
  %4739 = vrot.lane.b32.xlu0 %v4471, 127
  %v4740 = vpop.permute.xlu0 %4739
  %4741 = vrot.lane.b32.xlu0 %v4475, 127
  %v4742 = vpop.permute.xlu0 %4741
  %4743 = vrot.lane.b32.xlu0 %v4464, 127
  %v4744 = vpop.permute.xlu0 %4743
  %4745 = vrot.lane.b32.xlu0 %v4468, 127
  %v4746 = vpop.permute.xlu0 %4745
  %4747 = vrot.lane.b32.xlu0 %v4472, 127
  %v4748 = vpop.permute.xlu0 %4747
  %4749 = vrot.lane.b32.xlu0 %v4476, 127
  %v4750 = vpop.permute.xlu0 %4749
  %4751 = vrot.lane.b32.xlu0 %v4465, 127
  %v4752 = vpop.permute.xlu0 %4751
  %4753 = vrot.lane.b32.xlu0 %v4469, 127
  %v4754 = vpop.permute.xlu0 %4753
  %4755 = vrot.lane.b32.xlu0 %v4473, 127
  %v4756 = vpop.permute.xlu0 %4755
  %4757 = vrot.lane.b32.xlu0 %v4477, 127
  %v4758 = vpop.permute.xlu0 %4757
  %4759 = vrot.lane.b32.xlu0 %v4466, 127
  %v4760 = vpop.permute.xlu0 %4759
  %4761 = vrot.lane.b32.xlu0 %v4470, 127
  %v4762 = vpop.permute.xlu0 %4761
  %4763 = vrot.lane.b32.xlu0 %v4474, 127
  %v4764 = vpop.permute.xlu0 %4763
  %4765 = vrot.lane.b32.xlu0 %v4478, 127
  %v4766 = vpop.permute.xlu0 %4765
  %v4767 = vsel %vm422, %v4752, %v4760
  %v4768 = vsel %vm422, %v4754, %v4762
  %v4769 = vsel %vm422, %v4756, %v4764
  %v4770 = vsel %vm422, %v4758, %v4766
  %v4771 = vsel %vm422, %v4744, %v4752
  %v4772 = vsel %vm422, %v4746, %v4754
  %v4773 = vsel %vm422, %v4748, %v4756
  %v4774 = vsel %vm422, %v4750, %v4758
  %v4775 = vsel %vm422, %v4736, %v4744
  %v4776 = vsel %vm422, %v4738, %v4746
  %v4777 = vsel %vm422, %v4740, %v4748
  %v4778 = vsel %vm422, %v4742, %v4750
  %v4779 = vsel %vm422, %v4760, %v4736
  %v4780 = vsel %vm422, %v4762, %v4738
  %v4781 = vsel %vm422, %v4764, %v4740
  %v4782 = vsel %vm422, %v4766, %v4742
  %v4783 = vmul.f32 %v4775, %v442
  %v4784 = vmul.f32 %v4771, %v446
  %v4785 = vmul.f32 %v4767, %v450
  %v4786 = vmul.f32 %v4779, %v454
  %v4787 = vmul.f32 %v4776, %v442
  %v4788 = vmul.f32 %v4772, %v446
  %v4789 = vmul.f32 %v4768, %v450
  %v4790 = vmul.f32 %v4780, %v454
  %v4791 = vmul.f32 %v4777, %v442
  %v4792 = vmul.f32 %v4773, %v446
  %v4793 = vmul.f32 %v4769, %v450
  %v4794 = vmul.f32 %v4781, %v454
  %v4795 = vmul.f32 %v4778, %v442
  %v4796 = vmul.f32 %v4774, %v446
  %v4797 = vmul.f32 %v4770, %v450
  %v4798 = vmul.f32 %v4782, %v454
  %4799 = vrot.lane.b32.xlu0 %v4463, 113
  %v4800 = vpop.permute.xlu0 %4799
  %4801 = vrot.lane.b32.xlu0 %v4467, 113
  %v4802 = vpop.permute.xlu0 %4801
  %4803 = vrot.lane.b32.xlu0 %v4471, 113
  %v4804 = vpop.permute.xlu0 %4803
  %4805 = vrot.lane.b32.xlu0 %v4475, 113
  %v4806 = vpop.permute.xlu0 %4805
  %4807 = vrot.lane.b32.xlu0 %v4464, 113
  %v4808 = vpop.permute.xlu0 %4807
  %4809 = vrot.lane.b32.xlu0 %v4468, 113
  %v4810 = vpop.permute.xlu0 %4809
  %4811 = vrot.lane.b32.xlu0 %v4472, 113
  %v4812 = vpop.permute.xlu0 %4811
  %4813 = vrot.lane.b32.xlu0 %v4476, 113
  %v4814 = vpop.permute.xlu0 %4813
  %4815 = vrot.lane.b32.xlu0 %v4465, 113
  %v4816 = vpop.permute.xlu0 %4815
  %4817 = vrot.lane.b32.xlu0 %v4469, 113
  %v4818 = vpop.permute.xlu0 %4817
  %4819 = vrot.lane.b32.xlu0 %v4473, 113
  %v4820 = vpop.permute.xlu0 %4819
  %4821 = vrot.lane.b32.xlu0 %v4477, 113
  %v4822 = vpop.permute.xlu0 %4821
  %4823 = vrot.lane.b32.xlu0 %v4466, 113
  %v4824 = vpop.permute.xlu0 %4823
  %4825 = vrot.lane.b32.xlu0 %v4470, 113
  %v4826 = vpop.permute.xlu0 %4825
  %4827 = vrot.lane.b32.xlu0 %v4474, 113
  %v4828 = vpop.permute.xlu0 %4827
  %4829 = vrot.lane.b32.xlu0 %v4478, 113
  %v4830 = vpop.permute.xlu0 %4829
  %v4831 = vsel %vm503, %v4816, %v4824
  %v4832 = vsel %vm503, %v4818, %v4826
  %v4833 = vsel %vm503, %v4820, %v4828
  %v4834 = vsel %vm503, %v4822, %v4830
  %v4835 = vsel %vm503, %v4808, %v4816
  %v4836 = vsel %vm503, %v4810, %v4818
  %v4837 = vsel %vm503, %v4812, %v4820
  %v4838 = vsel %vm503, %v4814, %v4822
  %v4839 = vsel %vm503, %v4800, %v4808
  %v4840 = vsel %vm503, %v4802, %v4810
  %v4841 = vsel %vm503, %v4804, %v4812
  %v4842 = vsel %vm503, %v4806, %v4814
  %v4843 = vsel %vm503, %v4824, %v4800
  %v4844 = vsel %vm503, %v4826, %v4802
  %v4845 = vsel %vm503, %v4828, %v4804
  %v4846 = vsel %vm503, %v4830, %v4806
  %v4847 = vmul.f32 %v4839, %v523
  %v4848 = vmul.f32 %v4835, %v527
  %v4849 = vmul.f32 %v4831, %v531
  %v4850 = vmul.f32 %v4843, %v535
  %v4851 = vmul.f32 %v4840, %v523
  %v4852 = vmul.f32 %v4836, %v527
  %v4853 = vmul.f32 %v4832, %v531
  %v4854 = vmul.f32 %v4844, %v535
  %v4855 = vmul.f32 %v4841, %v523
  %v4856 = vmul.f32 %v4837, %v527
  %v4857 = vmul.f32 %v4833, %v531
  %v4858 = vmul.f32 %v4845, %v535
  %v4859 = vmul.f32 %v4842, %v523
  %v4860 = vmul.f32 %v4838, %v527
  %v4861 = vmul.f32 %v4834, %v531
  %v4862 = vmul.f32 %v4846, %v535
  %4863 = vrot.lane.b32.xlu0 %v4463, 112
  %v4864 = vpop.permute.xlu0 %4863
  %4865 = vrot.lane.b32.xlu0 %v4467, 112
  %v4866 = vpop.permute.xlu0 %4865
  %4867 = vrot.lane.b32.xlu0 %v4471, 112
  %v4868 = vpop.permute.xlu0 %4867
  %4869 = vrot.lane.b32.xlu0 %v4475, 112
  %v4870 = vpop.permute.xlu0 %4869
  %4871 = vrot.lane.b32.xlu0 %v4464, 112
  %v4872 = vpop.permute.xlu0 %4871
  %4873 = vrot.lane.b32.xlu0 %v4468, 112
  %v4874 = vpop.permute.xlu0 %4873
  %4875 = vrot.lane.b32.xlu0 %v4472, 112
  %v4876 = vpop.permute.xlu0 %4875
  %4877 = vrot.lane.b32.xlu0 %v4476, 112
  %v4878 = vpop.permute.xlu0 %4877
  %4879 = vrot.lane.b32.xlu0 %v4465, 112
  %v4880 = vpop.permute.xlu0 %4879
  %4881 = vrot.lane.b32.xlu0 %v4469, 112
  %v4882 = vpop.permute.xlu0 %4881
  %4883 = vrot.lane.b32.xlu0 %v4473, 112
  %v4884 = vpop.permute.xlu0 %4883
  %4885 = vrot.lane.b32.xlu0 %v4477, 112
  %v4886 = vpop.permute.xlu0 %4885
  %4887 = vrot.lane.b32.xlu0 %v4466, 112
  %v4888 = vpop.permute.xlu0 %4887
  %4889 = vrot.lane.b32.xlu0 %v4470, 112
  %v4890 = vpop.permute.xlu0 %4889
  %4891 = vrot.lane.b32.xlu0 %v4474, 112
  %v4892 = vpop.permute.xlu0 %4891
  %4893 = vrot.lane.b32.xlu0 %v4478, 112
  %v4894 = vpop.permute.xlu0 %4893
  %v4895 = vsel %vm584, %v4880, %v4888
  %v4896 = vsel %vm584, %v4882, %v4890
  %v4897 = vsel %vm584, %v4884, %v4892
  %v4898 = vsel %vm584, %v4886, %v4894
  %v4899 = vsel %vm584, %v4872, %v4880
  %v4900 = vsel %vm584, %v4874, %v4882
  %v4901 = vsel %vm584, %v4876, %v4884
  %v4902 = vsel %vm584, %v4878, %v4886
  %v4903 = vsel %vm584, %v4864, %v4872
  %v4904 = vsel %vm584, %v4866, %v4874
  %v4905 = vsel %vm584, %v4868, %v4876
  %v4906 = vsel %vm584, %v4870, %v4878
  %v4907 = vsel %vm584, %v4888, %v4864
  %v4908 = vsel %vm584, %v4890, %v4866
  %v4909 = vsel %vm584, %v4892, %v4868
  %v4910 = vsel %vm584, %v4894, %v4870
  %v4911 = vmul.f32 %v4903, %v604
  %v4912 = vmul.f32 %v4899, %v608
  %v4913 = vmul.f32 %v4895, %v612
  %v4914 = vmul.f32 %v4907, %v616
  %v4915 = vmul.f32 %v4904, %v604
  %v4916 = vmul.f32 %v4900, %v608
  %v4917 = vmul.f32 %v4896, %v612
  %v4918 = vmul.f32 %v4908, %v616
  %v4919 = vmul.f32 %v4905, %v604
  %v4920 = vmul.f32 %v4901, %v608
  %v4921 = vmul.f32 %v4897, %v612
  %v4922 = vmul.f32 %v4909, %v616
  %v4923 = vmul.f32 %v4906, %v604
  %v4924 = vmul.f32 %v4902, %v608
  %v4925 = vmul.f32 %v4898, %v612
  %v4926 = vmul.f32 %v4910, %v616
  %4927 = vrot.lane.b32.xlu0 %v4463, 111
  %v4928 = vpop.permute.xlu0 %4927
  %4929 = vrot.lane.b32.xlu0 %v4467, 111
  %v4930 = vpop.permute.xlu0 %4929
  %4931 = vrot.lane.b32.xlu0 %v4471, 111
  %v4932 = vpop.permute.xlu0 %4931
  %4933 = vrot.lane.b32.xlu0 %v4475, 111
  %v4934 = vpop.permute.xlu0 %4933
  %4935 = vrot.lane.b32.xlu0 %v4464, 111
  %v4936 = vpop.permute.xlu0 %4935
  %4937 = vrot.lane.b32.xlu0 %v4468, 111
  %v4938 = vpop.permute.xlu0 %4937
  %4939 = vrot.lane.b32.xlu0 %v4472, 111
  %v4940 = vpop.permute.xlu0 %4939
  %4941 = vrot.lane.b32.xlu0 %v4476, 111
  %v4942 = vpop.permute.xlu0 %4941
  %4943 = vrot.lane.b32.xlu0 %v4465, 111
  %v4944 = vpop.permute.xlu0 %4943
  %4945 = vrot.lane.b32.xlu0 %v4469, 111
  %v4946 = vpop.permute.xlu0 %4945
  %4947 = vrot.lane.b32.xlu0 %v4473, 111
  %v4948 = vpop.permute.xlu0 %4947
  %4949 = vrot.lane.b32.xlu0 %v4477, 111
  %v4950 = vpop.permute.xlu0 %4949
  %4951 = vrot.lane.b32.xlu0 %v4466, 111
  %v4952 = vpop.permute.xlu0 %4951
  %4953 = vrot.lane.b32.xlu0 %v4470, 111
  %v4954 = vpop.permute.xlu0 %4953
  %4955 = vrot.lane.b32.xlu0 %v4474, 111
  %v4956 = vpop.permute.xlu0 %4955
  %4957 = vrot.lane.b32.xlu0 %v4478, 111
  %v4958 = vpop.permute.xlu0 %4957
  %v4959 = vsel %vm665, %v4944, %v4952
  %v4960 = vsel %vm665, %v4946, %v4954
  %v4961 = vsel %vm665, %v4948, %v4956
  %v4962 = vsel %vm665, %v4950, %v4958
  %v4963 = vsel %vm665, %v4936, %v4944
  %v4964 = vsel %vm665, %v4938, %v4946
  %v4965 = vsel %vm665, %v4940, %v4948
  %v4966 = vsel %vm665, %v4942, %v4950
  %v4967 = vsel %vm665, %v4928, %v4936
  %v4968 = vsel %vm665, %v4930, %v4938
  %v4969 = vsel %vm665, %v4932, %v4940
  %v4970 = vsel %vm665, %v4934, %v4942
  %v4971 = vsel %vm665, %v4952, %v4928
  %v4972 = vsel %vm665, %v4954, %v4930
  %v4973 = vsel %vm665, %v4956, %v4932
  %v4974 = vsel %vm665, %v4958, %v4934
  %v4975 = vmul.f32 %v4967, %v685
  %v4976 = vmul.f32 %v4963, %v689
  %v4977 = vmul.f32 %v4959, %v693
  %v4978 = vmul.f32 %v4971, %v697
  %v4979 = vmul.f32 %v4968, %v685
  %v4980 = vmul.f32 %v4964, %v689
  %v4981 = vmul.f32 %v4960, %v693
  %v4982 = vmul.f32 %v4972, %v697
  %v4983 = vmul.f32 %v4969, %v685
  %v4984 = vmul.f32 %v4965, %v689
  %v4985 = vmul.f32 %v4961, %v693
  %v4986 = vmul.f32 %v4973, %v697
  %v4987 = vmul.f32 %v4970, %v685
  %v4988 = vmul.f32 %v4966, %v689
  %v4989 = vmul.f32 %v4962, %v693
  %v4990 = vmul.f32 %v4974, %v697
  %s4991 = scalar_lea.vmem %s1, 288
  %v4992 = vld [vmem:[%s4991] sm:$0xff]
  %v4993 = vld [vmem:[%s4991 + $0x8] sm:$0xff]
  %v4994 = vld [vmem:[%s4991 + $0x10] sm:$0xff]
  %v4995 = vld [vmem:[%s4991 + $0x18] sm:$0xff]
  %v4996 = vld [vmem:[%s4991 + $0x20] sm:$0xff]
  %v4997 = vld [vmem:[%s4991 + $0x28] sm:$0xff]
  %v4998 = vld [vmem:[%s4991 + $0x30] sm:$0xff]
  %v4999 = vld [vmem:[%s4991 + $0x38] sm:$0xff]
  %v5000 = vld [vmem:[%s4991 + $0x40] sm:$0xff]
  %v5001 = vld [vmem:[%s4991 + $0x48] sm:$0xff]
  %v5002 = vld [vmem:[%s4991 + $0x50] sm:$0xff]
  %v5003 = vld [vmem:[%s4991 + $0x58] sm:$0xff]
  %s5004 = scalar_lea.vmem %s2, 96
  %v5005 = vld [vmem:[%s5004] sm:$0xff]
  %v5006 = vld [vmem:[%s5004 + $0x8] sm:$0xff]
  %v5007 = vld [vmem:[%s5004 + $0x10] sm:$0xff]
  %v5008 = vld [vmem:[%s5004 + $0x18] sm:$0xff]
  %5010 = vset.pattern.permute.xlu0 0
  %5011 = vperm.xlu0 %5010, %v5005
  %v5012 = vpop.permute.xlu0 %5011
  %5015 = vset.pattern.permute.xlu0 0
  %5016 = vperm.xlu0 %5015, %v5006
  %v5017 = vpop.permute.xlu0 %5016
  %5020 = vset.pattern.permute.xlu0 0
  %5021 = vperm.xlu0 %5020, %v5007
  %v5022 = vpop.permute.xlu0 %5021
  %5025 = vset.pattern.permute.xlu0 0
  %5026 = vperm.xlu0 %5025, %v5008
  %v5027 = vpop.permute.xlu0 %5026
  %v5030 = vsel %vm750, %v4994, 0
  %v5033 = vsel %vm750, %v4997, 0
  %v5036 = vsel %vm750, %v5000, 0
  %v5039 = vsel %vm750, %v5003, 0
  %5041 = vmatprep.subr.mxu0 %v4528
  %5042 = vmatpush1.msra.mxu0 %v4527
  %5043 = vmatprep.subr.mxu0 %v4532
  %5044 = vmatpush1.msra.mxu0 %v4531
  %5045 = vmatprep.subr.mxu0 %v4536
  %5046 = vmatpush1.msra.mxu0 %v4535
  %5047 = vmatprep.subr.mxu0 %v4540
  %5048 = vmatpush1.msra.mxu0 %v4539
  %5049 = vmatprep.subr.mxu0 %v4592
  %5050 = vmatpush1.msra.mxu0 %v4591
  %5051 = vmatprep.subr.mxu0 %v4596
  %5052 = vmatpush1.msra.mxu0 %v4595
  %5053 = vmatprep.subr.mxu0 %v4600
  %5054 = vmatpush1.msra.mxu0 %v4599
  %5055 = vmatprep.subr.mxu0 %v4604
  %5056 = vmatpush1.msra.mxu0 %v4603
  %5057 = vmatprep.subr.mxu0 %v4656
  %5058 = vmatpush1.msra.mxu0 %v4655
  %5059 = vmatprep.subr.mxu0 %v4660
  %5060 = vmatpush1.msra.mxu0 %v4659
  %5061 = vmatprep.subr.mxu0 %v4664
  %5062 = vmatpush1.msra.mxu0 %v4663
  %5063 = vmatprep.subr.mxu0 %v4668
  %5064 = vmatpush1.msra.mxu0 %v4667
  %5065 = vmatprep.subr.mxu0 %v4720
  %5066 = vmatpush1.msra.mxu0 %v4719
  %5067 = vmatprep.subr.mxu0 %v4724
  %5068 = vmatpush1.msra.mxu0 %v4723
  %5069 = vmatprep.subr.mxu0 %v4728
  %5070 = vmatpush1.msra.mxu0 %v4727
  %5071 = vmatprep.subr.mxu0 %v4732
  %5072 = vmatpush1.msra.mxu0 %v4731
  %5073 = vmatprep.subr.mxu0 %v4464
  %5074 = vmatpush1.msra.mxu0 %v4463
  %5075 = vmatprep.subr.mxu0 %v4468
  %5076 = vmatpush1.msra.mxu0 %v4467
  %5077 = vmatprep.subr.mxu0 %v4472
  %5078 = vmatpush1.msra.mxu0 %v4471
  %5079 = vmatprep.subr.mxu0 %v4476
  %5080 = vmatpush1.msra.mxu0 %v4475
  %5081 = vmatprep.subr.mxu0 %v4784
  %5082 = vmatpush1.msra.mxu0 %v4783
  %5083 = vmatprep.subr.mxu0 %v4788
  %5084 = vmatpush1.msra.mxu0 %v4787
  %5085 = vmatprep.subr.mxu0 %v4792
  %5086 = vmatpush1.msra.mxu0 %v4791
  %5087 = vmatprep.subr.mxu0 %v4796
  %5088 = vmatpush1.msra.mxu0 %v4795
  %5089 = vmatprep.subr.mxu0 %v4848
  %5090 = vmatpush1.msra.mxu0 %v4847
  %5091 = vmatprep.subr.mxu0 %v4852
  %5092 = vmatpush1.msra.mxu0 %v4851
  %5093 = vmatprep.subr.mxu0 %v4856
  %5094 = vmatpush1.msra.mxu0 %v4855
  %5095 = vmatprep.subr.mxu0 %v4860
  %5096 = vmatpush1.msra.mxu0 %v4859
  %5097 = vmatprep.subr.mxu0 %v4912
  %5098 = vmatpush1.msra.mxu0 %v4911
  %5099 = vmatprep.subr.mxu0 %v4916
  %5100 = vmatpush1.msra.mxu0 %v4915
  %5101 = vmatprep.subr.mxu0 %v4920
  %5102 = vmatpush1.msra.mxu0 %v4919
  %5103 = vmatprep.subr.mxu0 %v4924
  %5104 = vmatpush1.msra.mxu0 %v4923
  %5105 = vmatprep.mubr.f32.mxu0 %v4993
  %5106 = vmatmul.mubr.f32.gmra.mrb[0].mxu0 %v4992
  %v5107 = vpop.f32.mrb[0].mxu0
  %v5108 = vadd.f32 %v5012, %v5107
  %v5109 = vpop.f32.mrb[0].mxu0
  %v5110 = vadd.f32 %v5012, %v5109
  %5111 = vmatprep.mubr.f32.mxu0 %v4996
  %5112 = vmatmul.mubr.f32.gmra.mrb[0].mxu0 %v4995
  %v5113 = vpop.f32.mrb[0].mxu0
  %v5114 = vadd.f32 %v5017, %v5113
  %v5115 = vpop.f32.mrb[0].mxu0
  %v5116 = vadd.f32 %v5017, %v5115
  %5117 = vmatprep.mubr.f32.mxu0 %v4999
  %5118 = vmatmul.mubr.f32.gmra.mrb[0].mxu0 %v4998
  %v5119 = vpop.f32.mrb[0].mxu0
  %v5120 = vadd.f32 %v5022, %v5119
  %v5121 = vpop.f32.mrb[0].mxu0
  %v5122 = vadd.f32 %v5022, %v5121
  %5123 = vmatprep.mubr.f32.mxu0 %v5002
  %5124 = vmatmul.mubr.f32.gmra.mrb[0].mxu0 %v5001
  %v5125 = vpop.f32.mrb[0].mxu0
  %v5126 = vadd.f32 %v5027, %v5125
  %v5127 = vpop.f32.mrb[0].mxu0
  %v5128 = vadd.f32 %v5027, %v5127
  %5129 = vdwg.mxu0
  %5130 = vmatprep.subr.mxu0 %v4976
  %5131 = vmatpush1.msra.mxu0 %v4975
  %5132 = vmatprep.subr.mxu0 %v4980
  %5133 = vmatpush1.msra.mxu0 %v4979
  %5134 = vmatprep.subr.mxu0 %v4984
  %5135 = vmatpush1.msra.mxu0 %v4983
  %5136 = vmatprep.subr.mxu0 %v4988
  %5137 = vmatpush1.msra.mxu0 %v4987
  %5138 = vmatprep.subr.mxu0 0.0
  %5139 = vmatpush1.msra.mxu0 0.0
  %5140 = vmatprep.subr.mxu0 0.0
  %5141 = vmatpush1.msra.mxu0 0.0
  %5142 = vmatprep.subr.mxu0 0.0
  %5143 = vmatpush1.msra.mxu0 0.0
  %5144 = vmatprep.subr.mxu0 0.0
  %5145 = vmatpush1.msra.mxu0 0.0
  %5146 = vmatprep.subr.mxu0 0.0
  %5147 = vmatpush1.msra.mxu0 0.0
  %5148 = vmatprep.subr.mxu0 0.0
  %5149 = vmatpush1.msra.mxu0 0.0
  %5150 = vmatprep.subr.mxu0 0.0
  %5151 = vmatpush1.msra.mxu0 0.0
  %5152 = vmatprep.subr.mxu0 0.0
  %5153 = vmatpush1.msra.mxu0 0.0
  %5154 = vmatprep.subr.mxu0 0.0
  %5155 = vmatpush1.msra.mxu0 0.0
  %5156 = vmatprep.subr.mxu0 0.0
  %5157 = vmatpush1.msra.mxu0 0.0
  %5158 = vmatprep.subr.mxu0 0.0
  %5159 = vmatpush1.msra.mxu0 0.0
  %5160 = vmatprep.subr.mxu0 0.0
  %5161 = vmatpush1.msra.mxu0 0.0
  %5162 = vmatprep.subr.mxu0 0.0
  %5163 = vmatpush1.msra.mxu0 0.0
  %5164 = vmatprep.subr.mxu0 0.0
  %5165 = vmatpush1.msra.mxu0 0.0
  %5166 = vmatprep.subr.mxu0 0.0
  %5167 = vmatpush1.msra.mxu0 0.0
  %5168 = vmatprep.subr.mxu0 0.0
  %5169 = vmatpush1.msra.mxu0 0.0
  %5170 = vmatprep.subr.mxu0 0.0
  %5171 = vmatpush1.msra.mxu0 0.0
  %5172 = vmatprep.subr.mxu0 0.0
  %5173 = vmatpush1.msra.mxu0 0.0
  %5174 = vmatprep.subr.mxu0 0.0
  %5175 = vmatpush1.msra.mxu0 0.0
  %5176 = vmatprep.subr.mxu0 0.0
  %5177 = vmatpush1.msra.mxu0 0.0
  %5178 = vmatprep.subr.mxu0 0.0
  %5179 = vmatpush1.msra.mxu0 0.0
  %5180 = vmatprep.subr.mxu0 0.0
  %5181 = vmatpush1.msra.mxu0 0.0
  %5182 = vmatprep.subr.mxu0 0.0
  %5183 = vmatpush1.msra.mxu0 0.0
  %5184 = vmatprep.subr.mxu0 0.0
  %5185 = vmatpush1.msra.mxu0 0.0
  %5186 = vmatprep.subr.mxu0 0.0
  %5187 = vmatpush1.msra.mxu0 0.0
  %5188 = vmatprep.subr.mxu0 0.0
  %5189 = vmatpush1.msra.mxu0 0.0
  %5190 = vmatprep.subr.mxu0 0.0
  %5191 = vmatpush1.msra.mxu0 0.0
  %5192 = vmatprep.subr.mxu0 0.0
  %5193 = vmatpush1.msra.mxu0 0.0
  %5194 = vmatprep.mubr.f32.mxu0 0.0
  %5195 = vmatmul.mubr.f32.gmra.mrb[0].mxu0 %v5030
  %v5196 = vpop.f32.mrb[0].mxu0
  %v5197 = vadd.f32 %v5108, %v5196
  %v5198 = vpop.f32.mrb[0].mxu0
  %v5199 = vadd.f32 %v5110, %v5198
  %5200 = vmatprep.mubr.f32.mxu0 0.0
  %5201 = vmatmul.mubr.f32.gmra.mrb[0].mxu0 %v5033
  %v5202 = vpop.f32.mrb[0].mxu0
  %v5203 = vadd.f32 %v5114, %v5202
  %v5204 = vpop.f32.mrb[0].mxu0
  %v5205 = vadd.f32 %v5116, %v5204
  %5206 = vmatprep.mubr.f32.mxu0 0.0
  %5207 = vmatmul.mubr.f32.gmra.mrb[0].mxu0 %v5036
  %v5208 = vpop.f32.mrb[0].mxu0
  %v5209 = vadd.f32 %v5120, %v5208
  %v5210 = vpop.f32.mrb[0].mxu0
  %v5211 = vadd.f32 %v5122, %v5210
  %5212 = vmatprep.mubr.f32.mxu0 0.0
  %5213 = vmatmul.mubr.f32.gmra.mrb[0].mxu0 %v5039
  %v5214 = vpop.f32.mrb[0].mxu0
  %v5215 = vadd.f32 %v5126, %v5214
  %v5216 = vpop.f32.mrb[0].mxu0
  %v5217 = vadd.f32 %v5128, %v5216
  %5218 = vdwg.mxu0
  %5219 = vmatprep.subr.mxu0 %v4530
  %5220 = vmatpush1.msra.mxu0 %v4529
  %5221 = vmatprep.subr.mxu0 %v4534
  %5222 = vmatpush1.msra.mxu0 %v4533
  %5223 = vmatprep.subr.mxu0 %v4538
  %5224 = vmatpush1.msra.mxu0 %v4537
  %5225 = vmatprep.subr.mxu0 %v4542
  %5226 = vmatpush1.msra.mxu0 %v4541
  %5227 = vmatprep.subr.mxu0 %v4594
  %5228 = vmatpush1.msra.mxu0 %v4593
  %5229 = vmatprep.subr.mxu0 %v4598
  %5230 = vmatpush1.msra.mxu0 %v4597
  %5231 = vmatprep.subr.mxu0 %v4602
  %5232 = vmatpush1.msra.mxu0 %v4601
  %5233 = vmatprep.subr.mxu0 %v4606
  %5234 = vmatpush1.msra.mxu0 %v4605
  %5235 = vmatprep.subr.mxu0 %v4658
  %5236 = vmatpush1.msra.mxu0 %v4657
  %5237 = vmatprep.subr.mxu0 %v4662
  %5238 = vmatpush1.msra.mxu0 %v4661
  %5239 = vmatprep.subr.mxu0 %v4666
  %5240 = vmatpush1.msra.mxu0 %v4665
  %5241 = vmatprep.subr.mxu0 %v4670
  %5242 = vmatpush1.msra.mxu0 %v4669
  %5243 = vmatprep.subr.mxu0 %v4722
  %5244 = vmatpush1.msra.mxu0 %v4721
  %5245 = vmatprep.subr.mxu0 %v4726
  %5246 = vmatpush1.msra.mxu0 %v4725
  %5247 = vmatprep.subr.mxu0 %v4730
  %5248 = vmatpush1.msra.mxu0 %v4729
  %5249 = vmatprep.subr.mxu0 %v4734
  %5250 = vmatpush1.msra.mxu0 %v4733
  %5251 = vmatprep.subr.mxu0 %v4466
  %5252 = vmatpush1.msra.mxu0 %v4465
  %5253 = vmatprep.subr.mxu0 %v4470
  %5254 = vmatpush1.msra.mxu0 %v4469
  %5255 = vmatprep.subr.mxu0 %v4474
  %5256 = vmatpush1.msra.mxu0 %v4473
  %5257 = vmatprep.subr.mxu0 %v4478
  %5258 = vmatpush1.msra.mxu0 %v4477
  %5259 = vmatprep.subr.mxu0 %v4786
  %5260 = vmatpush1.msra.mxu0 %v4785
  %5261 = vmatprep.subr.mxu0 %v4790
  %5262 = vmatpush1.msra.mxu0 %v4789
  %5263 = vmatprep.subr.mxu0 %v4794
  %5264 = vmatpush1.msra.mxu0 %v4793
  %5265 = vmatprep.subr.mxu0 %v4798
  %5266 = vmatpush1.msra.mxu0 %v4797
  %5267 = vmatprep.subr.mxu0 %v4850
  %5268 = vmatpush1.msra.mxu0 %v4849
  %5269 = vmatprep.subr.mxu0 %v4854
  %5270 = vmatpush1.msra.mxu0 %v4853
  %5271 = vmatprep.subr.mxu0 %v4858
  %5272 = vmatpush1.msra.mxu0 %v4857
  %5273 = vmatprep.subr.mxu0 %v4862
  %5274 = vmatpush1.msra.mxu0 %v4861
  %5275 = vmatprep.subr.mxu0 %v4914
  %5276 = vmatpush1.msra.mxu0 %v4913
  %5277 = vmatprep.subr.mxu0 %v4918
  %5278 = vmatpush1.msra.mxu0 %v4917
  %5279 = vmatprep.subr.mxu0 %v4922
  %5280 = vmatpush1.msra.mxu0 %v4921
  %5281 = vmatprep.subr.mxu0 %v4926
  %5282 = vmatpush1.msra.mxu0 %v4925
  %5283 = vmatprep.mubr.f32.mxu0 %v4993
  %5284 = vmatmul.mubr.f32.gmra.mrb[0].mxu0 %v4992
  %v5285 = vpop.f32.mrb[0].mxu0
  %v5286 = vadd.f32 %v5012, %v5285
  %v5287 = vpop.f32.mrb[0].mxu0
  %v5288 = vadd.f32 %v5012, %v5287
  %5289 = vmatprep.mubr.f32.mxu0 %v4996
  %5290 = vmatmul.mubr.f32.gmra.mrb[0].mxu0 %v4995
  %v5291 = vpop.f32.mrb[0].mxu0
  %v5292 = vadd.f32 %v5017, %v5291
  %v5293 = vpop.f32.mrb[0].mxu0
  %v5294 = vadd.f32 %v5017, %v5293
  %5295 = vmatprep.mubr.f32.mxu0 %v4999
  %5296 = vmatmul.mubr.f32.gmra.mrb[0].mxu0 %v4998
  %v5297 = vpop.f32.mrb[0].mxu0
  %v5298 = vadd.f32 %v5022, %v5297
  %v5299 = vpop.f32.mrb[0].mxu0
  %v5300 = vadd.f32 %v5022, %v5299
  %5301 = vmatprep.mubr.f32.mxu0 %v5002
  %5302 = vmatmul.mubr.f32.gmra.mrb[0].mxu0 %v5001
  %v5303 = vpop.f32.mrb[0].mxu0
  %v5304 = vadd.f32 %v5027, %v5303
  %v5305 = vpop.f32.mrb[0].mxu0
  %v5306 = vadd.f32 %v5027, %v5305
  %5307 = vdwg.mxu0
  %5308 = vmatprep.subr.mxu0 %v4978
  %5309 = vmatpush1.msra.mxu0 %v4977
  %5310 = vmatprep.subr.mxu0 %v4982
  %5311 = vmatpush1.msra.mxu0 %v4981
  %5312 = vmatprep.subr.mxu0 %v4986
  %5313 = vmatpush1.msra.mxu0 %v4985
  %5314 = vmatprep.subr.mxu0 %v4990
  %5315 = vmatpush1.msra.mxu0 %v4989
  %5316 = vmatprep.subr.mxu0 0.0
  %5317 = vmatpush1.msra.mxu0 0.0
  %5318 = vmatprep.subr.mxu0 0.0
  %5319 = vmatpush1.msra.mxu0 0.0
  %5320 = vmatprep.subr.mxu0 0.0
  %5321 = vmatpush1.msra.mxu0 0.0
  %5322 = vmatprep.subr.mxu0 0.0
  %5323 = vmatpush1.msra.mxu0 0.0
  %5324 = vmatprep.subr.mxu0 0.0
  %5325 = vmatpush1.msra.mxu0 0.0
  %5326 = vmatprep.subr.mxu0 0.0
  %5327 = vmatpush1.msra.mxu0 0.0
  %5328 = vmatprep.subr.mxu0 0.0
  %5329 = vmatpush1.msra.mxu0 0.0
  %5330 = vmatprep.subr.mxu0 0.0
  %5331 = vmatpush1.msra.mxu0 0.0
  %5332 = vmatprep.subr.mxu0 0.0
  %5333 = vmatpush1.msra.mxu0 0.0
  %5334 = vmatprep.subr.mxu0 0.0
  %5335 = vmatpush1.msra.mxu0 0.0
  %5336 = vmatprep.subr.mxu0 0.0
  %5337 = vmatpush1.msra.mxu0 0.0
  %5338 = vmatprep.subr.mxu0 0.0
  %5339 = vmatpush1.msra.mxu0 0.0
  %5340 = vmatprep.subr.mxu0 0.0
  %5341 = vmatpush1.msra.mxu0 0.0
  %5342 = vmatprep.subr.mxu0 0.0
  %5343 = vmatpush1.msra.mxu0 0.0
  %5344 = vmatprep.subr.mxu0 0.0
  %5345 = vmatpush1.msra.mxu0 0.0
  %5346 = vmatprep.subr.mxu0 0.0
  %5347 = vmatpush1.msra.mxu0 0.0
  %5348 = vmatprep.subr.mxu0 0.0
  %5349 = vmatpush1.msra.mxu0 0.0
  %5350 = vmatprep.subr.mxu0 0.0
  %5351 = vmatpush1.msra.mxu0 0.0
  %5352 = vmatprep.subr.mxu0 0.0
  %5353 = vmatpush1.msra.mxu0 0.0
  %5354 = vmatprep.subr.mxu0 0.0
  %5355 = vmatpush1.msra.mxu0 0.0
  %5356 = vmatprep.subr.mxu0 0.0
  %5357 = vmatpush1.msra.mxu0 0.0
  %5358 = vmatprep.subr.mxu0 0.0
  %5359 = vmatpush1.msra.mxu0 0.0
  %5360 = vmatprep.subr.mxu0 0.0
  %5361 = vmatpush1.msra.mxu0 0.0
  %5362 = vmatprep.subr.mxu0 0.0
  %5363 = vmatpush1.msra.mxu0 0.0
  %5364 = vmatprep.subr.mxu0 0.0
  %5365 = vmatpush1.msra.mxu0 0.0
  %5366 = vmatprep.subr.mxu0 0.0
  %5367 = vmatpush1.msra.mxu0 0.0
  %5368 = vmatprep.subr.mxu0 0.0
  %5369 = vmatpush1.msra.mxu0 0.0
  %5370 = vmatprep.subr.mxu0 0.0
  %5371 = vmatpush1.msra.mxu0 0.0
  %5372 = vmatprep.mubr.f32.mxu0 0.0
  %5373 = vmatmul.mubr.f32.gmra.mrb[0].mxu0 %v5030
  %v5374 = vpop.f32.mrb[0].mxu0
  %v5375 = vadd.f32 %v5286, %v5374
  %v5376 = vpop.f32.mrb[0].mxu0
  %v5377 = vadd.f32 %v5288, %v5376
  %5378 = vmatprep.mubr.f32.mxu0 0.0
  %5379 = vmatmul.mubr.f32.gmra.mrb[0].mxu0 %v5033
  %v5380 = vpop.f32.mrb[0].mxu0
  %v5381 = vadd.f32 %v5292, %v5380
  %v5382 = vpop.f32.mrb[0].mxu0
  %v5383 = vadd.f32 %v5294, %v5382
  %5384 = vmatprep.mubr.f32.mxu0 0.0
  %5385 = vmatmul.mubr.f32.gmra.mrb[0].mxu0 %v5036
  %v5386 = vpop.f32.mrb[0].mxu0
  %v5387 = vadd.f32 %v5298, %v5386
  %v5388 = vpop.f32.mrb[0].mxu0
  %v5389 = vadd.f32 %v5300, %v5388
  %5390 = vmatprep.mubr.f32.mxu0 0.0
  %5391 = vmatmul.mubr.f32.gmra.mrb[0].mxu0 %v5039
  %v5392 = vpop.f32.mrb[0].mxu0
  %v5393 = vadd.f32 %v5304, %v5392
  %v5394 = vpop.f32.mrb[0].mxu0
  %v5395 = vadd.f32 %v5306, %v5394
  %5396 = vdwg.mxu0
  %5397 = vmatprep.subr.mxu0 0.0
  %5398 = vmatpush1.msra.mxu0 1.0
  %5399 = vmatprep.subr.mxu0 0.0
  %5400 = vmatpush1.msra.mxu0 1.0
  %5401 = vmatprep.subr.mxu0 0.0
  %5402 = vmatpush1.msra.mxu0 1.0
  %5403 = vmatprep.subr.mxu0 0.0
  %5404 = vmatpush1.msra.mxu0 1.0
  %5405 = vmatprep.subr.mxu0 0.0
  %5406 = vmatpush1.msra.mxu0 1.0
  %5407 = vmatprep.subr.mxu0 0.0
  %5408 = vmatpush1.msra.mxu0 1.0
  %5409 = vmatprep.subr.mxu0 0.0
  %5410 = vmatpush1.msra.mxu0 1.0
  %5411 = vmatprep.subr.mxu0 0.0
  %5412 = vmatpush1.msra.mxu0 1.0
  %5413 = vmatprep.subr.mxu0 0.0
  %5414 = vmatpush1.msra.mxu0 1.0
  %5415 = vmatprep.subr.mxu0 0.0
  %5416 = vmatpush1.msra.mxu0 1.0
  %5417 = vmatprep.subr.mxu0 0.0
  %5418 = vmatpush1.msra.mxu0 1.0
  %5419 = vmatprep.subr.mxu0 0.0
  %5420 = vmatpush1.msra.mxu0 1.0
  %5421 = vmatprep.subr.mxu0 0.0
  %5422 = vmatpush1.msra.mxu0 1.0
  %5423 = vmatprep.subr.mxu0 0.0
  %5424 = vmatpush1.msra.mxu0 1.0
  %5425 = vmatprep.subr.mxu0 0.0
  %5426 = vmatpush1.msra.mxu0 1.0
  %5427 = vmatprep.subr.mxu0 0.0
  %5428 = vmatpush1.msra.mxu0 1.0
  %5429 = vmatprep.subr.mxu0 0.0
  %5430 = vmatpush1.msra.mxu0 1.0
  %5431 = vmatprep.subr.mxu0 0.0
  %5432 = vmatpush1.msra.mxu0 1.0
  %5433 = vmatprep.subr.mxu0 0.0
  %5434 = vmatpush1.msra.mxu0 1.0
  %5435 = vmatprep.subr.mxu0 0.0
  %5436 = vmatpush1.msra.mxu0 1.0
  %5437 = vmatprep.subr.mxu0 0.0
  %5438 = vmatpush1.msra.mxu0 1.0
  %5439 = vmatprep.subr.mxu0 0.0
  %5440 = vmatpush1.msra.mxu0 1.0
  %5441 = vmatprep.subr.mxu0 0.0
  %5442 = vmatpush1.msra.mxu0 1.0
  %5443 = vmatprep.subr.mxu0 0.0
  %5444 = vmatpush1.msra.mxu0 1.0
  %5445 = vmatprep.subr.mxu0 0.0
  %5446 = vmatpush1.msra.mxu0 1.0
  %5447 = vmatprep.subr.mxu0 0.0
  %5448 = vmatpush1.msra.mxu0 1.0
  %5449 = vmatprep.subr.mxu0 0.0
  %5450 = vmatpush1.msra.mxu0 1.0
  %5451 = vmatprep.subr.mxu0 0.0
  %5452 = vmatpush1.msra.mxu0 1.0
  %5453 = vmatprep.subr.mxu0 0.0
  %5454 = vmatpush1.msra.mxu0 1.0
  %5455 = vmatprep.subr.mxu0 0.0
  %5456 = vmatpush1.msra.mxu0 1.0
  %5457 = vmatprep.subr.mxu0 0.0
  %5458 = vmatpush1.msra.mxu0 1.0
  %5459 = vmatprep.subr.mxu0 0.0
  %5460 = vmatpush1.msra.mxu0 1.0
  %5461 = vmatprep.mubr.f32.mxu0 %v5199
  %5462 = vmatmul.mubr.f32.gmra.mrb[0].mxu0 %v5197
  %v5463 = vpop.f32.mrb[0].mxu0
  %v5464 = vadd.f32 0.0, %v5463
  %v5465 = vpop.f32.mrb[0].mxu0
  %5466 = vmatprep.mubr.f32.mxu0 %v5205
  %5467 = vmatmul.mubr.f32.gmra.mrb[0].mxu0 %v5203
  %v5468 = vpop.f32.mrb[0].mxu0
  %v5469 = vadd.f32 0.0, %v5468
  %v5470 = vpop.f32.mrb[0].mxu0
  %5471 = vmatprep.mubr.f32.mxu0 %v5211
  %5472 = vmatmul.mubr.f32.gmra.mrb[0].mxu0 %v5209
  %v5473 = vpop.f32.mrb[0].mxu0
  %v5474 = vadd.f32 0.0, %v5473
  %v5475 = vpop.f32.mrb[0].mxu0
  %5476 = vmatprep.mubr.f32.mxu0 %v5217
  %5477 = vmatmul.mubr.f32.gmra.mrb[0].mxu0 %v5215
  %v5478 = vpop.f32.mrb[0].mxu0
  %v5479 = vadd.f32 0.0, %v5478
  %v5480 = vpop.f32.mrb[0].mxu0
  %5481 = vdwg.mxu0
  %5482 = vmatprep.subr.mxu0 0.0
  %5483 = vmatpush1.msra.mxu0 1.0
  %5484 = vmatprep.subr.mxu0 0.0
  %5485 = vmatpush1.msra.mxu0 1.0
  %5486 = vmatprep.subr.mxu0 0.0
  %5487 = vmatpush1.msra.mxu0 1.0
  %5488 = vmatprep.subr.mxu0 0.0
  %5489 = vmatpush1.msra.mxu0 1.0
  %5490 = vmatprep.subr.mxu0 0.0
  %5491 = vmatpush1.msra.mxu0 1.0
  %5492 = vmatprep.subr.mxu0 0.0
  %5493 = vmatpush1.msra.mxu0 1.0
  %5494 = vmatprep.subr.mxu0 0.0
  %5495 = vmatpush1.msra.mxu0 1.0
  %5496 = vmatprep.subr.mxu0 0.0
  %5497 = vmatpush1.msra.mxu0 1.0
  %5498 = vmatprep.subr.mxu0 0.0
  %5499 = vmatpush1.msra.mxu0 1.0
  %5500 = vmatprep.subr.mxu0 0.0
  %5501 = vmatpush1.msra.mxu0 1.0
  %5502 = vmatprep.subr.mxu0 0.0
  %5503 = vmatpush1.msra.mxu0 1.0
  %5504 = vmatprep.subr.mxu0 0.0
  %5505 = vmatpush1.msra.mxu0 1.0
  %5506 = vmatprep.subr.mxu0 0.0
  %5507 = vmatpush1.msra.mxu0 1.0
  %5508 = vmatprep.subr.mxu0 0.0
  %5509 = vmatpush1.msra.mxu0 1.0
  %5510 = vmatprep.subr.mxu0 0.0
  %5511 = vmatpush1.msra.mxu0 1.0
  %5512 = vmatprep.subr.mxu0 0.0
  %5513 = vmatpush1.msra.mxu0 1.0
  %5514 = vmatprep.subr.mxu0 0.0
  %5515 = vmatpush1.msra.mxu0 1.0
  %5516 = vmatprep.subr.mxu0 0.0
  %5517 = vmatpush1.msra.mxu0 1.0
  %5518 = vmatprep.subr.mxu0 0.0
  %5519 = vmatpush1.msra.mxu0 1.0
  %5520 = vmatprep.subr.mxu0 0.0
  %5521 = vmatpush1.msra.mxu0 1.0
  %5522 = vmatprep.subr.mxu0 0.0
  %5523 = vmatpush1.msra.mxu0 1.0
  %5524 = vmatprep.subr.mxu0 0.0
  %5525 = vmatpush1.msra.mxu0 1.0
  %5526 = vmatprep.subr.mxu0 0.0
  %5527 = vmatpush1.msra.mxu0 1.0
  %5528 = vmatprep.subr.mxu0 0.0
  %5529 = vmatpush1.msra.mxu0 1.0
  %5530 = vmatprep.subr.mxu0 0.0
  %5531 = vmatpush1.msra.mxu0 1.0
  %5532 = vmatprep.subr.mxu0 0.0
  %5533 = vmatpush1.msra.mxu0 1.0
  %5534 = vmatprep.subr.mxu0 0.0
  %5535 = vmatpush1.msra.mxu0 1.0
  %5536 = vmatprep.subr.mxu0 0.0
  %5537 = vmatpush1.msra.mxu0 1.0
  %5538 = vmatprep.subr.mxu0 0.0
  %5539 = vmatpush1.msra.mxu0 1.0
  %5540 = vmatprep.subr.mxu0 0.0
  %5541 = vmatpush1.msra.mxu0 1.0
  %5542 = vmatprep.subr.mxu0 0.0
  %5543 = vmatpush1.msra.mxu0 1.0
  %5544 = vmatprep.subr.mxu0 0.0
  %5545 = vmatpush1.msra.mxu0 1.0
  %5546 = vmatprep.mubr.f32.mxu0 %v5377
  %5547 = vmatmul.mubr.f32.gmra.mrb[0].mxu0 %v5375
  %v5548 = vpop.f32.mrb[0].mxu0
  %v5549 = vadd.f32 %v5464, %v5548
  %v5550 = vpop.f32.mrb[0].mxu0
  %5551 = vmatprep.mubr.f32.mxu0 %v5383
  %5552 = vmatmul.mubr.f32.gmra.mrb[0].mxu0 %v5381
  %v5553 = vpop.f32.mrb[0].mxu0
  %v5554 = vadd.f32 %v5469, %v5553
  %v5555 = vpop.f32.mrb[0].mxu0
  %5556 = vmatprep.mubr.f32.mxu0 %v5389
  %5557 = vmatmul.mubr.f32.gmra.mrb[0].mxu0 %v5387
  %v5558 = vpop.f32.mrb[0].mxu0
  %v5559 = vadd.f32 %v5474, %v5558
  %v5560 = vpop.f32.mrb[0].mxu0
  %5561 = vmatprep.mubr.f32.mxu0 %v5395
  %5562 = vmatmul.mubr.f32.gmra.mrb[0].mxu0 %v5393
  %v5563 = vpop.f32.mrb[0].mxu0
  %v5564 = vadd.f32 %v5479, %v5563
  %v5565 = vpop.f32.mrb[0].mxu0
  %5566 = vdwg.mxu0
  %v5567 = vmul.f32 %v5549, 0.001953125
  %v5568 = vmul.f32 %v5554, 0.001953125
  %v5569 = vmul.f32 %v5559, 0.001953125
  %v5570 = vmul.f32 %v5564, 0.001953125
  %5572 = vset.pattern.permute.xlu0 0
  %5573 = vperm.xlu0 %5572, %v5567
  %v5574 = vpop.permute.xlu0 %5573
  %5577 = vset.pattern.permute.xlu0 0
  %5578 = vperm.xlu0 %5577, %v5568
  %v5579 = vpop.permute.xlu0 %5578
  %5582 = vset.pattern.permute.xlu0 0
  %5583 = vperm.xlu0 %5582, %v5569
  %v5584 = vpop.permute.xlu0 %5583
  %5587 = vset.pattern.permute.xlu0 0
  %5588 = vperm.xlu0 %5587, %v5570
  %v5589 = vpop.permute.xlu0 %5588
  %v5591 = vsub.f32 %v5197, %v5574
  %v5592 = vsub.f32 %v5199, %v5574
  %v5593 = vsub.f32 %v5375, %v5574
  %v5594 = vsub.f32 %v5377, %v5574
  %v5595 = vsub.f32 %v5203, %v5579
  %v5596 = vsub.f32 %v5205, %v5579
  %v5597 = vsub.f32 %v5381, %v5579
  %v5598 = vsub.f32 %v5383, %v5579
  %v5599 = vsub.f32 %v5209, %v5584
  %v5600 = vsub.f32 %v5211, %v5584
  %v5601 = vsub.f32 %v5387, %v5584
  %v5602 = vsub.f32 %v5389, %v5584
  %v5603 = vsub.f32 %v5215, %v5589
  %v5604 = vsub.f32 %v5217, %v5589
  %v5605 = vsub.f32 %v5393, %v5589
  %v5606 = vsub.f32 %v5395, %v5589
  %v5607 = vmul.f32 %v5591, %v5591
  %v5608 = vmul.f32 %v5592, %v5592
  %v5609 = vmul.f32 %v5593, %v5593
  %v5610 = vmul.f32 %v5594, %v5594
  %v5611 = vmul.f32 %v5595, %v5595
  %v5612 = vmul.f32 %v5596, %v5596
  %v5613 = vmul.f32 %v5597, %v5597
  %v5614 = vmul.f32 %v5598, %v5598
  %v5615 = vmul.f32 %v5599, %v5599
  %v5616 = vmul.f32 %v5600, %v5600
  %v5617 = vmul.f32 %v5601, %v5601
  %v5618 = vmul.f32 %v5602, %v5602
  %v5619 = vmul.f32 %v5603, %v5603
  %v5620 = vmul.f32 %v5604, %v5604
  %v5621 = vmul.f32 %v5605, %v5605
  %v5622 = vmul.f32 %v5606, %v5606
  %5623 = vmatprep.subr.mxu0 0.0
  %5624 = vmatpush1.msra.mxu0 1.0
  %5625 = vmatprep.subr.mxu0 0.0
  %5626 = vmatpush1.msra.mxu0 1.0
  %5627 = vmatprep.subr.mxu0 0.0
  %5628 = vmatpush1.msra.mxu0 1.0
  %5629 = vmatprep.subr.mxu0 0.0
  %5630 = vmatpush1.msra.mxu0 1.0
  %5631 = vmatprep.subr.mxu0 0.0
  %5632 = vmatpush1.msra.mxu0 1.0
  %5633 = vmatprep.subr.mxu0 0.0
  %5634 = vmatpush1.msra.mxu0 1.0
  %5635 = vmatprep.subr.mxu0 0.0
  %5636 = vmatpush1.msra.mxu0 1.0
  %5637 = vmatprep.subr.mxu0 0.0
  %5638 = vmatpush1.msra.mxu0 1.0
  %5639 = vmatprep.subr.mxu0 0.0
  %5640 = vmatpush1.msra.mxu0 1.0
  %5641 = vmatprep.subr.mxu0 0.0
  %5642 = vmatpush1.msra.mxu0 1.0
  %5643 = vmatprep.subr.mxu0 0.0
  %5644 = vmatpush1.msra.mxu0 1.0
  %5645 = vmatprep.subr.mxu0 0.0
  %5646 = vmatpush1.msra.mxu0 1.0
  %5647 = vmatprep.subr.mxu0 0.0
  %5648 = vmatpush1.msra.mxu0 1.0
  %5649 = vmatprep.subr.mxu0 0.0
  %5650 = vmatpush1.msra.mxu0 1.0
  %5651 = vmatprep.subr.mxu0 0.0
  %5652 = vmatpush1.msra.mxu0 1.0
  %5653 = vmatprep.subr.mxu0 0.0
  %5654 = vmatpush1.msra.mxu0 1.0
  %5655 = vmatprep.subr.mxu0 0.0
  %5656 = vmatpush1.msra.mxu0 1.0
  %5657 = vmatprep.subr.mxu0 0.0
  %5658 = vmatpush1.msra.mxu0 1.0
  %5659 = vmatprep.subr.mxu0 0.0
  %5660 = vmatpush1.msra.mxu0 1.0
  %5661 = vmatprep.subr.mxu0 0.0
  %5662 = vmatpush1.msra.mxu0 1.0
  %5663 = vmatprep.subr.mxu0 0.0
  %5664 = vmatpush1.msra.mxu0 1.0
  %5665 = vmatprep.subr.mxu0 0.0
  %5666 = vmatpush1.msra.mxu0 1.0
  %5667 = vmatprep.subr.mxu0 0.0
  %5668 = vmatpush1.msra.mxu0 1.0
  %5669 = vmatprep.subr.mxu0 0.0
  %5670 = vmatpush1.msra.mxu0 1.0
  %5671 = vmatprep.subr.mxu0 0.0
  %5672 = vmatpush1.msra.mxu0 1.0
  %5673 = vmatprep.subr.mxu0 0.0
  %5674 = vmatpush1.msra.mxu0 1.0
  %5675 = vmatprep.subr.mxu0 0.0
  %5676 = vmatpush1.msra.mxu0 1.0
  %5677 = vmatprep.subr.mxu0 0.0
  %5678 = vmatpush1.msra.mxu0 1.0
  %5679 = vmatprep.subr.mxu0 0.0
  %5680 = vmatpush1.msra.mxu0 1.0
  %5681 = vmatprep.subr.mxu0 0.0
  %5682 = vmatpush1.msra.mxu0 1.0
  %5683 = vmatprep.subr.mxu0 0.0
  %5684 = vmatpush1.msra.mxu0 1.0
  %5685 = vmatprep.subr.mxu0 0.0
  %5686 = vmatpush1.msra.mxu0 1.0
  %5687 = vmatprep.mubr.f32.mxu0 %v5608
  %5688 = vmatmul.mubr.f32.gmra.mrb[0].mxu0 %v5607
  %v5689 = vpop.f32.mrb[0].mxu0
  %v5690 = vadd.f32 0.0, %v5689
  %v5691 = vpop.f32.mrb[0].mxu0
  %5692 = vmatprep.mubr.f32.mxu0 %v5612
  %5693 = vmatmul.mubr.f32.gmra.mrb[0].mxu0 %v5611
  %v5694 = vpop.f32.mrb[0].mxu0
  %v5695 = vadd.f32 0.0, %v5694
  %v5696 = vpop.f32.mrb[0].mxu0
  %5697 = vmatprep.mubr.f32.mxu0 %v5616
  %5698 = vmatmul.mubr.f32.gmra.mrb[0].mxu0 %v5615
  %v5699 = vpop.f32.mrb[0].mxu0
  %v5700 = vadd.f32 0.0, %v5699
  %v5701 = vpop.f32.mrb[0].mxu0
  %5702 = vmatprep.mubr.f32.mxu0 %v5620
  %5703 = vmatmul.mubr.f32.gmra.mrb[0].mxu0 %v5619
  %v5704 = vpop.f32.mrb[0].mxu0
  %v5705 = vadd.f32 0.0, %v5704
  %v5706 = vpop.f32.mrb[0].mxu0
  %5707 = vdwg.mxu0
  %5708 = vmatprep.subr.mxu0 0.0
  %5709 = vmatpush1.msra.mxu0 1.0
  %5710 = vmatprep.subr.mxu0 0.0
  %5711 = vmatpush1.msra.mxu0 1.0
  %5712 = vmatprep.subr.mxu0 0.0
  %5713 = vmatpush1.msra.mxu0 1.0
  %5714 = vmatprep.subr.mxu0 0.0
  %5715 = vmatpush1.msra.mxu0 1.0
  %5716 = vmatprep.subr.mxu0 0.0
  %5717 = vmatpush1.msra.mxu0 1.0
  %5718 = vmatprep.subr.mxu0 0.0
  %5719 = vmatpush1.msra.mxu0 1.0
  %5720 = vmatprep.subr.mxu0 0.0
  %5721 = vmatpush1.msra.mxu0 1.0
  %5722 = vmatprep.subr.mxu0 0.0
  %5723 = vmatpush1.msra.mxu0 1.0
  %5724 = vmatprep.subr.mxu0 0.0
  %5725 = vmatpush1.msra.mxu0 1.0
  %5726 = vmatprep.subr.mxu0 0.0
  %5727 = vmatpush1.msra.mxu0 1.0
  %5728 = vmatprep.subr.mxu0 0.0
  %5729 = vmatpush1.msra.mxu0 1.0
  %5730 = vmatprep.subr.mxu0 0.0
  %5731 = vmatpush1.msra.mxu0 1.0
  %5732 = vmatprep.subr.mxu0 0.0
  %5733 = vmatpush1.msra.mxu0 1.0
  %5734 = vmatprep.subr.mxu0 0.0
  %5735 = vmatpush1.msra.mxu0 1.0
  %5736 = vmatprep.subr.mxu0 0.0
  %5737 = vmatpush1.msra.mxu0 1.0
  %5738 = vmatprep.subr.mxu0 0.0
  %5739 = vmatpush1.msra.mxu0 1.0
  %5740 = vmatprep.subr.mxu0 0.0
  %5741 = vmatpush1.msra.mxu0 1.0
  %5742 = vmatprep.subr.mxu0 0.0
  %5743 = vmatpush1.msra.mxu0 1.0
  %5744 = vmatprep.subr.mxu0 0.0
  %5745 = vmatpush1.msra.mxu0 1.0
  %5746 = vmatprep.subr.mxu0 0.0
  %5747 = vmatpush1.msra.mxu0 1.0
  %5748 = vmatprep.subr.mxu0 0.0
  %5749 = vmatpush1.msra.mxu0 1.0
  %5750 = vmatprep.subr.mxu0 0.0
  %5751 = vmatpush1.msra.mxu0 1.0
  %5752 = vmatprep.subr.mxu0 0.0
  %5753 = vmatpush1.msra.mxu0 1.0
  %5754 = vmatprep.subr.mxu0 0.0
  %5755 = vmatpush1.msra.mxu0 1.0
  %5756 = vmatprep.subr.mxu0 0.0
  %5757 = vmatpush1.msra.mxu0 1.0
  %5758 = vmatprep.subr.mxu0 0.0
  %5759 = vmatpush1.msra.mxu0 1.0
  %5760 = vmatprep.subr.mxu0 0.0
  %5761 = vmatpush1.msra.mxu0 1.0
  %5762 = vmatprep.subr.mxu0 0.0
  %5763 = vmatpush1.msra.mxu0 1.0
  %5764 = vmatprep.subr.mxu0 0.0
  %5765 = vmatpush1.msra.mxu0 1.0
  %5766 = vmatprep.subr.mxu0 0.0
  %5767 = vmatpush1.msra.mxu0 1.0
  %5768 = vmatprep.subr.mxu0 0.0
  %5769 = vmatpush1.msra.mxu0 1.0
  %5770 = vmatprep.subr.mxu0 0.0
  %5771 = vmatpush1.msra.mxu0 1.0
  %5772 = vmatprep.mubr.f32.mxu0 %v5610
  %5773 = vmatmul.mubr.f32.gmra.mrb[0].mxu0 %v5609
  %v5774 = vpop.f32.mrb[0].mxu0
  %v5775 = vadd.f32 %v5690, %v5774
  %v5776 = vpop.f32.mrb[0].mxu0
  %5777 = vmatprep.mubr.f32.mxu0 %v5614
  %5778 = vmatmul.mubr.f32.gmra.mrb[0].mxu0 %v5613
  %v5779 = vpop.f32.mrb[0].mxu0
  %v5780 = vadd.f32 %v5695, %v5779
  %v5781 = vpop.f32.mrb[0].mxu0
  %5782 = vmatprep.mubr.f32.mxu0 %v5618
  %5783 = vmatmul.mubr.f32.gmra.mrb[0].mxu0 %v5617
  %v5784 = vpop.f32.mrb[0].mxu0
  %v5785 = vadd.f32 %v5700, %v5784
  %v5786 = vpop.f32.mrb[0].mxu0
  %5787 = vmatprep.mubr.f32.mxu0 %v5622
  %5788 = vmatmul.mubr.f32.gmra.mrb[0].mxu0 %v5621
  %v5789 = vpop.f32.mrb[0].mxu0
  %v5790 = vadd.f32 %v5705, %v5789
  %v5791 = vpop.f32.mrb[0].mxu0
  %5792 = vdwg.mxu0
  %v5793 = vmul.f32 %v5775, 0.001953125
  %v5794 = vmul.f32 %v5780, 0.001953125
  %v5795 = vmul.f32 %v5785, 0.001953125
  %v5796 = vmul.f32 %v5790, 0.001953125
  %v5797 = vadd.f32 %v5793, 1e-05
  %v5798 = vadd.f32 %v5794, 1e-05
  %v5799 = vadd.f32 %v5795, 1e-05
  %v5800 = vadd.f32 %v5796, 1e-05
  %v5801 = vrsqrt.pop %v5797
  %v5802 = vrsqrt.pop %v5798
  %v5803 = vrsqrt.pop %v5799
  %v5804 = vrsqrt.pop %v5800
  %5805 = vrot.lane.b32.xlu0 %v5005, 127
  %v5806 = vpop.permute.xlu0 %5805
  %5807 = vrot.lane.b32.xlu0 %v5006, 127
  %v5808 = vpop.permute.xlu0 %5807
  %5809 = vrot.lane.b32.xlu0 %v5007, 127
  %v5810 = vpop.permute.xlu0 %5809
  %5811 = vrot.lane.b32.xlu0 %v5008, 127
  %v5812 = vpop.permute.xlu0 %5811
  %v5817 = vmul.f32 %v5801, %v5806
  %v5818 = vmul.f32 %v5802, %v5808
  %v5819 = vmul.f32 %v5803, %v5810
  %v5820 = vmul.f32 %v5804, %v5812
  %5822 = vset.pattern.permute.xlu0 0
  %5823 = vperm.xlu0 %5822, %v5817
  %v5824 = vpop.permute.xlu0 %5823
  %5827 = vset.pattern.permute.xlu0 0
  %5828 = vperm.xlu0 %5827, %v5818
  %v5829 = vpop.permute.xlu0 %5828
  %5832 = vset.pattern.permute.xlu0 0
  %5833 = vperm.xlu0 %5832, %v5819
  %v5834 = vpop.permute.xlu0 %5833
  %5837 = vset.pattern.permute.xlu0 0
  %5838 = vperm.xlu0 %5837, %v5820
  %v5839 = vpop.permute.xlu0 %5838
  %v5841 = vmul.f32 %v5591, %v5824
  %v5842 = vmul.f32 %v5592, %v5824
  %v5843 = vmul.f32 %v5593, %v5824
  %v5844 = vmul.f32 %v5594, %v5824
  %v5845 = vmul.f32 %v5595, %v5829
  %v5846 = vmul.f32 %v5596, %v5829
  %v5847 = vmul.f32 %v5597, %v5829
  %v5848 = vmul.f32 %v5598, %v5829
  %v5849 = vmul.f32 %v5599, %v5834
  %v5850 = vmul.f32 %v5600, %v5834
  %v5851 = vmul.f32 %v5601, %v5834
  %v5852 = vmul.f32 %v5602, %v5834
  %v5853 = vmul.f32 %v5603, %v5839
  %v5854 = vmul.f32 %v5604, %v5839
  %v5855 = vmul.f32 %v5605, %v5839
  %v5856 = vmul.f32 %v5606, %v5839
  %5857 = vset.pattern.permute.xlu0 2
  %5858 = vperm.xlu0 %5857, %v5005
  %v5859 = vpop.permute.xlu0 %5858
  %5861 = vset.pattern.permute.xlu0 2
  %5862 = vperm.xlu0 %5861, %v5006
  %v5863 = vpop.permute.xlu0 %5862
  %5865 = vset.pattern.permute.xlu0 2
  %5866 = vperm.xlu0 %5865, %v5007
  %v5867 = vpop.permute.xlu0 %5866
  %5869 = vset.pattern.permute.xlu0 2
  %5870 = vperm.xlu0 %5869, %v5008
  %v5871 = vpop.permute.xlu0 %5870
  %v5873 = vadd.f32 %v5841, %v5859
  %v5874 = vadd.f32 %v5842, %v5859
  %v5875 = vadd.f32 %v5843, %v5859
  %v5876 = vadd.f32 %v5844, %v5859
  %v5877 = vadd.f32 %v5845, %v5863
  %v5878 = vadd.f32 %v5846, %v5863
  %v5879 = vadd.f32 %v5847, %v5863
  %v5880 = vadd.f32 %v5848, %v5863
  %v5881 = vadd.f32 %v5849, %v5867
  %v5882 = vadd.f32 %v5850, %v5867
  %v5883 = vadd.f32 %v5851, %v5867
  %v5884 = vadd.f32 %v5852, %v5867
  %v5885 = vadd.f32 %v5853, %v5871
  %v5886 = vadd.f32 %v5854, %v5871
  %v5887 = vadd.f32 %v5855, %v5871
  %v5888 = vadd.f32 %v5856, %v5871
  %v5889 = vmax.f32 %v5873, 0.0
  %v5890 = vmax.f32 %v5874, 0.0
  %v5891 = vmax.f32 %v5875, 0.0
  %v5892 = vmax.f32 %v5876, 0.0
  %v5893 = vmax.f32 %v5877, 0.0
  %v5894 = vmax.f32 %v5878, 0.0
  %v5895 = vmax.f32 %v5879, 0.0
  %v5896 = vmax.f32 %v5880, 0.0
  %v5897 = vmax.f32 %v5881, 0.0
  %v5898 = vmax.f32 %v5882, 0.0
  %v5899 = vmax.f32 %v5883, 0.0
  %v5900 = vmax.f32 %v5884, 0.0
  %v5901 = vmax.f32 %v5885, 0.0
  %v5902 = vmax.f32 %v5886, 0.0
  %v5903 = vmax.f32 %v5887, 0.0
  %v5904 = vmax.f32 %v5888, 0.0
  %5905 = vrot.lane.b32.xlu0 %v5889, 127
  %v5906 = vpop.permute.xlu0 %5905
  %5907 = vrot.lane.b32.xlu0 %v5893, 127
  %v5908 = vpop.permute.xlu0 %5907
  %5909 = vrot.lane.b32.xlu0 %v5897, 127
  %v5910 = vpop.permute.xlu0 %5909
  %5911 = vrot.lane.b32.xlu0 %v5901, 127
  %v5912 = vpop.permute.xlu0 %5911
  %5913 = vrot.lane.b32.xlu0 %v5890, 127
  %v5914 = vpop.permute.xlu0 %5913
  %5915 = vrot.lane.b32.xlu0 %v5894, 127
  %v5916 = vpop.permute.xlu0 %5915
  %5917 = vrot.lane.b32.xlu0 %v5898, 127
  %v5918 = vpop.permute.xlu0 %5917
  %5919 = vrot.lane.b32.xlu0 %v5902, 127
  %v5920 = vpop.permute.xlu0 %5919
  %5921 = vrot.lane.b32.xlu0 %v5891, 127
  %v5922 = vpop.permute.xlu0 %5921
  %5923 = vrot.lane.b32.xlu0 %v5895, 127
  %v5924 = vpop.permute.xlu0 %5923
  %5925 = vrot.lane.b32.xlu0 %v5899, 127
  %v5926 = vpop.permute.xlu0 %5925
  %5927 = vrot.lane.b32.xlu0 %v5903, 127
  %v5928 = vpop.permute.xlu0 %5927
  %5929 = vrot.lane.b32.xlu0 %v5892, 127
  %v5930 = vpop.permute.xlu0 %5929
  %5931 = vrot.lane.b32.xlu0 %v5896, 127
  %v5932 = vpop.permute.xlu0 %5931
  %5933 = vrot.lane.b32.xlu0 %v5900, 127
  %v5934 = vpop.permute.xlu0 %5933
  %5935 = vrot.lane.b32.xlu0 %v5904, 127
  %v5936 = vpop.permute.xlu0 %5935
  %v5937 = vsel %vm422, %v5922, %v5930
  %v5938 = vsel %vm422, %v5924, %v5932
  %v5939 = vsel %vm422, %v5926, %v5934
  %v5940 = vsel %vm422, %v5928, %v5936
  %v5941 = vsel %vm422, %v5914, %v5922
  %v5942 = vsel %vm422, %v5916, %v5924
  %v5943 = vsel %vm422, %v5918, %v5926
  %v5944 = vsel %vm422, %v5920, %v5928
  %v5945 = vsel %vm422, %v5906, %v5914
  %v5946 = vsel %vm422, %v5908, %v5916
  %v5947 = vsel %vm422, %v5910, %v5918
  %v5948 = vsel %vm422, %v5912, %v5920
  %v5949 = vsel %vm422, %v5930, %v5906
  %v5950 = vsel %vm422, %v5932, %v5908
  %v5951 = vsel %vm422, %v5934, %v5910
  %v5952 = vsel %vm422, %v5936, %v5912
  %v5953 = vmax.f32 %v5889, %v5945
  %v5954 = vmax.f32 %v5890, %v5941
  %v5955 = vmax.f32 %v5891, %v5937
  %v5956 = vmax.f32 %v5892, %v5949
  %v5957 = vmax.f32 %v5893, %v5946
  %v5958 = vmax.f32 %v5894, %v5942
  %v5959 = vmax.f32 %v5895, %v5938
  %v5960 = vmax.f32 %v5896, %v5950
  %v5961 = vmax.f32 %v5897, %v5947
  %v5962 = vmax.f32 %v5898, %v5943
  %v5963 = vmax.f32 %v5899, %v5939
  %v5964 = vmax.f32 %v5900, %v5951
  %v5965 = vmax.f32 %v5901, %v5948
  %v5966 = vmax.f32 %v5902, %v5944
  %v5967 = vmax.f32 %v5903, %v5940
  %v5968 = vmax.f32 %v5904, %v5952
  %5969 = vrot.lane.b32.xlu0 %v5953, 112
  %v5970 = vpop.permute.xlu0 %5969
  %5971 = vrot.lane.b32.xlu0 %v5957, 112
  %v5972 = vpop.permute.xlu0 %5971
  %5973 = vrot.lane.b32.xlu0 %v5961, 112
  %v5974 = vpop.permute.xlu0 %5973
  %5975 = vrot.lane.b32.xlu0 %v5965, 112
  %v5976 = vpop.permute.xlu0 %5975
  %5977 = vrot.lane.b32.xlu0 %v5954, 112
  %v5978 = vpop.permute.xlu0 %5977
  %5979 = vrot.lane.b32.xlu0 %v5958, 112
  %v5980 = vpop.permute.xlu0 %5979
  %5981 = vrot.lane.b32.xlu0 %v5962, 112
  %v5982 = vpop.permute.xlu0 %5981
  %5983 = vrot.lane.b32.xlu0 %v5966, 112
  %v5984 = vpop.permute.xlu0 %5983
  %5985 = vrot.lane.b32.xlu0 %v5955, 112
  %v5986 = vpop.permute.xlu0 %5985
  %5987 = vrot.lane.b32.xlu0 %v5959, 112
  %v5988 = vpop.permute.xlu0 %5987
  %5989 = vrot.lane.b32.xlu0 %v5963, 112
  %v5990 = vpop.permute.xlu0 %5989
  %5991 = vrot.lane.b32.xlu0 %v5967, 112
  %v5992 = vpop.permute.xlu0 %5991
  %5993 = vrot.lane.b32.xlu0 %v5956, 112
  %v5994 = vpop.permute.xlu0 %5993
  %5995 = vrot.lane.b32.xlu0 %v5960, 112
  %v5996 = vpop.permute.xlu0 %5995
  %5997 = vrot.lane.b32.xlu0 %v5964, 112
  %v5998 = vpop.permute.xlu0 %5997
  %5999 = vrot.lane.b32.xlu0 %v5968, 112
  %v6000 = vpop.permute.xlu0 %5999
  %v6001 = vsel %vm584, %v5986, %v5994
  %v6002 = vsel %vm584, %v5988, %v5996
  %v6003 = vsel %vm584, %v5990, %v5998
  %v6004 = vsel %vm584, %v5992, %v6000
  %v6005 = vsel %vm584, %v5978, %v5986
  %v6006 = vsel %vm584, %v5980, %v5988
  %v6007 = vsel %vm584, %v5982, %v5990
  %v6008 = vsel %vm584, %v5984, %v5992
  %v6009 = vsel %vm584, %v5970, %v5978
  %v6010 = vsel %vm584, %v5972, %v5980
  %v6011 = vsel %vm584, %v5974, %v5982
  %v6012 = vsel %vm584, %v5976, %v5984
  %v6013 = vsel %vm584, %v5994, %v5970
  %v6014 = vsel %vm584, %v5996, %v5972
  %v6015 = vsel %vm584, %v5998, %v5974
  %v6016 = vsel %vm584, %v6000, %v5976
  %v6017 = vmax.f32 %v5953, %v6009
  %v6018 = vmax.f32 %v5954, %v6005
  %v6019 = vmax.f32 %v5955, %v6001
  %v6020 = vmax.f32 %v5956, %v6013
  %v6021 = vmax.f32 %v5957, %v6010
  %v6022 = vmax.f32 %v5958, %v6006
  %v6023 = vmax.f32 %v5959, %v6002
  %v6024 = vmax.f32 %v5960, %v6014
  %v6025 = vmax.f32 %v5961, %v6011
  %v6026 = vmax.f32 %v5962, %v6007
  %v6027 = vmax.f32 %v5963, %v6003
  %v6028 = vmax.f32 %v5964, %v6015
  %v6029 = vmax.f32 %v5965, %v6012
  %v6030 = vmax.f32 %v5966, %v6008
  %v6031 = vmax.f32 %v5967, %v6004
  %v6032 = vmax.f32 %v5968, %v6016
  %v6033 = vld [vmem:[%s5] sm:$0xff]
  %v6034 = vld [vmem:[%s5 + $0x8] sm:$0xff]
  %v6035 = vld [vmem:[%s5 + $0x10] sm:$0xff]
  %v6036 = vld [vmem:[%s5 + $0x18] sm:$0xff]
  %v6037 = vld [vmem:[%s5 + $0x20] sm:$0xff]
  %v6038 = vld [vmem:[%s5 + $0x28] sm:$0xff]
  %v6039 = vld [vmem:[%s5 + $0x30] sm:$0xff]
  %v6040 = vld [vmem:[%s5 + $0x38] sm:$0xff]
  %v6041 = vld [vmem:[%s5 + $0x40] sm:$0xff]
  %v6042 = vld [vmem:[%s5 + $0x48] sm:$0xff]
  %v6043 = vld [vmem:[%s5 + $0x50] sm:$0xff]
  %v6044 = vld [vmem:[%s5 + $0x58] sm:$0xff]
  %v6045 = vld [vmem:[%s5 + $0x60] sm:$0xff]
  %v6046 = vld [vmem:[%s5 + $0x68] sm:$0xff]
  %v6047 = vld [vmem:[%s5 + $0x70] sm:$0xff]
  %v6048 = vld [vmem:[%s5 + $0x78] sm:$0xff]
  %v6049 = vld [vmem:[%s5 + $0x80] sm:$0xff]
  %v6050 = vld [vmem:[%s5 + $0x88] sm:$0xff]
  %v6051 = vld [vmem:[%s5 + $0x90] sm:$0xff]
  %v6052 = vld [vmem:[%s5 + $0x98] sm:$0xff]
  %v6053 = vld [vmem:[%s5 + $0xa0] sm:$0xff]
  %v6054 = vld [vmem:[%s5 + $0xa8] sm:$0xff]
  %v6055 = vld [vmem:[%s5 + $0xb0] sm:$0xff]
  %v6056 = vld [vmem:[%s5 + $0xb8] sm:$0xff]
  %v6057 = vld [vmem:[%s5 + $0xc0] sm:$0xff]
  %v6058 = vld [vmem:[%s5 + $0xc8] sm:$0xff]
  %v6059 = vld [vmem:[%s5 + $0xd0] sm:$0xff]
  %v6060 = vld [vmem:[%s5 + $0xd8] sm:$0xff]
  %v6061 = vld [vmem:[%s5 + $0xe0] sm:$0xff]
  %v6062 = vld [vmem:[%s5 + $0xe8] sm:$0xff]
  %v6063 = vld [vmem:[%s5 + $0xf0] sm:$0xff]
  %v6064 = vld [vmem:[%s5 + $0xf8] sm:$0xff]
  %v6065 = vld [vmem:[%s5 + $0x100] sm:$0xff]
  %v6066 = vld [vmem:[%s5 + $0x108] sm:$0xff]
  %v6067 = vld [vmem:[%s5 + $0x110] sm:$0xff]
  %v6068 = vld [vmem:[%s5 + $0x118] sm:$0xff]
  %v6069 = vld [vmem:[%s5 + $0x120] sm:$0xff]
  %v6070 = vld [vmem:[%s5 + $0x128] sm:$0xff]
  %v6071 = vld [vmem:[%s5 + $0x130] sm:$0xff]
  %v6072 = vld [vmem:[%s5 + $0x138] sm:$0xff]
  %v6073 = vld [vmem:[%s5 + $0x140] sm:$0xff]
  %v6074 = vld [vmem:[%s5 + $0x148] sm:$0xff]
  %v6075 = vld [vmem:[%s5 + $0x150] sm:$0xff]
  %v6076 = vld [vmem:[%s5 + $0x158] sm:$0xff]
  %v6077 = vld [vmem:[%s5 + $0x160] sm:$0xff]
  %v6078 = vld [vmem:[%s5 + $0x168] sm:$0xff]
  %v6079 = vld [vmem:[%s5 + $0x170] sm:$0xff]
  %v6080 = vld [vmem:[%s5 + $0x178] sm:$0xff]
  %v6081 = vld [vmem:[%s5 + $0x180] sm:$0xff]
  %v6082 = vld [vmem:[%s5 + $0x188] sm:$0xff]
  %v6083 = vld [vmem:[%s5 + $0x190] sm:$0xff]
  %v6084 = vld [vmem:[%s5 + $0x198] sm:$0xff]
  %v6085 = vld [vmem:[%s5 + $0x1a0] sm:$0xff]
  %v6086 = vld [vmem:[%s5 + $0x1a8] sm:$0xff]
  %v6087 = vld [vmem:[%s5 + $0x1b0] sm:$0xff]
  %v6088 = vld [vmem:[%s5 + $0x1b8] sm:$0xff]
  %v6089 = vld [vmem:[%s5 + $0x1c0] sm:$0xff]
  %v6090 = vld [vmem:[%s5 + $0x1c8] sm:$0xff]
  %v6091 = vld [vmem:[%s5 + $0x1d0] sm:$0xff]
  %v6092 = vld [vmem:[%s5 + $0x1d8] sm:$0xff]
  %v6093 = vld [vmem:[%s5 + $0x1e0] sm:$0xff]
  %v6094 = vld [vmem:[%s5 + $0x1e8] sm:$0xff]
  %v6095 = vld [vmem:[%s5 + $0x1f0] sm:$0xff]
  %v6096 = vld [vmem:[%s5 + $0x1f8] sm:$0xff]
  %6097 = vmatprep.subr.mxu0 0.0
  %6098 = vmatpush1.msra.mxu0 %v6033
  %6099 = vmatprep.subr.mxu0 0.0
  %6100 = vmatpush1.msra.mxu0 %v6034
  %6101 = vmatprep.subr.mxu0 0.0
  %6102 = vmatpush1.msra.mxu0 %v6035
  %6103 = vmatprep.subr.mxu0 0.0
  %6104 = vmatpush1.msra.mxu0 %v6036
  %6105 = vmatprep.subr.mxu0 0.0
  %6106 = vmatpush1.msra.mxu0 %v6037
  %6107 = vmatprep.subr.mxu0 0.0
  %6108 = vmatpush1.msra.mxu0 %v6038
  %6109 = vmatprep.subr.mxu0 0.0
  %6110 = vmatpush1.msra.mxu0 %v6039
  %6111 = vmatprep.subr.mxu0 0.0
  %6112 = vmatpush1.msra.mxu0 %v6040
  %6113 = vmatprep.subr.mxu0 0.0
  %6114 = vmatpush1.msra.mxu0 %v6041
  %6115 = vmatprep.subr.mxu0 0.0
  %6116 = vmatpush1.msra.mxu0 %v6042
  %6117 = vmatprep.subr.mxu0 0.0
  %6118 = vmatpush1.msra.mxu0 %v6043
  %6119 = vmatprep.subr.mxu0 0.0
  %6120 = vmatpush1.msra.mxu0 %v6044
  %6121 = vmatprep.subr.mxu0 0.0
  %6122 = vmatpush1.msra.mxu0 %v6045
  %6123 = vmatprep.subr.mxu0 0.0
  %6124 = vmatpush1.msra.mxu0 %v6046
  %6125 = vmatprep.subr.mxu0 0.0
  %6126 = vmatpush1.msra.mxu0 %v6047
  %6127 = vmatprep.subr.mxu0 0.0
  %6128 = vmatpush1.msra.mxu0 %v6048
  %6129 = vmatprep.subr.mxu0 0.0
  %6130 = vmatpush1.msra.mxu0 %v6049
  %6131 = vmatprep.subr.mxu0 0.0
  %6132 = vmatpush1.msra.mxu0 %v6050
  %6133 = vmatprep.subr.mxu0 0.0
  %6134 = vmatpush1.msra.mxu0 %v6051
  %6135 = vmatprep.subr.mxu0 0.0
  %6136 = vmatpush1.msra.mxu0 %v6052
  %6137 = vmatprep.subr.mxu0 0.0
  %6138 = vmatpush1.msra.mxu0 %v6053
  %6139 = vmatprep.subr.mxu0 0.0
  %6140 = vmatpush1.msra.mxu0 %v6054
  %6141 = vmatprep.subr.mxu0 0.0
  %6142 = vmatpush1.msra.mxu0 %v6055
  %6143 = vmatprep.subr.mxu0 0.0
  %6144 = vmatpush1.msra.mxu0 %v6056
  %6145 = vmatprep.subr.mxu0 0.0
  %6146 = vmatpush1.msra.mxu0 %v6057
  %6147 = vmatprep.subr.mxu0 0.0
  %6148 = vmatpush1.msra.mxu0 %v6058
  %6149 = vmatprep.subr.mxu0 0.0
  %6150 = vmatpush1.msra.mxu0 %v6059
  %6151 = vmatprep.subr.mxu0 0.0
  %6152 = vmatpush1.msra.mxu0 %v6060
  %6153 = vmatprep.subr.mxu0 0.0
  %6154 = vmatpush1.msra.mxu0 %v6061
  %6155 = vmatprep.subr.mxu0 0.0
  %6156 = vmatpush1.msra.mxu0 %v6062
  %6157 = vmatprep.subr.mxu0 0.0
  %6158 = vmatpush1.msra.mxu0 %v6063
  %6159 = vmatprep.subr.mxu0 0.0
  %6160 = vmatpush1.msra.mxu0 %v6064
  %6161 = vmatprep.mubr.f32.mxu0 %v6018
  %6162 = vmatmul.mubr.f32.gmra.mrb[0].mxu0 %v6017
  %v6163 = vpop.f32.mrb[0].mxu0
  %v6164 = vadd.f32 0.0, %v6163
  %v6165 = vpop.f32.mrb[0].mxu0
  %6166 = vmatprep.mubr.f32.mxu0 %v6022
  %6167 = vmatmul.mubr.f32.gmra.mrb[0].mxu0 %v6021
  %v6168 = vpop.f32.mrb[0].mxu0
  %v6169 = vadd.f32 0.0, %v6168
  %v6170 = vpop.f32.mrb[0].mxu0
  %6171 = vmatprep.mubr.f32.mxu0 %v6026
  %6172 = vmatmul.mubr.f32.gmra.mrb[0].mxu0 %v6025
  %v6173 = vpop.f32.mrb[0].mxu0
  %v6174 = vadd.f32 0.0, %v6173
  %v6175 = vpop.f32.mrb[0].mxu0
  %6176 = vmatprep.mubr.f32.mxu0 %v6030
  %6177 = vmatmul.mubr.f32.gmra.mrb[0].mxu0 %v6029
  %v6178 = vpop.f32.mrb[0].mxu0
  %v6179 = vadd.f32 0.0, %v6178
  %v6180 = vpop.f32.mrb[0].mxu0
  %6181 = vdwg.mxu0
  %6182 = vmatprep.subr.mxu0 0.0
  %6183 = vmatpush1.msra.mxu0 %v6065
  %6184 = vmatprep.subr.mxu0 0.0
  %6185 = vmatpush1.msra.mxu0 %v6066
  %6186 = vmatprep.subr.mxu0 0.0
  %6187 = vmatpush1.msra.mxu0 %v6067
  %6188 = vmatprep.subr.mxu0 0.0
  %6189 = vmatpush1.msra.mxu0 %v6068
  %6190 = vmatprep.subr.mxu0 0.0
  %6191 = vmatpush1.msra.mxu0 %v6069
  %6192 = vmatprep.subr.mxu0 0.0
  %6193 = vmatpush1.msra.mxu0 %v6070
  %6194 = vmatprep.subr.mxu0 0.0
  %6195 = vmatpush1.msra.mxu0 %v6071
  %6196 = vmatprep.subr.mxu0 0.0
  %6197 = vmatpush1.msra.mxu0 %v6072
  %6198 = vmatprep.subr.mxu0 0.0
  %6199 = vmatpush1.msra.mxu0 %v6073
  %6200 = vmatprep.subr.mxu0 0.0
  %6201 = vmatpush1.msra.mxu0 %v6074
  %6202 = vmatprep.subr.mxu0 0.0
  %6203 = vmatpush1.msra.mxu0 %v6075
  %6204 = vmatprep.subr.mxu0 0.0
  %6205 = vmatpush1.msra.mxu0 %v6076
  %6206 = vmatprep.subr.mxu0 0.0
  %6207 = vmatpush1.msra.mxu0 %v6077
  %6208 = vmatprep.subr.mxu0 0.0
  %6209 = vmatpush1.msra.mxu0 %v6078
  %6210 = vmatprep.subr.mxu0 0.0
  %6211 = vmatpush1.msra.mxu0 %v6079
  %6212 = vmatprep.subr.mxu0 0.0
  %6213 = vmatpush1.msra.mxu0 %v6080
  %6214 = vmatprep.subr.mxu0 0.0
  %6215 = vmatpush1.msra.mxu0 %v6081
  %6216 = vmatprep.subr.mxu0 0.0
  %6217 = vmatpush1.msra.mxu0 %v6082
  %6218 = vmatprep.subr.mxu0 0.0
  %6219 = vmatpush1.msra.mxu0 %v6083
  %6220 = vmatprep.subr.mxu0 0.0
  %6221 = vmatpush1.msra.mxu0 %v6084
  %6222 = vmatprep.subr.mxu0 0.0
  %6223 = vmatpush1.msra.mxu0 %v6085
  %6224 = vmatprep.subr.mxu0 0.0
  %6225 = vmatpush1.msra.mxu0 %v6086
  %6226 = vmatprep.subr.mxu0 0.0
  %6227 = vmatpush1.msra.mxu0 %v6087
  %6228 = vmatprep.subr.mxu0 0.0
  %6229 = vmatpush1.msra.mxu0 %v6088
  %6230 = vmatprep.subr.mxu0 0.0
  %6231 = vmatpush1.msra.mxu0 %v6089
  %6232 = vmatprep.subr.mxu0 0.0
  %6233 = vmatpush1.msra.mxu0 %v6090
  %6234 = vmatprep.subr.mxu0 0.0
  %6235 = vmatpush1.msra.mxu0 %v6091
  %6236 = vmatprep.subr.mxu0 0.0
  %6237 = vmatpush1.msra.mxu0 %v6092
  %6238 = vmatprep.subr.mxu0 0.0
  %6239 = vmatpush1.msra.mxu0 %v6093
  %6240 = vmatprep.subr.mxu0 0.0
  %6241 = vmatpush1.msra.mxu0 %v6094
  %6242 = vmatprep.subr.mxu0 0.0
  %6243 = vmatpush1.msra.mxu0 %v6095
  %6244 = vmatprep.subr.mxu0 0.0
  %6245 = vmatpush1.msra.mxu0 %v6096
  %6246 = vmatprep.mubr.f32.mxu0 %v6020
  %6247 = vmatmul.mubr.f32.gmra.mrb[0].mxu0 %v6019
  %v6248 = vpop.f32.mrb[0].mxu0
  %v6249 = vadd.f32 %v6164, %v6248
  %v6250 = vpop.f32.mrb[0].mxu0
  %6251 = vmatprep.mubr.f32.mxu0 %v6024
  %6252 = vmatmul.mubr.f32.gmra.mrb[0].mxu0 %v6023
  %v6253 = vpop.f32.mrb[0].mxu0
  %v6254 = vadd.f32 %v6169, %v6253
  %v6255 = vpop.f32.mrb[0].mxu0
  %6256 = vmatprep.mubr.f32.mxu0 %v6028
  %6257 = vmatmul.mubr.f32.gmra.mrb[0].mxu0 %v6027
  %v6258 = vpop.f32.mrb[0].mxu0
  %v6259 = vadd.f32 %v6174, %v6258
  %v6260 = vpop.f32.mrb[0].mxu0
  %6261 = vmatprep.mubr.f32.mxu0 %v6032
  %6262 = vmatmul.mubr.f32.gmra.mrb[0].mxu0 %v6031
  %v6263 = vpop.f32.mrb[0].mxu0
  %v6264 = vadd.f32 %v6179, %v6263
  %v6265 = vpop.f32.mrb[0].mxu0
  %6266 = vdwg.mxu0
  %6267 = vrot.lane.b32.xlu0 %v6249, 9
  %v6268 = vpop.permute.xlu0 %6267
  %6269 = vrot.lane.b32.xlu0 %v6254, 9
  %v6270 = vpop.permute.xlu0 %6269
  %6271 = vrot.lane.b32.xlu0 %v6259, 9
  %v6272 = vpop.permute.xlu0 %6271
  %6273 = vrot.lane.b32.xlu0 %v6264, 9
  %v6274 = vpop.permute.xlu0 %6273
  %v6275 = vlaneseq
  %v6276 = vshrl.u32 %v6275, 7
  %v6277 = vsub.s32 0, %v6276
  %v6278 = vrot.slane %v46, %v6277
  %v6279 = vmul.f32 %v6268, %v6278
  %v6280 = vmul.f32 %v6270, %v6278
  %v6281 = vmul.f32 %v6272, %v6278
  %v6282 = vmul.f32 %v6274, %v6278
  %6283 = vrot.lane.b32.xlu0 %v6249, 8
  %v6284 = vpop.permute.xlu0 %6283
  %6285 = vrot.lane.b32.xlu0 %v6254, 8
  %v6286 = vpop.permute.xlu0 %6285
  %6287 = vrot.lane.b32.xlu0 %v6259, 8
  %v6288 = vpop.permute.xlu0 %6287
  %6289 = vrot.lane.b32.xlu0 %v6264, 8
  %v6290 = vpop.permute.xlu0 %6289
  %v6291 = vlaneseq
  %v6292 = vshrl.u32 %v6291, 7
  %v6293 = vsub.s32 1, %v6292
  %v6294 = vrot.slane %v46, %v6293
  %v6295 = vmul.f32 %v6284, %v6294
  %v6296 = vmul.f32 %v6286, %v6294
  %v6297 = vmul.f32 %v6288, %v6294
  %v6298 = vmul.f32 %v6290, %v6294
  %6299 = vrot.lane.b32.xlu0 %v6249, 7
  %v6300 = vpop.permute.xlu0 %6299
  %6301 = vrot.lane.b32.xlu0 %v6254, 7
  %v6302 = vpop.permute.xlu0 %6301
  %6303 = vrot.lane.b32.xlu0 %v6259, 7
  %v6304 = vpop.permute.xlu0 %6303
  %6305 = vrot.lane.b32.xlu0 %v6264, 7
  %v6306 = vpop.permute.xlu0 %6305
  %v6307 = vlaneseq
  %v6308 = vshrl.u32 %v6307, 7
  %v6309 = vsub.s32 2, %v6308
  %v6310 = vrot.slane %v46, %v6309
  %v6311 = vmul.f32 %v6300, %v6310
  %v6312 = vmul.f32 %v6302, %v6310
  %v6313 = vmul.f32 %v6304, %v6310
  %v6314 = vmul.f32 %v6306, %v6310
  %6315 = vrot.lane.b32.xlu0 %v6249, 1
  %v6316 = vpop.permute.xlu0 %6315
  %6317 = vrot.lane.b32.xlu0 %v6254, 1
  %v6318 = vpop.permute.xlu0 %6317
  %6319 = vrot.lane.b32.xlu0 %v6259, 1
  %v6320 = vpop.permute.xlu0 %6319
  %6321 = vrot.lane.b32.xlu0 %v6264, 1
  %v6322 = vpop.permute.xlu0 %6321
  %v6323 = vlaneseq
  %v6324 = vshrl.u32 %v6323, 7
  %v6325 = vsub.s32 3, %v6324
  %v6326 = vrot.slane %v46, %v6325
  %v6327 = vmul.f32 %v6316, %v6326
  %v6328 = vmul.f32 %v6318, %v6326
  %v6329 = vmul.f32 %v6320, %v6326
  %v6330 = vmul.f32 %v6322, %v6326
  %6331 = vrot.lane.b32.xlu0 %v6249, 127
  %v6332 = vpop.permute.xlu0 %6331
  %6333 = vrot.lane.b32.xlu0 %v6254, 127
  %v6334 = vpop.permute.xlu0 %6333
  %6335 = vrot.lane.b32.xlu0 %v6259, 127
  %v6336 = vpop.permute.xlu0 %6335
  %6337 = vrot.lane.b32.xlu0 %v6264, 127
  %v6338 = vpop.permute.xlu0 %6337
  %v6339 = vlaneseq
  %v6340 = vshrl.u32 %v6339, 7
  %v6341 = vsub.s32 5, %v6340
  %v6342 = vrot.slane %v46, %v6341
  %v6343 = vmul.f32 %v6332, %v6342
  %v6344 = vmul.f32 %v6334, %v6342
  %v6345 = vmul.f32 %v6336, %v6342
  %v6346 = vmul.f32 %v6338, %v6342
  %6347 = vrot.lane.b32.xlu0 %v6249, 121
  %v6348 = vpop.permute.xlu0 %6347
  %6349 = vrot.lane.b32.xlu0 %v6254, 121
  %v6350 = vpop.permute.xlu0 %6349
  %6351 = vrot.lane.b32.xlu0 %v6259, 121
  %v6352 = vpop.permute.xlu0 %6351
  %6353 = vrot.lane.b32.xlu0 %v6264, 121
  %v6354 = vpop.permute.xlu0 %6353
  %v6355 = vlaneseq
  %v6356 = vshrl.u32 %v6355, 7
  %v6357 = vsub.s32 6, %v6356
  %v6358 = vrot.slane %v46, %v6357
  %v6359 = vmul.f32 %v6348, %v6358
  %v6360 = vmul.f32 %v6350, %v6358
  %v6361 = vmul.f32 %v6352, %v6358
  %v6362 = vmul.f32 %v6354, %v6358
  %6363 = vrot.lane.b32.xlu0 %v6249, 120
  %v6364 = vpop.permute.xlu0 %6363
  %6365 = vrot.lane.b32.xlu0 %v6254, 120
  %v6366 = vpop.permute.xlu0 %6365
  %6367 = vrot.lane.b32.xlu0 %v6259, 120
  %v6368 = vpop.permute.xlu0 %6367
  %6369 = vrot.lane.b32.xlu0 %v6264, 120
  %v6370 = vpop.permute.xlu0 %6369
  %v6371 = vlaneseq
  %v6372 = vshrl.u32 %v6371, 7
  %v6373 = vsub.s32 7, %v6372
  %v6374 = vrot.slane %v46, %v6373
  %v6375 = vmul.f32 %v6364, %v6374
  %v6376 = vmul.f32 %v6366, %v6374
  %v6377 = vmul.f32 %v6368, %v6374
  %v6378 = vmul.f32 %v6370, %v6374
  %6379 = vrot.lane.b32.xlu0 %v6249, 119
  %v6380 = vpop.permute.xlu0 %6379
  %6381 = vrot.lane.b32.xlu0 %v6254, 119
  %v6382 = vpop.permute.xlu0 %6381
  %6383 = vrot.lane.b32.xlu0 %v6259, 119
  %v6384 = vpop.permute.xlu0 %6383
  %6385 = vrot.lane.b32.xlu0 %v6264, 119
  %v6386 = vpop.permute.xlu0 %6385
  %v6387 = vlaneseq
  %v6388 = vshrl.u32 %v6387, 7
  %v6389 = vsub.s32 0, %v6388
  %v6390 = vrot.slane %v47, %v6389
  %v6391 = vmul.f32 %v6380, %v6390
  %v6392 = vmul.f32 %v6382, %v6390
  %v6393 = vmul.f32 %v6384, %v6390
  %v6394 = vmul.f32 %v6386, %v6390
  %s6395 = scalar_lea.vmem %s1, 384
  %v6396 = vld [vmem:[%s6395] sm:$0xff]
  %v6397 = vld [vmem:[%s6395 + $0x8] sm:$0xff]
  %v6398 = vld [vmem:[%s6395 + $0x10] sm:$0xff]
  %v6399 = vld [vmem:[%s6395 + $0x18] sm:$0xff]
  %v6400 = vld [vmem:[%s6395 + $0x20] sm:$0xff]
  %v6401 = vld [vmem:[%s6395 + $0x28] sm:$0xff]
  %v6402 = vld [vmem:[%s6395 + $0x30] sm:$0xff]
  %v6403 = vld [vmem:[%s6395 + $0x38] sm:$0xff]
  %v6404 = vld [vmem:[%s6395 + $0x40] sm:$0xff]
  %v6405 = vld [vmem:[%s6395 + $0x48] sm:$0xff]
  %v6406 = vld [vmem:[%s6395 + $0x50] sm:$0xff]
  %v6407 = vld [vmem:[%s6395 + $0x58] sm:$0xff]
  %s6408 = scalar_lea.vmem %s2, 128
  %v6409 = vld [vmem:[%s6408] sm:$0xff]
  %v6410 = vld [vmem:[%s6408 + $0x8] sm:$0xff]
  %v6411 = vld [vmem:[%s6408 + $0x10] sm:$0xff]
  %v6412 = vld [vmem:[%s6408 + $0x18] sm:$0xff]
  %6414 = vset.pattern.permute.xlu0 0
  %6415 = vperm.xlu0 %6414, %v6409
  %v6416 = vpop.permute.xlu0 %6415
  %6419 = vset.pattern.permute.xlu0 0
  %6420 = vperm.xlu0 %6419, %v6410
  %v6421 = vpop.permute.xlu0 %6420
  %6424 = vset.pattern.permute.xlu0 0
  %6425 = vperm.xlu0 %6424, %v6411
  %v6426 = vpop.permute.xlu0 %6425
  %6429 = vset.pattern.permute.xlu0 0
  %6430 = vperm.xlu0 %6429, %v6412
  %v6431 = vpop.permute.xlu0 %6430
  %v6434 = vsel %vm750, %v6398, 0
  %v6437 = vsel %vm750, %v6401, 0
  %v6440 = vsel %vm750, %v6404, 0
  %v6443 = vsel %vm750, %v6407, 0
  %6445 = vmatprep.subr.mxu0 0.0
  %6446 = vmatpush1.msra.mxu0 %v6279
  %6447 = vmatprep.subr.mxu0 0.0
  %6448 = vmatpush1.msra.mxu0 %v6280
  %6449 = vmatprep.subr.mxu0 0.0
  %6450 = vmatpush1.msra.mxu0 %v6281
  %6451 = vmatprep.subr.mxu0 0.0
  %6452 = vmatpush1.msra.mxu0 %v6282
  %6453 = vmatprep.subr.mxu0 0.0
  %6454 = vmatpush1.msra.mxu0 %v6295
  %6455 = vmatprep.subr.mxu0 0.0
  %6456 = vmatpush1.msra.mxu0 %v6296
  %6457 = vmatprep.subr.mxu0 0.0
  %6458 = vmatpush1.msra.mxu0 %v6297
  %6459 = vmatprep.subr.mxu0 0.0
  %6460 = vmatpush1.msra.mxu0 %v6298
  %6461 = vmatprep.subr.mxu0 0.0
  %6462 = vmatpush1.msra.mxu0 %v6311
  %6463 = vmatprep.subr.mxu0 0.0
  %6464 = vmatpush1.msra.mxu0 %v6312
  %6465 = vmatprep.subr.mxu0 0.0
  %6466 = vmatpush1.msra.mxu0 %v6313
  %6467 = vmatprep.subr.mxu0 0.0
  %6468 = vmatpush1.msra.mxu0 %v6314
  %6469 = vmatprep.subr.mxu0 0.0
  %6470 = vmatpush1.msra.mxu0 %v6327
  %6471 = vmatprep.subr.mxu0 0.0
  %6472 = vmatpush1.msra.mxu0 %v6328
  %6473 = vmatprep.subr.mxu0 0.0
  %6474 = vmatpush1.msra.mxu0 %v6329
  %6475 = vmatprep.subr.mxu0 0.0
  %6476 = vmatpush1.msra.mxu0 %v6330
  %6477 = vmatprep.subr.mxu0 0.0
  %6478 = vmatpush1.msra.mxu0 %v6249
  %6479 = vmatprep.subr.mxu0 0.0
  %6480 = vmatpush1.msra.mxu0 %v6254
  %6481 = vmatprep.subr.mxu0 0.0
  %6482 = vmatpush1.msra.mxu0 %v6259
  %6483 = vmatprep.subr.mxu0 0.0
  %6484 = vmatpush1.msra.mxu0 %v6264
  %6485 = vmatprep.subr.mxu0 0.0
  %6486 = vmatpush1.msra.mxu0 %v6343
  %6487 = vmatprep.subr.mxu0 0.0
  %6488 = vmatpush1.msra.mxu0 %v6344
  %6489 = vmatprep.subr.mxu0 0.0
  %6490 = vmatpush1.msra.mxu0 %v6345
  %6491 = vmatprep.subr.mxu0 0.0
  %6492 = vmatpush1.msra.mxu0 %v6346
  %6493 = vmatprep.subr.mxu0 0.0
  %6494 = vmatpush1.msra.mxu0 %v6359
  %6495 = vmatprep.subr.mxu0 0.0
  %6496 = vmatpush1.msra.mxu0 %v6360
  %6497 = vmatprep.subr.mxu0 0.0
  %6498 = vmatpush1.msra.mxu0 %v6361
  %6499 = vmatprep.subr.mxu0 0.0
  %6500 = vmatpush1.msra.mxu0 %v6362
  %6501 = vmatprep.subr.mxu0 0.0
  %6502 = vmatpush1.msra.mxu0 %v6375
  %6503 = vmatprep.subr.mxu0 0.0
  %6504 = vmatpush1.msra.mxu0 %v6376
  %6505 = vmatprep.subr.mxu0 0.0
  %6506 = vmatpush1.msra.mxu0 %v6377
  %6507 = vmatprep.subr.mxu0 0.0
  %6508 = vmatpush1.msra.mxu0 %v6378
  %6509 = vmatprep.mubr.f32.mxu0 %v6397
  %6510 = vmatmul.mubr.f32.gmra.mrb[0].mxu0 %v6396
  %v6511 = vpop.f32.mrb[0].mxu0
  %v6512 = vadd.f32 %v6416, %v6511
  %v6513 = vpop.f32.mrb[0].mxu0
  %6514 = vmatprep.mubr.f32.mxu0 %v6400
  %6515 = vmatmul.mubr.f32.gmra.mrb[0].mxu0 %v6399
  %v6516 = vpop.f32.mrb[0].mxu0
  %v6517 = vadd.f32 %v6421, %v6516
  %v6518 = vpop.f32.mrb[0].mxu0
  %6519 = vmatprep.mubr.f32.mxu0 %v6403
  %6520 = vmatmul.mubr.f32.gmra.mrb[0].mxu0 %v6402
  %v6521 = vpop.f32.mrb[0].mxu0
  %v6522 = vadd.f32 %v6426, %v6521
  %v6523 = vpop.f32.mrb[0].mxu0
  %6524 = vmatprep.mubr.f32.mxu0 %v6406
  %6525 = vmatmul.mubr.f32.gmra.mrb[0].mxu0 %v6405
  %v6526 = vpop.f32.mrb[0].mxu0
  %v6527 = vadd.f32 %v6431, %v6526
  %v6528 = vpop.f32.mrb[0].mxu0
  %6529 = vdwg.mxu0
  %6530 = vmatprep.subr.mxu0 0.0
  %6531 = vmatpush1.msra.mxu0 %v6391
  %6532 = vmatprep.subr.mxu0 0.0
  %6533 = vmatpush1.msra.mxu0 %v6392
  %6534 = vmatprep.subr.mxu0 0.0
  %6535 = vmatpush1.msra.mxu0 %v6393
  %6536 = vmatprep.subr.mxu0 0.0
  %6537 = vmatpush1.msra.mxu0 %v6394
  %6538 = vmatprep.subr.mxu0 0.0
  %6539 = vmatpush1.msra.mxu0 0.0
  %6540 = vmatprep.subr.mxu0 0.0
  %6541 = vmatpush1.msra.mxu0 0.0
  %6542 = vmatprep.subr.mxu0 0.0
  %6543 = vmatpush1.msra.mxu0 0.0
  %6544 = vmatprep.subr.mxu0 0.0
  %6545 = vmatpush1.msra.mxu0 0.0
  %6546 = vmatprep.subr.mxu0 0.0
  %6547 = vmatpush1.msra.mxu0 0.0
  %6548 = vmatprep.subr.mxu0 0.0
  %6549 = vmatpush1.msra.mxu0 0.0
  %6550 = vmatprep.subr.mxu0 0.0
  %6551 = vmatpush1.msra.mxu0 0.0
  %6552 = vmatprep.subr.mxu0 0.0
  %6553 = vmatpush1.msra.mxu0 0.0
  %6554 = vmatprep.subr.mxu0 0.0
  %6555 = vmatpush1.msra.mxu0 0.0
  %6556 = vmatprep.subr.mxu0 0.0
  %6557 = vmatpush1.msra.mxu0 0.0
  %6558 = vmatprep.subr.mxu0 0.0
  %6559 = vmatpush1.msra.mxu0 0.0
  %6560 = vmatprep.subr.mxu0 0.0
  %6561 = vmatpush1.msra.mxu0 0.0
  %6562 = vmatprep.subr.mxu0 0.0
  %6563 = vmatpush1.msra.mxu0 0.0
  %6564 = vmatprep.subr.mxu0 0.0
  %6565 = vmatpush1.msra.mxu0 0.0
  %6566 = vmatprep.subr.mxu0 0.0
  %6567 = vmatpush1.msra.mxu0 0.0
  %6568 = vmatprep.subr.mxu0 0.0
  %6569 = vmatpush1.msra.mxu0 0.0
  %6570 = vmatprep.subr.mxu0 0.0
  %6571 = vmatpush1.msra.mxu0 0.0
  %6572 = vmatprep.subr.mxu0 0.0
  %6573 = vmatpush1.msra.mxu0 0.0
  %6574 = vmatprep.subr.mxu0 0.0
  %6575 = vmatpush1.msra.mxu0 0.0
  %6576 = vmatprep.subr.mxu0 0.0
  %6577 = vmatpush1.msra.mxu0 0.0
  %6578 = vmatprep.subr.mxu0 0.0
  %6579 = vmatpush1.msra.mxu0 0.0
  %6580 = vmatprep.subr.mxu0 0.0
  %6581 = vmatpush1.msra.mxu0 0.0
  %6582 = vmatprep.subr.mxu0 0.0
  %6583 = vmatpush1.msra.mxu0 0.0
  %6584 = vmatprep.subr.mxu0 0.0
  %6585 = vmatpush1.msra.mxu0 0.0
  %6586 = vmatprep.subr.mxu0 0.0
  %6587 = vmatpush1.msra.mxu0 0.0
  %6588 = vmatprep.subr.mxu0 0.0
  %6589 = vmatpush1.msra.mxu0 0.0
  %6590 = vmatprep.subr.mxu0 0.0
  %6591 = vmatpush1.msra.mxu0 0.0
  %6592 = vmatprep.subr.mxu0 0.0
  %6593 = vmatpush1.msra.mxu0 0.0
  %6594 = vmatprep.mubr.f32.mxu0 0.0
  %6595 = vmatmul.mubr.f32.gmra.mrb[0].mxu0 %v6434
  %v6596 = vpop.f32.mrb[0].mxu0
  %v6597 = vadd.f32 %v6512, %v6596
  %v6598 = vpop.f32.mrb[0].mxu0
  %6599 = vmatprep.mubr.f32.mxu0 0.0
  %6600 = vmatmul.mubr.f32.gmra.mrb[0].mxu0 %v6437
  %v6601 = vpop.f32.mrb[0].mxu0
  %v6602 = vadd.f32 %v6517, %v6601
  %v6603 = vpop.f32.mrb[0].mxu0
  %6604 = vmatprep.mubr.f32.mxu0 0.0
  %6605 = vmatmul.mubr.f32.gmra.mrb[0].mxu0 %v6440
  %v6606 = vpop.f32.mrb[0].mxu0
  %v6607 = vadd.f32 %v6522, %v6606
  %v6608 = vpop.f32.mrb[0].mxu0
  %6609 = vmatprep.mubr.f32.mxu0 0.0
  %6610 = vmatmul.mubr.f32.gmra.mrb[0].mxu0 %v6443
  %v6611 = vpop.f32.mrb[0].mxu0
  %v6612 = vadd.f32 %v6527, %v6611
  %v6613 = vpop.f32.mrb[0].mxu0
  %6614 = vdwg.mxu0
  %6615 = vmatprep.subr.mxu0 0.0
  %6616 = vmatpush1.msra.mxu0 1.0
  %6617 = vmatprep.subr.mxu0 0.0
  %6618 = vmatpush1.msra.mxu0 1.0
  %6619 = vmatprep.subr.mxu0 0.0
  %6620 = vmatpush1.msra.mxu0 1.0
  %6621 = vmatprep.subr.mxu0 0.0
  %6622 = vmatpush1.msra.mxu0 1.0
  %6623 = vmatprep.subr.mxu0 0.0
  %6624 = vmatpush1.msra.mxu0 1.0
  %6625 = vmatprep.subr.mxu0 0.0
  %6626 = vmatpush1.msra.mxu0 1.0
  %6627 = vmatprep.subr.mxu0 0.0
  %6628 = vmatpush1.msra.mxu0 1.0
  %6629 = vmatprep.subr.mxu0 0.0
  %6630 = vmatpush1.msra.mxu0 1.0
  %6631 = vmatprep.subr.mxu0 0.0
  %6632 = vmatpush1.msra.mxu0 1.0
  %6633 = vmatprep.subr.mxu0 0.0
  %6634 = vmatpush1.msra.mxu0 1.0
  %6635 = vmatprep.subr.mxu0 0.0
  %6636 = vmatpush1.msra.mxu0 1.0
  %6637 = vmatprep.subr.mxu0 0.0
  %6638 = vmatpush1.msra.mxu0 1.0
  %6639 = vmatprep.subr.mxu0 0.0
  %6640 = vmatpush1.msra.mxu0 1.0
  %6641 = vmatprep.subr.mxu0 0.0
  %6642 = vmatpush1.msra.mxu0 1.0
  %6643 = vmatprep.subr.mxu0 0.0
  %6644 = vmatpush1.msra.mxu0 1.0
  %6645 = vmatprep.subr.mxu0 0.0
  %6646 = vmatpush1.msra.mxu0 1.0
  %6647 = vmatprep.subr.mxu0 0.0
  %6648 = vmatpush1.msra.mxu0 0.0
  %6649 = vmatprep.subr.mxu0 0.0
  %6650 = vmatpush1.msra.mxu0 0.0
  %6651 = vmatprep.subr.mxu0 0.0
  %6652 = vmatpush1.msra.mxu0 0.0
  %6653 = vmatprep.subr.mxu0 0.0
  %6654 = vmatpush1.msra.mxu0 0.0
  %6655 = vmatprep.subr.mxu0 0.0
  %6656 = vmatpush1.msra.mxu0 0.0
  %6657 = vmatprep.subr.mxu0 0.0
  %6658 = vmatpush1.msra.mxu0 0.0
  %6659 = vmatprep.subr.mxu0 0.0
  %6660 = vmatpush1.msra.mxu0 0.0
  %6661 = vmatprep.subr.mxu0 0.0
  %6662 = vmatpush1.msra.mxu0 0.0
  %6663 = vmatprep.subr.mxu0 0.0
  %6664 = vmatpush1.msra.mxu0 0.0
  %6665 = vmatprep.subr.mxu0 0.0
  %6666 = vmatpush1.msra.mxu0 0.0
  %6667 = vmatprep.subr.mxu0 0.0
  %6668 = vmatpush1.msra.mxu0 0.0
  %6669 = vmatprep.subr.mxu0 0.0
  %6670 = vmatpush1.msra.mxu0 0.0
  %6671 = vmatprep.subr.mxu0 0.0
  %6672 = vmatpush1.msra.mxu0 0.0
  %6673 = vmatprep.subr.mxu0 0.0
  %6674 = vmatpush1.msra.mxu0 0.0
  %6675 = vmatprep.subr.mxu0 0.0
  %6676 = vmatpush1.msra.mxu0 0.0
  %6677 = vmatprep.subr.mxu0 0.0
  %6678 = vmatpush1.msra.mxu0 0.0
  %6679 = vmatprep.mubr.f32.mxu0 0.0
  %6680 = vmatmul.mubr.f32.gmra.mrb[0].mxu0 %v6597
  %v6681 = vpop.f32.mrb[0].mxu0
  %v6682 = vadd.f32 0.0, %v6681
  %v6683 = vpop.f32.mrb[0].mxu0
  %6684 = vmatprep.mubr.f32.mxu0 0.0
  %6685 = vmatmul.mubr.f32.gmra.mrb[0].mxu0 %v6602
  %v6686 = vpop.f32.mrb[0].mxu0
  %v6687 = vadd.f32 0.0, %v6686
  %v6688 = vpop.f32.mrb[0].mxu0
  %6689 = vmatprep.mubr.f32.mxu0 0.0
  %6690 = vmatmul.mubr.f32.gmra.mrb[0].mxu0 %v6607
  %v6691 = vpop.f32.mrb[0].mxu0
  %v6692 = vadd.f32 0.0, %v6691
  %v6693 = vpop.f32.mrb[0].mxu0
  %6694 = vmatprep.mubr.f32.mxu0 0.0
  %6695 = vmatmul.mubr.f32.gmra.mrb[0].mxu0 %v6612
  %v6696 = vpop.f32.mrb[0].mxu0
  %v6697 = vadd.f32 0.0, %v6696
  %v6698 = vpop.f32.mrb[0].mxu0
  %6699 = vdwg.mxu0
  %v6700 = vmul.f32 %v6682, 0.0078125
  %v6701 = vmul.f32 %v6687, 0.0078125
  %v6702 = vmul.f32 %v6692, 0.0078125
  %v6703 = vmul.f32 %v6697, 0.0078125
  %6705 = vset.pattern.permute.xlu0 0
  %6706 = vperm.xlu0 %6705, %v6700
  %v6707 = vpop.permute.xlu0 %6706
  %6710 = vset.pattern.permute.xlu0 0
  %6711 = vperm.xlu0 %6710, %v6701
  %v6712 = vpop.permute.xlu0 %6711
  %6715 = vset.pattern.permute.xlu0 0
  %6716 = vperm.xlu0 %6715, %v6702
  %v6717 = vpop.permute.xlu0 %6716
  %6720 = vset.pattern.permute.xlu0 0
  %6721 = vperm.xlu0 %6720, %v6703
  %v6722 = vpop.permute.xlu0 %6721
  %v6724 = vsub.f32 %v6597, %v6707
  %v6725 = vsub.f32 %v6602, %v6712
  %v6726 = vsub.f32 %v6607, %v6717
  %v6727 = vsub.f32 %v6612, %v6722
  %v6728 = vmul.f32 %v6724, %v6724
  %v6729 = vmul.f32 %v6725, %v6725
  %v6730 = vmul.f32 %v6726, %v6726
  %v6731 = vmul.f32 %v6727, %v6727
  %6732 = vmatprep.subr.mxu0 0.0
  %6733 = vmatpush1.msra.mxu0 1.0
  %6734 = vmatprep.subr.mxu0 0.0
  %6735 = vmatpush1.msra.mxu0 1.0
  %6736 = vmatprep.subr.mxu0 0.0
  %6737 = vmatpush1.msra.mxu0 1.0
  %6738 = vmatprep.subr.mxu0 0.0
  %6739 = vmatpush1.msra.mxu0 1.0
  %6740 = vmatprep.subr.mxu0 0.0
  %6741 = vmatpush1.msra.mxu0 1.0
  %6742 = vmatprep.subr.mxu0 0.0
  %6743 = vmatpush1.msra.mxu0 1.0
  %6744 = vmatprep.subr.mxu0 0.0
  %6745 = vmatpush1.msra.mxu0 1.0
  %6746 = vmatprep.subr.mxu0 0.0
  %6747 = vmatpush1.msra.mxu0 1.0
  %6748 = vmatprep.subr.mxu0 0.0
  %6749 = vmatpush1.msra.mxu0 1.0
  %6750 = vmatprep.subr.mxu0 0.0
  %6751 = vmatpush1.msra.mxu0 1.0
  %6752 = vmatprep.subr.mxu0 0.0
  %6753 = vmatpush1.msra.mxu0 1.0
  %6754 = vmatprep.subr.mxu0 0.0
  %6755 = vmatpush1.msra.mxu0 1.0
  %6756 = vmatprep.subr.mxu0 0.0
  %6757 = vmatpush1.msra.mxu0 1.0
  %6758 = vmatprep.subr.mxu0 0.0
  %6759 = vmatpush1.msra.mxu0 1.0
  %6760 = vmatprep.subr.mxu0 0.0
  %6761 = vmatpush1.msra.mxu0 1.0
  %6762 = vmatprep.subr.mxu0 0.0
  %6763 = vmatpush1.msra.mxu0 1.0
  %6764 = vmatprep.subr.mxu0 0.0
  %6765 = vmatpush1.msra.mxu0 0.0
  %6766 = vmatprep.subr.mxu0 0.0
  %6767 = vmatpush1.msra.mxu0 0.0
  %6768 = vmatprep.subr.mxu0 0.0
  %6769 = vmatpush1.msra.mxu0 0.0
  %6770 = vmatprep.subr.mxu0 0.0
  %6771 = vmatpush1.msra.mxu0 0.0
  %6772 = vmatprep.subr.mxu0 0.0
  %6773 = vmatpush1.msra.mxu0 0.0
  %6774 = vmatprep.subr.mxu0 0.0
  %6775 = vmatpush1.msra.mxu0 0.0
  %6776 = vmatprep.subr.mxu0 0.0
  %6777 = vmatpush1.msra.mxu0 0.0
  %6778 = vmatprep.subr.mxu0 0.0
  %6779 = vmatpush1.msra.mxu0 0.0
  %6780 = vmatprep.subr.mxu0 0.0
  %6781 = vmatpush1.msra.mxu0 0.0
  %6782 = vmatprep.subr.mxu0 0.0
  %6783 = vmatpush1.msra.mxu0 0.0
  %6784 = vmatprep.subr.mxu0 0.0
  %6785 = vmatpush1.msra.mxu0 0.0
  %6786 = vmatprep.subr.mxu0 0.0
  %6787 = vmatpush1.msra.mxu0 0.0
  %6788 = vmatprep.subr.mxu0 0.0
  %6789 = vmatpush1.msra.mxu0 0.0
  %6790 = vmatprep.subr.mxu0 0.0
  %6791 = vmatpush1.msra.mxu0 0.0
  %6792 = vmatprep.subr.mxu0 0.0
  %6793 = vmatpush1.msra.mxu0 0.0
  %6794 = vmatprep.subr.mxu0 0.0
  %6795 = vmatpush1.msra.mxu0 0.0
  %6796 = vmatprep.mubr.f32.mxu0 0.0
  %6797 = vmatmul.mubr.f32.gmra.mrb[0].mxu0 %v6728
  %v6798 = vpop.f32.mrb[0].mxu0
  %v6799 = vadd.f32 0.0, %v6798
  %v6800 = vpop.f32.mrb[0].mxu0
  %6801 = vmatprep.mubr.f32.mxu0 0.0
  %6802 = vmatmul.mubr.f32.gmra.mrb[0].mxu0 %v6729
  %v6803 = vpop.f32.mrb[0].mxu0
  %v6804 = vadd.f32 0.0, %v6803
  %v6805 = vpop.f32.mrb[0].mxu0
  %6806 = vmatprep.mubr.f32.mxu0 0.0
  %6807 = vmatmul.mubr.f32.gmra.mrb[0].mxu0 %v6730
  %v6808 = vpop.f32.mrb[0].mxu0
  %v6809 = vadd.f32 0.0, %v6808
  %v6810 = vpop.f32.mrb[0].mxu0
  %6811 = vmatprep.mubr.f32.mxu0 0.0
  %6812 = vmatmul.mubr.f32.gmra.mrb[0].mxu0 %v6731
  %v6813 = vpop.f32.mrb[0].mxu0
  %v6814 = vadd.f32 0.0, %v6813
  %v6815 = vpop.f32.mrb[0].mxu0
  %6816 = vdwg.mxu0
  %v6817 = vmul.f32 %v6799, 0.0078125
  %v6818 = vmul.f32 %v6804, 0.0078125
  %v6819 = vmul.f32 %v6809, 0.0078125
  %v6820 = vmul.f32 %v6814, 0.0078125
  %v6821 = vadd.f32 %v6817, 1e-05
  %v6822 = vadd.f32 %v6818, 1e-05
  %v6823 = vadd.f32 %v6819, 1e-05
  %v6824 = vadd.f32 %v6820, 1e-05
  %v6825 = vrsqrt.pop %v6821
  %v6826 = vrsqrt.pop %v6822
  %v6827 = vrsqrt.pop %v6823
  %v6828 = vrsqrt.pop %v6824
  %6829 = vrot.lane.b32.xlu0 %v6409, 127
  %v6830 = vpop.permute.xlu0 %6829
  %6831 = vrot.lane.b32.xlu0 %v6410, 127
  %v6832 = vpop.permute.xlu0 %6831
  %6833 = vrot.lane.b32.xlu0 %v6411, 127
  %v6834 = vpop.permute.xlu0 %6833
  %6835 = vrot.lane.b32.xlu0 %v6412, 127
  %v6836 = vpop.permute.xlu0 %6835
  %v6841 = vmul.f32 %v6825, %v6830
  %v6842 = vmul.f32 %v6826, %v6832
  %v6843 = vmul.f32 %v6827, %v6834
  %v6844 = vmul.f32 %v6828, %v6836
  %6846 = vset.pattern.permute.xlu0 0
  %6847 = vperm.xlu0 %6846, %v6841
  %v6848 = vpop.permute.xlu0 %6847
  %6851 = vset.pattern.permute.xlu0 0
  %6852 = vperm.xlu0 %6851, %v6842
  %v6853 = vpop.permute.xlu0 %6852
  %6856 = vset.pattern.permute.xlu0 0
  %6857 = vperm.xlu0 %6856, %v6843
  %v6858 = vpop.permute.xlu0 %6857
  %6861 = vset.pattern.permute.xlu0 0
  %6862 = vperm.xlu0 %6861, %v6844
  %v6863 = vpop.permute.xlu0 %6862
  %v6865 = vmul.f32 %v6724, %v6848
  %v6866 = vmul.f32 %v6725, %v6853
  %v6867 = vmul.f32 %v6726, %v6858
  %v6868 = vmul.f32 %v6727, %v6863
  %6869 = vset.pattern.permute.xlu0 2
  %6870 = vperm.xlu0 %6869, %v6409
  %v6871 = vpop.permute.xlu0 %6870
  %6873 = vset.pattern.permute.xlu0 2
  %6874 = vperm.xlu0 %6873, %v6410
  %v6875 = vpop.permute.xlu0 %6874
  %6877 = vset.pattern.permute.xlu0 2
  %6878 = vperm.xlu0 %6877, %v6411
  %v6879 = vpop.permute.xlu0 %6878
  %6881 = vset.pattern.permute.xlu0 2
  %6882 = vperm.xlu0 %6881, %v6412
  %v6883 = vpop.permute.xlu0 %6882
  %v6885 = vadd.f32 %v6865, %v6871
  %v6886 = vadd.f32 %v6866, %v6875
  %v6887 = vadd.f32 %v6867, %v6879
  %v6888 = vadd.f32 %v6868, %v6883
  %v6889 = vmax.f32 %v6885, 0.0
  %v6890 = vmax.f32 %v6886, 0.0
  %v6891 = vmax.f32 %v6887, 0.0
  %v6892 = vmax.f32 %v6888, 0.0
  %6893 = vrot.lane.b32.xlu0 %v6889, 9
  %v6894 = vpop.permute.xlu0 %6893
  %6895 = vrot.lane.b32.xlu0 %v6890, 9
  %v6896 = vpop.permute.xlu0 %6895
  %6897 = vrot.lane.b32.xlu0 %v6891, 9
  %v6898 = vpop.permute.xlu0 %6897
  %6899 = vrot.lane.b32.xlu0 %v6892, 9
  %v6900 = vpop.permute.xlu0 %6899
  %v6901 = vmul.f32 %v6894, %v6278
  %v6902 = vmul.f32 %v6896, %v6278
  %v6903 = vmul.f32 %v6898, %v6278
  %v6904 = vmul.f32 %v6900, %v6278
  %6905 = vrot.lane.b32.xlu0 %v6889, 8
  %v6906 = vpop.permute.xlu0 %6905
  %6907 = vrot.lane.b32.xlu0 %v6890, 8
  %v6908 = vpop.permute.xlu0 %6907
  %6909 = vrot.lane.b32.xlu0 %v6891, 8
  %v6910 = vpop.permute.xlu0 %6909
  %6911 = vrot.lane.b32.xlu0 %v6892, 8
  %v6912 = vpop.permute.xlu0 %6911
  %v6913 = vmul.f32 %v6906, %v6294
  %v6914 = vmul.f32 %v6908, %v6294
  %v6915 = vmul.f32 %v6910, %v6294
  %v6916 = vmul.f32 %v6912, %v6294
  %6917 = vrot.lane.b32.xlu0 %v6889, 7
  %v6918 = vpop.permute.xlu0 %6917
  %6919 = vrot.lane.b32.xlu0 %v6890, 7
  %v6920 = vpop.permute.xlu0 %6919
  %6921 = vrot.lane.b32.xlu0 %v6891, 7
  %v6922 = vpop.permute.xlu0 %6921
  %6923 = vrot.lane.b32.xlu0 %v6892, 7
  %v6924 = vpop.permute.xlu0 %6923
  %v6925 = vmul.f32 %v6918, %v6310
  %v6926 = vmul.f32 %v6920, %v6310
  %v6927 = vmul.f32 %v6922, %v6310
  %v6928 = vmul.f32 %v6924, %v6310
  %6929 = vrot.lane.b32.xlu0 %v6889, 1
  %v6930 = vpop.permute.xlu0 %6929
  %6931 = vrot.lane.b32.xlu0 %v6890, 1
  %v6932 = vpop.permute.xlu0 %6931
  %6933 = vrot.lane.b32.xlu0 %v6891, 1
  %v6934 = vpop.permute.xlu0 %6933
  %6935 = vrot.lane.b32.xlu0 %v6892, 1
  %v6936 = vpop.permute.xlu0 %6935
  %v6937 = vmul.f32 %v6930, %v6326
  %v6938 = vmul.f32 %v6932, %v6326
  %v6939 = vmul.f32 %v6934, %v6326
  %v6940 = vmul.f32 %v6936, %v6326
  %6941 = vrot.lane.b32.xlu0 %v6889, 127
  %v6942 = vpop.permute.xlu0 %6941
  %6943 = vrot.lane.b32.xlu0 %v6890, 127
  %v6944 = vpop.permute.xlu0 %6943
  %6945 = vrot.lane.b32.xlu0 %v6891, 127
  %v6946 = vpop.permute.xlu0 %6945
  %6947 = vrot.lane.b32.xlu0 %v6892, 127
  %v6948 = vpop.permute.xlu0 %6947
  %v6949 = vmul.f32 %v6942, %v6342
  %v6950 = vmul.f32 %v6944, %v6342
  %v6951 = vmul.f32 %v6946, %v6342
  %v6952 = vmul.f32 %v6948, %v6342
  %6953 = vrot.lane.b32.xlu0 %v6889, 121
  %v6954 = vpop.permute.xlu0 %6953
  %6955 = vrot.lane.b32.xlu0 %v6890, 121
  %v6956 = vpop.permute.xlu0 %6955
  %6957 = vrot.lane.b32.xlu0 %v6891, 121
  %v6958 = vpop.permute.xlu0 %6957
  %6959 = vrot.lane.b32.xlu0 %v6892, 121
  %v6960 = vpop.permute.xlu0 %6959
  %v6961 = vmul.f32 %v6954, %v6358
  %v6962 = vmul.f32 %v6956, %v6358
  %v6963 = vmul.f32 %v6958, %v6358
  %v6964 = vmul.f32 %v6960, %v6358
  %6965 = vrot.lane.b32.xlu0 %v6889, 120
  %v6966 = vpop.permute.xlu0 %6965
  %6967 = vrot.lane.b32.xlu0 %v6890, 120
  %v6968 = vpop.permute.xlu0 %6967
  %6969 = vrot.lane.b32.xlu0 %v6891, 120
  %v6970 = vpop.permute.xlu0 %6969
  %6971 = vrot.lane.b32.xlu0 %v6892, 120
  %v6972 = vpop.permute.xlu0 %6971
  %v6973 = vmul.f32 %v6966, %v6374
  %v6974 = vmul.f32 %v6968, %v6374
  %v6975 = vmul.f32 %v6970, %v6374
  %v6976 = vmul.f32 %v6972, %v6374
  %6977 = vrot.lane.b32.xlu0 %v6889, 119
  %v6978 = vpop.permute.xlu0 %6977
  %6979 = vrot.lane.b32.xlu0 %v6890, 119
  %v6980 = vpop.permute.xlu0 %6979
  %6981 = vrot.lane.b32.xlu0 %v6891, 119
  %v6982 = vpop.permute.xlu0 %6981
  %6983 = vrot.lane.b32.xlu0 %v6892, 119
  %v6984 = vpop.permute.xlu0 %6983
  %v6985 = vmul.f32 %v6978, %v6390
  %v6986 = vmul.f32 %v6980, %v6390
  %v6987 = vmul.f32 %v6982, %v6390
  %v6988 = vmul.f32 %v6984, %v6390
  %s6989 = scalar_lea.vmem %s1, 480
  %v6990 = vld [vmem:[%s6989] sm:$0xff]
  %v6991 = vld [vmem:[%s6989 + $0x8] sm:$0xff]
  %v6992 = vld [vmem:[%s6989 + $0x10] sm:$0xff]
  %v6993 = vld [vmem:[%s6989 + $0x18] sm:$0xff]
  %v6994 = vld [vmem:[%s6989 + $0x20] sm:$0xff]
  %v6995 = vld [vmem:[%s6989 + $0x28] sm:$0xff]
  %v6996 = vld [vmem:[%s6989 + $0x30] sm:$0xff]
  %v6997 = vld [vmem:[%s6989 + $0x38] sm:$0xff]
  %v6998 = vld [vmem:[%s6989 + $0x40] sm:$0xff]
  %v6999 = vld [vmem:[%s6989 + $0x48] sm:$0xff]
  %v7000 = vld [vmem:[%s6989 + $0x50] sm:$0xff]
  %v7001 = vld [vmem:[%s6989 + $0x58] sm:$0xff]
  %s7002 = scalar_lea.vmem %s2, 160
  %v7003 = vld [vmem:[%s7002] sm:$0xff]
  %v7004 = vld [vmem:[%s7002 + $0x8] sm:$0xff]
  %v7005 = vld [vmem:[%s7002 + $0x10] sm:$0xff]
  %v7006 = vld [vmem:[%s7002 + $0x18] sm:$0xff]
  %7008 = vset.pattern.permute.xlu0 0
  %7009 = vperm.xlu0 %7008, %v7003
  %v7010 = vpop.permute.xlu0 %7009
  %7013 = vset.pattern.permute.xlu0 0
  %7014 = vperm.xlu0 %7013, %v7004
  %v7015 = vpop.permute.xlu0 %7014
  %7018 = vset.pattern.permute.xlu0 0
  %7019 = vperm.xlu0 %7018, %v7005
  %v7020 = vpop.permute.xlu0 %7019
  %7023 = vset.pattern.permute.xlu0 0
  %7024 = vperm.xlu0 %7023, %v7006
  %v7025 = vpop.permute.xlu0 %7024
  %v7028 = vsel %vm750, %v6992, 0
  %v7031 = vsel %vm750, %v6995, 0
  %v7034 = vsel %vm750, %v6998, 0
  %v7037 = vsel %vm750, %v7001, 0
  %7039 = vmatprep.subr.mxu0 0.0
  %7040 = vmatpush1.msra.mxu0 %v6901
  %7041 = vmatprep.subr.mxu0 0.0
  %7042 = vmatpush1.msra.mxu0 %v6902
  %7043 = vmatprep.subr.mxu0 0.0
  %7044 = vmatpush1.msra.mxu0 %v6903
  %7045 = vmatprep.subr.mxu0 0.0
  %7046 = vmatpush1.msra.mxu0 %v6904
  %7047 = vmatprep.subr.mxu0 0.0
  %7048 = vmatpush1.msra.mxu0 %v6913
  %7049 = vmatprep.subr.mxu0 0.0
  %7050 = vmatpush1.msra.mxu0 %v6914
  %7051 = vmatprep.subr.mxu0 0.0
  %7052 = vmatpush1.msra.mxu0 %v6915
  %7053 = vmatprep.subr.mxu0 0.0
  %7054 = vmatpush1.msra.mxu0 %v6916
  %7055 = vmatprep.subr.mxu0 0.0
  %7056 = vmatpush1.msra.mxu0 %v6925
  %7057 = vmatprep.subr.mxu0 0.0
  %7058 = vmatpush1.msra.mxu0 %v6926
  %7059 = vmatprep.subr.mxu0 0.0
  %7060 = vmatpush1.msra.mxu0 %v6927
  %7061 = vmatprep.subr.mxu0 0.0
  %7062 = vmatpush1.msra.mxu0 %v6928
  %7063 = vmatprep.subr.mxu0 0.0
  %7064 = vmatpush1.msra.mxu0 %v6937
  %7065 = vmatprep.subr.mxu0 0.0
  %7066 = vmatpush1.msra.mxu0 %v6938
  %7067 = vmatprep.subr.mxu0 0.0
  %7068 = vmatpush1.msra.mxu0 %v6939
  %7069 = vmatprep.subr.mxu0 0.0
  %7070 = vmatpush1.msra.mxu0 %v6940
  %7071 = vmatprep.subr.mxu0 0.0
  %7072 = vmatpush1.msra.mxu0 %v6889
  %7073 = vmatprep.subr.mxu0 0.0
  %7074 = vmatpush1.msra.mxu0 %v6890
  %7075 = vmatprep.subr.mxu0 0.0
  %7076 = vmatpush1.msra.mxu0 %v6891
  %7077 = vmatprep.subr.mxu0 0.0
  %7078 = vmatpush1.msra.mxu0 %v6892
  %7079 = vmatprep.subr.mxu0 0.0
  %7080 = vmatpush1.msra.mxu0 %v6949
  %7081 = vmatprep.subr.mxu0 0.0
  %7082 = vmatpush1.msra.mxu0 %v6950
  %7083 = vmatprep.subr.mxu0 0.0
  %7084 = vmatpush1.msra.mxu0 %v6951
  %7085 = vmatprep.subr.mxu0 0.0
  %7086 = vmatpush1.msra.mxu0 %v6952
  %7087 = vmatprep.subr.mxu0 0.0
  %7088 = vmatpush1.msra.mxu0 %v6961
  %7089 = vmatprep.subr.mxu0 0.0
  %7090 = vmatpush1.msra.mxu0 %v6962
  %7091 = vmatprep.subr.mxu0 0.0
  %7092 = vmatpush1.msra.mxu0 %v6963
  %7093 = vmatprep.subr.mxu0 0.0
  %7094 = vmatpush1.msra.mxu0 %v6964
  %7095 = vmatprep.subr.mxu0 0.0
  %7096 = vmatpush1.msra.mxu0 %v6973
  %7097 = vmatprep.subr.mxu0 0.0
  %7098 = vmatpush1.msra.mxu0 %v6974
  %7099 = vmatprep.subr.mxu0 0.0
  %7100 = vmatpush1.msra.mxu0 %v6975
  %7101 = vmatprep.subr.mxu0 0.0
  %7102 = vmatpush1.msra.mxu0 %v6976
  %7103 = vmatprep.mubr.f32.mxu0 %v6991
  %7104 = vmatmul.mubr.f32.gmra.mrb[0].mxu0 %v6990
  %v7105 = vpop.f32.mrb[0].mxu0
  %v7106 = vadd.f32 %v7010, %v7105
  %v7107 = vpop.f32.mrb[0].mxu0
  %7108 = vmatprep.mubr.f32.mxu0 %v6994
  %7109 = vmatmul.mubr.f32.gmra.mrb[0].mxu0 %v6993
  %v7110 = vpop.f32.mrb[0].mxu0
  %v7111 = vadd.f32 %v7015, %v7110
  %v7112 = vpop.f32.mrb[0].mxu0
  %7113 = vmatprep.mubr.f32.mxu0 %v6997
  %7114 = vmatmul.mubr.f32.gmra.mrb[0].mxu0 %v6996
  %v7115 = vpop.f32.mrb[0].mxu0
  %v7116 = vadd.f32 %v7020, %v7115
  %v7117 = vpop.f32.mrb[0].mxu0
  %7118 = vmatprep.mubr.f32.mxu0 %v7000
  %7119 = vmatmul.mubr.f32.gmra.mrb[0].mxu0 %v6999
  %v7120 = vpop.f32.mrb[0].mxu0
  %v7121 = vadd.f32 %v7025, %v7120
  %v7122 = vpop.f32.mrb[0].mxu0
  %7123 = vdwg.mxu0
  %7124 = vmatprep.subr.mxu0 0.0
  %7125 = vmatpush1.msra.mxu0 %v6985
  %7126 = vmatprep.subr.mxu0 0.0
  %7127 = vmatpush1.msra.mxu0 %v6986
  %7128 = vmatprep.subr.mxu0 0.0
  %7129 = vmatpush1.msra.mxu0 %v6987
  %7130 = vmatprep.subr.mxu0 0.0
  %7131 = vmatpush1.msra.mxu0 %v6988
  %7132 = vmatprep.subr.mxu0 0.0
  %7133 = vmatpush1.msra.mxu0 0.0
  %7134 = vmatprep.subr.mxu0 0.0
  %7135 = vmatpush1.msra.mxu0 0.0
  %7136 = vmatprep.subr.mxu0 0.0
  %7137 = vmatpush1.msra.mxu0 0.0
  %7138 = vmatprep.subr.mxu0 0.0
  %7139 = vmatpush1.msra.mxu0 0.0
  %7140 = vmatprep.subr.mxu0 0.0
  %7141 = vmatpush1.msra.mxu0 0.0
  %7142 = vmatprep.subr.mxu0 0.0
  %7143 = vmatpush1.msra.mxu0 0.0
  %7144 = vmatprep.subr.mxu0 0.0
  %7145 = vmatpush1.msra.mxu0 0.0
  %7146 = vmatprep.subr.mxu0 0.0
  %7147 = vmatpush1.msra.mxu0 0.0
  %7148 = vmatprep.subr.mxu0 0.0
  %7149 = vmatpush1.msra.mxu0 0.0
  %7150 = vmatprep.subr.mxu0 0.0
  %7151 = vmatpush1.msra.mxu0 0.0
  %7152 = vmatprep.subr.mxu0 0.0
  %7153 = vmatpush1.msra.mxu0 0.0
  %7154 = vmatprep.subr.mxu0 0.0
  %7155 = vmatpush1.msra.mxu0 0.0
  %7156 = vmatprep.subr.mxu0 0.0
  %7157 = vmatpush1.msra.mxu0 0.0
  %7158 = vmatprep.subr.mxu0 0.0
  %7159 = vmatpush1.msra.mxu0 0.0
  %7160 = vmatprep.subr.mxu0 0.0
  %7161 = vmatpush1.msra.mxu0 0.0
  %7162 = vmatprep.subr.mxu0 0.0
  %7163 = vmatpush1.msra.mxu0 0.0
  %7164 = vmatprep.subr.mxu0 0.0
  %7165 = vmatpush1.msra.mxu0 0.0
  %7166 = vmatprep.subr.mxu0 0.0
  %7167 = vmatpush1.msra.mxu0 0.0
  %7168 = vmatprep.subr.mxu0 0.0
  %7169 = vmatpush1.msra.mxu0 0.0
  %7170 = vmatprep.subr.mxu0 0.0
  %7171 = vmatpush1.msra.mxu0 0.0
  %7172 = vmatprep.subr.mxu0 0.0
  %7173 = vmatpush1.msra.mxu0 0.0
  %7174 = vmatprep.subr.mxu0 0.0
  %7175 = vmatpush1.msra.mxu0 0.0
  %7176 = vmatprep.subr.mxu0 0.0
  %7177 = vmatpush1.msra.mxu0 0.0
  %7178 = vmatprep.subr.mxu0 0.0
  %7179 = vmatpush1.msra.mxu0 0.0
  %7180 = vmatprep.subr.mxu0 0.0
  %7181 = vmatpush1.msra.mxu0 0.0
  %7182 = vmatprep.subr.mxu0 0.0
  %7183 = vmatpush1.msra.mxu0 0.0
  %7184 = vmatprep.subr.mxu0 0.0
  %7185 = vmatpush1.msra.mxu0 0.0
  %7186 = vmatprep.subr.mxu0 0.0
  %7187 = vmatpush1.msra.mxu0 0.0
  %7188 = vmatprep.mubr.f32.mxu0 0.0
  %7189 = vmatmul.mubr.f32.gmra.mrb[0].mxu0 %v7028
  %v7190 = vpop.f32.mrb[0].mxu0
  %v7191 = vadd.f32 %v7106, %v7190
  %v7192 = vpop.f32.mrb[0].mxu0
  %7193 = vmatprep.mubr.f32.mxu0 0.0
  %7194 = vmatmul.mubr.f32.gmra.mrb[0].mxu0 %v7031
  %v7195 = vpop.f32.mrb[0].mxu0
  %v7196 = vadd.f32 %v7111, %v7195
  %v7197 = vpop.f32.mrb[0].mxu0
  %7198 = vmatprep.mubr.f32.mxu0 0.0
  %7199 = vmatmul.mubr.f32.gmra.mrb[0].mxu0 %v7034
  %v7200 = vpop.f32.mrb[0].mxu0
  %v7201 = vadd.f32 %v7116, %v7200
  %v7202 = vpop.f32.mrb[0].mxu0
  %7203 = vmatprep.mubr.f32.mxu0 0.0
  %7204 = vmatmul.mubr.f32.gmra.mrb[0].mxu0 %v7037
  %v7205 = vpop.f32.mrb[0].mxu0
  %v7206 = vadd.f32 %v7121, %v7205
  %v7207 = vpop.f32.mrb[0].mxu0
  %7208 = vdwg.mxu0
  %7209 = vmatprep.subr.mxu0 0.0
  %7210 = vmatpush1.msra.mxu0 1.0
  %7211 = vmatprep.subr.mxu0 0.0
  %7212 = vmatpush1.msra.mxu0 1.0
  %7213 = vmatprep.subr.mxu0 0.0
  %7214 = vmatpush1.msra.mxu0 1.0
  %7215 = vmatprep.subr.mxu0 0.0
  %7216 = vmatpush1.msra.mxu0 1.0
  %7217 = vmatprep.subr.mxu0 0.0
  %7218 = vmatpush1.msra.mxu0 1.0
  %7219 = vmatprep.subr.mxu0 0.0
  %7220 = vmatpush1.msra.mxu0 1.0
  %7221 = vmatprep.subr.mxu0 0.0
  %7222 = vmatpush1.msra.mxu0 1.0
  %7223 = vmatprep.subr.mxu0 0.0
  %7224 = vmatpush1.msra.mxu0 1.0
  %7225 = vmatprep.subr.mxu0 0.0
  %7226 = vmatpush1.msra.mxu0 1.0
  %7227 = vmatprep.subr.mxu0 0.0
  %7228 = vmatpush1.msra.mxu0 1.0
  %7229 = vmatprep.subr.mxu0 0.0
  %7230 = vmatpush1.msra.mxu0 1.0
  %7231 = vmatprep.subr.mxu0 0.0
  %7232 = vmatpush1.msra.mxu0 1.0
  %7233 = vmatprep.subr.mxu0 0.0
  %7234 = vmatpush1.msra.mxu0 1.0
  %7235 = vmatprep.subr.mxu0 0.0
  %7236 = vmatpush1.msra.mxu0 1.0
  %7237 = vmatprep.subr.mxu0 0.0
  %7238 = vmatpush1.msra.mxu0 1.0
  %7239 = vmatprep.subr.mxu0 0.0
  %7240 = vmatpush1.msra.mxu0 1.0
  %7241 = vmatprep.subr.mxu0 0.0
  %7242 = vmatpush1.msra.mxu0 0.0
  %7243 = vmatprep.subr.mxu0 0.0
  %7244 = vmatpush1.msra.mxu0 0.0
  %7245 = vmatprep.subr.mxu0 0.0
  %7246 = vmatpush1.msra.mxu0 0.0
  %7247 = vmatprep.subr.mxu0 0.0
  %7248 = vmatpush1.msra.mxu0 0.0
  %7249 = vmatprep.subr.mxu0 0.0
  %7250 = vmatpush1.msra.mxu0 0.0
  %7251 = vmatprep.subr.mxu0 0.0
  %7252 = vmatpush1.msra.mxu0 0.0
  %7253 = vmatprep.subr.mxu0 0.0
  %7254 = vmatpush1.msra.mxu0 0.0
  %7255 = vmatprep.subr.mxu0 0.0
  %7256 = vmatpush1.msra.mxu0 0.0
  %7257 = vmatprep.subr.mxu0 0.0
  %7258 = vmatpush1.msra.mxu0 0.0
  %7259 = vmatprep.subr.mxu0 0.0
  %7260 = vmatpush1.msra.mxu0 0.0
  %7261 = vmatprep.subr.mxu0 0.0
  %7262 = vmatpush1.msra.mxu0 0.0
  %7263 = vmatprep.subr.mxu0 0.0
  %7264 = vmatpush1.msra.mxu0 0.0
  %7265 = vmatprep.subr.mxu0 0.0
  %7266 = vmatpush1.msra.mxu0 0.0
  %7267 = vmatprep.subr.mxu0 0.0
  %7268 = vmatpush1.msra.mxu0 0.0
  %7269 = vmatprep.subr.mxu0 0.0
  %7270 = vmatpush1.msra.mxu0 0.0
  %7271 = vmatprep.subr.mxu0 0.0
  %7272 = vmatpush1.msra.mxu0 0.0
  %7273 = vmatprep.mubr.f32.mxu0 0.0
  %7274 = vmatmul.mubr.f32.gmra.mrb[0].mxu0 %v7191
  %v7275 = vpop.f32.mrb[0].mxu0
  %v7276 = vadd.f32 0.0, %v7275
  %v7277 = vpop.f32.mrb[0].mxu0
  %7278 = vmatprep.mubr.f32.mxu0 0.0
  %7279 = vmatmul.mubr.f32.gmra.mrb[0].mxu0 %v7196
  %v7280 = vpop.f32.mrb[0].mxu0
  %v7281 = vadd.f32 0.0, %v7280
  %v7282 = vpop.f32.mrb[0].mxu0
  %7283 = vmatprep.mubr.f32.mxu0 0.0
  %7284 = vmatmul.mubr.f32.gmra.mrb[0].mxu0 %v7201
  %v7285 = vpop.f32.mrb[0].mxu0
  %v7286 = vadd.f32 0.0, %v7285
  %v7287 = vpop.f32.mrb[0].mxu0
  %7288 = vmatprep.mubr.f32.mxu0 0.0
  %7289 = vmatmul.mubr.f32.gmra.mrb[0].mxu0 %v7206
  %v7290 = vpop.f32.mrb[0].mxu0
  %v7291 = vadd.f32 0.0, %v7290
  %v7292 = vpop.f32.mrb[0].mxu0
  %7293 = vdwg.mxu0
  %v7294 = vmul.f32 %v7276, 0.0078125
  %v7295 = vmul.f32 %v7281, 0.0078125
  %v7296 = vmul.f32 %v7286, 0.0078125
  %v7297 = vmul.f32 %v7291, 0.0078125
  %7299 = vset.pattern.permute.xlu0 0
  %7300 = vperm.xlu0 %7299, %v7294
  %v7301 = vpop.permute.xlu0 %7300
  %7304 = vset.pattern.permute.xlu0 0
  %7305 = vperm.xlu0 %7304, %v7295
  %v7306 = vpop.permute.xlu0 %7305
  %7309 = vset.pattern.permute.xlu0 0
  %7310 = vperm.xlu0 %7309, %v7296
  %v7311 = vpop.permute.xlu0 %7310
  %7314 = vset.pattern.permute.xlu0 0
  %7315 = vperm.xlu0 %7314, %v7297
  %v7316 = vpop.permute.xlu0 %7315
  %v7318 = vsub.f32 %v7191, %v7301
  %v7319 = vsub.f32 %v7196, %v7306
  %v7320 = vsub.f32 %v7201, %v7311
  %v7321 = vsub.f32 %v7206, %v7316
  %v7322 = vmul.f32 %v7318, %v7318
  %v7323 = vmul.f32 %v7319, %v7319
  %v7324 = vmul.f32 %v7320, %v7320
  %v7325 = vmul.f32 %v7321, %v7321
  %7326 = vmatprep.subr.mxu0 0.0
  %7327 = vmatpush1.msra.mxu0 1.0
  %7328 = vmatprep.subr.mxu0 0.0
  %7329 = vmatpush1.msra.mxu0 1.0
  %7330 = vmatprep.subr.mxu0 0.0
  %7331 = vmatpush1.msra.mxu0 1.0
  %7332 = vmatprep.subr.mxu0 0.0
  %7333 = vmatpush1.msra.mxu0 1.0
  %7334 = vmatprep.subr.mxu0 0.0
  %7335 = vmatpush1.msra.mxu0 1.0
  %7336 = vmatprep.subr.mxu0 0.0
  %7337 = vmatpush1.msra.mxu0 1.0
  %7338 = vmatprep.subr.mxu0 0.0
  %7339 = vmatpush1.msra.mxu0 1.0
  %7340 = vmatprep.subr.mxu0 0.0
  %7341 = vmatpush1.msra.mxu0 1.0
  %7342 = vmatprep.subr.mxu0 0.0
  %7343 = vmatpush1.msra.mxu0 1.0
  %7344 = vmatprep.subr.mxu0 0.0
  %7345 = vmatpush1.msra.mxu0 1.0
  %7346 = vmatprep.subr.mxu0 0.0
  %7347 = vmatpush1.msra.mxu0 1.0
  %7348 = vmatprep.subr.mxu0 0.0
  %7349 = vmatpush1.msra.mxu0 1.0
  %7350 = vmatprep.subr.mxu0 0.0
  %7351 = vmatpush1.msra.mxu0 1.0
  %7352 = vmatprep.subr.mxu0 0.0
  %7353 = vmatpush1.msra.mxu0 1.0
  %7354 = vmatprep.subr.mxu0 0.0
  %7355 = vmatpush1.msra.mxu0 1.0
  %7356 = vmatprep.subr.mxu0 0.0
  %7357 = vmatpush1.msra.mxu0 1.0
  %7358 = vmatprep.subr.mxu0 0.0
  %7359 = vmatpush1.msra.mxu0 0.0
  %7360 = vmatprep.subr.mxu0 0.0
  %7361 = vmatpush1.msra.mxu0 0.0
  %7362 = vmatprep.subr.mxu0 0.0
  %7363 = vmatpush1.msra.mxu0 0.0
  %7364 = vmatprep.subr.mxu0 0.0
  %7365 = vmatpush1.msra.mxu0 0.0
  %7366 = vmatprep.subr.mxu0 0.0
  %7367 = vmatpush1.msra.mxu0 0.0
  %7368 = vmatprep.subr.mxu0 0.0
  %7369 = vmatpush1.msra.mxu0 0.0
  %7370 = vmatprep.subr.mxu0 0.0
  %7371 = vmatpush1.msra.mxu0 0.0
  %7372 = vmatprep.subr.mxu0 0.0
  %7373 = vmatpush1.msra.mxu0 0.0
  %7374 = vmatprep.subr.mxu0 0.0
  %7375 = vmatpush1.msra.mxu0 0.0
  %7376 = vmatprep.subr.mxu0 0.0
  %7377 = vmatpush1.msra.mxu0 0.0
  %7378 = vmatprep.subr.mxu0 0.0
  %7379 = vmatpush1.msra.mxu0 0.0
  %7380 = vmatprep.subr.mxu0 0.0
  %7381 = vmatpush1.msra.mxu0 0.0
  %7382 = vmatprep.subr.mxu0 0.0
  %7383 = vmatpush1.msra.mxu0 0.0
  %7384 = vmatprep.subr.mxu0 0.0
  %7385 = vmatpush1.msra.mxu0 0.0
  %7386 = vmatprep.subr.mxu0 0.0
  %7387 = vmatpush1.msra.mxu0 0.0
  %7388 = vmatprep.subr.mxu0 0.0
  %7389 = vmatpush1.msra.mxu0 0.0
  %7390 = vmatprep.mubr.f32.mxu0 0.0
  %7391 = vmatmul.mubr.f32.gmra.mrb[0].mxu0 %v7322
  %v7392 = vpop.f32.mrb[0].mxu0
  %v7393 = vadd.f32 0.0, %v7392
  %v7394 = vpop.f32.mrb[0].mxu0
  %7395 = vmatprep.mubr.f32.mxu0 0.0
  %7396 = vmatmul.mubr.f32.gmra.mrb[0].mxu0 %v7323
  %v7397 = vpop.f32.mrb[0].mxu0
  %v7398 = vadd.f32 0.0, %v7397
  %v7399 = vpop.f32.mrb[0].mxu0
  %7400 = vmatprep.mubr.f32.mxu0 0.0
  %7401 = vmatmul.mubr.f32.gmra.mrb[0].mxu0 %v7324
  %v7402 = vpop.f32.mrb[0].mxu0
  %v7403 = vadd.f32 0.0, %v7402
  %v7404 = vpop.f32.mrb[0].mxu0
  %7405 = vmatprep.mubr.f32.mxu0 0.0
  %7406 = vmatmul.mubr.f32.gmra.mrb[0].mxu0 %v7325
  %v7407 = vpop.f32.mrb[0].mxu0
  %v7408 = vadd.f32 0.0, %v7407
  %v7409 = vpop.f32.mrb[0].mxu0
  %7410 = vdwg.mxu0
  %v7411 = vmul.f32 %v7393, 0.0078125
  %v7412 = vmul.f32 %v7398, 0.0078125
  %v7413 = vmul.f32 %v7403, 0.0078125
  %v7414 = vmul.f32 %v7408, 0.0078125
  %v7415 = vadd.f32 %v7411, 1e-05
  %v7416 = vadd.f32 %v7412, 1e-05
  %v7417 = vadd.f32 %v7413, 1e-05
  %v7418 = vadd.f32 %v7414, 1e-05
  %v7419 = vrsqrt.pop %v7415
  %v7420 = vrsqrt.pop %v7416
  %v7421 = vrsqrt.pop %v7417
  %v7422 = vrsqrt.pop %v7418
  %7423 = vrot.lane.b32.xlu0 %v7003, 127
  %v7424 = vpop.permute.xlu0 %7423
  %7425 = vrot.lane.b32.xlu0 %v7004, 127
  %v7426 = vpop.permute.xlu0 %7425
  %7427 = vrot.lane.b32.xlu0 %v7005, 127
  %v7428 = vpop.permute.xlu0 %7427
  %7429 = vrot.lane.b32.xlu0 %v7006, 127
  %v7430 = vpop.permute.xlu0 %7429
  %v7435 = vmul.f32 %v7419, %v7424
  %v7436 = vmul.f32 %v7420, %v7426
  %v7437 = vmul.f32 %v7421, %v7428
  %v7438 = vmul.f32 %v7422, %v7430
  %7440 = vset.pattern.permute.xlu0 0
  %7441 = vperm.xlu0 %7440, %v7435
  %v7442 = vpop.permute.xlu0 %7441
  %7445 = vset.pattern.permute.xlu0 0
  %7446 = vperm.xlu0 %7445, %v7436
  %v7447 = vpop.permute.xlu0 %7446
  %7450 = vset.pattern.permute.xlu0 0
  %7451 = vperm.xlu0 %7450, %v7437
  %v7452 = vpop.permute.xlu0 %7451
  %7455 = vset.pattern.permute.xlu0 0
  %7456 = vperm.xlu0 %7455, %v7438
  %v7457 = vpop.permute.xlu0 %7456
  %v7459 = vmul.f32 %v7318, %v7442
  %v7460 = vmul.f32 %v7319, %v7447
  %v7461 = vmul.f32 %v7320, %v7452
  %v7462 = vmul.f32 %v7321, %v7457
  %7463 = vset.pattern.permute.xlu0 2
  %7464 = vperm.xlu0 %7463, %v7003
  %v7465 = vpop.permute.xlu0 %7464
  %7467 = vset.pattern.permute.xlu0 2
  %7468 = vperm.xlu0 %7467, %v7004
  %v7469 = vpop.permute.xlu0 %7468
  %7471 = vset.pattern.permute.xlu0 2
  %7472 = vperm.xlu0 %7471, %v7005
  %v7473 = vpop.permute.xlu0 %7472
  %7475 = vset.pattern.permute.xlu0 2
  %7476 = vperm.xlu0 %7475, %v7006
  %v7477 = vpop.permute.xlu0 %7476
  %v7479 = vadd.f32 %v7459, %v7465
  %v7480 = vadd.f32 %v7460, %v7469
  %v7481 = vadd.f32 %v7461, %v7473
  %v7482 = vadd.f32 %v7462, %v7477
  %v7483 = vmax.f32 %v7479, 0.0
  %v7484 = vmax.f32 %v7480, 0.0
  %v7485 = vmax.f32 %v7481, 0.0
  %v7486 = vmax.f32 %v7482, 0.0
  %v7487 = vlaneseq
  %v7488 = vshrl.u32 %v7487, 7
  %v7489 = vadd.s32 %v7488, 8
  %v7490 = vadd.s32 %v7488, 16
  %v7491 = vadd.s32 %v7488, 24
  %v7492 = vadd.s32 %v7488, 32
  %v7493 = vadd.s32 %v7488, 40
  %v7494 = vadd.s32 %v7488, 48
  %v7495 = vadd.s32 %v7488, 56
  %v7496 = vadd.s32 %v7488, 64
  %v7497 = vadd.s32 %v7488, 72
  %v7498 = vadd.s32 %v7488, 80
  %v7499 = vadd.s32 %v7488, 88
  %v7500 = vadd.s32 %v7488, 96
  %v7501 = vadd.s32 %v7488, 104
  %v7502 = vadd.s32 %v7488, 112
  %v7503 = vadd.s32 %v7488, 120
  %vm7504 = vcmp.eq.s32.totalorder %v7488, %v97
  %vm7505 = vcmp.eq.s32.totalorder %v7489, %v97
  %vm7506 = vcmp.eq.s32.totalorder %v7490, %v97
  %vm7507 = vcmp.eq.s32.totalorder %v7491, %v97
  %vm7508 = vcmp.eq.s32.totalorder %v7492, %v97
  %vm7509 = vcmp.eq.s32.totalorder %v7493, %v97
  %vm7510 = vcmp.eq.s32.totalorder %v7494, %v97
  %vm7511 = vcmp.eq.s32.totalorder %v7495, %v97
  %vm7512 = vcmp.eq.s32.totalorder %v7496, %v97
  %vm7513 = vcmp.eq.s32.totalorder %v7497, %v97
  %vm7514 = vcmp.eq.s32.totalorder %v7498, %v97
  %vm7515 = vcmp.eq.s32.totalorder %v7499, %v97
  %vm7516 = vcmp.eq.s32.totalorder %v7500, %v97
  %vm7517 = vcmp.eq.s32.totalorder %v7501, %v97
  %vm7518 = vcmp.eq.s32.totalorder %v7502, %v97
  %vm7519 = vcmp.eq.s32.totalorder %v7503, %v97
  %v7520 = vsel %vm7504, 1, 0
  %v7521 = vsel %vm7505, 1, 0
  %v7522 = vsel %vm7506, 1, 0
  %v7523 = vsel %vm7507, 1, 0
  %v7524 = vsel %vm7508, 1, 0
  %v7525 = vsel %vm7509, 1, 0
  %v7526 = vsel %vm7510, 1, 0
  %v7527 = vsel %vm7511, 1, 0
  %v7528 = vsel %vm7512, 1, 0
  %v7529 = vsel %vm7513, 1, 0
  %v7530 = vsel %vm7514, 1, 0
  %v7531 = vsel %vm7515, 1, 0
  %v7532 = vsel %vm7516, 1, 0
  %v7533 = vsel %vm7517, 1, 0
  %v7534 = vsel %vm7518, 1, 0
  %v7535 = vsel %vm7519, 1, 0
  %v7536 = vcvt.s32.f32 %v7520
  %v7537 = vcvt.s32.f32 %v7521
  %v7538 = vcvt.s32.f32 %v7522
  %v7539 = vcvt.s32.f32 %v7523
  %v7540 = vcvt.s32.f32 %v7524
  %v7541 = vcvt.s32.f32 %v7525
  %v7542 = vcvt.s32.f32 %v7526
  %v7543 = vcvt.s32.f32 %v7527
  %v7544 = vcvt.s32.f32 %v7528
  %v7545 = vcvt.s32.f32 %v7529
  %v7546 = vcvt.s32.f32 %v7530
  %v7547 = vcvt.s32.f32 %v7531
  %v7548 = vcvt.s32.f32 %v7532
  %v7549 = vcvt.s32.f32 %v7533
  %v7550 = vcvt.s32.f32 %v7534
  %v7551 = vcvt.s32.f32 %v7535
  %7552 = vmatprep.subr.mxu0 0.0
  %7553 = vmatpush1.xpose.msra.mxu0 %v7483
  %7554 = vmatprep.subr.mxu0 0.0
  %7555 = vmatpush1.xpose.msra.mxu0 %v7484
  %7556 = vmatprep.subr.mxu0 0.0
  %7557 = vmatpush1.xpose.msra.mxu0 %v7485
  %7558 = vmatprep.subr.mxu0 0.0
  %7559 = vmatpush1.xpose.msra.mxu0 %v7486
  %7560 = vmatprep.subr.mxu0 0.0
  %7561 = vmatpush1.xpose.msra.mxu0 0.0
  %7562 = vmatprep.subr.mxu0 0.0
  %7563 = vmatpush1.xpose.msra.mxu0 0.0
  %7564 = vmatprep.subr.mxu0 0.0
  %7565 = vmatpush1.xpose.msra.mxu0 0.0
  %7566 = vmatprep.subr.mxu0 0.0
  %7567 = vmatpush1.xpose.msra.mxu0 0.0
  %7568 = vmatprep.subr.mxu0 0.0
  %7569 = vmatpush1.xpose.msra.mxu0 0.0
  %7570 = vmatprep.subr.mxu0 0.0
  %7571 = vmatpush1.xpose.msra.mxu0 0.0
  %7572 = vmatprep.subr.mxu0 0.0
  %7573 = vmatpush1.xpose.msra.mxu0 0.0
  %7574 = vmatprep.subr.mxu0 0.0
  %7575 = vmatpush1.xpose.msra.mxu0 0.0
  %7576 = vmatprep.subr.mxu0 0.0
  %7577 = vmatpush1.xpose.msra.mxu0 0.0
  %7578 = vmatprep.subr.mxu0 0.0
  %7579 = vmatpush1.xpose.msra.mxu0 0.0
  %7580 = vmatprep.subr.mxu0 0.0
  %7581 = vmatpush1.xpose.msra.mxu0 0.0
  %7582 = vmatprep.subr.mxu0 0.0
  %7583 = vmatpush1.xpose.msra.mxu0 0.0
  %7584 = vmatprep.subr.mxu0 0.0
  %7585 = vmatpush1.xpose.msra.mxu0 0.0
  %7586 = vmatprep.subr.mxu0 0.0
  %7587 = vmatpush1.xpose.msra.mxu0 0.0
  %7588 = vmatprep.subr.mxu0 0.0
  %7589 = vmatpush1.xpose.msra.mxu0 0.0
  %7590 = vmatprep.subr.mxu0 0.0
  %7591 = vmatpush1.xpose.msra.mxu0 0.0
  %7592 = vmatprep.subr.mxu0 0.0
  %7593 = vmatpush1.xpose.msra.mxu0 0.0
  %7594 = vmatprep.subr.mxu0 0.0
  %7595 = vmatpush1.xpose.msra.mxu0 0.0
  %7596 = vmatprep.subr.mxu0 0.0
  %7597 = vmatpush1.xpose.msra.mxu0 0.0
  %7598 = vmatprep.subr.mxu0 0.0
  %7599 = vmatpush1.xpose.msra.mxu0 0.0
  %7600 = vmatprep.subr.mxu0 0.0
  %7601 = vmatpush1.xpose.msra.mxu0 0.0
  %7602 = vmatprep.subr.mxu0 0.0
  %7603 = vmatpush1.xpose.msra.mxu0 0.0
  %7604 = vmatprep.subr.mxu0 0.0
  %7605 = vmatpush1.xpose.msra.mxu0 0.0
  %7606 = vmatprep.subr.mxu0 0.0
  %7607 = vmatpush1.xpose.msra.mxu0 0.0
  %7608 = vmatprep.subr.mxu0 0.0
  %7609 = vmatpush1.xpose.msra.mxu0 0.0
  %7610 = vmatprep.subr.mxu0 0.0
  %7611 = vmatpush1.xpose.msra.mxu0 0.0
  %7612 = vmatprep.subr.mxu0 0.0
  %7613 = vmatpush1.xpose.msra.mxu0 0.0
  %7614 = vmatprep.subr.mxu0 0.0
  %7615 = vmatpush1.xpose.msra.mxu0 0.0
  %7616 = vmatprep.mubr.f32.mxu0 0.0
  %7617 = vmatmul.mubr.f32.gmra.mrb[0].mxu0 %v7536
  %v7618 = vpop.f32.mrb[0].mxu0
  %v7619 = vadd.f32 0.0, %v7618
  %v7620 = vpop.f32.mrb[0].mxu0
  %7621 = vmatprep.mubr.f32.mxu0 0.0
  %7622 = vmatmul.mubr.f32.gmra.mrb[0].mxu0 %v7537
  %v7623 = vpop.f32.mrb[0].mxu0
  %v7624 = vadd.f32 0.0, %v7623
  %v7625 = vpop.f32.mrb[0].mxu0
  %7626 = vmatprep.mubr.f32.mxu0 0.0
  %7627 = vmatmul.mubr.f32.gmra.mrb[0].mxu0 %v7538
  %v7628 = vpop.f32.mrb[0].mxu0
  %v7629 = vadd.f32 0.0, %v7628
  %v7630 = vpop.f32.mrb[0].mxu0
  %7631 = vmatprep.mubr.f32.mxu0 0.0
  %7632 = vmatmul.mubr.f32.gmra.mrb[0].mxu0 %v7539
  %v7633 = vpop.f32.mrb[0].mxu0
  %v7634 = vadd.f32 0.0, %v7633
  %v7635 = vpop.f32.mrb[0].mxu0
  %7636 = vmatprep.mubr.f32.mxu0 0.0
  %7637 = vmatmul.mubr.f32.gmra.mrb[0].mxu0 %v7540
  %v7638 = vpop.f32.mrb[0].mxu0
  %v7639 = vadd.f32 0.0, %v7638
  %v7640 = vpop.f32.mrb[0].mxu0
  %7641 = vmatprep.mubr.f32.mxu0 0.0
  %7642 = vmatmul.mubr.f32.gmra.mrb[0].mxu0 %v7541
  %v7643 = vpop.f32.mrb[0].mxu0
  %v7644 = vadd.f32 0.0, %v7643
  %v7645 = vpop.f32.mrb[0].mxu0
  %7646 = vmatprep.mubr.f32.mxu0 0.0
  %7647 = vmatmul.mubr.f32.gmra.mrb[0].mxu0 %v7542
  %v7648 = vpop.f32.mrb[0].mxu0
  %v7649 = vadd.f32 0.0, %v7648
  %v7650 = vpop.f32.mrb[0].mxu0
  %7651 = vmatprep.mubr.f32.mxu0 0.0
  %7652 = vmatmul.mubr.f32.gmra.mrb[0].mxu0 %v7543
  %v7653 = vpop.f32.mrb[0].mxu0
  %v7654 = vadd.f32 0.0, %v7653
  %v7655 = vpop.f32.mrb[0].mxu0
  %7656 = vmatprep.mubr.f32.mxu0 0.0
  %7657 = vmatmul.mubr.f32.gmra.mrb[0].mxu0 %v7544
  %v7658 = vpop.f32.mrb[0].mxu0
  %v7659 = vadd.f32 0.0, %v7658
  %v7660 = vpop.f32.mrb[0].mxu0
  %7661 = vmatprep.mubr.f32.mxu0 0.0
  %7662 = vmatmul.mubr.f32.gmra.mrb[0].mxu0 %v7545
  %v7663 = vpop.f32.mrb[0].mxu0
  %v7664 = vadd.f32 0.0, %v7663
  %v7665 = vpop.f32.mrb[0].mxu0
  %7666 = vmatprep.mubr.f32.mxu0 0.0
  %7667 = vmatmul.mubr.f32.gmra.mrb[0].mxu0 %v7546
  %v7668 = vpop.f32.mrb[0].mxu0
  %v7669 = vadd.f32 0.0, %v7668
  %v7670 = vpop.f32.mrb[0].mxu0
  %7671 = vmatprep.mubr.f32.mxu0 0.0
  %7672 = vmatmul.mubr.f32.gmra.mrb[0].mxu0 %v7547
  %v7673 = vpop.f32.mrb[0].mxu0
  %v7674 = vadd.f32 0.0, %v7673
  %v7675 = vpop.f32.mrb[0].mxu0
  %7676 = vmatprep.mubr.f32.mxu0 0.0
  %7677 = vmatmul.mubr.f32.gmra.mrb[0].mxu0 %v7548
  %v7678 = vpop.f32.mrb[0].mxu0
  %v7679 = vadd.f32 0.0, %v7678
  %v7680 = vpop.f32.mrb[0].mxu0
  %7681 = vmatprep.mubr.f32.mxu0 0.0
  %7682 = vmatmul.mubr.f32.gmra.mrb[0].mxu0 %v7549
  %v7683 = vpop.f32.mrb[0].mxu0
  %v7684 = vadd.f32 0.0, %v7683
  %v7685 = vpop.f32.mrb[0].mxu0
  %7686 = vmatprep.mubr.f32.mxu0 0.0
  %7687 = vmatmul.mubr.f32.gmra.mrb[0].mxu0 %v7550
  %v7688 = vpop.f32.mrb[0].mxu0
  %v7689 = vadd.f32 0.0, %v7688
  %v7690 = vpop.f32.mrb[0].mxu0
  %7691 = vmatprep.mubr.f32.mxu0 0.0
  %7692 = vmatmul.mubr.f32.gmra.mrb[0].mxu0 %v7551
  %v7693 = vpop.f32.mrb[0].mxu0
  %v7694 = vadd.f32 0.0, %v7693
  %v7695 = vpop.f32.mrb[0].mxu0
  %7696 = vdwg.mxu0
  %v7697 = vld [vmem:[%s10] sm:$0xff]
  %v7698 = vld [vmem:[%s10 + $0x8] sm:$0xff]
  %v7699 = vld [vmem:[%s9] sm:$0xff]
  %v7700 = vld [vmem:[%s9 + $0x8] sm:$0xff]
  %v7701 = vld [vmem:[%s9 + $0x10] sm:$0xff]
  %v7702 = vld [vmem:[%s9 + $0x18] sm:$0xff]
  %s7703 = scalar_lea.vmem %s9, 64
  %v7704 = vld [vmem:[%s7703] sm:$0xff]
  %v7705 = vld [vmem:[%s7703 + $0x8] sm:$0xff]
  %v7706 = vld [vmem:[%s7703 + $0x10] sm:$0xff]
  %v7707 = vld [vmem:[%s7703 + $0x18] sm:$0xff]
  %s7708 = scalar_lea.vmem %s9, 128
  %v7709 = vld [vmem:[%s7708] sm:$0xff]
  %v7710 = vld [vmem:[%s7708 + $0x8] sm:$0xff]
  %v7711 = vld [vmem:[%s7708 + $0x10] sm:$0xff]
  %v7712 = vld [vmem:[%s7708 + $0x18] sm:$0xff]
  %s7713 = scalar_lea.vmem %s9, 192
  %v7714 = vld [vmem:[%s7713] sm:$0xff]
  %v7715 = vld [vmem:[%s7713 + $0x8] sm:$0xff]
  %v7716 = vld [vmem:[%s7713 + $0x10] sm:$0xff]
  %v7717 = vld [vmem:[%s7713 + $0x18] sm:$0xff]
  %s7718 = scalar_lea.vmem %s9, 256
  %v7719 = vld [vmem:[%s7718] sm:$0xff]
  %v7720 = vld [vmem:[%s7718 + $0x8] sm:$0xff]
  %v7721 = vld [vmem:[%s7718 + $0x10] sm:$0xff]
  %v7722 = vld [vmem:[%s7718 + $0x18] sm:$0xff]
  %s7723 = scalar_lea.vmem %s9, 320
  %v7724 = vld [vmem:[%s7723] sm:$0xff]
  %v7725 = vld [vmem:[%s7723 + $0x8] sm:$0xff]
  %v7726 = vld [vmem:[%s7723 + $0x10] sm:$0xff]
  %v7727 = vld [vmem:[%s7723 + $0x18] sm:$0xff]
  %s7728 = scalar_lea.vmem %s9, 384
  %v7729 = vld [vmem:[%s7728] sm:$0xff]
  %v7730 = vld [vmem:[%s7728 + $0x8] sm:$0xff]
  %v7731 = vld [vmem:[%s7728 + $0x10] sm:$0xff]
  %v7732 = vld [vmem:[%s7728 + $0x18] sm:$0xff]
  %v7733 = vld [vmem:[%s7728 + $0x20] sm:$0xff]
  %v7734 = vld [vmem:[%s7728 + $0x28] sm:$0xff]
  %v7735 = vld [vmem:[%s7728 + $0x30] sm:$0xff]
  %v7736 = vld [vmem:[%s7728 + $0x38] sm:$0xff]
  %s7737 = scalar_lea.vmem %s9, 448
  %v7738 = vld [vmem:[%s7737] sm:$0xff]
  %v7739 = vld [vmem:[%s7737 + $0x8] sm:$0xff]
  %v7740 = vld [vmem:[%s7737 + $0x10] sm:$0xff]
  %v7741 = vld [vmem:[%s7737 + $0x18] sm:$0xff]
  %v7742 = vld [vmem:[%s7] sm:$0xff]
  %v7743 = vld [vmem:[%s7 + $0x8] sm:$0xff]
  %v7744 = vld [vmem:[%s8] sm:$0xff]
  %v7745 = vld [vmem:[%s8 + $0x8] sm:$0xff]
  %v7746 = vld [vmem:[%s6] sm:$0xff]
  %v7747 = vld [vmem:[%s6 + $0x8] sm:$0xff]
  %v7748 = vsel %vm750, %v7746, 0.0
  %7749 = vadd.xlane.f32.xlu0 %v7748
  %v7750 = vpop.xlane.xlu0 %7749
  %v7751 = vsel %vm750, %v7747, 0.0
  %7752 = vadd.xlane.f32.xlu0 %v7751
  %v7753 = vpop.xlane.xlu0 %7752
  %v7754 = vrcp.pop 32.0
  %v7755 = vmul.f32 %v7750, %v7754
  %v7756 = vmul.f32 %v7753, %v7754
  %v7757 = vsub.f32 %v7746, %v7755
  %v7758 = vsub.f32 %v7747, %v7756
  %v7759 = vmul.f32 %v7757, %v7757
  %v7760 = vmul.f32 %v7758, %v7758
  %v7761 = vsel %vm750, %v7759, 0.0
  %7762 = vadd.xlane.f32.xlu0 %v7761
  %v7763 = vpop.xlane.xlu0 %7762
  %v7764 = vsel %vm750, %v7760, 0.0
  %7765 = vadd.xlane.f32.xlu0 %v7764
  %v7766 = vpop.xlane.xlu0 %7765
  %v7767 = vmul.f32 %v7763, %v7754
  %v7768 = vmul.f32 %v7766, %v7754
  %v7769 = vadd.f32 %v7767, 1e-05
  %v7770 = vadd.f32 %v7768, 1e-05
  %v7771 = vrsqrt.pop %v7769
  %v7772 = vrsqrt.pop %v7770
  %v7773 = vmul.f32 %v7757, %v7771
  %v7774 = vmul.f32 %v7758, %v7772
  %v7775 = vlaneseq
  %v7776 = vshrl.u32 %v7775, 7
  %v7777 = vsub.s32 0, %v7776
  %v7778 = vrot.slane %v7697, %v7777
  %v7779 = vmul.f32 %v7773, %v7778
  %v7780 = vmul.f32 %v7774, %v7778
  %v7781 = vlaneseq
  %v7782 = vshrl.u32 %v7781, 7
  %v7783 = vsub.s32 1, %v7782
  %v7784 = vrot.slane %v7697, %v7783
  %v7785 = vadd.f32 %v7779, %v7784
  %v7786 = vadd.f32 %v7780, %v7784
  %v7787 = vlaneseq
  %v7788 = vshrl.u32 %v7787, 7
  %v7789 = vsub.s32 2, %v7788
  %v7790 = vrot.slane %v7697, %v7789
  %v7792 = vsel %vm750, %v7785, 0
  %v7795 = vsel %vm750, %v7786, 0
  %7797 = vmatprep.subr.mxu0 0.0
  %7798 = vmatpush1.msra.mxu0 %v7699
  %7799 = vmatprep.subr.mxu0 0.0
  %7800 = vmatpush1.msra.mxu0 %v7700
  %7801 = vmatprep.subr.mxu0 0.0
  %7802 = vmatpush1.msra.mxu0 %v7701
  %7803 = vmatprep.subr.mxu0 0.0
  %7804 = vmatpush1.msra.mxu0 %v7702
  %7805 = vmatprep.subr.mxu0 0.0
  %7806 = vmatpush1.msra.mxu0 0.0
  %7807 = vmatprep.subr.mxu0 0.0
  %7808 = vmatpush1.msra.mxu0 0.0
  %7809 = vmatprep.subr.mxu0 0.0
  %7810 = vmatpush1.msra.mxu0 0.0
  %7811 = vmatprep.subr.mxu0 0.0
  %7812 = vmatpush1.msra.mxu0 0.0
  %7813 = vmatprep.subr.mxu0 0.0
  %7814 = vmatpush1.msra.mxu0 0.0
  %7815 = vmatprep.subr.mxu0 0.0
  %7816 = vmatpush1.msra.mxu0 0.0
  %7817 = vmatprep.subr.mxu0 0.0
  %7818 = vmatpush1.msra.mxu0 0.0
  %7819 = vmatprep.subr.mxu0 0.0
  %7820 = vmatpush1.msra.mxu0 0.0
  %7821 = vmatprep.subr.mxu0 0.0
  %7822 = vmatpush1.msra.mxu0 0.0
  %7823 = vmatprep.subr.mxu0 0.0
  %7824 = vmatpush1.msra.mxu0 0.0
  %7825 = vmatprep.subr.mxu0 0.0
  %7826 = vmatpush1.msra.mxu0 0.0
  %7827 = vmatprep.subr.mxu0 0.0
  %7828 = vmatpush1.msra.mxu0 0.0
  %7829 = vmatprep.subr.mxu0 0.0
  %7830 = vmatpush1.msra.mxu0 0.0
  %7831 = vmatprep.subr.mxu0 0.0
  %7832 = vmatpush1.msra.mxu0 0.0
  %7833 = vmatprep.subr.mxu0 0.0
  %7834 = vmatpush1.msra.mxu0 0.0
  %7835 = vmatprep.subr.mxu0 0.0
  %7836 = vmatpush1.msra.mxu0 0.0
  %7837 = vmatprep.subr.mxu0 0.0
  %7838 = vmatpush1.msra.mxu0 0.0
  %7839 = vmatprep.subr.mxu0 0.0
  %7840 = vmatpush1.msra.mxu0 0.0
  %7841 = vmatprep.subr.mxu0 0.0
  %7842 = vmatpush1.msra.mxu0 0.0
  %7843 = vmatprep.subr.mxu0 0.0
  %7844 = vmatpush1.msra.mxu0 0.0
  %7845 = vmatprep.subr.mxu0 0.0
  %7846 = vmatpush1.msra.mxu0 0.0
  %7847 = vmatprep.subr.mxu0 0.0
  %7848 = vmatpush1.msra.mxu0 0.0
  %7849 = vmatprep.subr.mxu0 0.0
  %7850 = vmatpush1.msra.mxu0 0.0
  %7851 = vmatprep.subr.mxu0 0.0
  %7852 = vmatpush1.msra.mxu0 0.0
  %7853 = vmatprep.subr.mxu0 0.0
  %7854 = vmatpush1.msra.mxu0 0.0
  %7855 = vmatprep.subr.mxu0 0.0
  %7856 = vmatpush1.msra.mxu0 0.0
  %7857 = vmatprep.subr.mxu0 0.0
  %7858 = vmatpush1.msra.mxu0 0.0
  %7859 = vmatprep.subr.mxu0 0.0
  %7860 = vmatpush1.msra.mxu0 0.0
  %7861 = vmatprep.mubr.f32.mxu0 0.0
  %7862 = vmatmul.mubr.f32.gmra.mrb[0].mxu0 %v7792
  %v7863 = vpop.f32.mrb[0].mxu0
  %v7864 = vadd.f32 %v7790, %v7863
  %v7865 = vpop.f32.mrb[0].mxu0
  %7866 = vmatprep.mubr.f32.mxu0 0.0
  %7867 = vmatmul.mubr.f32.gmra.mrb[0].mxu0 %v7795
  %v7868 = vpop.f32.mrb[0].mxu0
  %v7869 = vadd.f32 %v7790, %v7868
  %v7870 = vpop.f32.mrb[0].mxu0
  %7871 = vdwg.mxu0
  %7874 = vrot.lane.b32.xlu0 %v7864, 96
  %v7875 = vpop.permute.xlu0 %7874
  %7876 = vrot.lane.b32.xlu0 %v7869, 96
  %v7877 = vpop.permute.xlu0 %7876
  %vm7878 = vcmask 64512
  %v7879 = vsel %vm7878, %v7864, 0
  %v7881 = vsel %vm7878, %v7869, 0
  %v7883 = vsel %vm7878, %v7875, 0
  %v7885 = vsel %vm7878, %v7877, 0
  %7887 = vmatprep.subr.mxu0 0.0
  %7888 = vmatpush1.xpose.msra.mxu0 %v7883
  %7889 = vmatprep.subr.mxu0 0.0
  %7890 = vmatpush1.xpose.msra.mxu0 %v7885
  %7891 = vmatprep.subr.mxu0 0.0
  %7892 = vmatpush1.xpose.msra.mxu0 0.0
  %7893 = vmatprep.subr.mxu0 0.0
  %7894 = vmatpush1.xpose.msra.mxu0 0.0
  %7895 = vmatprep.subr.mxu0 0.0
  %7896 = vmatpush1.xpose.msra.mxu0 0.0
  %7897 = vmatprep.subr.mxu0 0.0
  %7898 = vmatpush1.xpose.msra.mxu0 0.0
  %7899 = vmatprep.subr.mxu0 0.0
  %7900 = vmatpush1.xpose.msra.mxu0 0.0
  %7901 = vmatprep.subr.mxu0 0.0
  %7902 = vmatpush1.xpose.msra.mxu0 0.0
  %7903 = vmatprep.subr.mxu0 0.0
  %7904 = vmatpush1.xpose.msra.mxu0 0.0
  %7905 = vmatprep.subr.mxu0 0.0
  %7906 = vmatpush1.xpose.msra.mxu0 0.0
  %7907 = vmatprep.subr.mxu0 0.0
  %7908 = vmatpush1.xpose.msra.mxu0 0.0
  %7909 = vmatprep.subr.mxu0 0.0
  %7910 = vmatpush1.xpose.msra.mxu0 0.0
  %7911 = vmatprep.subr.mxu0 0.0
  %7912 = vmatpush1.xpose.msra.mxu0 0.0
  %7913 = vmatprep.subr.mxu0 0.0
  %7914 = vmatpush1.xpose.msra.mxu0 0.0
  %7915 = vmatprep.subr.mxu0 0.0
  %7916 = vmatpush1.xpose.msra.mxu0 0.0
  %7917 = vmatprep.subr.mxu0 0.0
  %7918 = vmatpush1.xpose.msra.mxu0 0.0
  %7919 = vmatprep.subr.mxu0 0.0
  %7920 = vmatpush1.xpose.msra.mxu0 0.0
  %7921 = vmatprep.subr.mxu0 0.0
  %7922 = vmatpush1.xpose.msra.mxu0 0.0
  %7923 = vmatprep.subr.mxu0 0.0
  %7924 = vmatpush1.xpose.msra.mxu0 0.0
  %7925 = vmatprep.subr.mxu0 0.0
  %7926 = vmatpush1.xpose.msra.mxu0 0.0
  %7927 = vmatprep.subr.mxu0 0.0
  %7928 = vmatpush1.xpose.msra.mxu0 0.0
  %7929 = vmatprep.subr.mxu0 0.0
  %7930 = vmatpush1.xpose.msra.mxu0 0.0
  %7931 = vmatprep.subr.mxu0 0.0
  %7932 = vmatpush1.xpose.msra.mxu0 0.0
  %7933 = vmatprep.subr.mxu0 0.0
  %7934 = vmatpush1.xpose.msra.mxu0 0.0
  %7935 = vmatprep.subr.mxu0 0.0
  %7936 = vmatpush1.xpose.msra.mxu0 0.0
  %7937 = vmatprep.subr.mxu0 0.0
  %7938 = vmatpush1.xpose.msra.mxu0 0.0
  %7939 = vmatprep.subr.mxu0 0.0
  %7940 = vmatpush1.xpose.msra.mxu0 0.0
  %7941 = vmatprep.subr.mxu0 0.0
  %7942 = vmatpush1.xpose.msra.mxu0 0.0
  %7943 = vmatprep.subr.mxu0 0.0
  %7944 = vmatpush1.xpose.msra.mxu0 0.0
  %7945 = vmatprep.subr.mxu0 0.0
  %7946 = vmatpush1.xpose.msra.mxu0 0.0
  %7947 = vmatprep.subr.mxu0 0.0
  %7948 = vmatpush1.xpose.msra.mxu0 0.0
  %7949 = vmatprep.subr.mxu0 0.0
  %7950 = vmatpush1.xpose.msra.mxu0 0.0
  %7951 = vmatprep.mubr.f32.mxu0 0.0
  %7952 = vmatmul.mubr.f32.gmra.mrb[0].mxu0 %v7879
  %v7953 = vpop.f32.mrb[0].mxu0
  %v7954 = vadd.f32 %v7742, %v7953
  %v7955 = vpop.f32.mrb[0].mxu0
  %7956 = vmatprep.mubr.f32.mxu0 0.0
  %7957 = vmatmul.mubr.f32.gmra.mrb[0].mxu0 %v7881
  %v7958 = vpop.f32.mrb[0].mxu0
  %v7959 = vadd.f32 %v7743, %v7958
  %v7960 = vpop.f32.mrb[0].mxu0
  %7961 = vdwg.mxu0
  %vm7962 = vcmask 130048
  %v7963 = vsel %vm7962, %v7954, -inf
  %7964 = vmax.xlane.f32.xlu0 %v7963
  %v7965 = vpop.xlane.xlu0 %7964
  %v7966 = vsel %vm7962, %v7959, -inf
  %7967 = vmax.xlane.f32.xlu0 %v7966
  %v7968 = vpop.xlane.xlu0 %7967
  %v7969 = vsub.f32 %v7954, %v7965
  %v7970 = vsub.f32 %v7959, %v7968
  %v7971 = vmul.f32 %v7969, 1.442695
  %v7972 = vpow.pop %v7971
  %v7973 = vmul.f32 %v7970, 1.442695
  %v7974 = vpow.pop %v7973
  %v7975 = vsel %vm7962, %v7972, 0.0
  %7976 = vadd.xlane.f32.xlu0 %v7975
  %v7977 = vpop.xlane.xlu0 %7976
  %v7978 = vsel %vm7962, %v7974, 0.0
  %7979 = vadd.xlane.f32.xlu0 %v7978
  %v7980 = vpop.xlane.xlu0 %7979
  %v7981 = vrcp.pop %v7977
  %v7982 = vrcp.pop %v7980
  %v7983 = vmul.f32 %v7972, %v7981
  %v7984 = vmul.f32 %v7974, %v7982
  %7985 = vrot.lane.b32.xlu0 %v7864, 64
  %v7986 = vpop.permute.xlu0 %7985
  %7987 = vrot.lane.b32.xlu0 %v7869, 64
  %v7988 = vpop.permute.xlu0 %7987
  %v7992 = vsel %vm7962, %v7983, 0
  %v7995 = vsel %vm7962, %v7984, 0
  %7997 = vmatprep.subr.mxu0 0.0
  %7998 = vmatpush1.msra.mxu0 %v7986
  %7999 = vmatprep.subr.mxu0 0.0
  %8000 = vmatpush1.msra.mxu0 %v7988
  %8001 = vmatprep.subr.mxu0 0.0
  %8002 = vmatpush1.msra.mxu0 0.0
  %8003 = vmatprep.subr.mxu0 0.0
  %8004 = vmatpush1.msra.mxu0 0.0
  %8005 = vmatprep.subr.mxu0 0.0
  %8006 = vmatpush1.msra.mxu0 0.0
  %8007 = vmatprep.subr.mxu0 0.0
  %8008 = vmatpush1.msra.mxu0 0.0
  %8009 = vmatprep.subr.mxu0 0.0
  %8010 = vmatpush1.msra.mxu0 0.0
  %8011 = vmatprep.subr.mxu0 0.0
  %8012 = vmatpush1.msra.mxu0 0.0
  %8013 = vmatprep.subr.mxu0 0.0
  %8014 = vmatpush1.msra.mxu0 0.0
  %8015 = vmatprep.subr.mxu0 0.0
  %8016 = vmatpush1.msra.mxu0 0.0
  %8017 = vmatprep.subr.mxu0 0.0
  %8018 = vmatpush1.msra.mxu0 0.0
  %8019 = vmatprep.subr.mxu0 0.0
  %8020 = vmatpush1.msra.mxu0 0.0
  %8021 = vmatprep.subr.mxu0 0.0
  %8022 = vmatpush1.msra.mxu0 0.0
  %8023 = vmatprep.subr.mxu0 0.0
  %8024 = vmatpush1.msra.mxu0 0.0
  %8025 = vmatprep.subr.mxu0 0.0
  %8026 = vmatpush1.msra.mxu0 0.0
  %8027 = vmatprep.subr.mxu0 0.0
  %8028 = vmatpush1.msra.mxu0 0.0
  %8029 = vmatprep.subr.mxu0 0.0
  %8030 = vmatpush1.msra.mxu0 0.0
  %8031 = vmatprep.subr.mxu0 0.0
  %8032 = vmatpush1.msra.mxu0 0.0
  %8033 = vmatprep.subr.mxu0 0.0
  %8034 = vmatpush1.msra.mxu0 0.0
  %8035 = vmatprep.subr.mxu0 0.0
  %8036 = vmatpush1.msra.mxu0 0.0
  %8037 = vmatprep.subr.mxu0 0.0
  %8038 = vmatpush1.msra.mxu0 0.0
  %8039 = vmatprep.subr.mxu0 0.0
  %8040 = vmatpush1.msra.mxu0 0.0
  %8041 = vmatprep.subr.mxu0 0.0
  %8042 = vmatpush1.msra.mxu0 0.0
  %8043 = vmatprep.subr.mxu0 0.0
  %8044 = vmatpush1.msra.mxu0 0.0
  %8045 = vmatprep.subr.mxu0 0.0
  %8046 = vmatpush1.msra.mxu0 0.0
  %8047 = vmatprep.subr.mxu0 0.0
  %8048 = vmatpush1.msra.mxu0 0.0
  %8049 = vmatprep.subr.mxu0 0.0
  %8050 = vmatpush1.msra.mxu0 0.0
  %8051 = vmatprep.subr.mxu0 0.0
  %8052 = vmatpush1.msra.mxu0 0.0
  %8053 = vmatprep.subr.mxu0 0.0
  %8054 = vmatpush1.msra.mxu0 0.0
  %8055 = vmatprep.subr.mxu0 0.0
  %8056 = vmatpush1.msra.mxu0 0.0
  %8057 = vmatprep.subr.mxu0 0.0
  %8058 = vmatpush1.msra.mxu0 0.0
  %8059 = vmatprep.subr.mxu0 0.0
  %8060 = vmatpush1.msra.mxu0 0.0
  %8061 = vmatprep.mubr.f32.mxu0 0.0
  %8062 = vmatmul.mubr.f32.gmra.mrb[0].mxu0 %v7992
  %v8063 = vpop.f32.mrb[0].mxu0
  %v8064 = vadd.f32 0.0, %v8063
  %v8065 = vpop.f32.mrb[0].mxu0
  %8066 = vmatprep.mubr.f32.mxu0 0.0
  %8067 = vmatmul.mubr.f32.gmra.mrb[0].mxu0 %v7995
  %v8068 = vpop.f32.mrb[0].mxu0
  %v8069 = vadd.f32 0.0, %v8068
  %v8070 = vpop.f32.mrb[0].mxu0
  %8071 = vdwg.mxu0
  %8072 = vrot.lane.b32.xlu0 %v7864, 120
  %v8073 = vpop.permute.xlu0 %8072
  %8074 = vrot.lane.b32.xlu0 %v7869, 120
  %v8075 = vpop.permute.xlu0 %8074
  %8076 = vrot.lane.b32.xlu0 %v7864, 88
  %v8077 = vpop.permute.xlu0 %8076
  %8078 = vrot.lane.b32.xlu0 %v7869, 88
  %v8079 = vpop.permute.xlu0 %8078
  %v8080 = vsel %vm7878, %v8073, 0
  %v8082 = vsel %vm7878, %v8075, 0
  %v8084 = vsel %vm7878, %v8077, 0
  %v8086 = vsel %vm7878, %v8079, 0
  %8088 = vmatprep.subr.mxu0 0.0
  %8089 = vmatpush1.xpose.msra.mxu0 %v8084
  %8090 = vmatprep.subr.mxu0 0.0
  %8091 = vmatpush1.xpose.msra.mxu0 %v8086
  %8092 = vmatprep.subr.mxu0 0.0
  %8093 = vmatpush1.xpose.msra.mxu0 0.0
  %8094 = vmatprep.subr.mxu0 0.0
  %8095 = vmatpush1.xpose.msra.mxu0 0.0
  %8096 = vmatprep.subr.mxu0 0.0
  %8097 = vmatpush1.xpose.msra.mxu0 0.0
  %8098 = vmatprep.subr.mxu0 0.0
  %8099 = vmatpush1.xpose.msra.mxu0 0.0
  %8100 = vmatprep.subr.mxu0 0.0
  %8101 = vmatpush1.xpose.msra.mxu0 0.0
  %8102 = vmatprep.subr.mxu0 0.0
  %8103 = vmatpush1.xpose.msra.mxu0 0.0
  %8104 = vmatprep.subr.mxu0 0.0
  %8105 = vmatpush1.xpose.msra.mxu0 0.0
  %8106 = vmatprep.subr.mxu0 0.0
  %8107 = vmatpush1.xpose.msra.mxu0 0.0
  %8108 = vmatprep.subr.mxu0 0.0
  %8109 = vmatpush1.xpose.msra.mxu0 0.0
  %8110 = vmatprep.subr.mxu0 0.0
  %8111 = vmatpush1.xpose.msra.mxu0 0.0
  %8112 = vmatprep.subr.mxu0 0.0
  %8113 = vmatpush1.xpose.msra.mxu0 0.0
  %8114 = vmatprep.subr.mxu0 0.0
  %8115 = vmatpush1.xpose.msra.mxu0 0.0
  %8116 = vmatprep.subr.mxu0 0.0
  %8117 = vmatpush1.xpose.msra.mxu0 0.0
  %8118 = vmatprep.subr.mxu0 0.0
  %8119 = vmatpush1.xpose.msra.mxu0 0.0
  %8120 = vmatprep.subr.mxu0 0.0
  %8121 = vmatpush1.xpose.msra.mxu0 0.0
  %8122 = vmatprep.subr.mxu0 0.0
  %8123 = vmatpush1.xpose.msra.mxu0 0.0
  %8124 = vmatprep.subr.mxu0 0.0
  %8125 = vmatpush1.xpose.msra.mxu0 0.0
  %8126 = vmatprep.subr.mxu0 0.0
  %8127 = vmatpush1.xpose.msra.mxu0 0.0
  %8128 = vmatprep.subr.mxu0 0.0
  %8129 = vmatpush1.xpose.msra.mxu0 0.0
  %8130 = vmatprep.subr.mxu0 0.0
  %8131 = vmatpush1.xpose.msra.mxu0 0.0
  %8132 = vmatprep.subr.mxu0 0.0
  %8133 = vmatpush1.xpose.msra.mxu0 0.0
  %8134 = vmatprep.subr.mxu0 0.0
  %8135 = vmatpush1.xpose.msra.mxu0 0.0
  %8136 = vmatprep.subr.mxu0 0.0
  %8137 = vmatpush1.xpose.msra.mxu0 0.0
  %8138 = vmatprep.subr.mxu0 0.0
  %8139 = vmatpush1.xpose.msra.mxu0 0.0
  %8140 = vmatprep.subr.mxu0 0.0
  %8141 = vmatpush1.xpose.msra.mxu0 0.0
  %8142 = vmatprep.subr.mxu0 0.0
  %8143 = vmatpush1.xpose.msra.mxu0 0.0
  %8144 = vmatprep.subr.mxu0 0.0
  %8145 = vmatpush1.xpose.msra.mxu0 0.0
  %8146 = vmatprep.subr.mxu0 0.0
  %8147 = vmatpush1.xpose.msra.mxu0 0.0
  %8148 = vmatprep.subr.mxu0 0.0
  %8149 = vmatpush1.xpose.msra.mxu0 0.0
  %8150 = vmatprep.subr.mxu0 0.0
  %8151 = vmatpush1.xpose.msra.mxu0 0.0
  %8152 = vmatprep.mubr.f32.mxu0 0.0
  %8153 = vmatmul.mubr.f32.gmra.mrb[0].mxu0 %v8080
  %v8154 = vpop.f32.mrb[0].mxu0
  %v8155 = vadd.f32 %v7742, %v8154
  %v8156 = vpop.f32.mrb[0].mxu0
  %8157 = vmatprep.mubr.f32.mxu0 0.0
  %8158 = vmatmul.mubr.f32.gmra.mrb[0].mxu0 %v8082
  %v8159 = vpop.f32.mrb[0].mxu0
  %v8160 = vadd.f32 %v7743, %v8159
  %v8161 = vpop.f32.mrb[0].mxu0
  %8162 = vdwg.mxu0
  %v8163 = vsel %vm7962, %v8155, -inf
  %8164 = vmax.xlane.f32.xlu0 %v8163
  %v8165 = vpop.xlane.xlu0 %8164
  %v8166 = vsel %vm7962, %v8160, -inf
  %8167 = vmax.xlane.f32.xlu0 %v8166
  %v8168 = vpop.xlane.xlu0 %8167
  %v8169 = vsub.f32 %v8155, %v8165
  %v8170 = vsub.f32 %v8160, %v8168
  %v8171 = vmul.f32 %v8169, 1.442695
  %v8172 = vpow.pop %v8171
  %v8173 = vmul.f32 %v8170, 1.442695
  %v8174 = vpow.pop %v8173
  %v8175 = vsel %vm7962, %v8172, 0.0
  %8176 = vadd.xlane.f32.xlu0 %v8175
  %v8177 = vpop.xlane.xlu0 %8176
  %v8178 = vsel %vm7962, %v8174, 0.0
  %8179 = vadd.xlane.f32.xlu0 %v8178
  %v8180 = vpop.xlane.xlu0 %8179
  %v8181 = vrcp.pop %v8177
  %v8182 = vrcp.pop %v8180
  %v8183 = vmul.f32 %v8172, %v8181
  %v8184 = vmul.f32 %v8174, %v8182
  %8185 = vrot.lane.b32.xlu0 %v7864, 56
  %v8186 = vpop.permute.xlu0 %8185
  %8187 = vrot.lane.b32.xlu0 %v7869, 56
  %v8188 = vpop.permute.xlu0 %8187
  %v8192 = vsel %vm7962, %v8183, 0
  %v8195 = vsel %vm7962, %v8184, 0
  %8197 = vmatprep.subr.mxu0 0.0
  %8198 = vmatpush1.msra.mxu0 %v8186
  %8199 = vmatprep.subr.mxu0 0.0
  %8200 = vmatpush1.msra.mxu0 %v8188
  %8201 = vmatprep.subr.mxu0 0.0
  %8202 = vmatpush1.msra.mxu0 0.0
  %8203 = vmatprep.subr.mxu0 0.0
  %8204 = vmatpush1.msra.mxu0 0.0
  %8205 = vmatprep.subr.mxu0 0.0
  %8206 = vmatpush1.msra.mxu0 0.0
  %8207 = vmatprep.subr.mxu0 0.0
  %8208 = vmatpush1.msra.mxu0 0.0
  %8209 = vmatprep.subr.mxu0 0.0
  %8210 = vmatpush1.msra.mxu0 0.0
  %8211 = vmatprep.subr.mxu0 0.0
  %8212 = vmatpush1.msra.mxu0 0.0
  %8213 = vmatprep.subr.mxu0 0.0
  %8214 = vmatpush1.msra.mxu0 0.0
  %8215 = vmatprep.subr.mxu0 0.0
  %8216 = vmatpush1.msra.mxu0 0.0
  %8217 = vmatprep.subr.mxu0 0.0
  %8218 = vmatpush1.msra.mxu0 0.0
  %8219 = vmatprep.subr.mxu0 0.0
  %8220 = vmatpush1.msra.mxu0 0.0
  %8221 = vmatprep.subr.mxu0 0.0
  %8222 = vmatpush1.msra.mxu0 0.0
  %8223 = vmatprep.subr.mxu0 0.0
  %8224 = vmatpush1.msra.mxu0 0.0
  %8225 = vmatprep.subr.mxu0 0.0
  %8226 = vmatpush1.msra.mxu0 0.0
  %8227 = vmatprep.subr.mxu0 0.0
  %8228 = vmatpush1.msra.mxu0 0.0
  %8229 = vmatprep.subr.mxu0 0.0
  %8230 = vmatpush1.msra.mxu0 0.0
  %8231 = vmatprep.subr.mxu0 0.0
  %8232 = vmatpush1.msra.mxu0 0.0
  %8233 = vmatprep.subr.mxu0 0.0
  %8234 = vmatpush1.msra.mxu0 0.0
  %8235 = vmatprep.subr.mxu0 0.0
  %8236 = vmatpush1.msra.mxu0 0.0
  %8237 = vmatprep.subr.mxu0 0.0
  %8238 = vmatpush1.msra.mxu0 0.0
  %8239 = vmatprep.subr.mxu0 0.0
  %8240 = vmatpush1.msra.mxu0 0.0
  %8241 = vmatprep.subr.mxu0 0.0
  %8242 = vmatpush1.msra.mxu0 0.0
  %8243 = vmatprep.subr.mxu0 0.0
  %8244 = vmatpush1.msra.mxu0 0.0
  %8245 = vmatprep.subr.mxu0 0.0
  %8246 = vmatpush1.msra.mxu0 0.0
  %8247 = vmatprep.subr.mxu0 0.0
  %8248 = vmatpush1.msra.mxu0 0.0
  %8249 = vmatprep.subr.mxu0 0.0
  %8250 = vmatpush1.msra.mxu0 0.0
  %8251 = vmatprep.subr.mxu0 0.0
  %8252 = vmatpush1.msra.mxu0 0.0
  %8253 = vmatprep.subr.mxu0 0.0
  %8254 = vmatpush1.msra.mxu0 0.0
  %8255 = vmatprep.subr.mxu0 0.0
  %8256 = vmatpush1.msra.mxu0 0.0
  %8257 = vmatprep.subr.mxu0 0.0
  %8258 = vmatpush1.msra.mxu0 0.0
  %8259 = vmatprep.subr.mxu0 0.0
  %8260 = vmatpush1.msra.mxu0 0.0
  %8261 = vmatprep.mubr.f32.mxu0 0.0
  %8262 = vmatmul.mubr.f32.gmra.mrb[0].mxu0 %v8192
  %v8263 = vpop.f32.mrb[0].mxu0
  %v8264 = vadd.f32 0.0, %v8263
  %v8265 = vpop.f32.mrb[0].mxu0
  %8266 = vmatprep.mubr.f32.mxu0 0.0
  %8267 = vmatmul.mubr.f32.gmra.mrb[0].mxu0 %v8195
  %v8268 = vpop.f32.mrb[0].mxu0
  %v8269 = vadd.f32 0.0, %v8268
  %v8270 = vpop.f32.mrb[0].mxu0
  %8271 = vdwg.mxu0
  %8272 = vrot.lane.b32.xlu0 %v7864, 112
  %v8273 = vpop.permute.xlu0 %8272
  %8274 = vrot.lane.b32.xlu0 %v7869, 112
  %v8275 = vpop.permute.xlu0 %8274
  %8276 = vrot.lane.b32.xlu0 %v7864, 80
  %v8277 = vpop.permute.xlu0 %8276
  %8278 = vrot.lane.b32.xlu0 %v7869, 80
  %v8279 = vpop.permute.xlu0 %8278
  %v8280 = vsel %vm7878, %v8273, 0
  %v8282 = vsel %vm7878, %v8275, 0
  %v8284 = vsel %vm7878, %v8277, 0
  %v8286 = vsel %vm7878, %v8279, 0
  %8288 = vmatprep.subr.mxu0 0.0
  %8289 = vmatpush1.xpose.msra.mxu0 %v8284
  %8290 = vmatprep.subr.mxu0 0.0
  %8291 = vmatpush1.xpose.msra.mxu0 %v8286
  %8292 = vmatprep.subr.mxu0 0.0
  %8293 = vmatpush1.xpose.msra.mxu0 0.0
  %8294 = vmatprep.subr.mxu0 0.0
  %8295 = vmatpush1.xpose.msra.mxu0 0.0
  %8296 = vmatprep.subr.mxu0 0.0
  %8297 = vmatpush1.xpose.msra.mxu0 0.0
  %8298 = vmatprep.subr.mxu0 0.0
  %8299 = vmatpush1.xpose.msra.mxu0 0.0
  %8300 = vmatprep.subr.mxu0 0.0
  %8301 = vmatpush1.xpose.msra.mxu0 0.0
  %8302 = vmatprep.subr.mxu0 0.0
  %8303 = vmatpush1.xpose.msra.mxu0 0.0
  %8304 = vmatprep.subr.mxu0 0.0
  %8305 = vmatpush1.xpose.msra.mxu0 0.0
  %8306 = vmatprep.subr.mxu0 0.0
  %8307 = vmatpush1.xpose.msra.mxu0 0.0
  %8308 = vmatprep.subr.mxu0 0.0
  %8309 = vmatpush1.xpose.msra.mxu0 0.0
  %8310 = vmatprep.subr.mxu0 0.0
  %8311 = vmatpush1.xpose.msra.mxu0 0.0
  %8312 = vmatprep.subr.mxu0 0.0
  %8313 = vmatpush1.xpose.msra.mxu0 0.0
  %8314 = vmatprep.subr.mxu0 0.0
  %8315 = vmatpush1.xpose.msra.mxu0 0.0
  %8316 = vmatprep.subr.mxu0 0.0
  %8317 = vmatpush1.xpose.msra.mxu0 0.0
  %8318 = vmatprep.subr.mxu0 0.0
  %8319 = vmatpush1.xpose.msra.mxu0 0.0
  %8320 = vmatprep.subr.mxu0 0.0
  %8321 = vmatpush1.xpose.msra.mxu0 0.0
  %8322 = vmatprep.subr.mxu0 0.0
  %8323 = vmatpush1.xpose.msra.mxu0 0.0
  %8324 = vmatprep.subr.mxu0 0.0
  %8325 = vmatpush1.xpose.msra.mxu0 0.0
  %8326 = vmatprep.subr.mxu0 0.0
  %8327 = vmatpush1.xpose.msra.mxu0 0.0
  %8328 = vmatprep.subr.mxu0 0.0
  %8329 = vmatpush1.xpose.msra.mxu0 0.0
  %8330 = vmatprep.subr.mxu0 0.0
  %8331 = vmatpush1.xpose.msra.mxu0 0.0
  %8332 = vmatprep.subr.mxu0 0.0
  %8333 = vmatpush1.xpose.msra.mxu0 0.0
  %8334 = vmatprep.subr.mxu0 0.0
  %8335 = vmatpush1.xpose.msra.mxu0 0.0
  %8336 = vmatprep.subr.mxu0 0.0
  %8337 = vmatpush1.xpose.msra.mxu0 0.0
  %8338 = vmatprep.subr.mxu0 0.0
  %8339 = vmatpush1.xpose.msra.mxu0 0.0
  %8340 = vmatprep.subr.mxu0 0.0
  %8341 = vmatpush1.xpose.msra.mxu0 0.0
  %8342 = vmatprep.subr.mxu0 0.0
  %8343 = vmatpush1.xpose.msra.mxu0 0.0
  %8344 = vmatprep.subr.mxu0 0.0
  %8345 = vmatpush1.xpose.msra.mxu0 0.0
  %8346 = vmatprep.subr.mxu0 0.0
  %8347 = vmatpush1.xpose.msra.mxu0 0.0
  %8348 = vmatprep.subr.mxu0 0.0
  %8349 = vmatpush1.xpose.msra.mxu0 0.0
  %8350 = vmatprep.subr.mxu0 0.0
  %8351 = vmatpush1.xpose.msra.mxu0 0.0
  %8352 = vmatprep.mubr.f32.mxu0 0.0
  %8353 = vmatmul.mubr.f32.gmra.mrb[0].mxu0 %v8280
  %v8354 = vpop.f32.mrb[0].mxu0
  %v8355 = vadd.f32 %v7742, %v8354
  %v8356 = vpop.f32.mrb[0].mxu0
  %8357 = vmatprep.mubr.f32.mxu0 0.0
  %8358 = vmatmul.mubr.f32.gmra.mrb[0].mxu0 %v8282
  %v8359 = vpop.f32.mrb[0].mxu0
  %v8360 = vadd.f32 %v7743, %v8359
  %v8361 = vpop.f32.mrb[0].mxu0
  %8362 = vdwg.mxu0
  %v8363 = vsel %vm7962, %v8355, -inf
  %8364 = vmax.xlane.f32.xlu0 %v8363
  %v8365 = vpop.xlane.xlu0 %8364
  %v8366 = vsel %vm7962, %v8360, -inf
  %8367 = vmax.xlane.f32.xlu0 %v8366
  %v8368 = vpop.xlane.xlu0 %8367
  %v8369 = vsub.f32 %v8355, %v8365
  %v8370 = vsub.f32 %v8360, %v8368
  %v8371 = vmul.f32 %v8369, 1.442695
  %v8372 = vpow.pop %v8371
  %v8373 = vmul.f32 %v8370, 1.442695
  %v8374 = vpow.pop %v8373
  %v8375 = vsel %vm7962, %v8372, 0.0
  %8376 = vadd.xlane.f32.xlu0 %v8375
  %v8377 = vpop.xlane.xlu0 %8376
  %v8378 = vsel %vm7962, %v8374, 0.0
  %8379 = vadd.xlane.f32.xlu0 %v8378
  %v8380 = vpop.xlane.xlu0 %8379
  %v8381 = vrcp.pop %v8377
  %v8382 = vrcp.pop %v8380
  %v8383 = vmul.f32 %v8372, %v8381
  %v8384 = vmul.f32 %v8374, %v8382
  %8385 = vrot.lane.b32.xlu0 %v7864, 48
  %v8386 = vpop.permute.xlu0 %8385
  %8387 = vrot.lane.b32.xlu0 %v7869, 48
  %v8388 = vpop.permute.xlu0 %8387
  %v8392 = vsel %vm7962, %v8383, 0
  %v8395 = vsel %vm7962, %v8384, 0
  %8397 = vmatprep.subr.mxu0 0.0
  %8398 = vmatpush1.msra.mxu0 %v8386
  %8399 = vmatprep.subr.mxu0 0.0
  %8400 = vmatpush1.msra.mxu0 %v8388
  %8401 = vmatprep.subr.mxu0 0.0
  %8402 = vmatpush1.msra.mxu0 0.0
  %8403 = vmatprep.subr.mxu0 0.0
  %8404 = vmatpush1.msra.mxu0 0.0
  %8405 = vmatprep.subr.mxu0 0.0
  %8406 = vmatpush1.msra.mxu0 0.0
  %8407 = vmatprep.subr.mxu0 0.0
  %8408 = vmatpush1.msra.mxu0 0.0
  %8409 = vmatprep.subr.mxu0 0.0
  %8410 = vmatpush1.msra.mxu0 0.0
  %8411 = vmatprep.subr.mxu0 0.0
  %8412 = vmatpush1.msra.mxu0 0.0
  %8413 = vmatprep.subr.mxu0 0.0
  %8414 = vmatpush1.msra.mxu0 0.0
  %8415 = vmatprep.subr.mxu0 0.0
  %8416 = vmatpush1.msra.mxu0 0.0
  %8417 = vmatprep.subr.mxu0 0.0
  %8418 = vmatpush1.msra.mxu0 0.0
  %8419 = vmatprep.subr.mxu0 0.0
  %8420 = vmatpush1.msra.mxu0 0.0
  %8421 = vmatprep.subr.mxu0 0.0
  %8422 = vmatpush1.msra.mxu0 0.0
  %8423 = vmatprep.subr.mxu0 0.0
  %8424 = vmatpush1.msra.mxu0 0.0
  %8425 = vmatprep.subr.mxu0 0.0
  %8426 = vmatpush1.msra.mxu0 0.0
  %8427 = vmatprep.subr.mxu0 0.0
  %8428 = vmatpush1.msra.mxu0 0.0
  %8429 = vmatprep.subr.mxu0 0.0
  %8430 = vmatpush1.msra.mxu0 0.0
  %8431 = vmatprep.subr.mxu0 0.0
  %8432 = vmatpush1.msra.mxu0 0.0
  %8433 = vmatprep.subr.mxu0 0.0
  %8434 = vmatpush1.msra.mxu0 0.0
  %8435 = vmatprep.subr.mxu0 0.0
  %8436 = vmatpush1.msra.mxu0 0.0
  %8437 = vmatprep.subr.mxu0 0.0
  %8438 = vmatpush1.msra.mxu0 0.0
  %8439 = vmatprep.subr.mxu0 0.0
  %8440 = vmatpush1.msra.mxu0 0.0
  %8441 = vmatprep.subr.mxu0 0.0
  %8442 = vmatpush1.msra.mxu0 0.0
  %8443 = vmatprep.subr.mxu0 0.0
  %8444 = vmatpush1.msra.mxu0 0.0
  %8445 = vmatprep.subr.mxu0 0.0
  %8446 = vmatpush1.msra.mxu0 0.0
  %8447 = vmatprep.subr.mxu0 0.0
  %8448 = vmatpush1.msra.mxu0 0.0
  %8449 = vmatprep.subr.mxu0 0.0
  %8450 = vmatpush1.msra.mxu0 0.0
  %8451 = vmatprep.subr.mxu0 0.0
  %8452 = vmatpush1.msra.mxu0 0.0
  %8453 = vmatprep.subr.mxu0 0.0
  %8454 = vmatpush1.msra.mxu0 0.0
  %8455 = vmatprep.subr.mxu0 0.0
  %8456 = vmatpush1.msra.mxu0 0.0
  %8457 = vmatprep.subr.mxu0 0.0
  %8458 = vmatpush1.msra.mxu0 0.0
  %8459 = vmatprep.subr.mxu0 0.0
  %8460 = vmatpush1.msra.mxu0 0.0
  %8461 = vmatprep.mubr.f32.mxu0 0.0
  %8462 = vmatmul.mubr.f32.gmra.mrb[0].mxu0 %v8392
  %v8463 = vpop.f32.mrb[0].mxu0
  %v8464 = vadd.f32 0.0, %v8463
  %v8465 = vpop.f32.mrb[0].mxu0
  %8466 = vmatprep.mubr.f32.mxu0 0.0
  %8467 = vmatmul.mubr.f32.gmra.mrb[0].mxu0 %v8395
  %v8468 = vpop.f32.mrb[0].mxu0
  %v8469 = vadd.f32 0.0, %v8468
  %v8470 = vpop.f32.mrb[0].mxu0
  %8471 = vdwg.mxu0
  %8472 = vrot.lane.b32.xlu0 %v7864, 104
  %v8473 = vpop.permute.xlu0 %8472
  %8474 = vrot.lane.b32.xlu0 %v7869, 104
  %v8475 = vpop.permute.xlu0 %8474
  %8476 = vrot.lane.b32.xlu0 %v7864, 72
  %v8477 = vpop.permute.xlu0 %8476
  %8478 = vrot.lane.b32.xlu0 %v7869, 72
  %v8479 = vpop.permute.xlu0 %8478
  %v8480 = vsel %vm7878, %v8473, 0
  %v8482 = vsel %vm7878, %v8475, 0
  %v8484 = vsel %vm7878, %v8477, 0
  %v8486 = vsel %vm7878, %v8479, 0
  %8488 = vmatprep.subr.mxu0 0.0
  %8489 = vmatpush1.xpose.msra.mxu0 %v8484
  %8490 = vmatprep.subr.mxu0 0.0
  %8491 = vmatpush1.xpose.msra.mxu0 %v8486
  %8492 = vmatprep.subr.mxu0 0.0
  %8493 = vmatpush1.xpose.msra.mxu0 0.0
  %8494 = vmatprep.subr.mxu0 0.0
  %8495 = vmatpush1.xpose.msra.mxu0 0.0
  %8496 = vmatprep.subr.mxu0 0.0
  %8497 = vmatpush1.xpose.msra.mxu0 0.0
  %8498 = vmatprep.subr.mxu0 0.0
  %8499 = vmatpush1.xpose.msra.mxu0 0.0
  %8500 = vmatprep.subr.mxu0 0.0
  %8501 = vmatpush1.xpose.msra.mxu0 0.0
  %8502 = vmatprep.subr.mxu0 0.0
  %8503 = vmatpush1.xpose.msra.mxu0 0.0
  %8504 = vmatprep.subr.mxu0 0.0
  %8505 = vmatpush1.xpose.msra.mxu0 0.0
  %8506 = vmatprep.subr.mxu0 0.0
  %8507 = vmatpush1.xpose.msra.mxu0 0.0
  %8508 = vmatprep.subr.mxu0 0.0
  %8509 = vmatpush1.xpose.msra.mxu0 0.0
  %8510 = vmatprep.subr.mxu0 0.0
  %8511 = vmatpush1.xpose.msra.mxu0 0.0
  %8512 = vmatprep.subr.mxu0 0.0
  %8513 = vmatpush1.xpose.msra.mxu0 0.0
  %8514 = vmatprep.subr.mxu0 0.0
  %8515 = vmatpush1.xpose.msra.mxu0 0.0
  %8516 = vmatprep.subr.mxu0 0.0
  %8517 = vmatpush1.xpose.msra.mxu0 0.0
  %8518 = vmatprep.subr.mxu0 0.0
  %8519 = vmatpush1.xpose.msra.mxu0 0.0
  %8520 = vmatprep.subr.mxu0 0.0
  %8521 = vmatpush1.xpose.msra.mxu0 0.0
  %8522 = vmatprep.subr.mxu0 0.0
  %8523 = vmatpush1.xpose.msra.mxu0 0.0
  %8524 = vmatprep.subr.mxu0 0.0
  %8525 = vmatpush1.xpose.msra.mxu0 0.0
  %8526 = vmatprep.subr.mxu0 0.0
  %8527 = vmatpush1.xpose.msra.mxu0 0.0
  %8528 = vmatprep.subr.mxu0 0.0
  %8529 = vmatpush1.xpose.msra.mxu0 0.0
  %8530 = vmatprep.subr.mxu0 0.0
  %8531 = vmatpush1.xpose.msra.mxu0 0.0
  %8532 = vmatprep.subr.mxu0 0.0
  %8533 = vmatpush1.xpose.msra.mxu0 0.0
  %8534 = vmatprep.subr.mxu0 0.0
  %8535 = vmatpush1.xpose.msra.mxu0 0.0
  %8536 = vmatprep.subr.mxu0 0.0
  %8537 = vmatpush1.xpose.msra.mxu0 0.0
  %8538 = vmatprep.subr.mxu0 0.0
  %8539 = vmatpush1.xpose.msra.mxu0 0.0
  %8540 = vmatprep.subr.mxu0 0.0
  %8541 = vmatpush1.xpose.msra.mxu0 0.0
  %8542 = vmatprep.subr.mxu0 0.0
  %8543 = vmatpush1.xpose.msra.mxu0 0.0
  %8544 = vmatprep.subr.mxu0 0.0
  %8545 = vmatpush1.xpose.msra.mxu0 0.0
  %8546 = vmatprep.subr.mxu0 0.0
  %8547 = vmatpush1.xpose.msra.mxu0 0.0
  %8548 = vmatprep.subr.mxu0 0.0
  %8549 = vmatpush1.xpose.msra.mxu0 0.0
  %8550 = vmatprep.subr.mxu0 0.0
  %8551 = vmatpush1.xpose.msra.mxu0 0.0
  %8552 = vmatprep.mubr.f32.mxu0 0.0
  %8553 = vmatmul.mubr.f32.gmra.mrb[0].mxu0 %v8480
  %v8554 = vpop.f32.mrb[0].mxu0
  %v8555 = vadd.f32 %v7742, %v8554
  %v8556 = vpop.f32.mrb[0].mxu0
  %8557 = vmatprep.mubr.f32.mxu0 0.0
  %8558 = vmatmul.mubr.f32.gmra.mrb[0].mxu0 %v8482
  %v8559 = vpop.f32.mrb[0].mxu0
  %v8560 = vadd.f32 %v7743, %v8559
  %v8561 = vpop.f32.mrb[0].mxu0
  %8562 = vdwg.mxu0
  %v8563 = vsel %vm7962, %v8555, -inf
  %8564 = vmax.xlane.f32.xlu0 %v8563
  %v8565 = vpop.xlane.xlu0 %8564
  %v8566 = vsel %vm7962, %v8560, -inf
  %8567 = vmax.xlane.f32.xlu0 %v8566
  %v8568 = vpop.xlane.xlu0 %8567
  %v8569 = vsub.f32 %v8555, %v8565
  %v8570 = vsub.f32 %v8560, %v8568
  %v8571 = vmul.f32 %v8569, 1.442695
  %v8572 = vpow.pop %v8571
  %v8573 = vmul.f32 %v8570, 1.442695
  %v8574 = vpow.pop %v8573
  %v8575 = vsel %vm7962, %v8572, 0.0
  %8576 = vadd.xlane.f32.xlu0 %v8575
  %v8577 = vpop.xlane.xlu0 %8576
  %v8578 = vsel %vm7962, %v8574, 0.0
  %8579 = vadd.xlane.f32.xlu0 %v8578
  %v8580 = vpop.xlane.xlu0 %8579
  %v8581 = vrcp.pop %v8577
  %v8582 = vrcp.pop %v8580
  %v8583 = vmul.f32 %v8572, %v8581
  %v8584 = vmul.f32 %v8574, %v8582
  %8585 = vrot.lane.b32.xlu0 %v7864, 40
  %v8586 = vpop.permute.xlu0 %8585
  %8587 = vrot.lane.b32.xlu0 %v7869, 40
  %v8588 = vpop.permute.xlu0 %8587
  %v8592 = vsel %vm7962, %v8583, 0
  %v8595 = vsel %vm7962, %v8584, 0
  %8597 = vmatprep.subr.mxu0 0.0
  %8598 = vmatpush1.msra.mxu0 %v8586
  %8599 = vmatprep.subr.mxu0 0.0
  %8600 = vmatpush1.msra.mxu0 %v8588
  %8601 = vmatprep.subr.mxu0 0.0
  %8602 = vmatpush1.msra.mxu0 0.0
  %8603 = vmatprep.subr.mxu0 0.0
  %8604 = vmatpush1.msra.mxu0 0.0
  %8605 = vmatprep.subr.mxu0 0.0
  %8606 = vmatpush1.msra.mxu0 0.0
  %8607 = vmatprep.subr.mxu0 0.0
  %8608 = vmatpush1.msra.mxu0 0.0
  %8609 = vmatprep.subr.mxu0 0.0
  %8610 = vmatpush1.msra.mxu0 0.0
  %8611 = vmatprep.subr.mxu0 0.0
  %8612 = vmatpush1.msra.mxu0 0.0
  %8613 = vmatprep.subr.mxu0 0.0
  %8614 = vmatpush1.msra.mxu0 0.0
  %8615 = vmatprep.subr.mxu0 0.0
  %8616 = vmatpush1.msra.mxu0 0.0
  %8617 = vmatprep.subr.mxu0 0.0
  %8618 = vmatpush1.msra.mxu0 0.0
  %8619 = vmatprep.subr.mxu0 0.0
  %8620 = vmatpush1.msra.mxu0 0.0
  %8621 = vmatprep.subr.mxu0 0.0
  %8622 = vmatpush1.msra.mxu0 0.0
  %8623 = vmatprep.subr.mxu0 0.0
  %8624 = vmatpush1.msra.mxu0 0.0
  %8625 = vmatprep.subr.mxu0 0.0
  %8626 = vmatpush1.msra.mxu0 0.0
  %8627 = vmatprep.subr.mxu0 0.0
  %8628 = vmatpush1.msra.mxu0 0.0
  %8629 = vmatprep.subr.mxu0 0.0
  %8630 = vmatpush1.msra.mxu0 0.0
  %8631 = vmatprep.subr.mxu0 0.0
  %8632 = vmatpush1.msra.mxu0 0.0
  %8633 = vmatprep.subr.mxu0 0.0
  %8634 = vmatpush1.msra.mxu0 0.0
  %8635 = vmatprep.subr.mxu0 0.0
  %8636 = vmatpush1.msra.mxu0 0.0
  %8637 = vmatprep.subr.mxu0 0.0
  %8638 = vmatpush1.msra.mxu0 0.0
  %8639 = vmatprep.subr.mxu0 0.0
  %8640 = vmatpush1.msra.mxu0 0.0
  %8641 = vmatprep.subr.mxu0 0.0
  %8642 = vmatpush1.msra.mxu0 0.0
  %8643 = vmatprep.subr.mxu0 0.0
  %8644 = vmatpush1.msra.mxu0 0.0
  %8645 = vmatprep.subr.mxu0 0.0
  %8646 = vmatpush1.msra.mxu0 0.0
  %8647 = vmatprep.subr.mxu0 0.0
  %8648 = vmatpush1.msra.mxu0 0.0
  %8649 = vmatprep.subr.mxu0 0.0
  %8650 = vmatpush1.msra.mxu0 0.0
  %8651 = vmatprep.subr.mxu0 0.0
  %8652 = vmatpush1.msra.mxu0 0.0
  %8653 = vmatprep.subr.mxu0 0.0
  %8654 = vmatpush1.msra.mxu0 0.0
  %8655 = vmatprep.subr.mxu0 0.0
  %8656 = vmatpush1.msra.mxu0 0.0
  %8657 = vmatprep.subr.mxu0 0.0
  %8658 = vmatpush1.msra.mxu0 0.0
  %8659 = vmatprep.subr.mxu0 0.0
  %8660 = vmatpush1.msra.mxu0 0.0
  %8661 = vmatprep.mubr.f32.mxu0 0.0
  %8662 = vmatmul.mubr.f32.gmra.mrb[0].mxu0 %v8592
  %v8663 = vpop.f32.mrb[0].mxu0
  %v8664 = vadd.f32 0.0, %v8663
  %v8665 = vpop.f32.mrb[0].mxu0
  %8666 = vmatprep.mubr.f32.mxu0 0.0
  %8667 = vmatmul.mubr.f32.gmra.mrb[0].mxu0 %v8595
  %v8668 = vpop.f32.mrb[0].mxu0
  %v8669 = vadd.f32 0.0, %v8668
  %v8670 = vpop.f32.mrb[0].mxu0
  %8671 = vdwg.mxu0
  %8674 = vrot.lane.b32.xlu0 %v8264, 8
  %v8675 = vpop.permute.xlu0 %8674
  %8676 = vrot.lane.b32.xlu0 %v8269, 8
  %v8677 = vpop.permute.xlu0 %8676
  %8682 = vrot.lane.b32.xlu0 %v8464, 16
  %v8683 = vpop.permute.xlu0 %8682
  %8684 = vrot.lane.b32.xlu0 %v8469, 16
  %v8685 = vpop.permute.xlu0 %8684
  %8690 = vrot.lane.b32.xlu0 %v8664, 24
  %v8691 = vpop.permute.xlu0 %8690
  %8692 = vrot.lane.b32.xlu0 %v8669, 24
  %v8693 = vpop.permute.xlu0 %8692
  %v8696 = vsel %vm7878, %v8064, %v8675
  %v8697 = vsel %vm7878, %v8069, %v8677
  %v8698 = vsel %vm7962, %v8696, %v8683
  %v8699 = vsel %vm7962, %v8697, %v8685
  %vm8700 = vcmask 195584
  %v8701 = vsel %vm8700, %v8698, %v8691
  %v8702 = vsel %vm8700, %v8699, %v8693
  %v8703 = vlaneseq
  %v8704 = vshrl.u32 %v8703, 7
  %v8705 = vsub.s32 3, %v8704
  %v8706 = vrot.slane %v7697, %v8705
  %v8708 = vsel %vm750, %v8701, 0
  %v8711 = vsel %vm750, %v8702, 0
  %8713 = vmatprep.subr.mxu0 0.0
  %8714 = vmatpush1.msra.mxu0 %v7714
  %8715 = vmatprep.subr.mxu0 0.0
  %8716 = vmatpush1.msra.mxu0 %v7715
  %8717 = vmatprep.subr.mxu0 0.0
  %8718 = vmatpush1.msra.mxu0 %v7716
  %8719 = vmatprep.subr.mxu0 0.0
  %8720 = vmatpush1.msra.mxu0 %v7717
  %8721 = vmatprep.subr.mxu0 0.0
  %8722 = vmatpush1.msra.mxu0 0.0
  %8723 = vmatprep.subr.mxu0 0.0
  %8724 = vmatpush1.msra.mxu0 0.0
  %8725 = vmatprep.subr.mxu0 0.0
  %8726 = vmatpush1.msra.mxu0 0.0
  %8727 = vmatprep.subr.mxu0 0.0
  %8728 = vmatpush1.msra.mxu0 0.0
  %8729 = vmatprep.subr.mxu0 0.0
  %8730 = vmatpush1.msra.mxu0 0.0
  %8731 = vmatprep.subr.mxu0 0.0
  %8732 = vmatpush1.msra.mxu0 0.0
  %8733 = vmatprep.subr.mxu0 0.0
  %8734 = vmatpush1.msra.mxu0 0.0
  %8735 = vmatprep.subr.mxu0 0.0
  %8736 = vmatpush1.msra.mxu0 0.0
  %8737 = vmatprep.subr.mxu0 0.0
  %8738 = vmatpush1.msra.mxu0 0.0
  %8739 = vmatprep.subr.mxu0 0.0
  %8740 = vmatpush1.msra.mxu0 0.0
  %8741 = vmatprep.subr.mxu0 0.0
  %8742 = vmatpush1.msra.mxu0 0.0
  %8743 = vmatprep.subr.mxu0 0.0
  %8744 = vmatpush1.msra.mxu0 0.0
  %8745 = vmatprep.subr.mxu0 0.0
  %8746 = vmatpush1.msra.mxu0 0.0
  %8747 = vmatprep.subr.mxu0 0.0
  %8748 = vmatpush1.msra.mxu0 0.0
  %8749 = vmatprep.subr.mxu0 0.0
  %8750 = vmatpush1.msra.mxu0 0.0
  %8751 = vmatprep.subr.mxu0 0.0
  %8752 = vmatpush1.msra.mxu0 0.0
  %8753 = vmatprep.subr.mxu0 0.0
  %8754 = vmatpush1.msra.mxu0 0.0
  %8755 = vmatprep.subr.mxu0 0.0
  %8756 = vmatpush1.msra.mxu0 0.0
  %8757 = vmatprep.subr.mxu0 0.0
  %8758 = vmatpush1.msra.mxu0 0.0
  %8759 = vmatprep.subr.mxu0 0.0
  %8760 = vmatpush1.msra.mxu0 0.0
  %8761 = vmatprep.subr.mxu0 0.0
  %8762 = vmatpush1.msra.mxu0 0.0
  %8763 = vmatprep.subr.mxu0 0.0
  %8764 = vmatpush1.msra.mxu0 0.0
  %8765 = vmatprep.subr.mxu0 0.0
  %8766 = vmatpush1.msra.mxu0 0.0
  %8767 = vmatprep.subr.mxu0 0.0
  %8768 = vmatpush1.msra.mxu0 0.0
  %8769 = vmatprep.subr.mxu0 0.0
  %8770 = vmatpush1.msra.mxu0 0.0
  %8771 = vmatprep.subr.mxu0 0.0
  %8772 = vmatpush1.msra.mxu0 0.0
  %8773 = vmatprep.subr.mxu0 0.0
  %8774 = vmatpush1.msra.mxu0 0.0
  %8775 = vmatprep.subr.mxu0 0.0
  %8776 = vmatpush1.msra.mxu0 0.0
  %8777 = vmatprep.mubr.f32.mxu0 0.0
  %8778 = vmatmul.mubr.f32.gmra.mrb[0].mxu0 %v8708
  %v8779 = vpop.f32.mrb[0].mxu0
  %v8780 = vadd.f32 %v8706, %v8779
  %v8781 = vpop.f32.mrb[0].mxu0
  %8782 = vmatprep.mubr.f32.mxu0 0.0
  %8783 = vmatmul.mubr.f32.gmra.mrb[0].mxu0 %v8711
  %v8784 = vpop.f32.mrb[0].mxu0
  %v8785 = vadd.f32 %v8706, %v8784
  %v8786 = vpop.f32.mrb[0].mxu0
  %8787 = vdwg.mxu0
  %v8788 = vadd.f32 %v7785, %v8780
  %v8789 = vadd.f32 %v7786, %v8785
  %v8790 = vsel %vm750, %v8788, 0.0
  %8791 = vadd.xlane.f32.xlu0 %v8790
  %v8792 = vpop.xlane.xlu0 %8791
  %v8793 = vsel %vm750, %v8789, 0.0
  %8794 = vadd.xlane.f32.xlu0 %v8793
  %v8795 = vpop.xlane.xlu0 %8794
  %v8796 = vmul.f32 %v8792, %v7754
  %v8797 = vmul.f32 %v8795, %v7754
  %v8798 = vsub.f32 %v8788, %v8796
  %v8799 = vsub.f32 %v8789, %v8797
  %v8800 = vmul.f32 %v8798, %v8798
  %v8801 = vmul.f32 %v8799, %v8799
  %v8802 = vsel %vm750, %v8800, 0.0
  %8803 = vadd.xlane.f32.xlu0 %v8802
  %v8804 = vpop.xlane.xlu0 %8803
  %v8805 = vsel %vm750, %v8801, 0.0
  %8806 = vadd.xlane.f32.xlu0 %v8805
  %v8807 = vpop.xlane.xlu0 %8806
  %v8808 = vmul.f32 %v8804, %v7754
  %v8809 = vmul.f32 %v8807, %v7754
  %v8810 = vadd.f32 %v8808, 1e-05
  %v8811 = vadd.f32 %v8809, 1e-05
  %v8812 = vrsqrt.pop %v8810
  %v8813 = vrsqrt.pop %v8811
  %v8814 = vmul.f32 %v8798, %v8812
  %v8815 = vmul.f32 %v8799, %v8813
  %v8816 = vlaneseq
  %v8817 = vshrl.u32 %v8816, 7
  %v8818 = vsub.s32 7, %v8817
  %v8819 = vrot.slane %v7697, %v8818
  %v8820 = vmul.f32 %v8814, %v8819
  %v8821 = vmul.f32 %v8815, %v8819
  %v8822 = vlaneseq
  %v8823 = vshrl.u32 %v8822, 7
  %v8824 = vsub.s32 0, %v8823
  %v8825 = vrot.slane %v7698, %v8824
  %v8826 = vadd.f32 %v8820, %v8825
  %v8827 = vadd.f32 %v8821, %v8825
  %v8828 = vlaneseq
  %v8829 = vshrl.u32 %v8828, 7
  %v8830 = vsub.s32 4, %v8829
  %v8831 = vrot.slane %v7697, %v8830
  %v8833 = vsel %vm750, %v8826, 0
  %v8836 = vsel %vm750, %v8827, 0
  %8838 = vmatprep.subr.mxu0 0.0
  %8839 = vmatpush1.msra.mxu0 %v7704
  %8840 = vmatprep.subr.mxu0 0.0
  %8841 = vmatpush1.msra.mxu0 %v7705
  %8842 = vmatprep.subr.mxu0 0.0
  %8843 = vmatpush1.msra.mxu0 %v7706
  %8844 = vmatprep.subr.mxu0 0.0
  %8845 = vmatpush1.msra.mxu0 %v7707
  %8846 = vmatprep.subr.mxu0 0.0
  %8847 = vmatpush1.msra.mxu0 0.0
  %8848 = vmatprep.subr.mxu0 0.0
  %8849 = vmatpush1.msra.mxu0 0.0
  %8850 = vmatprep.subr.mxu0 0.0
  %8851 = vmatpush1.msra.mxu0 0.0
  %8852 = vmatprep.subr.mxu0 0.0
  %8853 = vmatpush1.msra.mxu0 0.0
  %8854 = vmatprep.subr.mxu0 0.0
  %8855 = vmatpush1.msra.mxu0 0.0
  %8856 = vmatprep.subr.mxu0 0.0
  %8857 = vmatpush1.msra.mxu0 0.0
  %8858 = vmatprep.subr.mxu0 0.0
  %8859 = vmatpush1.msra.mxu0 0.0
  %8860 = vmatprep.subr.mxu0 0.0
  %8861 = vmatpush1.msra.mxu0 0.0
  %8862 = vmatprep.subr.mxu0 0.0
  %8863 = vmatpush1.msra.mxu0 0.0
  %8864 = vmatprep.subr.mxu0 0.0
  %8865 = vmatpush1.msra.mxu0 0.0
  %8866 = vmatprep.subr.mxu0 0.0
  %8867 = vmatpush1.msra.mxu0 0.0
  %8868 = vmatprep.subr.mxu0 0.0
  %8869 = vmatpush1.msra.mxu0 0.0
  %8870 = vmatprep.subr.mxu0 0.0
  %8871 = vmatpush1.msra.mxu0 0.0
  %8872 = vmatprep.subr.mxu0 0.0
  %8873 = vmatpush1.msra.mxu0 0.0
  %8874 = vmatprep.subr.mxu0 0.0
  %8875 = vmatpush1.msra.mxu0 0.0
  %8876 = vmatprep.subr.mxu0 0.0
  %8877 = vmatpush1.msra.mxu0 0.0
  %8878 = vmatprep.subr.mxu0 0.0
  %8879 = vmatpush1.msra.mxu0 0.0
  %8880 = vmatprep.subr.mxu0 0.0
  %8881 = vmatpush1.msra.mxu0 0.0
  %8882 = vmatprep.subr.mxu0 0.0
  %8883 = vmatpush1.msra.mxu0 0.0
  %8884 = vmatprep.subr.mxu0 0.0
  %8885 = vmatpush1.msra.mxu0 0.0
  %8886 = vmatprep.subr.mxu0 0.0
  %8887 = vmatpush1.msra.mxu0 0.0
  %8888 = vmatprep.subr.mxu0 0.0
  %8889 = vmatpush1.msra.mxu0 0.0
  %8890 = vmatprep.subr.mxu0 0.0
  %8891 = vmatpush1.msra.mxu0 0.0
  %8892 = vmatprep.subr.mxu0 0.0
  %8893 = vmatpush1.msra.mxu0 0.0
  %8894 = vmatprep.subr.mxu0 0.0
  %8895 = vmatpush1.msra.mxu0 0.0
  %8896 = vmatprep.subr.mxu0 0.0
  %8897 = vmatpush1.msra.mxu0 0.0
  %8898 = vmatprep.subr.mxu0 0.0
  %8899 = vmatpush1.msra.mxu0 0.0
  %8900 = vmatprep.subr.mxu0 0.0
  %8901 = vmatpush1.msra.mxu0 0.0
  %8902 = vmatprep.mubr.f32.mxu0 0.0
  %8903 = vmatmul.mubr.f32.gmra.mrb[0].mxu0 %v8833
  %v8904 = vpop.f32.mrb[0].mxu0
  %v8905 = vadd.f32 %v8831, %v8904
  %v8906 = vpop.f32.mrb[0].mxu0
  %8907 = vmatprep.mubr.f32.mxu0 0.0
  %8908 = vmatmul.mubr.f32.gmra.mrb[0].mxu0 %v8836
  %v8909 = vpop.f32.mrb[0].mxu0
  %v8910 = vadd.f32 %v8831, %v8909
  %v8911 = vpop.f32.mrb[0].mxu0
  %8912 = vdwg.mxu0
  %v8913 = vlaneseq
  %v8914 = vshrl.u32 %v8913, 7
  %v8915 = vsub.s32 5, %v8914
  %v8916 = vrot.slane %v7697, %v8915
  %v8918 = vsel %vm750, %v7619, 0
  %v8921 = vsel %vm750, %v7624, 0
  %v8924 = vsel %vm750, %v7629, 0
  %v8927 = vsel %vm750, %v7634, 0
  %v8930 = vsel %vm750, %v7639, 0
  %v8933 = vsel %vm750, %v7644, 0
  %v8936 = vsel %vm750, %v7649, 0
  %v8939 = vsel %vm750, %v7654, 0
  %v8942 = vsel %vm750, %v7659, 0
  %v8945 = vsel %vm750, %v7664, 0
  %v8948 = vsel %vm750, %v7669, 0
  %v8951 = vsel %vm750, %v7674, 0
  %v8954 = vsel %vm750, %v7679, 0
  %v8957 = vsel %vm750, %v7684, 0
  %v8960 = vsel %vm750, %v7689, 0
  %v8963 = vsel %vm750, %v7694, 0
  %8965 = vmatprep.subr.mxu0 0.0
  %8966 = vmatpush1.msra.mxu0 %v7709
  %8967 = vmatprep.subr.mxu0 0.0
  %8968 = vmatpush1.msra.mxu0 %v7710
  %8969 = vmatprep.subr.mxu0 0.0
  %8970 = vmatpush1.msra.mxu0 %v7711
  %8971 = vmatprep.subr.mxu0 0.0
  %8972 = vmatpush1.msra.mxu0 %v7712
  %8973 = vmatprep.subr.mxu0 0.0
  %8974 = vmatpush1.msra.mxu0 0.0
  %8975 = vmatprep.subr.mxu0 0.0
  %8976 = vmatpush1.msra.mxu0 0.0
  %8977 = vmatprep.subr.mxu0 0.0
  %8978 = vmatpush1.msra.mxu0 0.0
  %8979 = vmatprep.subr.mxu0 0.0
  %8980 = vmatpush1.msra.mxu0 0.0
  %8981 = vmatprep.subr.mxu0 0.0
  %8982 = vmatpush1.msra.mxu0 0.0
  %8983 = vmatprep.subr.mxu0 0.0
  %8984 = vmatpush1.msra.mxu0 0.0
  %8985 = vmatprep.subr.mxu0 0.0
  %8986 = vmatpush1.msra.mxu0 0.0
  %8987 = vmatprep.subr.mxu0 0.0
  %8988 = vmatpush1.msra.mxu0 0.0
  %8989 = vmatprep.subr.mxu0 0.0
  %8990 = vmatpush1.msra.mxu0 0.0
  %8991 = vmatprep.subr.mxu0 0.0
  %8992 = vmatpush1.msra.mxu0 0.0
  %8993 = vmatprep.subr.mxu0 0.0
  %8994 = vmatpush1.msra.mxu0 0.0
  %8995 = vmatprep.subr.mxu0 0.0
  %8996 = vmatpush1.msra.mxu0 0.0
  %8997 = vmatprep.subr.mxu0 0.0
  %8998 = vmatpush1.msra.mxu0 0.0
  %8999 = vmatprep.subr.mxu0 0.0
  %9000 = vmatpush1.msra.mxu0 0.0
  %9001 = vmatprep.subr.mxu0 0.0
  %9002 = vmatpush1.msra.mxu0 0.0
  %9003 = vmatprep.subr.mxu0 0.0
  %9004 = vmatpush1.msra.mxu0 0.0
  %9005 = vmatprep.subr.mxu0 0.0
  %9006 = vmatpush1.msra.mxu0 0.0
  %9007 = vmatprep.subr.mxu0 0.0
  %9008 = vmatpush1.msra.mxu0 0.0
  %9009 = vmatprep.subr.mxu0 0.0
  %9010 = vmatpush1.msra.mxu0 0.0
  %9011 = vmatprep.subr.mxu0 0.0
  %9012 = vmatpush1.msra.mxu0 0.0
  %9013 = vmatprep.subr.mxu0 0.0
  %9014 = vmatpush1.msra.mxu0 0.0
  %9015 = vmatprep.subr.mxu0 0.0
  %9016 = vmatpush1.msra.mxu0 0.0
  %9017 = vmatprep.subr.mxu0 0.0
  %9018 = vmatpush1.msra.mxu0 0.0
  %9019 = vmatprep.subr.mxu0 0.0
  %9020 = vmatpush1.msra.mxu0 0.0
  %9021 = vmatprep.subr.mxu0 0.0
  %9022 = vmatpush1.msra.mxu0 0.0
  %9023 = vmatprep.subr.mxu0 0.0
  %9024 = vmatpush1.msra.mxu0 0.0
  %9025 = vmatprep.subr.mxu0 0.0
  %9026 = vmatpush1.msra.mxu0 0.0
  %9027 = vmatprep.subr.mxu0 0.0
  %9028 = vmatpush1.msra.mxu0 0.0
  %9029 = vmatprep.mubr.f32.mxu0 0.0
  %9030 = vmatmul.mubr.f32.gmra.mrb[0].mxu0 %v8918
  %v9031 = vpop.f32.mrb[0].mxu0
  %v9032 = vadd.f32 %v8916, %v9031
  %v9033 = vpop.f32.mrb[0].mxu0
  %9034 = vmatprep.mubr.f32.mxu0 0.0
  %9035 = vmatmul.mubr.f32.gmra.mrb[0].mxu0 %v8921
  %v9036 = vpop.f32.mrb[0].mxu0
  %v9037 = vadd.f32 %v8916, %v9036
  %v9038 = vpop.f32.mrb[0].mxu0
  %9039 = vmatprep.mubr.f32.mxu0 0.0
  %9040 = vmatmul.mubr.f32.gmra.mrb[0].mxu0 %v8924
  %v9041 = vpop.f32.mrb[0].mxu0
  %v9042 = vadd.f32 %v8916, %v9041
  %v9043 = vpop.f32.mrb[0].mxu0
  %9044 = vmatprep.mubr.f32.mxu0 0.0
  %9045 = vmatmul.mubr.f32.gmra.mrb[0].mxu0 %v8927
  %v9046 = vpop.f32.mrb[0].mxu0
  %v9047 = vadd.f32 %v8916, %v9046
  %v9048 = vpop.f32.mrb[0].mxu0
  %9049 = vmatprep.mubr.f32.mxu0 0.0
  %9050 = vmatmul.mubr.f32.gmra.mrb[0].mxu0 %v8930
  %v9051 = vpop.f32.mrb[0].mxu0
  %v9052 = vadd.f32 %v8916, %v9051
  %v9053 = vpop.f32.mrb[0].mxu0
  %9054 = vmatprep.mubr.f32.mxu0 0.0
  %9055 = vmatmul.mubr.f32.gmra.mrb[0].mxu0 %v8933
  %v9056 = vpop.f32.mrb[0].mxu0
  %v9057 = vadd.f32 %v8916, %v9056
  %v9058 = vpop.f32.mrb[0].mxu0
  %9059 = vmatprep.mubr.f32.mxu0 0.0
  %9060 = vmatmul.mubr.f32.gmra.mrb[0].mxu0 %v8936
  %v9061 = vpop.f32.mrb[0].mxu0
  %v9062 = vadd.f32 %v8916, %v9061
  %v9063 = vpop.f32.mrb[0].mxu0
  %9064 = vmatprep.mubr.f32.mxu0 0.0
  %9065 = vmatmul.mubr.f32.gmra.mrb[0].mxu0 %v8939
  %v9066 = vpop.f32.mrb[0].mxu0
  %v9067 = vadd.f32 %v8916, %v9066
  %v9068 = vpop.f32.mrb[0].mxu0
  %9069 = vmatprep.mubr.f32.mxu0 0.0
  %9070 = vmatmul.mubr.f32.gmra.mrb[0].mxu0 %v8942
  %v9071 = vpop.f32.mrb[0].mxu0
  %v9072 = vadd.f32 %v8916, %v9071
  %v9073 = vpop.f32.mrb[0].mxu0
  %9074 = vmatprep.mubr.f32.mxu0 0.0
  %9075 = vmatmul.mubr.f32.gmra.mrb[0].mxu0 %v8945
  %v9076 = vpop.f32.mrb[0].mxu0
  %v9077 = vadd.f32 %v8916, %v9076
  %v9078 = vpop.f32.mrb[0].mxu0
  %9079 = vmatprep.mubr.f32.mxu0 0.0
  %9080 = vmatmul.mubr.f32.gmra.mrb[0].mxu0 %v8948
  %v9081 = vpop.f32.mrb[0].mxu0
  %v9082 = vadd.f32 %v8916, %v9081
  %v9083 = vpop.f32.mrb[0].mxu0
  %9084 = vmatprep.mubr.f32.mxu0 0.0
  %9085 = vmatmul.mubr.f32.gmra.mrb[0].mxu0 %v8951
  %v9086 = vpop.f32.mrb[0].mxu0
  %v9087 = vadd.f32 %v8916, %v9086
  %v9088 = vpop.f32.mrb[0].mxu0
  %9089 = vmatprep.mubr.f32.mxu0 0.0
  %9090 = vmatmul.mubr.f32.gmra.mrb[0].mxu0 %v8954
  %v9091 = vpop.f32.mrb[0].mxu0
  %v9092 = vadd.f32 %v8916, %v9091
  %v9093 = vpop.f32.mrb[0].mxu0
  %9094 = vmatprep.mubr.f32.mxu0 0.0
  %9095 = vmatmul.mubr.f32.gmra.mrb[0].mxu0 %v8957
  %v9096 = vpop.f32.mrb[0].mxu0
  %v9097 = vadd.f32 %v8916, %v9096
  %v9098 = vpop.f32.mrb[0].mxu0
  %9099 = vmatprep.mubr.f32.mxu0 0.0
  %9100 = vmatmul.mubr.f32.gmra.mrb[0].mxu0 %v8960
  %v9101 = vpop.f32.mrb[0].mxu0
  %v9102 = vadd.f32 %v8916, %v9101
  %v9103 = vpop.f32.mrb[0].mxu0
  %9104 = vmatprep.mubr.f32.mxu0 0.0
  %9105 = vmatmul.mubr.f32.gmra.mrb[0].mxu0 %v8963
  %v9106 = vpop.f32.mrb[0].mxu0
  %v9107 = vadd.f32 %v8916, %v9106
  %v9108 = vpop.f32.mrb[0].mxu0
  %9109 = vdwg.mxu0
  %v9111 = vsel %vm7878, %v8905, 0
  %v9114 = vsel %vm7878, %v8910, 0
  %v9117 = vsel %vm7878, %v9032, 0
  %v9120 = vsel %vm7878, %v9037, 0
  %v9123 = vsel %vm7878, %v9042, 0
  %v9126 = vsel %vm7878, %v9047, 0
  %v9129 = vsel %vm7878, %v9052, 0
  %v9132 = vsel %vm7878, %v9057, 0
  %v9135 = vsel %vm7878, %v9062, 0
  %v9138 = vsel %vm7878, %v9067, 0
  %v9141 = vsel %vm7878, %v9072, 0
  %v9144 = vsel %vm7878, %v9077, 0
  %v9147 = vsel %vm7878, %v9082, 0
  %v9150 = vsel %vm7878, %v9087, 0
  %v9153 = vsel %vm7878, %v9092, 0
  %v9156 = vsel %vm7878, %v9097, 0
  %v9159 = vsel %vm7878, %v9102, 0
  %v9162 = vsel %vm7878, %v9107, 0
  %9164 = vmatprep.subr.mxu0 0.0
  %9165 = vmatpush1.xpose.msra.mxu0 %v9117
  %9166 = vmatprep.subr.mxu0 0.0
  %9167 = vmatpush1.xpose.msra.mxu0 %v9120
  %9168 = vmatprep.subr.mxu0 0.0
  %9169 = vmatpush1.xpose.msra.mxu0 %v9123
  %9170 = vmatprep.subr.mxu0 0.0
  %9171 = vmatpush1.xpose.msra.mxu0 %v9126
  %9172 = vmatprep.subr.mxu0 0.0
  %9173 = vmatpush1.xpose.msra.mxu0 %v9129
  %9174 = vmatprep.subr.mxu0 0.0
  %9175 = vmatpush1.xpose.msra.mxu0 %v9132
  %9176 = vmatprep.subr.mxu0 0.0
  %9177 = vmatpush1.xpose.msra.mxu0 %v9135
  %9178 = vmatprep.subr.mxu0 0.0
  %9179 = vmatpush1.xpose.msra.mxu0 %v9138
  %9180 = vmatprep.subr.mxu0 0.0
  %9181 = vmatpush1.xpose.msra.mxu0 %v9141
  %9182 = vmatprep.subr.mxu0 0.0
  %9183 = vmatpush1.xpose.msra.mxu0 %v9144
  %9184 = vmatprep.subr.mxu0 0.0
  %9185 = vmatpush1.xpose.msra.mxu0 %v9147
  %9186 = vmatprep.subr.mxu0 0.0
  %9187 = vmatpush1.xpose.msra.mxu0 %v9150
  %9188 = vmatprep.subr.mxu0 0.0
  %9189 = vmatpush1.xpose.msra.mxu0 %v9153
  %9190 = vmatprep.subr.mxu0 0.0
  %9191 = vmatpush1.xpose.msra.mxu0 %v9156
  %9192 = vmatprep.subr.mxu0 0.0
  %9193 = vmatpush1.xpose.msra.mxu0 %v9159
  %9194 = vmatprep.subr.mxu0 0.0
  %9195 = vmatpush1.xpose.msra.mxu0 %v9162
  %9196 = vmatprep.subr.mxu0 0.0
  %9197 = vmatpush1.xpose.msra.mxu0 0.0
  %9198 = vmatprep.subr.mxu0 0.0
  %9199 = vmatpush1.xpose.msra.mxu0 0.0
  %9200 = vmatprep.subr.mxu0 0.0
  %9201 = vmatpush1.xpose.msra.mxu0 0.0
  %9202 = vmatprep.subr.mxu0 0.0
  %9203 = vmatpush1.xpose.msra.mxu0 0.0
  %9204 = vmatprep.subr.mxu0 0.0
  %9205 = vmatpush1.xpose.msra.mxu0 0.0
  %9206 = vmatprep.subr.mxu0 0.0
  %9207 = vmatpush1.xpose.msra.mxu0 0.0
  %9208 = vmatprep.subr.mxu0 0.0
  %9209 = vmatpush1.xpose.msra.mxu0 0.0
  %9210 = vmatprep.subr.mxu0 0.0
  %9211 = vmatpush1.xpose.msra.mxu0 0.0
  %9212 = vmatprep.subr.mxu0 0.0
  %9213 = vmatpush1.xpose.msra.mxu0 0.0
  %9214 = vmatprep.subr.mxu0 0.0
  %9215 = vmatpush1.xpose.msra.mxu0 0.0
  %9216 = vmatprep.subr.mxu0 0.0
  %9217 = vmatpush1.xpose.msra.mxu0 0.0
  %9218 = vmatprep.subr.mxu0 0.0
  %9219 = vmatpush1.xpose.msra.mxu0 0.0
  %9220 = vmatprep.subr.mxu0 0.0
  %9221 = vmatpush1.xpose.msra.mxu0 0.0
  %9222 = vmatprep.subr.mxu0 0.0
  %9223 = vmatpush1.xpose.msra.mxu0 0.0
  %9224 = vmatprep.subr.mxu0 0.0
  %9225 = vmatpush1.xpose.msra.mxu0 0.0
  %9226 = vmatprep.subr.mxu0 0.0
  %9227 = vmatpush1.xpose.msra.mxu0 0.0
  %9228 = vmatprep.mubr.f32.mxu0 0.0
  %9229 = vmatmul.mubr.f32.gmra.mrb[0].mxu0 %v9111
  %v9230 = vpop.f32.mrb[0].mxu0
  %v9231 = vadd.f32 %v7744, %v9230
  %v9232 = vpop.f32.mrb[0].mxu0
  %9233 = vmatprep.mubr.f32.mxu0 0.0
  %9234 = vmatmul.mubr.f32.gmra.mrb[0].mxu0 %v9114
  %v9235 = vpop.f32.mrb[0].mxu0
  %v9236 = vadd.f32 %v7745, %v9235
  %v9237 = vpop.f32.mrb[0].mxu0
  %9238 = vdwg.mxu0
  %9239 = vmax.xlane.f32.xlu0 %v9231
  %v9240 = vpop.xlane.xlu0 %9239
  %9241 = vmax.xlane.f32.xlu0 %v9236
  %v9242 = vpop.xlane.xlu0 %9241
  %v9243 = vsub.f32 %v9231, %v9240
  %v9244 = vsub.f32 %v9236, %v9242
  %v9245 = vmul.f32 %v9243, 1.442695
  %v9246 = vpow.pop %v9245
  %v9247 = vmul.f32 %v9244, 1.442695
  %v9248 = vpow.pop %v9247
  %9249 = vadd.xlane.f32.xlu0 %v9246
  %v9250 = vpop.xlane.xlu0 %9249
  %9251 = vadd.xlane.f32.xlu0 %v9248
  %v9252 = vpop.xlane.xlu0 %9251
  %v9253 = vrcp.pop %v9250
  %v9254 = vrcp.pop %v9252
  %v9255 = vmul.f32 %v9246, %v9253
  %v9256 = vmul.f32 %v9248, %v9254
  %9257 = vrot.lane.b32.xlu0 %v9032, 96
  %v9258 = vpop.permute.xlu0 %9257
  %9259 = vrot.lane.b32.xlu0 %v9037, 96
  %v9260 = vpop.permute.xlu0 %9259
  %9261 = vrot.lane.b32.xlu0 %v9042, 96
  %v9262 = vpop.permute.xlu0 %9261
  %9263 = vrot.lane.b32.xlu0 %v9047, 96
  %v9264 = vpop.permute.xlu0 %9263
  %9265 = vrot.lane.b32.xlu0 %v9052, 96
  %v9266 = vpop.permute.xlu0 %9265
  %9267 = vrot.lane.b32.xlu0 %v9057, 96
  %v9268 = vpop.permute.xlu0 %9267
  %9269 = vrot.lane.b32.xlu0 %v9062, 96
  %v9270 = vpop.permute.xlu0 %9269
  %9271 = vrot.lane.b32.xlu0 %v9067, 96
  %v9272 = vpop.permute.xlu0 %9271
  %9273 = vrot.lane.b32.xlu0 %v9072, 96
  %v9274 = vpop.permute.xlu0 %9273
  %9275 = vrot.lane.b32.xlu0 %v9077, 96
  %v9276 = vpop.permute.xlu0 %9275
  %9277 = vrot.lane.b32.xlu0 %v9082, 96
  %v9278 = vpop.permute.xlu0 %9277
  %9279 = vrot.lane.b32.xlu0 %v9087, 96
  %v9280 = vpop.permute.xlu0 %9279
  %9281 = vrot.lane.b32.xlu0 %v9092, 96
  %v9282 = vpop.permute.xlu0 %9281
  %9283 = vrot.lane.b32.xlu0 %v9097, 96
  %v9284 = vpop.permute.xlu0 %9283
  %9285 = vrot.lane.b32.xlu0 %v9102, 96
  %v9286 = vpop.permute.xlu0 %9285
  %9287 = vrot.lane.b32.xlu0 %v9107, 96
  %v9288 = vpop.permute.xlu0 %9287
  %9305 = vmatprep.subr.mxu0 0.0
  %9306 = vmatpush1.msra.mxu0 %v9258
  %9307 = vmatprep.subr.mxu0 0.0
  %9308 = vmatpush1.msra.mxu0 %v9260
  %9309 = vmatprep.subr.mxu0 0.0
  %9310 = vmatpush1.msra.mxu0 %v9262
  %9311 = vmatprep.subr.mxu0 0.0
  %9312 = vmatpush1.msra.mxu0 %v9264
  %9313 = vmatprep.subr.mxu0 0.0
  %9314 = vmatpush1.msra.mxu0 %v9266
  %9315 = vmatprep.subr.mxu0 0.0
  %9316 = vmatpush1.msra.mxu0 %v9268
  %9317 = vmatprep.subr.mxu0 0.0
  %9318 = vmatpush1.msra.mxu0 %v9270
  %9319 = vmatprep.subr.mxu0 0.0
  %9320 = vmatpush1.msra.mxu0 %v9272
  %9321 = vmatprep.subr.mxu0 0.0
  %9322 = vmatpush1.msra.mxu0 %v9274
  %9323 = vmatprep.subr.mxu0 0.0
  %9324 = vmatpush1.msra.mxu0 %v9276
  %9325 = vmatprep.subr.mxu0 0.0
  %9326 = vmatpush1.msra.mxu0 %v9278
  %9327 = vmatprep.subr.mxu0 0.0
  %9328 = vmatpush1.msra.mxu0 %v9280
  %9329 = vmatprep.subr.mxu0 0.0
  %9330 = vmatpush1.msra.mxu0 %v9282
  %9331 = vmatprep.subr.mxu0 0.0
  %9332 = vmatpush1.msra.mxu0 %v9284
  %9333 = vmatprep.subr.mxu0 0.0
  %9334 = vmatpush1.msra.mxu0 %v9286
  %9335 = vmatprep.subr.mxu0 0.0
  %9336 = vmatpush1.msra.mxu0 %v9288
  %9337 = vmatprep.subr.mxu0 0.0
  %9338 = vmatpush1.msra.mxu0 0.0
  %9339 = vmatprep.subr.mxu0 0.0
  %9340 = vmatpush1.msra.mxu0 0.0
  %9341 = vmatprep.subr.mxu0 0.0
  %9342 = vmatpush1.msra.mxu0 0.0
  %9343 = vmatprep.subr.mxu0 0.0
  %9344 = vmatpush1.msra.mxu0 0.0
  %9345 = vmatprep.subr.mxu0 0.0
  %9346 = vmatpush1.msra.mxu0 0.0
  %9347 = vmatprep.subr.mxu0 0.0
  %9348 = vmatpush1.msra.mxu0 0.0
  %9349 = vmatprep.subr.mxu0 0.0
  %9350 = vmatpush1.msra.mxu0 0.0
  %9351 = vmatprep.subr.mxu0 0.0
  %9352 = vmatpush1.msra.mxu0 0.0
  %9353 = vmatprep.subr.mxu0 0.0
  %9354 = vmatpush1.msra.mxu0 0.0
  %9355 = vmatprep.subr.mxu0 0.0
  %9356 = vmatpush1.msra.mxu0 0.0
  %9357 = vmatprep.subr.mxu0 0.0
  %9358 = vmatpush1.msra.mxu0 0.0
  %9359 = vmatprep.subr.mxu0 0.0
  %9360 = vmatpush1.msra.mxu0 0.0
  %9361 = vmatprep.subr.mxu0 0.0
  %9362 = vmatpush1.msra.mxu0 0.0
  %9363 = vmatprep.subr.mxu0 0.0
  %9364 = vmatpush1.msra.mxu0 0.0
  %9365 = vmatprep.subr.mxu0 0.0
  %9366 = vmatpush1.msra.mxu0 0.0
  %9367 = vmatprep.subr.mxu0 0.0
  %9368 = vmatpush1.msra.mxu0 0.0
  %9369 = vmatprep.mubr.f32.mxu0 0.0
  %9370 = vmatmul.mubr.f32.gmra.mrb[0].mxu0 %v9255
  %v9371 = vpop.f32.mrb[0].mxu0
  %v9372 = vadd.f32 0.0, %v9371
  %v9373 = vpop.f32.mrb[0].mxu0
  %9374 = vmatprep.mubr.f32.mxu0 0.0
  %9375 = vmatmul.mubr.f32.gmra.mrb[0].mxu0 %v9256
  %v9376 = vpop.f32.mrb[0].mxu0
  %v9377 = vadd.f32 0.0, %v9376
  %v9378 = vpop.f32.mrb[0].mxu0
  %9379 = vdwg.mxu0
  %9380 = vrot.lane.b32.xlu0 %v8905, 120
  %v9381 = vpop.permute.xlu0 %9380
  %9382 = vrot.lane.b32.xlu0 %v8910, 120
  %v9383 = vpop.permute.xlu0 %9382
  %9384 = vrot.lane.b32.xlu0 %v9032, 120
  %v9385 = vpop.permute.xlu0 %9384
  %9386 = vrot.lane.b32.xlu0 %v9037, 120
  %v9387 = vpop.permute.xlu0 %9386
  %9388 = vrot.lane.b32.xlu0 %v9042, 120
  %v9389 = vpop.permute.xlu0 %9388
  %9390 = vrot.lane.b32.xlu0 %v9047, 120
  %v9391 = vpop.permute.xlu0 %9390
  %9392 = vrot.lane.b32.xlu0 %v9052, 120
  %v9393 = vpop.permute.xlu0 %9392
  %9394 = vrot.lane.b32.xlu0 %v9057, 120
  %v9395 = vpop.permute.xlu0 %9394
  %9396 = vrot.lane.b32.xlu0 %v9062, 120
  %v9397 = vpop.permute.xlu0 %9396
  %9398 = vrot.lane.b32.xlu0 %v9067, 120
  %v9399 = vpop.permute.xlu0 %9398
  %9400 = vrot.lane.b32.xlu0 %v9072, 120
  %v9401 = vpop.permute.xlu0 %9400
  %9402 = vrot.lane.b32.xlu0 %v9077, 120
  %v9403 = vpop.permute.xlu0 %9402
  %9404 = vrot.lane.b32.xlu0 %v9082, 120
  %v9405 = vpop.permute.xlu0 %9404
  %9406 = vrot.lane.b32.xlu0 %v9087, 120
  %v9407 = vpop.permute.xlu0 %9406
  %9408 = vrot.lane.b32.xlu0 %v9092, 120
  %v9409 = vpop.permute.xlu0 %9408
  %9410 = vrot.lane.b32.xlu0 %v9097, 120
  %v9411 = vpop.permute.xlu0 %9410
  %9412 = vrot.lane.b32.xlu0 %v9102, 120
  %v9413 = vpop.permute.xlu0 %9412
  %9414 = vrot.lane.b32.xlu0 %v9107, 120
  %v9415 = vpop.permute.xlu0 %9414
  %v9416 = vsel %vm7878, %v9381, 0
  %v9418 = vsel %vm7878, %v9383, 0
  %v9420 = vsel %vm7878, %v9385, 0
  %v9422 = vsel %vm7878, %v9387, 0
  %v9424 = vsel %vm7878, %v9389, 0
  %v9426 = vsel %vm7878, %v9391, 0
  %v9428 = vsel %vm7878, %v9393, 0
  %v9430 = vsel %vm7878, %v9395, 0
  %v9432 = vsel %vm7878, %v9397, 0
  %v9434 = vsel %vm7878, %v9399, 0
  %v9436 = vsel %vm7878, %v9401, 0
  %v9438 = vsel %vm7878, %v9403, 0
  %v9440 = vsel %vm7878, %v9405, 0
  %v9442 = vsel %vm7878, %v9407, 0
  %v9444 = vsel %vm7878, %v9409, 0
  %v9446 = vsel %vm7878, %v9411, 0
  %v9448 = vsel %vm7878, %v9413, 0
  %v9450 = vsel %vm7878, %v9415, 0
  %9452 = vmatprep.subr.mxu0 0.0
  %9453 = vmatpush1.xpose.msra.mxu0 %v9420
  %9454 = vmatprep.subr.mxu0 0.0
  %9455 = vmatpush1.xpose.msra.mxu0 %v9422
  %9456 = vmatprep.subr.mxu0 0.0
  %9457 = vmatpush1.xpose.msra.mxu0 %v9424
  %9458 = vmatprep.subr.mxu0 0.0
  %9459 = vmatpush1.xpose.msra.mxu0 %v9426
  %9460 = vmatprep.subr.mxu0 0.0
  %9461 = vmatpush1.xpose.msra.mxu0 %v9428
  %9462 = vmatprep.subr.mxu0 0.0
  %9463 = vmatpush1.xpose.msra.mxu0 %v9430
  %9464 = vmatprep.subr.mxu0 0.0
  %9465 = vmatpush1.xpose.msra.mxu0 %v9432
  %9466 = vmatprep.subr.mxu0 0.0
  %9467 = vmatpush1.xpose.msra.mxu0 %v9434
  %9468 = vmatprep.subr.mxu0 0.0
  %9469 = vmatpush1.xpose.msra.mxu0 %v9436
  %9470 = vmatprep.subr.mxu0 0.0
  %9471 = vmatpush1.xpose.msra.mxu0 %v9438
  %9472 = vmatprep.subr.mxu0 0.0
  %9473 = vmatpush1.xpose.msra.mxu0 %v9440
  %9474 = vmatprep.subr.mxu0 0.0
  %9475 = vmatpush1.xpose.msra.mxu0 %v9442
  %9476 = vmatprep.subr.mxu0 0.0
  %9477 = vmatpush1.xpose.msra.mxu0 %v9444
  %9478 = vmatprep.subr.mxu0 0.0
  %9479 = vmatpush1.xpose.msra.mxu0 %v9446
  %9480 = vmatprep.subr.mxu0 0.0
  %9481 = vmatpush1.xpose.msra.mxu0 %v9448
  %9482 = vmatprep.subr.mxu0 0.0
  %9483 = vmatpush1.xpose.msra.mxu0 %v9450
  %9484 = vmatprep.subr.mxu0 0.0
  %9485 = vmatpush1.xpose.msra.mxu0 0.0
  %9486 = vmatprep.subr.mxu0 0.0
  %9487 = vmatpush1.xpose.msra.mxu0 0.0
  %9488 = vmatprep.subr.mxu0 0.0
  %9489 = vmatpush1.xpose.msra.mxu0 0.0
  %9490 = vmatprep.subr.mxu0 0.0
  %9491 = vmatpush1.xpose.msra.mxu0 0.0
  %9492 = vmatprep.subr.mxu0 0.0
  %9493 = vmatpush1.xpose.msra.mxu0 0.0
  %9494 = vmatprep.subr.mxu0 0.0
  %9495 = vmatpush1.xpose.msra.mxu0 0.0
  %9496 = vmatprep.subr.mxu0 0.0
  %9497 = vmatpush1.xpose.msra.mxu0 0.0
  %9498 = vmatprep.subr.mxu0 0.0
  %9499 = vmatpush1.xpose.msra.mxu0 0.0
  %9500 = vmatprep.subr.mxu0 0.0
  %9501 = vmatpush1.xpose.msra.mxu0 0.0
  %9502 = vmatprep.subr.mxu0 0.0
  %9503 = vmatpush1.xpose.msra.mxu0 0.0
  %9504 = vmatprep.subr.mxu0 0.0
  %9505 = vmatpush1.xpose.msra.mxu0 0.0
  %9506 = vmatprep.subr.mxu0 0.0
  %9507 = vmatpush1.xpose.msra.mxu0 0.0
  %9508 = vmatprep.subr.mxu0 0.0
  %9509 = vmatpush1.xpose.msra.mxu0 0.0
  %9510 = vmatprep.subr.mxu0 0.0
  %9511 = vmatpush1.xpose.msra.mxu0 0.0
  %9512 = vmatprep.subr.mxu0 0.0
  %9513 = vmatpush1.xpose.msra.mxu0 0.0
  %9514 = vmatprep.subr.mxu0 0.0
  %9515 = vmatpush1.xpose.msra.mxu0 0.0
  %9516 = vmatprep.mubr.f32.mxu0 0.0
  %9517 = vmatmul.mubr.f32.gmra.mrb[0].mxu0 %v9416
  %v9518 = vpop.f32.mrb[0].mxu0
  %v9519 = vadd.f32 %v7744, %v9518
  %v9520 = vpop.f32.mrb[0].mxu0
  %9521 = vmatprep.mubr.f32.mxu0 0.0
  %9522 = vmatmul.mubr.f32.gmra.mrb[0].mxu0 %v9418
  %v9523 = vpop.f32.mrb[0].mxu0
  %v9524 = vadd.f32 %v7745, %v9523
  %v9525 = vpop.f32.mrb[0].mxu0
  %9526 = vdwg.mxu0
  %9527 = vmax.xlane.f32.xlu0 %v9519
  %v9528 = vpop.xlane.xlu0 %9527
  %9529 = vmax.xlane.f32.xlu0 %v9524
  %v9530 = vpop.xlane.xlu0 %9529
  %v9531 = vsub.f32 %v9519, %v9528
  %v9532 = vsub.f32 %v9524, %v9530
  %v9533 = vmul.f32 %v9531, 1.442695
  %v9534 = vpow.pop %v9533
  %v9535 = vmul.f32 %v9532, 1.442695
  %v9536 = vpow.pop %v9535
  %9537 = vadd.xlane.f32.xlu0 %v9534
  %v9538 = vpop.xlane.xlu0 %9537
  %9539 = vadd.xlane.f32.xlu0 %v9536
  %v9540 = vpop.xlane.xlu0 %9539
  %v9541 = vrcp.pop %v9538
  %v9542 = vrcp.pop %v9540
  %v9543 = vmul.f32 %v9534, %v9541
  %v9544 = vmul.f32 %v9536, %v9542
  %9545 = vrot.lane.b32.xlu0 %v9032, 88
  %v9546 = vpop.permute.xlu0 %9545
  %9547 = vrot.lane.b32.xlu0 %v9037, 88
  %v9548 = vpop.permute.xlu0 %9547
  %9549 = vrot.lane.b32.xlu0 %v9042, 88
  %v9550 = vpop.permute.xlu0 %9549
  %9551 = vrot.lane.b32.xlu0 %v9047, 88
  %v9552 = vpop.permute.xlu0 %9551
  %9553 = vrot.lane.b32.xlu0 %v9052, 88
  %v9554 = vpop.permute.xlu0 %9553
  %9555 = vrot.lane.b32.xlu0 %v9057, 88
  %v9556 = vpop.permute.xlu0 %9555
  %9557 = vrot.lane.b32.xlu0 %v9062, 88
  %v9558 = vpop.permute.xlu0 %9557
  %9559 = vrot.lane.b32.xlu0 %v9067, 88
  %v9560 = vpop.permute.xlu0 %9559
  %9561 = vrot.lane.b32.xlu0 %v9072, 88
  %v9562 = vpop.permute.xlu0 %9561
  %9563 = vrot.lane.b32.xlu0 %v9077, 88
  %v9564 = vpop.permute.xlu0 %9563
  %9565 = vrot.lane.b32.xlu0 %v9082, 88
  %v9566 = vpop.permute.xlu0 %9565
  %9567 = vrot.lane.b32.xlu0 %v9087, 88
  %v9568 = vpop.permute.xlu0 %9567
  %9569 = vrot.lane.b32.xlu0 %v9092, 88
  %v9570 = vpop.permute.xlu0 %9569
  %9571 = vrot.lane.b32.xlu0 %v9097, 88
  %v9572 = vpop.permute.xlu0 %9571
  %9573 = vrot.lane.b32.xlu0 %v9102, 88
  %v9574 = vpop.permute.xlu0 %9573
  %9575 = vrot.lane.b32.xlu0 %v9107, 88
  %v9576 = vpop.permute.xlu0 %9575
  %9593 = vmatprep.subr.mxu0 0.0
  %9594 = vmatpush1.msra.mxu0 %v9546
  %9595 = vmatprep.subr.mxu0 0.0
  %9596 = vmatpush1.msra.mxu0 %v9548
  %9597 = vmatprep.subr.mxu0 0.0
  %9598 = vmatpush1.msra.mxu0 %v9550
  %9599 = vmatprep.subr.mxu0 0.0
  %9600 = vmatpush1.msra.mxu0 %v9552
  %9601 = vmatprep.subr.mxu0 0.0
  %9602 = vmatpush1.msra.mxu0 %v9554
  %9603 = vmatprep.subr.mxu0 0.0
  %9604 = vmatpush1.msra.mxu0 %v9556
  %9605 = vmatprep.subr.mxu0 0.0
  %9606 = vmatpush1.msra.mxu0 %v9558
  %9607 = vmatprep.subr.mxu0 0.0
  %9608 = vmatpush1.msra.mxu0 %v9560
  %9609 = vmatprep.subr.mxu0 0.0
  %9610 = vmatpush1.msra.mxu0 %v9562
  %9611 = vmatprep.subr.mxu0 0.0
  %9612 = vmatpush1.msra.mxu0 %v9564
  %9613 = vmatprep.subr.mxu0 0.0
  %9614 = vmatpush1.msra.mxu0 %v9566
  %9615 = vmatprep.subr.mxu0 0.0
  %9616 = vmatpush1.msra.mxu0 %v9568
  %9617 = vmatprep.subr.mxu0 0.0
  %9618 = vmatpush1.msra.mxu0 %v9570
  %9619 = vmatprep.subr.mxu0 0.0
  %9620 = vmatpush1.msra.mxu0 %v9572
  %9621 = vmatprep.subr.mxu0 0.0
  %9622 = vmatpush1.msra.mxu0 %v9574
  %9623 = vmatprep.subr.mxu0 0.0
  %9624 = vmatpush1.msra.mxu0 %v9576
  %9625 = vmatprep.subr.mxu0 0.0
  %9626 = vmatpush1.msra.mxu0 0.0
  %9627 = vmatprep.subr.mxu0 0.0
  %9628 = vmatpush1.msra.mxu0 0.0
  %9629 = vmatprep.subr.mxu0 0.0
  %9630 = vmatpush1.msra.mxu0 0.0
  %9631 = vmatprep.subr.mxu0 0.0
  %9632 = vmatpush1.msra.mxu0 0.0
  %9633 = vmatprep.subr.mxu0 0.0
  %9634 = vmatpush1.msra.mxu0 0.0
  %9635 = vmatprep.subr.mxu0 0.0
  %9636 = vmatpush1.msra.mxu0 0.0
  %9637 = vmatprep.subr.mxu0 0.0
  %9638 = vmatpush1.msra.mxu0 0.0
  %9639 = vmatprep.subr.mxu0 0.0
  %9640 = vmatpush1.msra.mxu0 0.0
  %9641 = vmatprep.subr.mxu0 0.0
  %9642 = vmatpush1.msra.mxu0 0.0
  %9643 = vmatprep.subr.mxu0 0.0
  %9644 = vmatpush1.msra.mxu0 0.0
  %9645 = vmatprep.subr.mxu0 0.0
  %9646 = vmatpush1.msra.mxu0 0.0
  %9647 = vmatprep.subr.mxu0 0.0
  %9648 = vmatpush1.msra.mxu0 0.0
  %9649 = vmatprep.subr.mxu0 0.0
  %9650 = vmatpush1.msra.mxu0 0.0
  %9651 = vmatprep.subr.mxu0 0.0
  %9652 = vmatpush1.msra.mxu0 0.0
  %9653 = vmatprep.subr.mxu0 0.0
  %9654 = vmatpush1.msra.mxu0 0.0
  %9655 = vmatprep.subr.mxu0 0.0
  %9656 = vmatpush1.msra.mxu0 0.0
  %9657 = vmatprep.mubr.f32.mxu0 0.0
  %9658 = vmatmul.mubr.f32.gmra.mrb[0].mxu0 %v9543
  %v9659 = vpop.f32.mrb[0].mxu0
  %v9660 = vadd.f32 0.0, %v9659
  %v9661 = vpop.f32.mrb[0].mxu0
  %9662 = vmatprep.mubr.f32.mxu0 0.0
  %9663 = vmatmul.mubr.f32.gmra.mrb[0].mxu0 %v9544
  %v9664 = vpop.f32.mrb[0].mxu0
  %v9665 = vadd.f32 0.0, %v9664
  %v9666 = vpop.f32.mrb[0].mxu0
  %9667 = vdwg.mxu0
  %9668 = vrot.lane.b32.xlu0 %v8905, 112
  %v9669 = vpop.permute.xlu0 %9668
  %9670 = vrot.lane.b32.xlu0 %v8910, 112
  %v9671 = vpop.permute.xlu0 %9670
  %9672 = vrot.lane.b32.xlu0 %v9032, 112
  %v9673 = vpop.permute.xlu0 %9672
  %9674 = vrot.lane.b32.xlu0 %v9037, 112
  %v9675 = vpop.permute.xlu0 %9674
  %9676 = vrot.lane.b32.xlu0 %v9042, 112
  %v9677 = vpop.permute.xlu0 %9676
  %9678 = vrot.lane.b32.xlu0 %v9047, 112
  %v9679 = vpop.permute.xlu0 %9678
  %9680 = vrot.lane.b32.xlu0 %v9052, 112
  %v9681 = vpop.permute.xlu0 %9680
  %9682 = vrot.lane.b32.xlu0 %v9057, 112
  %v9683 = vpop.permute.xlu0 %9682
  %9684 = vrot.lane.b32.xlu0 %v9062, 112
  %v9685 = vpop.permute.xlu0 %9684
  %9686 = vrot.lane.b32.xlu0 %v9067, 112
  %v9687 = vpop.permute.xlu0 %9686
  %9688 = vrot.lane.b32.xlu0 %v9072, 112
  %v9689 = vpop.permute.xlu0 %9688
  %9690 = vrot.lane.b32.xlu0 %v9077, 112
  %v9691 = vpop.permute.xlu0 %9690
  %9692 = vrot.lane.b32.xlu0 %v9082, 112
  %v9693 = vpop.permute.xlu0 %9692
  %9694 = vrot.lane.b32.xlu0 %v9087, 112
  %v9695 = vpop.permute.xlu0 %9694
  %9696 = vrot.lane.b32.xlu0 %v9092, 112
  %v9697 = vpop.permute.xlu0 %9696
  %9698 = vrot.lane.b32.xlu0 %v9097, 112
  %v9699 = vpop.permute.xlu0 %9698
  %9700 = vrot.lane.b32.xlu0 %v9102, 112
  %v9701 = vpop.permute.xlu0 %9700
  %9702 = vrot.lane.b32.xlu0 %v9107, 112
  %v9703 = vpop.permute.xlu0 %9702
  %v9704 = vsel %vm7878, %v9669, 0
  %v9706 = vsel %vm7878, %v9671, 0
  %v9708 = vsel %vm7878, %v9673, 0
  %v9710 = vsel %vm7878, %v9675, 0
  %v9712 = vsel %vm7878, %v9677, 0
  %v9714 = vsel %vm7878, %v9679, 0
  %v9716 = vsel %vm7878, %v9681, 0
  %v9718 = vsel %vm7878, %v9683, 0
  %v9720 = vsel %vm7878, %v9685, 0
  %v9722 = vsel %vm7878, %v9687, 0
  %v9724 = vsel %vm7878, %v9689, 0
  %v9726 = vsel %vm7878, %v9691, 0
  %v9728 = vsel %vm7878, %v9693, 0
  %v9730 = vsel %vm7878, %v9695, 0
  %v9732 = vsel %vm7878, %v9697, 0
  %v9734 = vsel %vm7878, %v9699, 0
  %v9736 = vsel %vm7878, %v9701, 0
  %v9738 = vsel %vm7878, %v9703, 0
  %9740 = vmatprep.subr.mxu0 0.0
  %9741 = vmatpush1.xpose.msra.mxu0 %v9708
  %9742 = vmatprep.subr.mxu0 0.0
  %9743 = vmatpush1.xpose.msra.mxu0 %v9710
  %9744 = vmatprep.subr.mxu0 0.0
  %9745 = vmatpush1.xpose.msra.mxu0 %v9712
  %9746 = vmatprep.subr.mxu0 0.0
  %9747 = vmatpush1.xpose.msra.mxu0 %v9714
  %9748 = vmatprep.subr.mxu0 0.0
  %9749 = vmatpush1.xpose.msra.mxu0 %v9716
  %9750 = vmatprep.subr.mxu0 0.0
  %9751 = vmatpush1.xpose.msra.mxu0 %v9718
  %9752 = vmatprep.subr.mxu0 0.0
  %9753 = vmatpush1.xpose.msra.mxu0 %v9720
  %9754 = vmatprep.subr.mxu0 0.0
  %9755 = vmatpush1.xpose.msra.mxu0 %v9722
  %9756 = vmatprep.subr.mxu0 0.0
  %9757 = vmatpush1.xpose.msra.mxu0 %v9724
  %9758 = vmatprep.subr.mxu0 0.0
  %9759 = vmatpush1.xpose.msra.mxu0 %v9726
  %9760 = vmatprep.subr.mxu0 0.0
  %9761 = vmatpush1.xpose.msra.mxu0 %v9728
  %9762 = vmatprep.subr.mxu0 0.0
  %9763 = vmatpush1.xpose.msra.mxu0 %v9730
  %9764 = vmatprep.subr.mxu0 0.0
  %9765 = vmatpush1.xpose.msra.mxu0 %v9732
  %9766 = vmatprep.subr.mxu0 0.0
  %9767 = vmatpush1.xpose.msra.mxu0 %v9734
  %9768 = vmatprep.subr.mxu0 0.0
  %9769 = vmatpush1.xpose.msra.mxu0 %v9736
  %9770 = vmatprep.subr.mxu0 0.0
  %9771 = vmatpush1.xpose.msra.mxu0 %v9738
  %9772 = vmatprep.subr.mxu0 0.0
  %9773 = vmatpush1.xpose.msra.mxu0 0.0
  %9774 = vmatprep.subr.mxu0 0.0
  %9775 = vmatpush1.xpose.msra.mxu0 0.0
  %9776 = vmatprep.subr.mxu0 0.0
  %9777 = vmatpush1.xpose.msra.mxu0 0.0
  %9778 = vmatprep.subr.mxu0 0.0
  %9779 = vmatpush1.xpose.msra.mxu0 0.0
  %9780 = vmatprep.subr.mxu0 0.0
  %9781 = vmatpush1.xpose.msra.mxu0 0.0
  %9782 = vmatprep.subr.mxu0 0.0
  %9783 = vmatpush1.xpose.msra.mxu0 0.0
  %9784 = vmatprep.subr.mxu0 0.0
  %9785 = vmatpush1.xpose.msra.mxu0 0.0
  %9786 = vmatprep.subr.mxu0 0.0
  %9787 = vmatpush1.xpose.msra.mxu0 0.0
  %9788 = vmatprep.subr.mxu0 0.0
  %9789 = vmatpush1.xpose.msra.mxu0 0.0
  %9790 = vmatprep.subr.mxu0 0.0
  %9791 = vmatpush1.xpose.msra.mxu0 0.0
  %9792 = vmatprep.subr.mxu0 0.0
  %9793 = vmatpush1.xpose.msra.mxu0 0.0
  %9794 = vmatprep.subr.mxu0 0.0
  %9795 = vmatpush1.xpose.msra.mxu0 0.0
  %9796 = vmatprep.subr.mxu0 0.0
  %9797 = vmatpush1.xpose.msra.mxu0 0.0
  %9798 = vmatprep.subr.mxu0 0.0
  %9799 = vmatpush1.xpose.msra.mxu0 0.0
  %9800 = vmatprep.subr.mxu0 0.0
  %9801 = vmatpush1.xpose.msra.mxu0 0.0
  %9802 = vmatprep.subr.mxu0 0.0
  %9803 = vmatpush1.xpose.msra.mxu0 0.0
  %9804 = vmatprep.mubr.f32.mxu0 0.0
  %9805 = vmatmul.mubr.f32.gmra.mrb[0].mxu0 %v9704
  %v9806 = vpop.f32.mrb[0].mxu0
  %v9807 = vadd.f32 %v7744, %v9806
  %v9808 = vpop.f32.mrb[0].mxu0
  %9809 = vmatprep.mubr.f32.mxu0 0.0
  %9810 = vmatmul.mubr.f32.gmra.mrb[0].mxu0 %v9706
  %v9811 = vpop.f32.mrb[0].mxu0
  %v9812 = vadd.f32 %v7745, %v9811
  %v9813 = vpop.f32.mrb[0].mxu0
  %9814 = vdwg.mxu0
  %9815 = vmax.xlane.f32.xlu0 %v9807
  %v9816 = vpop.xlane.xlu0 %9815
  %9817 = vmax.xlane.f32.xlu0 %v9812
  %v9818 = vpop.xlane.xlu0 %9817
  %v9819 = vsub.f32 %v9807, %v9816
  %v9820 = vsub.f32 %v9812, %v9818
  %v9821 = vmul.f32 %v9819, 1.442695
  %v9822 = vpow.pop %v9821
  %v9823 = vmul.f32 %v9820, 1.442695
  %v9824 = vpow.pop %v9823
  %9825 = vadd.xlane.f32.xlu0 %v9822
  %v9826 = vpop.xlane.xlu0 %9825
  %9827 = vadd.xlane.f32.xlu0 %v9824
  %v9828 = vpop.xlane.xlu0 %9827
  %v9829 = vrcp.pop %v9826
  %v9830 = vrcp.pop %v9828
  %v9831 = vmul.f32 %v9822, %v9829
  %v9832 = vmul.f32 %v9824, %v9830
  %9833 = vrot.lane.b32.xlu0 %v9032, 80
  %v9834 = vpop.permute.xlu0 %9833
  %9835 = vrot.lane.b32.xlu0 %v9037, 80
  %v9836 = vpop.permute.xlu0 %9835
  %9837 = vrot.lane.b32.xlu0 %v9042, 80
  %v9838 = vpop.permute.xlu0 %9837
  %9839 = vrot.lane.b32.xlu0 %v9047, 80
  %v9840 = vpop.permute.xlu0 %9839
  %9841 = vrot.lane.b32.xlu0 %v9052, 80
  %v9842 = vpop.permute.xlu0 %9841
  %9843 = vrot.lane.b32.xlu0 %v9057, 80
  %v9844 = vpop.permute.xlu0 %9843
  %9845 = vrot.lane.b32.xlu0 %v9062, 80
  %v9846 = vpop.permute.xlu0 %9845
  %9847 = vrot.lane.b32.xlu0 %v9067, 80
  %v9848 = vpop.permute.xlu0 %9847
  %9849 = vrot.lane.b32.xlu0 %v9072, 80
  %v9850 = vpop.permute.xlu0 %9849
  %9851 = vrot.lane.b32.xlu0 %v9077, 80
  %v9852 = vpop.permute.xlu0 %9851
  %9853 = vrot.lane.b32.xlu0 %v9082, 80
  %v9854 = vpop.permute.xlu0 %9853
  %9855 = vrot.lane.b32.xlu0 %v9087, 80
  %v9856 = vpop.permute.xlu0 %9855
  %9857 = vrot.lane.b32.xlu0 %v9092, 80
  %v9858 = vpop.permute.xlu0 %9857
  %9859 = vrot.lane.b32.xlu0 %v9097, 80
  %v9860 = vpop.permute.xlu0 %9859
  %9861 = vrot.lane.b32.xlu0 %v9102, 80
  %v9862 = vpop.permute.xlu0 %9861
  %9863 = vrot.lane.b32.xlu0 %v9107, 80
  %v9864 = vpop.permute.xlu0 %9863
  %9881 = vmatprep.subr.mxu0 0.0
  %9882 = vmatpush1.msra.mxu0 %v9834
  %9883 = vmatprep.subr.mxu0 0.0
  %9884 = vmatpush1.msra.mxu0 %v9836
  %9885 = vmatprep.subr.mxu0 0.0
  %9886 = vmatpush1.msra.mxu0 %v9838
  %9887 = vmatprep.subr.mxu0 0.0
  %9888 = vmatpush1.msra.mxu0 %v9840
  %9889 = vmatprep.subr.mxu0 0.0
  %9890 = vmatpush1.msra.mxu0 %v9842
  %9891 = vmatprep.subr.mxu0 0.0
  %9892 = vmatpush1.msra.mxu0 %v9844
  %9893 = vmatprep.subr.mxu0 0.0
  %9894 = vmatpush1.msra.mxu0 %v9846
  %9895 = vmatprep.subr.mxu0 0.0
  %9896 = vmatpush1.msra.mxu0 %v9848
  %9897 = vmatprep.subr.mxu0 0.0
  %9898 = vmatpush1.msra.mxu0 %v9850
  %9899 = vmatprep.subr.mxu0 0.0
  %9900 = vmatpush1.msra.mxu0 %v9852
  %9901 = vmatprep.subr.mxu0 0.0
  %9902 = vmatpush1.msra.mxu0 %v9854
  %9903 = vmatprep.subr.mxu0 0.0
  %9904 = vmatpush1.msra.mxu0 %v9856
  %9905 = vmatprep.subr.mxu0 0.0
  %9906 = vmatpush1.msra.mxu0 %v9858
  %9907 = vmatprep.subr.mxu0 0.0
  %9908 = vmatpush1.msra.mxu0 %v9860
  %9909 = vmatprep.subr.mxu0 0.0
  %9910 = vmatpush1.msra.mxu0 %v9862
  %9911 = vmatprep.subr.mxu0 0.0
  %9912 = vmatpush1.msra.mxu0 %v9864
  %9913 = vmatprep.subr.mxu0 0.0
  %9914 = vmatpush1.msra.mxu0 0.0
  %9915 = vmatprep.subr.mxu0 0.0
  %9916 = vmatpush1.msra.mxu0 0.0
  %9917 = vmatprep.subr.mxu0 0.0
  %9918 = vmatpush1.msra.mxu0 0.0
  %9919 = vmatprep.subr.mxu0 0.0
  %9920 = vmatpush1.msra.mxu0 0.0
  %9921 = vmatprep.subr.mxu0 0.0
  %9922 = vmatpush1.msra.mxu0 0.0
  %9923 = vmatprep.subr.mxu0 0.0
  %9924 = vmatpush1.msra.mxu0 0.0
  %9925 = vmatprep.subr.mxu0 0.0
  %9926 = vmatpush1.msra.mxu0 0.0
  %9927 = vmatprep.subr.mxu0 0.0
  %9928 = vmatpush1.msra.mxu0 0.0
  %9929 = vmatprep.subr.mxu0 0.0
  %9930 = vmatpush1.msra.mxu0 0.0
  %9931 = vmatprep.subr.mxu0 0.0
  %9932 = vmatpush1.msra.mxu0 0.0
  %9933 = vmatprep.subr.mxu0 0.0
  %9934 = vmatpush1.msra.mxu0 0.0
  %9935 = vmatprep.subr.mxu0 0.0
  %9936 = vmatpush1.msra.mxu0 0.0
  %9937 = vmatprep.subr.mxu0 0.0
  %9938 = vmatpush1.msra.mxu0 0.0
  %9939 = vmatprep.subr.mxu0 0.0
  %9940 = vmatpush1.msra.mxu0 0.0
  %9941 = vmatprep.subr.mxu0 0.0
  %9942 = vmatpush1.msra.mxu0 0.0
  %9943 = vmatprep.subr.mxu0 0.0
  %9944 = vmatpush1.msra.mxu0 0.0
  %9945 = vmatprep.mubr.f32.mxu0 0.0
  %9946 = vmatmul.mubr.f32.gmra.mrb[0].mxu0 %v9831
  %v9947 = vpop.f32.mrb[0].mxu0
  %v9948 = vadd.f32 0.0, %v9947
  %v9949 = vpop.f32.mrb[0].mxu0
  %9950 = vmatprep.mubr.f32.mxu0 0.0
  %9951 = vmatmul.mubr.f32.gmra.mrb[0].mxu0 %v9832
  %v9952 = vpop.f32.mrb[0].mxu0
  %v9953 = vadd.f32 0.0, %v9952
  %v9954 = vpop.f32.mrb[0].mxu0
  %9955 = vdwg.mxu0
  %9956 = vrot.lane.b32.xlu0 %v8905, 104
  %v9957 = vpop.permute.xlu0 %9956
  %9958 = vrot.lane.b32.xlu0 %v8910, 104
  %v9959 = vpop.permute.xlu0 %9958
  %9960 = vrot.lane.b32.xlu0 %v9032, 104
  %v9961 = vpop.permute.xlu0 %9960
  %9962 = vrot.lane.b32.xlu0 %v9037, 104
  %v9963 = vpop.permute.xlu0 %9962
  %9964 = vrot.lane.b32.xlu0 %v9042, 104
  %v9965 = vpop.permute.xlu0 %9964
  %9966 = vrot.lane.b32.xlu0 %v9047, 104
  %v9967 = vpop.permute.xlu0 %9966
  %9968 = vrot.lane.b32.xlu0 %v9052, 104
  %v9969 = vpop.permute.xlu0 %9968
  %9970 = vrot.lane.b32.xlu0 %v9057, 104
  %v9971 = vpop.permute.xlu0 %9970
  %9972 = vrot.lane.b32.xlu0 %v9062, 104
  %v9973 = vpop.permute.xlu0 %9972
  %9974 = vrot.lane.b32.xlu0 %v9067, 104
  %v9975 = vpop.permute.xlu0 %9974
  %9976 = vrot.lane.b32.xlu0 %v9072, 104
  %v9977 = vpop.permute.xlu0 %9976
  %9978 = vrot.lane.b32.xlu0 %v9077, 104
  %v9979 = vpop.permute.xlu0 %9978
  %9980 = vrot.lane.b32.xlu0 %v9082, 104
  %v9981 = vpop.permute.xlu0 %9980
  %9982 = vrot.lane.b32.xlu0 %v9087, 104
  %v9983 = vpop.permute.xlu0 %9982
  %9984 = vrot.lane.b32.xlu0 %v9092, 104
  %v9985 = vpop.permute.xlu0 %9984
  %9986 = vrot.lane.b32.xlu0 %v9097, 104
  %v9987 = vpop.permute.xlu0 %9986
  %9988 = vrot.lane.b32.xlu0 %v9102, 104
  %v9989 = vpop.permute.xlu0 %9988
  %9990 = vrot.lane.b32.xlu0 %v9107, 104
  %v9991 = vpop.permute.xlu0 %9990
  %v9992 = vsel %vm7878, %v9957, 0
  %v9994 = vsel %vm7878, %v9959, 0
  %v9996 = vsel %vm7878, %v9961, 0
  %v9998 = vsel %vm7878, %v9963, 0
  %v10000 = vsel %vm7878, %v9965, 0
  %v10002 = vsel %vm7878, %v9967, 0
  %v10004 = vsel %vm7878, %v9969, 0
  %v10006 = vsel %vm7878, %v9971, 0
  %v10008 = vsel %vm7878, %v9973, 0
  %v10010 = vsel %vm7878, %v9975, 0
  %v10012 = vsel %vm7878, %v9977, 0
  %v10014 = vsel %vm7878, %v9979, 0
  %v10016 = vsel %vm7878, %v9981, 0
  %v10018 = vsel %vm7878, %v9983, 0
  %v10020 = vsel %vm7878, %v9985, 0
  %v10022 = vsel %vm7878, %v9987, 0
  %v10024 = vsel %vm7878, %v9989, 0
  %v10026 = vsel %vm7878, %v9991, 0
  %10028 = vmatprep.subr.mxu0 0.0
  %10029 = vmatpush1.xpose.msra.mxu0 %v9996
  %10030 = vmatprep.subr.mxu0 0.0
  %10031 = vmatpush1.xpose.msra.mxu0 %v9998
  %10032 = vmatprep.subr.mxu0 0.0
  %10033 = vmatpush1.xpose.msra.mxu0 %v10000
  %10034 = vmatprep.subr.mxu0 0.0
  %10035 = vmatpush1.xpose.msra.mxu0 %v10002
  %10036 = vmatprep.subr.mxu0 0.0
  %10037 = vmatpush1.xpose.msra.mxu0 %v10004
  %10038 = vmatprep.subr.mxu0 0.0
  %10039 = vmatpush1.xpose.msra.mxu0 %v10006
  %10040 = vmatprep.subr.mxu0 0.0
  %10041 = vmatpush1.xpose.msra.mxu0 %v10008
  %10042 = vmatprep.subr.mxu0 0.0
  %10043 = vmatpush1.xpose.msra.mxu0 %v10010
  %10044 = vmatprep.subr.mxu0 0.0
  %10045 = vmatpush1.xpose.msra.mxu0 %v10012
  %10046 = vmatprep.subr.mxu0 0.0
  %10047 = vmatpush1.xpose.msra.mxu0 %v10014
  %10048 = vmatprep.subr.mxu0 0.0
  %10049 = vmatpush1.xpose.msra.mxu0 %v10016
  %10050 = vmatprep.subr.mxu0 0.0
  %10051 = vmatpush1.xpose.msra.mxu0 %v10018
  %10052 = vmatprep.subr.mxu0 0.0
  %10053 = vmatpush1.xpose.msra.mxu0 %v10020
  %10054 = vmatprep.subr.mxu0 0.0
  %10055 = vmatpush1.xpose.msra.mxu0 %v10022
  %10056 = vmatprep.subr.mxu0 0.0
  %10057 = vmatpush1.xpose.msra.mxu0 %v10024
  %10058 = vmatprep.subr.mxu0 0.0
  %10059 = vmatpush1.xpose.msra.mxu0 %v10026
  %10060 = vmatprep.subr.mxu0 0.0
  %10061 = vmatpush1.xpose.msra.mxu0 0.0
  %10062 = vmatprep.subr.mxu0 0.0
  %10063 = vmatpush1.xpose.msra.mxu0 0.0
  %10064 = vmatprep.subr.mxu0 0.0
  %10065 = vmatpush1.xpose.msra.mxu0 0.0
  %10066 = vmatprep.subr.mxu0 0.0
  %10067 = vmatpush1.xpose.msra.mxu0 0.0
  %10068 = vmatprep.subr.mxu0 0.0
  %10069 = vmatpush1.xpose.msra.mxu0 0.0
  %10070 = vmatprep.subr.mxu0 0.0
  %10071 = vmatpush1.xpose.msra.mxu0 0.0
  %10072 = vmatprep.subr.mxu0 0.0
  %10073 = vmatpush1.xpose.msra.mxu0 0.0
  %10074 = vmatprep.subr.mxu0 0.0
  %10075 = vmatpush1.xpose.msra.mxu0 0.0
  %10076 = vmatprep.subr.mxu0 0.0
  %10077 = vmatpush1.xpose.msra.mxu0 0.0
  %10078 = vmatprep.subr.mxu0 0.0
  %10079 = vmatpush1.xpose.msra.mxu0 0.0
  %10080 = vmatprep.subr.mxu0 0.0
  %10081 = vmatpush1.xpose.msra.mxu0 0.0
  %10082 = vmatprep.subr.mxu0 0.0
  %10083 = vmatpush1.xpose.msra.mxu0 0.0
  %10084 = vmatprep.subr.mxu0 0.0
  %10085 = vmatpush1.xpose.msra.mxu0 0.0
  %10086 = vmatprep.subr.mxu0 0.0
  %10087 = vmatpush1.xpose.msra.mxu0 0.0
  %10088 = vmatprep.subr.mxu0 0.0
  %10089 = vmatpush1.xpose.msra.mxu0 0.0
  %10090 = vmatprep.subr.mxu0 0.0
  %10091 = vmatpush1.xpose.msra.mxu0 0.0
  %10092 = vmatprep.mubr.f32.mxu0 0.0
  %10093 = vmatmul.mubr.f32.gmra.mrb[0].mxu0 %v9992
  %v10094 = vpop.f32.mrb[0].mxu0
  %v10095 = vadd.f32 %v7744, %v10094
  %v10096 = vpop.f32.mrb[0].mxu0
  %10097 = vmatprep.mubr.f32.mxu0 0.0
  %10098 = vmatmul.mubr.f32.gmra.mrb[0].mxu0 %v9994
  %v10099 = vpop.f32.mrb[0].mxu0
  %v10100 = vadd.f32 %v7745, %v10099
  %v10101 = vpop.f32.mrb[0].mxu0
  %10102 = vdwg.mxu0
  %10103 = vmax.xlane.f32.xlu0 %v10095
  %v10104 = vpop.xlane.xlu0 %10103
  %10105 = vmax.xlane.f32.xlu0 %v10100
  %v10106 = vpop.xlane.xlu0 %10105
  %v10107 = vsub.f32 %v10095, %v10104
  %v10108 = vsub.f32 %v10100, %v10106
  %v10109 = vmul.f32 %v10107, 1.442695
  %v10110 = vpow.pop %v10109
  %v10111 = vmul.f32 %v10108, 1.442695
  %v10112 = vpow.pop %v10111
  %10113 = vadd.xlane.f32.xlu0 %v10110
  %v10114 = vpop.xlane.xlu0 %10113
  %10115 = vadd.xlane.f32.xlu0 %v10112
  %v10116 = vpop.xlane.xlu0 %10115
  %v10117 = vrcp.pop %v10114
  %v10118 = vrcp.pop %v10116
  %v10119 = vmul.f32 %v10110, %v10117
  %v10120 = vmul.f32 %v10112, %v10118
  %10121 = vrot.lane.b32.xlu0 %v9032, 72
  %v10122 = vpop.permute.xlu0 %10121
  %10123 = vrot.lane.b32.xlu0 %v9037, 72
  %v10124 = vpop.permute.xlu0 %10123
  %10125 = vrot.lane.b32.xlu0 %v9042, 72
  %v10126 = vpop.permute.xlu0 %10125
  %10127 = vrot.lane.b32.xlu0 %v9047, 72
  %v10128 = vpop.permute.xlu0 %10127
  %10129 = vrot.lane.b32.xlu0 %v9052, 72
  %v10130 = vpop.permute.xlu0 %10129
  %10131 = vrot.lane.b32.xlu0 %v9057, 72
  %v10132 = vpop.permute.xlu0 %10131
  %10133 = vrot.lane.b32.xlu0 %v9062, 72
  %v10134 = vpop.permute.xlu0 %10133
  %10135 = vrot.lane.b32.xlu0 %v9067, 72
  %v10136 = vpop.permute.xlu0 %10135
  %10137 = vrot.lane.b32.xlu0 %v9072, 72
  %v10138 = vpop.permute.xlu0 %10137
  %10139 = vrot.lane.b32.xlu0 %v9077, 72
  %v10140 = vpop.permute.xlu0 %10139
  %10141 = vrot.lane.b32.xlu0 %v9082, 72
  %v10142 = vpop.permute.xlu0 %10141
  %10143 = vrot.lane.b32.xlu0 %v9087, 72
  %v10144 = vpop.permute.xlu0 %10143
  %10145 = vrot.lane.b32.xlu0 %v9092, 72
  %v10146 = vpop.permute.xlu0 %10145
  %10147 = vrot.lane.b32.xlu0 %v9097, 72
  %v10148 = vpop.permute.xlu0 %10147
  %10149 = vrot.lane.b32.xlu0 %v9102, 72
  %v10150 = vpop.permute.xlu0 %10149
  %10151 = vrot.lane.b32.xlu0 %v9107, 72
  %v10152 = vpop.permute.xlu0 %10151
  %10169 = vmatprep.subr.mxu0 0.0
  %10170 = vmatpush1.msra.mxu0 %v10122
  %10171 = vmatprep.subr.mxu0 0.0
  %10172 = vmatpush1.msra.mxu0 %v10124
  %10173 = vmatprep.subr.mxu0 0.0
  %10174 = vmatpush1.msra.mxu0 %v10126
  %10175 = vmatprep.subr.mxu0 0.0
  %10176 = vmatpush1.msra.mxu0 %v10128
  %10177 = vmatprep.subr.mxu0 0.0
  %10178 = vmatpush1.msra.mxu0 %v10130
  %10179 = vmatprep.subr.mxu0 0.0
  %10180 = vmatpush1.msra.mxu0 %v10132
  %10181 = vmatprep.subr.mxu0 0.0
  %10182 = vmatpush1.msra.mxu0 %v10134
  %10183 = vmatprep.subr.mxu0 0.0
  %10184 = vmatpush1.msra.mxu0 %v10136
  %10185 = vmatprep.subr.mxu0 0.0
  %10186 = vmatpush1.msra.mxu0 %v10138
  %10187 = vmatprep.subr.mxu0 0.0
  %10188 = vmatpush1.msra.mxu0 %v10140
  %10189 = vmatprep.subr.mxu0 0.0
  %10190 = vmatpush1.msra.mxu0 %v10142
  %10191 = vmatprep.subr.mxu0 0.0
  %10192 = vmatpush1.msra.mxu0 %v10144
  %10193 = vmatprep.subr.mxu0 0.0
  %10194 = vmatpush1.msra.mxu0 %v10146
  %10195 = vmatprep.subr.mxu0 0.0
  %10196 = vmatpush1.msra.mxu0 %v10148
  %10197 = vmatprep.subr.mxu0 0.0
  %10198 = vmatpush1.msra.mxu0 %v10150
  %10199 = vmatprep.subr.mxu0 0.0
  %10200 = vmatpush1.msra.mxu0 %v10152
  %10201 = vmatprep.subr.mxu0 0.0
  %10202 = vmatpush1.msra.mxu0 0.0
  %10203 = vmatprep.subr.mxu0 0.0
  %10204 = vmatpush1.msra.mxu0 0.0
  %10205 = vmatprep.subr.mxu0 0.0
  %10206 = vmatpush1.msra.mxu0 0.0
  %10207 = vmatprep.subr.mxu0 0.0
  %10208 = vmatpush1.msra.mxu0 0.0
  %10209 = vmatprep.subr.mxu0 0.0
  %10210 = vmatpush1.msra.mxu0 0.0
  %10211 = vmatprep.subr.mxu0 0.0
  %10212 = vmatpush1.msra.mxu0 0.0
  %10213 = vmatprep.subr.mxu0 0.0
  %10214 = vmatpush1.msra.mxu0 0.0
  %10215 = vmatprep.subr.mxu0 0.0
  %10216 = vmatpush1.msra.mxu0 0.0
  %10217 = vmatprep.subr.mxu0 0.0
  %10218 = vmatpush1.msra.mxu0 0.0
  %10219 = vmatprep.subr.mxu0 0.0
  %10220 = vmatpush1.msra.mxu0 0.0
  %10221 = vmatprep.subr.mxu0 0.0
  %10222 = vmatpush1.msra.mxu0 0.0
  %10223 = vmatprep.subr.mxu0 0.0
  %10224 = vmatpush1.msra.mxu0 0.0
  %10225 = vmatprep.subr.mxu0 0.0
  %10226 = vmatpush1.msra.mxu0 0.0
  %10227 = vmatprep.subr.mxu0 0.0
  %10228 = vmatpush1.msra.mxu0 0.0
  %10229 = vmatprep.subr.mxu0 0.0
  %10230 = vmatpush1.msra.mxu0 0.0
  %10231 = vmatprep.subr.mxu0 0.0
  %10232 = vmatpush1.msra.mxu0 0.0
  %10233 = vmatprep.mubr.f32.mxu0 0.0
  %10234 = vmatmul.mubr.f32.gmra.mrb[0].mxu0 %v10119
  %v10235 = vpop.f32.mrb[0].mxu0
  %v10236 = vadd.f32 0.0, %v10235
  %v10237 = vpop.f32.mrb[0].mxu0
  %10238 = vmatprep.mubr.f32.mxu0 0.0
  %10239 = vmatmul.mubr.f32.gmra.mrb[0].mxu0 %v10120
  %v10240 = vpop.f32.mrb[0].mxu0
  %v10241 = vadd.f32 0.0, %v10240
  %v10242 = vpop.f32.mrb[0].mxu0
  %10243 = vdwg.mxu0
  %10246 = vrot.lane.b32.xlu0 %v9660, 8
  %v10247 = vpop.permute.xlu0 %10246
  %10248 = vrot.lane.b32.xlu0 %v9665, 8
  %v10249 = vpop.permute.xlu0 %10248
  %10254 = vrot.lane.b32.xlu0 %v9948, 16
  %v10255 = vpop.permute.xlu0 %10254
  %10256 = vrot.lane.b32.xlu0 %v9953, 16
  %v10257 = vpop.permute.xlu0 %10256
  %10262 = vrot.lane.b32.xlu0 %v10236, 24
  %v10263 = vpop.permute.xlu0 %10262
  %10264 = vrot.lane.b32.xlu0 %v10241, 24
  %v10265 = vpop.permute.xlu0 %10264
  %v10268 = vsel %vm7878, %v9372, %v10247
  %v10269 = vsel %vm7878, %v9377, %v10249
  %v10270 = vsel %vm7962, %v10268, %v10255
  %v10271 = vsel %vm7962, %v10269, %v10257
  %v10272 = vsel %vm8700, %v10270, %v10263
  %v10273 = vsel %vm8700, %v10271, %v10265
  %v10274 = vlaneseq
  %v10275 = vshrl.u32 %v10274, 7
  %v10276 = vsub.s32 6, %v10275
  %v10277 = vrot.slane %v7697, %v10276
  %v10279 = vsel %vm750, %v10272, 0
  %v10282 = vsel %vm750, %v10273, 0
  %10284 = vmatprep.subr.mxu0 0.0
  %10285 = vmatpush1.msra.mxu0 %v7719
  %10286 = vmatprep.subr.mxu0 0.0
  %10287 = vmatpush1.msra.mxu0 %v7720
  %10288 = vmatprep.subr.mxu0 0.0
  %10289 = vmatpush1.msra.mxu0 %v7721
  %10290 = vmatprep.subr.mxu0 0.0
  %10291 = vmatpush1.msra.mxu0 %v7722
  %10292 = vmatprep.subr.mxu0 0.0
  %10293 = vmatpush1.msra.mxu0 0.0
  %10294 = vmatprep.subr.mxu0 0.0
  %10295 = vmatpush1.msra.mxu0 0.0
  %10296 = vmatprep.subr.mxu0 0.0
  %10297 = vmatpush1.msra.mxu0 0.0
  %10298 = vmatprep.subr.mxu0 0.0
  %10299 = vmatpush1.msra.mxu0 0.0
  %10300 = vmatprep.subr.mxu0 0.0
  %10301 = vmatpush1.msra.mxu0 0.0
  %10302 = vmatprep.subr.mxu0 0.0
  %10303 = vmatpush1.msra.mxu0 0.0
  %10304 = vmatprep.subr.mxu0 0.0
  %10305 = vmatpush1.msra.mxu0 0.0
  %10306 = vmatprep.subr.mxu0 0.0
  %10307 = vmatpush1.msra.mxu0 0.0
  %10308 = vmatprep.subr.mxu0 0.0
  %10309 = vmatpush1.msra.mxu0 0.0
  %10310 = vmatprep.subr.mxu0 0.0
  %10311 = vmatpush1.msra.mxu0 0.0
  %10312 = vmatprep.subr.mxu0 0.0
  %10313 = vmatpush1.msra.mxu0 0.0
  %10314 = vmatprep.subr.mxu0 0.0
  %10315 = vmatpush1.msra.mxu0 0.0
  %10316 = vmatprep.subr.mxu0 0.0
  %10317 = vmatpush1.msra.mxu0 0.0
  %10318 = vmatprep.subr.mxu0 0.0
  %10319 = vmatpush1.msra.mxu0 0.0
  %10320 = vmatprep.subr.mxu0 0.0
  %10321 = vmatpush1.msra.mxu0 0.0
  %10322 = vmatprep.subr.mxu0 0.0
  %10323 = vmatpush1.msra.mxu0 0.0
  %10324 = vmatprep.subr.mxu0 0.0
  %10325 = vmatpush1.msra.mxu0 0.0
  %10326 = vmatprep.subr.mxu0 0.0
  %10327 = vmatpush1.msra.mxu0 0.0
  %10328 = vmatprep.subr.mxu0 0.0
  %10329 = vmatpush1.msra.mxu0 0.0
  %10330 = vmatprep.subr.mxu0 0.0
  %10331 = vmatpush1.msra.mxu0 0.0
  %10332 = vmatprep.subr.mxu0 0.0
  %10333 = vmatpush1.msra.mxu0 0.0
  %10334 = vmatprep.subr.mxu0 0.0
  %10335 = vmatpush1.msra.mxu0 0.0
  %10336 = vmatprep.subr.mxu0 0.0
  %10337 = vmatpush1.msra.mxu0 0.0
  %10338 = vmatprep.subr.mxu0 0.0
  %10339 = vmatpush1.msra.mxu0 0.0
  %10340 = vmatprep.subr.mxu0 0.0
  %10341 = vmatpush1.msra.mxu0 0.0
  %10342 = vmatprep.subr.mxu0 0.0
  %10343 = vmatpush1.msra.mxu0 0.0
  %10344 = vmatprep.subr.mxu0 0.0
  %10345 = vmatpush1.msra.mxu0 0.0
  %10346 = vmatprep.subr.mxu0 0.0
  %10347 = vmatpush1.msra.mxu0 0.0
  %10348 = vmatprep.mubr.f32.mxu0 0.0
  %10349 = vmatmul.mubr.f32.gmra.mrb[0].mxu0 %v10279
  %v10350 = vpop.f32.mrb[0].mxu0
  %v10351 = vadd.f32 %v10277, %v10350
  %v10352 = vpop.f32.mrb[0].mxu0
  %10353 = vmatprep.mubr.f32.mxu0 0.0
  %10354 = vmatmul.mubr.f32.gmra.mrb[0].mxu0 %v10282
  %v10355 = vpop.f32.mrb[0].mxu0
  %v10356 = vadd.f32 %v10277, %v10355
  %v10357 = vpop.f32.mrb[0].mxu0
  %10358 = vdwg.mxu0
  %v10359 = vadd.f32 %v8826, %v10351
  %v10360 = vadd.f32 %v8827, %v10356
  %v10361 = vsel %vm750, %v10359, 0.0
  %10362 = vadd.xlane.f32.xlu0 %v10361
  %v10363 = vpop.xlane.xlu0 %10362
  %v10364 = vsel %vm750, %v10360, 0.0
  %10365 = vadd.xlane.f32.xlu0 %v10364
  %v10366 = vpop.xlane.xlu0 %10365
  %v10367 = vmul.f32 %v10363, %v7754
  %v10368 = vmul.f32 %v10366, %v7754
  %v10369 = vsub.f32 %v10359, %v10367
  %v10370 = vsub.f32 %v10360, %v10368
  %v10371 = vmul.f32 %v10369, %v10369
  %v10372 = vmul.f32 %v10370, %v10370
  %v10373 = vsel %vm750, %v10371, 0.0
  %10374 = vadd.xlane.f32.xlu0 %v10373
  %v10375 = vpop.xlane.xlu0 %10374
  %v10376 = vsel %vm750, %v10372, 0.0
  %10377 = vadd.xlane.f32.xlu0 %v10376
  %v10378 = vpop.xlane.xlu0 %10377
  %v10379 = vmul.f32 %v10375, %v7754
  %v10380 = vmul.f32 %v10378, %v7754
  %v10381 = vadd.f32 %v10379, 1e-05
  %v10382 = vadd.f32 %v10380, 1e-05
  %v10383 = vrsqrt.pop %v10381
  %v10384 = vrsqrt.pop %v10382
  %v10385 = vmul.f32 %v10369, %v10383
  %v10386 = vmul.f32 %v10370, %v10384
  %v10387 = vlaneseq
  %v10388 = vshrl.u32 %v10387, 7
  %v10389 = vsub.s32 1, %v10388
  %v10390 = vrot.slane %v7698, %v10389
  %v10391 = vmul.f32 %v10385, %v10390
  %v10392 = vmul.f32 %v10386, %v10390
  %v10393 = vlaneseq
  %v10394 = vshrl.u32 %v10393, 7
  %v10395 = vsub.s32 2, %v10394
  %v10396 = vrot.slane %v7698, %v10395
  %v10397 = vadd.f32 %v10391, %v10396
  %v10398 = vadd.f32 %v10392, %v10396
  %v10399 = vlaneseq
  %v10400 = vshrl.u32 %v10399, 7
  %v10401 = vsub.s32 5, %v10400
  %v10402 = vrot.slane %v7698, %v10401
  %v10404 = vsel %vm750, %v10397, 0
  %v10407 = vsel %vm750, %v10398, 0
  %10409 = vmatprep.subr.mxu0 0.0
  %10410 = vmatpush1.msra.mxu0 %v7724
  %10411 = vmatprep.subr.mxu0 0.0
  %10412 = vmatpush1.msra.mxu0 %v7725
  %10413 = vmatprep.subr.mxu0 0.0
  %10414 = vmatpush1.msra.mxu0 %v7726
  %10415 = vmatprep.subr.mxu0 0.0
  %10416 = vmatpush1.msra.mxu0 %v7727
  %10417 = vmatprep.subr.mxu0 0.0
  %10418 = vmatpush1.msra.mxu0 0.0
  %10419 = vmatprep.subr.mxu0 0.0
  %10420 = vmatpush1.msra.mxu0 0.0
  %10421 = vmatprep.subr.mxu0 0.0
  %10422 = vmatpush1.msra.mxu0 0.0
  %10423 = vmatprep.subr.mxu0 0.0
  %10424 = vmatpush1.msra.mxu0 0.0
  %10425 = vmatprep.subr.mxu0 0.0
  %10426 = vmatpush1.msra.mxu0 0.0
  %10427 = vmatprep.subr.mxu0 0.0
  %10428 = vmatpush1.msra.mxu0 0.0
  %10429 = vmatprep.subr.mxu0 0.0
  %10430 = vmatpush1.msra.mxu0 0.0
  %10431 = vmatprep.subr.mxu0 0.0
  %10432 = vmatpush1.msra.mxu0 0.0
  %10433 = vmatprep.subr.mxu0 0.0
  %10434 = vmatpush1.msra.mxu0 0.0
  %10435 = vmatprep.subr.mxu0 0.0
  %10436 = vmatpush1.msra.mxu0 0.0
  %10437 = vmatprep.subr.mxu0 0.0
  %10438 = vmatpush1.msra.mxu0 0.0
  %10439 = vmatprep.subr.mxu0 0.0
  %10440 = vmatpush1.msra.mxu0 0.0
  %10441 = vmatprep.subr.mxu0 0.0
  %10442 = vmatpush1.msra.mxu0 0.0
  %10443 = vmatprep.subr.mxu0 0.0
  %10444 = vmatpush1.msra.mxu0 0.0
  %10445 = vmatprep.subr.mxu0 0.0
  %10446 = vmatpush1.msra.mxu0 0.0
  %10447 = vmatprep.subr.mxu0 0.0
  %10448 = vmatpush1.msra.mxu0 0.0
  %10449 = vmatprep.subr.mxu0 0.0
  %10450 = vmatpush1.msra.mxu0 0.0
  %10451 = vmatprep.subr.mxu0 0.0
  %10452 = vmatpush1.msra.mxu0 0.0
  %10453 = vmatprep.subr.mxu0 0.0
  %10454 = vmatpush1.msra.mxu0 0.0
  %10455 = vmatprep.subr.mxu0 0.0
  %10456 = vmatpush1.msra.mxu0 0.0
  %10457 = vmatprep.subr.mxu0 0.0
  %10458 = vmatpush1.msra.mxu0 0.0
  %10459 = vmatprep.subr.mxu0 0.0
  %10460 = vmatpush1.msra.mxu0 0.0
  %10461 = vmatprep.subr.mxu0 0.0
  %10462 = vmatpush1.msra.mxu0 0.0
  %10463 = vmatprep.subr.mxu0 0.0
  %10464 = vmatpush1.msra.mxu0 0.0
  %10465 = vmatprep.subr.mxu0 0.0
  %10466 = vmatpush1.msra.mxu0 0.0
  %10467 = vmatprep.subr.mxu0 0.0
  %10468 = vmatpush1.msra.mxu0 0.0
  %10469 = vmatprep.subr.mxu0 0.0
  %10470 = vmatpush1.msra.mxu0 0.0
  %10471 = vmatprep.subr.mxu0 0.0
  %10472 = vmatpush1.msra.mxu0 0.0
  %10473 = vmatprep.mubr.f32.mxu0 0.0
  %10474 = vmatmul.mubr.f32.gmra.mrb[0].mxu0 %v10404
  %v10475 = vpop.f32.mrb[0].mxu0
  %v10476 = vadd.f32 %v10402, %v10475
  %v10477 = vpop.f32.mrb[0].mxu0
  %10478 = vmatprep.mubr.f32.mxu0 0.0
  %10479 = vmatmul.mubr.f32.gmra.mrb[0].mxu0 %v10407
  %v10480 = vpop.f32.mrb[0].mxu0
  %v10481 = vadd.f32 %v10402, %v10480
  %v10482 = vpop.f32.mrb[0].mxu0
  %10483 = vdwg.mxu0
  %v10484 = vmax.f32 %v10476, 0.0
  %v10485 = vmax.f32 %v10481, 0.0
  %v10486 = vlaneseq
  %v10487 = vshrl.u32 %v10486, 7
  %v10488 = vsub.s32 6, %v10487
  %v10489 = vrot.slane %v7698, %v10488
  %vm10490 = vcmask 523264
  %v10492 = vsel %vm10490, %v10484, 0
  %v10495 = vsel %vm10490, %v10485, 0
  %10497 = vmatprep.subr.mxu0 0.0
  %10498 = vmatpush1.msra.mxu0 %v7729
  %10499 = vmatprep.subr.mxu0 0.0
  %10500 = vmatpush1.msra.mxu0 %v7730
  %10501 = vmatprep.subr.mxu0 0.0
  %10502 = vmatpush1.msra.mxu0 %v7731
  %10503 = vmatprep.subr.mxu0 0.0
  %10504 = vmatpush1.msra.mxu0 %v7732
  %10505 = vmatprep.subr.mxu0 0.0
  %10506 = vmatpush1.msra.mxu0 %v7733
  %10507 = vmatprep.subr.mxu0 0.0
  %10508 = vmatpush1.msra.mxu0 %v7734
  %10509 = vmatprep.subr.mxu0 0.0
  %10510 = vmatpush1.msra.mxu0 %v7735
  %10511 = vmatprep.subr.mxu0 0.0
  %10512 = vmatpush1.msra.mxu0 %v7736
  %10513 = vmatprep.subr.mxu0 0.0
  %10514 = vmatpush1.msra.mxu0 0.0
  %10515 = vmatprep.subr.mxu0 0.0
  %10516 = vmatpush1.msra.mxu0 0.0
  %10517 = vmatprep.subr.mxu0 0.0
  %10518 = vmatpush1.msra.mxu0 0.0
  %10519 = vmatprep.subr.mxu0 0.0
  %10520 = vmatpush1.msra.mxu0 0.0
  %10521 = vmatprep.subr.mxu0 0.0
  %10522 = vmatpush1.msra.mxu0 0.0
  %10523 = vmatprep.subr.mxu0 0.0
  %10524 = vmatpush1.msra.mxu0 0.0
  %10525 = vmatprep.subr.mxu0 0.0
  %10526 = vmatpush1.msra.mxu0 0.0
  %10527 = vmatprep.subr.mxu0 0.0
  %10528 = vmatpush1.msra.mxu0 0.0
  %10529 = vmatprep.subr.mxu0 0.0
  %10530 = vmatpush1.msra.mxu0 0.0
  %10531 = vmatprep.subr.mxu0 0.0
  %10532 = vmatpush1.msra.mxu0 0.0
  %10533 = vmatprep.subr.mxu0 0.0
  %10534 = vmatpush1.msra.mxu0 0.0
  %10535 = vmatprep.subr.mxu0 0.0
  %10536 = vmatpush1.msra.mxu0 0.0
  %10537 = vmatprep.subr.mxu0 0.0
  %10538 = vmatpush1.msra.mxu0 0.0
  %10539 = vmatprep.subr.mxu0 0.0
  %10540 = vmatpush1.msra.mxu0 0.0
  %10541 = vmatprep.subr.mxu0 0.0
  %10542 = vmatpush1.msra.mxu0 0.0
  %10543 = vmatprep.subr.mxu0 0.0
  %10544 = vmatpush1.msra.mxu0 0.0
  %10545 = vmatprep.subr.mxu0 0.0
  %10546 = vmatpush1.msra.mxu0 0.0
  %10547 = vmatprep.subr.mxu0 0.0
  %10548 = vmatpush1.msra.mxu0 0.0
  %10549 = vmatprep.subr.mxu0 0.0
  %10550 = vmatpush1.msra.mxu0 0.0
  %10551 = vmatprep.subr.mxu0 0.0
  %10552 = vmatpush1.msra.mxu0 0.0
  %10553 = vmatprep.subr.mxu0 0.0
  %10554 = vmatpush1.msra.mxu0 0.0
  %10555 = vmatprep.subr.mxu0 0.0
  %10556 = vmatpush1.msra.mxu0 0.0
  %10557 = vmatprep.subr.mxu0 0.0
  %10558 = vmatpush1.msra.mxu0 0.0
  %10559 = vmatprep.subr.mxu0 0.0
  %10560 = vmatpush1.msra.mxu0 0.0
  %10561 = vmatprep.mubr.f32.mxu0 0.0
  %10562 = vmatmul.mubr.f32.gmra.mrb[0].mxu0 %v10492
  %v10563 = vpop.f32.mrb[0].mxu0
  %v10564 = vadd.f32 %v10489, %v10563
  %v10565 = vpop.f32.mrb[0].mxu0
  %10566 = vmatprep.mubr.f32.mxu0 0.0
  %10567 = vmatmul.mubr.f32.gmra.mrb[0].mxu0 %v10495
  %v10568 = vpop.f32.mrb[0].mxu0
  %v10569 = vadd.f32 %v10489, %v10568
  %v10570 = vpop.f32.mrb[0].mxu0
  %10571 = vdwg.mxu0
  %v10572 = vadd.f32 %v10397, %v10564
  %v10573 = vadd.f32 %v10398, %v10569
  %v10574 = vsel %vm750, %v10572, 0.0
  %10575 = vadd.xlane.f32.xlu0 %v10574
  %v10576 = vpop.xlane.xlu0 %10575
  %v10577 = vsel %vm750, %v10573, 0.0
  %10578 = vadd.xlane.f32.xlu0 %v10577
  %v10579 = vpop.xlane.xlu0 %10578
  %v10580 = vmul.f32 %v10576, %v7754
  %v10581 = vmul.f32 %v10579, %v7754
  %v10582 = vsub.f32 %v10572, %v10580
  %v10583 = vsub.f32 %v10573, %v10581
  %v10584 = vmul.f32 %v10582, %v10582
  %v10585 = vmul.f32 %v10583, %v10583
  %v10586 = vsel %vm750, %v10584, 0.0
  %10587 = vadd.xlane.f32.xlu0 %v10586
  %v10588 = vpop.xlane.xlu0 %10587
  %v10589 = vsel %vm750, %v10585, 0.0
  %10590 = vadd.xlane.f32.xlu0 %v10589
  %v10591 = vpop.xlane.xlu0 %10590
  %v10592 = vmul.f32 %v10588, %v7754
  %v10593 = vmul.f32 %v10591, %v7754
  %v10594 = vadd.f32 %v10592, 1e-05
  %v10595 = vadd.f32 %v10593, 1e-05
  %v10596 = vrsqrt.pop %v10594
  %v10597 = vrsqrt.pop %v10595
  %v10598 = vmul.f32 %v10582, %v10596
  %v10599 = vmul.f32 %v10583, %v10597
  %v10600 = vlaneseq
  %v10601 = vshrl.u32 %v10600, 7
  %v10602 = vsub.s32 3, %v10601
  %v10603 = vrot.slane %v7698, %v10602
  %v10604 = vmul.f32 %v10598, %v10603
  %v10605 = vmul.f32 %v10599, %v10603
  %v10606 = vlaneseq
  %v10607 = vshrl.u32 %v10606, 7
  %v10608 = vsub.s32 4, %v10607
  %v10609 = vrot.slane %v7698, %v10608
  %v10610 = vadd.f32 %v10604, %v10609
  %v10611 = vadd.f32 %v10605, %v10609
  %v10612 = vlaneseq
  %v10613 = vshrl.u32 %v10612, 7
  %v10614 = vsub.s32 7, %v10613
  %v10615 = vrot.slane %v7698, %v10614
  %v10617 = vsel %vm750, %v10610, 0
  %v10620 = vsel %vm750, %v10611, 0
  %10622 = vmatprep.subr.mxu0 0.0
  %10623 = vmatpush1.msra.mxu0 %v7738
  %10624 = vmatprep.subr.mxu0 0.0
  %10625 = vmatpush1.msra.mxu0 %v7739
  %10626 = vmatprep.subr.mxu0 0.0
  %10627 = vmatpush1.msra.mxu0 %v7740
  %10628 = vmatprep.subr.mxu0 0.0
  %10629 = vmatpush1.msra.mxu0 %v7741
  %10630 = vmatprep.subr.mxu0 0.0
  %10631 = vmatpush1.msra.mxu0 0.0
  %10632 = vmatprep.subr.mxu0 0.0
  %10633 = vmatpush1.msra.mxu0 0.0
  %10634 = vmatprep.subr.mxu0 0.0
  %10635 = vmatpush1.msra.mxu0 0.0
  %10636 = vmatprep.subr.mxu0 0.0
  %10637 = vmatpush1.msra.mxu0 0.0
  %10638 = vmatprep.subr.mxu0 0.0
  %10639 = vmatpush1.msra.mxu0 0.0
  %10640 = vmatprep.subr.mxu0 0.0
  %10641 = vmatpush1.msra.mxu0 0.0
  %10642 = vmatprep.subr.mxu0 0.0
  %10643 = vmatpush1.msra.mxu0 0.0
  %10644 = vmatprep.subr.mxu0 0.0
  %10645 = vmatpush1.msra.mxu0 0.0
  %10646 = vmatprep.subr.mxu0 0.0
  %10647 = vmatpush1.msra.mxu0 0.0
  %10648 = vmatprep.subr.mxu0 0.0
  %10649 = vmatpush1.msra.mxu0 0.0
  %10650 = vmatprep.subr.mxu0 0.0
  %10651 = vmatpush1.msra.mxu0 0.0
  %10652 = vmatprep.subr.mxu0 0.0
  %10653 = vmatpush1.msra.mxu0 0.0
  %10654 = vmatprep.subr.mxu0 0.0
  %10655 = vmatpush1.msra.mxu0 0.0
  %10656 = vmatprep.subr.mxu0 0.0
  %10657 = vmatpush1.msra.mxu0 0.0
  %10658 = vmatprep.subr.mxu0 0.0
  %10659 = vmatpush1.msra.mxu0 0.0
  %10660 = vmatprep.subr.mxu0 0.0
  %10661 = vmatpush1.msra.mxu0 0.0
  %10662 = vmatprep.subr.mxu0 0.0
  %10663 = vmatpush1.msra.mxu0 0.0
  %10664 = vmatprep.subr.mxu0 0.0
  %10665 = vmatpush1.msra.mxu0 0.0
  %10666 = vmatprep.subr.mxu0 0.0
  %10667 = vmatpush1.msra.mxu0 0.0
  %10668 = vmatprep.subr.mxu0 0.0
  %10669 = vmatpush1.msra.mxu0 0.0
  %10670 = vmatprep.subr.mxu0 0.0
  %10671 = vmatpush1.msra.mxu0 0.0
  %10672 = vmatprep.subr.mxu0 0.0
  %10673 = vmatpush1.msra.mxu0 0.0
  %10674 = vmatprep.subr.mxu0 0.0
  %10675 = vmatpush1.msra.mxu0 0.0
  %10676 = vmatprep.subr.mxu0 0.0
  %10677 = vmatpush1.msra.mxu0 0.0
  %10678 = vmatprep.subr.mxu0 0.0
  %10679 = vmatpush1.msra.mxu0 0.0
  %10680 = vmatprep.subr.mxu0 0.0
  %10681 = vmatpush1.msra.mxu0 0.0
  %10682 = vmatprep.subr.mxu0 0.0
  %10683 = vmatpush1.msra.mxu0 0.0
  %10684 = vmatprep.subr.mxu0 0.0
  %10685 = vmatpush1.msra.mxu0 0.0
  %10686 = vmatprep.mubr.f32.mxu0 0.0
  %10687 = vmatmul.mubr.f32.gmra.mrb[0].mxu0 %v10617
  %v10688 = vpop.f32.mrb[0].mxu0
  %v10689 = vadd.f32 %v10615, %v10688
  %v10690 = vpop.f32.mrb[0].mxu0
  %10691 = vmatprep.mubr.f32.mxu0 0.0
  %10692 = vmatmul.mubr.f32.gmra.mrb[0].mxu0 %v10620
  %v10693 = vpop.f32.mrb[0].mxu0
  %v10694 = vadd.f32 %v10615, %v10693
  %v10695 = vpop.f32.mrb[0].mxu0
  %10696 = vdwg.mxu0
  %10697 = vst [vmem:[%s11] sm:$0xff] %v10689
  %10698 = vst [vmem:[%s11 + $0x8] sm:$0xff] %v10694
  // Predicated region
  $region46: #{transformer_attn_recognizer_forward.1} parent=0 // pred_check
    _
  $region47: #{transformer_attn_recognizer_forward.1} parent=0 // pred_check_branch
    %10700 = sbr.rel (0) target = $region49
  $region48: #{transformer_attn_recognizer_forward.1} parent=0 // pred_region
    _
  $region49: #{transformer_attn_recognizer_forward.1} parent=0 // pred_fallthru
    _
  // Predicated region
  $region50: #{transformer_attn_recognizer_forward.1} parent=0 // pred_check
    _
  $region51: #{transformer_attn_recognizer_forward.1} parent=0 // pred_check_branch
    %10702 = sbr.rel (0) target = $region53
  $region52: #{transformer_attn_recognizer_forward.1} parent=0 // pred_region
    _
  $region53: #{transformer_attn_recognizer_forward.1} parent=0 // pred_fallthru
    _

</llo_original>
